<compile_context>
chip_gen: v5e
topology: v5e:2x2
jax: 0.10.0
libtpu: 0.0.40
codegen_flags: <defaults>
</compile_context>

<pallas_src>
import functools
import math

import jax
import jax.numpy as jnp
from jax import lax
from jax.experimental import pallas as pl
from jax.experimental.pallas import tpu as pltpu

_EPS = 1e-5  # torch nn.LayerNorm default


def _round_up(x, m):
    return (x + m - 1) // m * m


# ----------------------------------------------------------------------------
# in-kernel math helpers (plain jnp/lax ops; traced inside Pallas kernels)
# ----------------------------------------------------------------------------
def _erf(x):
    # Numerical-Recipes erfc rational approximation (|err| < 1.2e-7), built from
    # ops guaranteed to lower on Mosaic (abs/exp/where/mul/add).
    # TODO(synk): replace with lax.erf if/when its Pallas-TPU lowering is confirmed.
    a = jnp.abs(x)
    t = 1.0 / (1.0 + 0.5 * a)
    poly = t * (1.00002368 + t * (0.37409196 + t * (0.09678418 + t * (
        -0.18628806 + t * (0.27886807 + t * (-1.13520398 + t * (
            1.48851587 + t * (-0.82215223 + t * 0.17087277))))))))
    y = t * jnp.exp(-a * a - 1.26551223 + poly)
    return jnp.where(x >= 0.0, 1.0 - y, y - 1.0)


def _gelu_exact(x):
    # matches torch.nn.GELU() (exact erf formulation) to ~1e-7
    return 0.5 * x * (1.0 + _erf(x * (1.0 / math.sqrt(2.0))))


def _layernorm(x, g, b):
    mu = jnp.mean(x, axis=-1, keepdims=True)
    var = jnp.mean((x - mu) * (x - mu), axis=-1, keepdims=True)
    return (x - mu) * lax.rsqrt(var + _EPS) * g + b


def _rotate_half(x):
    # rotate_half(x): out[2k] = -x[2k+1], out[2k+1] = x[2k]
    # Pair swap via two lane rolls (XLU) + a lane-parity select (VPU).
    # Pairs never straddle head boundaries since dim_head is even, so applying
    # it to the full heads*dh lane axis equals the per-head rotate_half.
    d = x.shape[1]
    up = pltpu.roll(x, shift=d - 1, axis=1)   # up[i] = x[(i + 1) % d]
    dn = pltpu.roll(x, shift=1, axis=1)       # dn[i] = x[(i - 1) % d]
    lane = lax.broadcasted_iota(jnp.int32, x.shape, 1)
    return jnp.where(lane % 2 == 0, -up, dn)


def _rope(x, cos, sin):
    return x * cos + _rotate_half(x) * sin


# ----------------------------------------------------------------------------
# Pallas kernels
# ----------------------------------------------------------------------------
def _attn_block_kernel(x_ref, g_ref, b_ref, wqkv_ref, wout_ref, bout_ref,
                       cos_ref, sin_ref, o_ref, *, heads, causal, scale):
    """Fused LN -> QKV -> RoPE -> attention (all heads) -> out-proj -> +residual.

    x_ref / o_ref: (S, d) float32 slab of one attention group.
    wqkv_ref (d, 3d) / wout_ref (d, d): bf16, VMEM-resident (constant index_map).
    cos_ref / sin_ref: (S, d) rotary tables already tiled across heads.
    """
    x = x_ref[...]                                   # (S, d) f32
    S, d = x.shape
    dh = d // heads

    y = _layernorm(x, g_ref[...], b_ref[...])
    qkv = jnp.dot(y.astype(jnp.bfloat16), wqkv_ref[...],
                  preferred_element_type=jnp.float32)           # (S, 3d) f32
    cos = cos_ref[...]
    sin = sin_ref[...]
    q = _rope(qkv[:, :d], cos, sin)
    k = _rope(qkv[:, d:2 * d], cos, sin)
    v = qkv[:, 2 * d:]

    if causal:
        row = lax.broadcasted_iota(jnp.int32, (S, S), 0)
        col = lax.broadcasted_iota(jnp.int32, (S, S), 1)
        causal_ok = col <= row

    outs = []
    for h in range(heads):                           # static, small unroll
        sl = slice(h * dh, (h + 1) * dh)
        qh = q[:, sl].astype(jnp.bfloat16)
        kh = k[:, sl].astype(jnp.bfloat16)
        vh = v[:, sl].astype(jnp.bfloat16)
        s = lax.dot_general(qh, kh, (((1,), (1,)), ((), ())),
                            preferred_element_type=jnp.float32) * scale
        if causal:
            s = jnp.where(causal_ok, s, -1e30)       # f32 mask constant
        m = jnp.max(s, axis=-1, keepdims=True)
        p = jnp.exp(s - m)
        denom = jnp.sum(p, axis=-1, keepdims=True)
        p = p * pl.reciprocal(denom, approx=True)    # EUP slot, VALU-free
        outs.append(lax.dot_general(p.astype(jnp.bfloat16), vh,
                                    (((1,), (0,)), ((), ())),
                                    preferred_element_type=jnp.float32))
    attn = jnp.concatenate(outs, axis=-1)            # (S, d) lane-dense
    o = jnp.dot(attn.astype(jnp.bfloat16), wout_ref[...],
                preferred_element_type=jnp.float32) + bout_ref[...]
    o_ref[...] = x + o                               # residual fused in


def _mlp_res_kernel(x_ref, g_ref, b_ref, w1_ref, b1_ref, w2_ref, b2_ref, o_ref):
    """Fused LayerNorm -> Linear(d,4d) -> GELU -> Linear(4d,d) -> +residual."""
    x = x_ref[...]                                   # (tm, d) f32
    y = _layernorm(x, g_ref[...], b_ref[...])
    h = jnp.dot(y.astype(jnp.bfloat16), w1_ref[...],
                preferred_element_type=jnp.float32) + b1_ref[...]
    h = _gelu_exact(h)
    o = jnp.dot(h.astype(jnp.bfloat16), w2_ref[...],
                preferred_element_type=jnp.float32) + b2_ref[...]
    o_ref[...] = x + o


# ----------------------------------------------------------------------------
# pallas_call wrappers
# ----------------------------------------------------------------------------
def fused_axial_attention(x4, gamma, beta, wqkv, wout, bout, cos, sin, *,
                          heads, causal):
    """x4: (G0, G1, S, d); fused pre-norm axial attention + residual over S."""
    G0, G1, S, d = x4.shape
    dh = d // heads
    kernel = functools.partial(_attn_block_kernel, heads=heads, causal=causal,
                               scale=1.0 / math.sqrt(dh))
    row_spec = pl.BlockSpec((None, None, S, d), lambda i, j: (i, j, 0, 0))

    def const(shape):                                # VMEM-resident operands
        return pl.BlockSpec(shape, lambda i, j: (0, 0))

    return pl.pallas_call(
        kernel,
        out_shape=jax.ShapeDtypeStruct(x4.shape, x4.dtype),
        grid=(G0, G1),
        in_specs=[
            row_spec,
            const((1, d)), const((1, d)),            # LN gamma / beta
            const((d, 3 * d)),                       # W_qkv (no bias in to_qkv)
            const((d, d)), const((1, d)),            # W_out, b_out
            const((S, d)), const((S, d)),            # cos / sin (tiled over heads)
        ],
        out_specs=row_spec,
        compiler_params=pltpu.CompilerParams(
            dimension_semantics=("parallel", "parallel")),
    )(x4, gamma.reshape(1, d), beta.reshape(1, d),
      wqkv.astype(jnp.bfloat16),
      wout.astype(jnp.bfloat16), bout.reshape(1, d),
      cos, sin)


def fused_mlp_residual(x2, gamma, beta, w1, b1, w2, b2):
    """x2: (M, d) rows; fused MLP + residual, tiled & pipelined over rows."""
    M, d = x2.shape
    d4 = w1.shape[1]
    # Row tile: large enough to keep the HBM/MXU pipeline busy, small enough to
    # double-buffer comfortably inside v7x's 64 MiB VMEM (d=128: ~1.5 MiB/step).
    tm = min(512, _round_up(M, 8))
    Mp = _round_up(M, tm)
    xp = x2 if Mp == M else jnp.pad(x2, ((0, Mp - M), (0, 0)))

    row_spec = pl.BlockSpec((tm, d), lambda i: (i, 0))

    def const(shape):
        return pl.BlockSpec(shape, lambda i: (0, 0))

    out = pl.pallas_call(
        _mlp_res_kernel,
        out_shape=jax.ShapeDtypeStruct((Mp, d), x2.dtype),
        grid=(Mp // tm,),
        in_specs=[row_spec,
                  const((1, d)), const((1, d)),      # LN gamma / beta
                  const((d, d4)), const((1, d4)),    # W1, b1
                  const((d4, d)), const((1, d))],    # W2, b2
        out_specs=row_spec,
        compiler_params=pltpu.CompilerParams(dimension_semantics=("parallel",)),
    )(xp, gamma.reshape(1, d), beta.reshape(1, d),
      w1.astype(jnp.bfloat16), b1.reshape(1, d4),
      w2.astype(jnp.bfloat16), b2.reshape(1, d))
    return out if Mp == M else out[:M]


# ----------------------------------------------------------------------------
# rotary frequency tables (glue; matches rotary_embedding_torch), pre-tiled
# across heads so the kernel applies RoPE on the full lane-dense (S, d) slab.
# ----------------------------------------------------------------------------
def spatial_rotary_tables(H, W, dh, heads):
    # RotaryEmbedding(dim=dh//2, freqs_for='pixel', max_freq=10).get_axial_freqs(H, W)
    sub = dh // 2
    base = jnp.linspace(1.0, 10.0 / 2.0, sub // 2) * math.pi     # (sub//2,)

    def axis(steps):
        pos = jnp.linspace(-1.0, 1.0, steps)
        f = pos[:, None] * base[None, :]
        return jnp.repeat(f, 2, axis=-1)                         # (steps, sub)

    fh = jnp.broadcast_to(axis(H)[:, None, :], (H, W, sub))
    fw = jnp.broadcast_to(axis(W)[None, :, :], (H, W, sub))
    freqs = jnp.concatenate([fh, fw], axis=-1).reshape(H * W, dh)
    cos = jnp.tile(jnp.cos(freqs), (1, heads)).astype(jnp.float32)
    sin = jnp.tile(jnp.sin(freqs), (1, heads)).astype(jnp.float32)
    return cos, sin                                              # (H*W, heads*dh)


def temporal_rotary_tables(T, dh, heads):
    # RotaryEmbedding(dim=dh, freqs_for='lang', theta=10000) over positions 0..T-1
    inv = 1.0 / (10000.0 ** (jnp.arange(0, dh, 2, dtype=jnp.float32) / dh))
    pos = jnp.arange(T, dtype=jnp.float32)
    f = jnp.repeat(pos[:, None] * inv[None, :], 2, axis=-1)      # (T, dh)
    cos = jnp.tile(jnp.cos(f), (1, heads)).astype(jnp.float32)
    sin = jnp.tile(jnp.sin(f), (1, heads)).astype(jnp.float32)
    return cos, sin                                              # (T, heads*dh)


# ----------------------------------------------------------------------------
# SpatioTemporalBlock forward
# ----------------------------------------------------------------------------
def spatio_temporal_block(params, x, *, heads):
    B, T, H, W, d = x.shape
    HW = H * W
    dh = d // heads
    assert d % heads == 0 and dh % 4 == 0

    cos_sp, sin_sp = spatial_rotary_tables(H, W, dh, heads)
    cos_tp, sin_tp = temporal_rotary_tables(T, dh, heads)

    # --- spatial axial attention (+ residual): groups (B, T), attend over H*W
    x_sp = fused_axial_attention(
        x.reshape(B, T, HW, d),
        params['ln1_g'], params['ln1_b'],
        params['sp_qkv_w'], params['sp_out_w'], params['sp_out_b'],
        cos_sp, sin_sp, heads=heads, causal=False)

    # --- temporal axial attention (+ residual): groups (B, H*W), causal over T
    x_tp = jnp.transpose(x_sp, (0, 2, 1, 3))                     # (B, HW, T, d)
    x_tp = fused_axial_attention(
        x_tp,
        params['ln2_g'], params['ln2_b'],
        params['tp_qkv_w'], params['tp_out_w'], params['tp_out_b'],
        cos_tp, sin_tp, heads=heads, causal=True)
    x2 = jnp.transpose(x_tp, (0, 2, 1, 3)).reshape(B * T * HW, d)

    # --- MLP (LayerNorm -> Linear(d,4d) -> GELU -> Linear(4d,d)) + residual
    x2 = fused_mlp_residual(x2, params['ln3_g'], params['ln3_b'],
                            params['mlp_w1'], params['mlp_b1'],
                            params['mlp_w2'], params['mlp_b2'])
    return x2.reshape(B, T, H, W, d)


# ----------------------------------------------------------------------------
# deterministic synthetic parameters
# ----------------------------------------------------------------------------
def init_block_params(key, d):
    def normal(k, shape, scale=0.02):
        return scale * jax.random.normal(k, shape, dtype=jnp.float32)

    keys = iter(jax.random.split(key, 8))
    return {
        'ln1_g': jnp.ones((d,), jnp.float32), 'ln1_b': jnp.zeros((d,), jnp.float32),
        'ln2_g': jnp.ones((d,), jnp.float32), 'ln2_b': jnp.zeros((d,), jnp.float32),
        'ln3_g': jnp.ones((d,), jnp.float32), 'ln3_b': jnp.zeros((d,), jnp.float32),
        'sp_qkv_w': normal(next(keys), (d, 3 * d)),   # to_qkv has no bias
        'sp_out_w': normal(next(keys), (d, d)),
        'sp_out_b': jnp.zeros((d,), jnp.float32),
        'tp_qkv_w': normal(next(keys), (d, 3 * d)),
        'tp_out_w': normal(next(keys), (d, d)),
        'tp_out_b': jnp.zeros((d,), jnp.float32),
        'mlp_w1': normal(next(keys), (d, 4 * d)),
        'mlp_b1': jnp.zeros((4 * d,), jnp.float32),
        'mlp_w2': normal(next(keys), (4 * d, d)),
        'mlp_b2': jnp.zeros((d,), jnp.float32),
    }


if __name__ == "__main__":
    d, heads = 128, 4            # dim_head = d // heads = 32
    B, T, H, W = 2, 4, 4, 4

    root = jax.random.PRNGKey(0)
    pkey, xkey = jax.random.split(root)
    params = init_block_params(pkey, d)
    x = jax.random.normal(xkey, (B, T, H, W, d), dtype=jnp.float32)

    fwd = jax.jit(functools.partial(spatio_temporal_block, heads=heads))
    y = jax.block_until_ready(fwd(params, x))

    assert y.shape == (B, T, H, W, d)
    assert bool(jnp.all(jnp.isfinite(y)))
    print("KERNEL_OK")
</pallas_src>

<mosaic_0001>
module attributes {stable_mosaic.version = 11 : i64} {
  func.func @_attn_block_kernel(%arg0: i32, %arg1: i32, %arg2: memref<1x1x4x128xf32, #tpu.memory_space<vmem>>, %arg3: memref<1x128xf32, #tpu.memory_space<vmem>>, %arg4: memref<1x128xf32, #tpu.memory_space<vmem>>, %arg5: memref<128x384xbf16, #tpu.memory_space<vmem>>, %arg6: memref<128x128xbf16, #tpu.memory_space<vmem>>, %arg7: memref<1x128xf32, #tpu.memory_space<vmem>>, %arg8: memref<4x128xf32, #tpu.memory_space<vmem>>, %arg9: memref<4x128xf32, #tpu.memory_space<vmem>>, %arg10: memref<1x1x4x128xf32, #tpu.memory_space<vmem>>) attributes {dimension_semantics = [#tpu.dimension_semantics<parallel>, #tpu.dimension_semantics<parallel>], iteration_bounds = array<i64: 2, 16>, scalar_prefetch = 0 : i64, scratch_operands = 0 : i64, tpu.core_type = #tpu.core_type<tc>, window_params = [{transform_indices = @transform_0, window_bounds = array<i64: 1, 1, 4, 128>}, {pipeline_mode = #tpu.pipeline_mode<synchronous>, transform_indices = @transform_1, window_bounds = array<i64: 1, 128>}, {pipeline_mode = #tpu.pipeline_mode<synchronous>, transform_indices = @transform_2, window_bounds = array<i64: 1, 128>}, {pipeline_mode = #tpu.pipeline_mode<synchronous>, transform_indices = @transform_3, window_bounds = array<i64: 128, 384>}, {pipeline_mode = #tpu.pipeline_mode<synchronous>, transform_indices = @transform_4, window_bounds = array<i64: 128, 128>}, {pipeline_mode = #tpu.pipeline_mode<synchronous>, transform_indices = @transform_5, window_bounds = array<i64: 1, 128>}, {pipeline_mode = #tpu.pipeline_mode<synchronous>, transform_indices = @transform_6, window_bounds = array<i64: 4, 128>}, {pipeline_mode = #tpu.pipeline_mode<synchronous>, transform_indices = @transform_7, window_bounds = array<i64: 4, 128>}, {transform_indices = @transform_8, window_bounds = array<i64: 1, 1, 4, 128>}]} {
    %c0 = arith.constant 0 : index
    %c0_0 = arith.constant 0 : index
    %c0_1 = arith.constant 0 : index
    %c0_2 = arith.constant 0 : index
    %0 = vector.load %arg2[%c0, %c0_0, %c0_1, %c0_2] : memref<1x1x4x128xf32, #tpu.memory_space<vmem>>, vector<1x1x4x128xf32>
    %1 = vector.shape_cast %0 : vector<1x1x4x128xf32> to vector<4x128xf32>
    %c0_3 = arith.constant 0 : index
    %c0_4 = arith.constant 0 : index
    %2 = vector.load %arg3[%c0_3, %c0_4] : memref<1x128xf32, #tpu.memory_space<vmem>>, vector<1x128xf32>
    %c0_5 = arith.constant 0 : index
    %c0_6 = arith.constant 0 : index
    %3 = vector.load %arg4[%c0_5, %c0_6] : memref<1x128xf32, #tpu.memory_space<vmem>>, vector<1x128xf32>
    %cst = arith.constant dense<0.000000e+00> : vector<4xf32>
    %4 = vector.multi_reduction <add>, %1, %cst [1] : vector<4x128xf32> to vector<4xf32>
    %5 = vector.shape_cast %4 : vector<4xf32> to vector<4x1xf32>
    %cst_7 = arith.constant 1.280000e+02 : f32
    %6 = vector.broadcast %cst_7 : f32 to vector<4x1xf32>
    %7 = arith.divf %5, %6 : vector<4x1xf32>
    %8 = vector.broadcast %7 : vector<4x1xf32> to vector<4x128xf32>
    %9 = arith.subf %1, %8 : vector<4x128xf32>
    %10 = vector.broadcast %7 : vector<4x1xf32> to vector<4x128xf32>
    %11 = arith.subf %1, %10 : vector<4x128xf32>
    %12 = arith.mulf %9, %11 : vector<4x128xf32>
    %cst_8 = arith.constant dense<0.000000e+00> : vector<4xf32>
    %13 = vector.multi_reduction <add>, %12, %cst_8 [1] : vector<4x128xf32> to vector<4xf32>
    %14 = vector.shape_cast %13 : vector<4xf32> to vector<4x1xf32>
    %cst_9 = arith.constant 1.280000e+02 : f32
    %15 = vector.broadcast %cst_9 : f32 to vector<4x1xf32>
    %16 = arith.divf %14, %15 : vector<4x1xf32>
    %17 = vector.broadcast %7 : vector<4x1xf32> to vector<4x128xf32>
    %18 = arith.subf %1, %17 : vector<4x128xf32>
    %cst_10 = arith.constant 9.99999974E-6 : f32
    %19 = vector.broadcast %cst_10 : f32 to vector<4x1xf32>
    %20 = arith.addf %16, %19 : vector<4x1xf32>
    %21 = math.rsqrt %20 : vector<4x1xf32>
    %22 = vector.broadcast %21 : vector<4x1xf32> to vector<4x128xf32>
    %23 = arith.mulf %18, %22 : vector<4x128xf32>
    %24 = vector.broadcast %2 : vector<1x128xf32> to vector<4x128xf32>
    %25 = arith.mulf %23, %24 : vector<4x128xf32>
    %26 = vector.broadcast %3 : vector<1x128xf32> to vector<4x128xf32>
    %27 = arith.addf %25, %26 : vector<4x128xf32>
    %28 = arith.truncf %27 : vector<4x128xf32> to vector<4x128xbf16>
    %c0_11 = arith.constant 0 : index
    %c0_12 = arith.constant 0 : index
    %29 = vector.load %arg5[%c0_11, %c0_12] : memref<128x384xbf16, #tpu.memory_space<vmem>>, vector<128x384xbf16>
    %cst_13 = arith.constant dense<0.000000e+00> : vector<4x384xf32>
    %30 = tpu.matmul %28, %29, %cst_13 {dimension_numbers = #tpu.dot_dimension_numbers<[1], [0], [0], [1], [0, 0, 1, 1], [], []>} : vector<4x128xbf16>, vector<128x384xbf16>, vector<4x384xf32> -> vector<4x384xf32>
    %c0_14 = arith.constant 0 : index
    %c0_15 = arith.constant 0 : index
    %31 = vector.load %arg8[%c0_14, %c0_15] : memref<4x128xf32, #tpu.memory_space<vmem>>, vector<4x128xf32>
    %c0_16 = arith.constant 0 : index
    %c0_17 = arith.constant 0 : index
    %32 = vector.load %arg9[%c0_16, %c0_17] : memref<4x128xf32, #tpu.memory_space<vmem>>, vector<4x128xf32>
    %33 = vector.extract_strided_slice %30 {offsets = [0, 0], sizes = [4, 128], strides = [1, 1]} : vector<4x384xf32> to vector<4x128xf32>
    %34 = arith.mulf %33, %31 : vector<4x128xf32>
    %c127_i32 = arith.constant 127 : i32
    %35 = tpu.dynamic_rotate %33 by %c127_i32 dim 1 : vector<4x128xf32>, i32 -> vector<4x128xf32>
    %c1_i32 = arith.constant 1 : i32
    %36 = tpu.dynamic_rotate %33 by %c1_i32 dim 1 : vector<4x128xf32>, i32 -> vector<4x128xf32>
    %37 = tpu.iota {dimensions = array<i32: 1>} : vector<4x128xi32>
    %c2_i32 = arith.constant 2 : i32
    %c0_i32 = arith.constant 0 : i32
    %38 = arith.cmpi eq, %c2_i32, %c0_i32 : i32
    %c1_i32_18 = arith.constant 1 : i32
    %39 = arith.select %38, %c1_i32_18, %c2_i32 : i32
    %40 = vector.broadcast %39 : i32 to vector<4x128xi32>
    %41 = arith.remsi %37, %40 : vector<4x128xi32>
    %c0_i32_19 = arith.constant 0 : i32
    %42 = vector.broadcast %c0_i32_19 : i32 to vector<4x128xi32>
    %43 = arith.cmpi ne, %41, %42 : vector<4x128xi32>
    %c0_i32_20 = arith.constant 0 : i32
    %44 = vector.broadcast %c0_i32_20 : i32 to vector<4x128xi32>
    %45 = arith.cmpi slt, %41, %44 : vector<4x128xi32>
    %c0_i32_21 = arith.constant 0 : i32
    %46 = arith.cmpi slt, %39, %c0_i32_21 : i32
    %47 = vector.broadcast %46 : i1 to vector<4x128xi1>
    %48 = vector.broadcast %47 : vector<4x128xi1> to vector<4x128xi1>
    %49 = arith.xori %45, %48 : vector<4x128xi1>
    %50 = arith.andi %49, %43 : vector<4x128xi1>
    %51 = vector.broadcast %39 : i32 to vector<4x128xi32>
    %52 = arith.addi %41, %51 : vector<4x128xi32>
    %53 = arith.select %50, %52, %41 : vector<4x128xi1>, vector<4x128xi32>
    %c0_i32_22 = arith.constant 0 : i32
    %54 = vector.broadcast %c0_i32_22 : i32 to vector<4x128xi32>
    %55 = arith.cmpi eq, %53, %54 : vector<4x128xi32>
    %cst_23 = arith.constant 0.000000e+00 : f32
    %56 = vector.broadcast %cst_23 : f32 to vector<4x128xf32>
    %57 = arith.subf %56, %35 : vector<4x128xf32>
    %58 = arith.select %55, %57, %36 : vector<4x128xi1>, vector<4x128xf32>
    %59 = arith.mulf %58, %32 : vector<4x128xf32>
    %60 = arith.addf %34, %59 : vector<4x128xf32>
    %61 = vector.extract_strided_slice %30 {offsets = [0, 128], sizes = [4, 128], strides = [1, 1]} : vector<4x384xf32> to vector<4x128xf32>
    %62 = arith.mulf %61, %31 : vector<4x128xf32>
    %c127_i32_24 = arith.constant 127 : i32
    %63 = tpu.dynamic_rotate %61 by %c127_i32_24 dim 1 : vector<4x128xf32>, i32 -> vector<4x128xf32>
    %c1_i32_25 = arith.constant 1 : i32
    %64 = tpu.dynamic_rotate %61 by %c1_i32_25 dim 1 : vector<4x128xf32>, i32 -> vector<4x128xf32>
    %65 = tpu.iota {dimensions = array<i32: 1>} : vector<4x128xi32>
    %c2_i32_26 = arith.constant 2 : i32
    %c0_i32_27 = arith.constant 0 : i32
    %66 = arith.cmpi eq, %c2_i32_26, %c0_i32_27 : i32
    %c1_i32_28 = arith.constant 1 : i32
    %67 = arith.select %66, %c1_i32_28, %c2_i32_26 : i32
    %68 = vector.broadcast %67 : i32 to vector<4x128xi32>
    %69 = arith.remsi %65, %68 : vector<4x128xi32>
    %c0_i32_29 = arith.constant 0 : i32
    %70 = vector.broadcast %c0_i32_29 : i32 to vector<4x128xi32>
    %71 = arith.cmpi ne, %69, %70 : vector<4x128xi32>
    %c0_i32_30 = arith.constant 0 : i32
    %72 = vector.broadcast %c0_i32_30 : i32 to vector<4x128xi32>
    %73 = arith.cmpi slt, %69, %72 : vector<4x128xi32>
    %c0_i32_31 = arith.constant 0 : i32
    %74 = arith.cmpi slt, %67, %c0_i32_31 : i32
    %75 = vector.broadcast %74 : i1 to vector<4x128xi1>
    %76 = vector.broadcast %75 : vector<4x128xi1> to vector<4x128xi1>
    %77 = arith.xori %73, %76 : vector<4x128xi1>
    %78 = arith.andi %77, %71 : vector<4x128xi1>
    %79 = vector.broadcast %67 : i32 to vector<4x128xi32>
    %80 = arith.addi %69, %79 : vector<4x128xi32>
    %81 = arith.select %78, %80, %69 : vector<4x128xi1>, vector<4x128xi32>
    %c0_i32_32 = arith.constant 0 : i32
    %82 = vector.broadcast %c0_i32_32 : i32 to vector<4x128xi32>
    %83 = arith.cmpi eq, %81, %82 : vector<4x128xi32>
    %cst_33 = arith.constant 0.000000e+00 : f32
    %84 = vector.broadcast %cst_33 : f32 to vector<4x128xf32>
    %85 = arith.subf %84, %63 : vector<4x128xf32>
    %86 = arith.select %83, %85, %64 : vector<4x128xi1>, vector<4x128xf32>
    %87 = arith.mulf %86, %32 : vector<4x128xf32>
    %88 = arith.addf %62, %87 : vector<4x128xf32>
    %89 = vector.extract_strided_slice %30 {offsets = [0, 256], sizes = [4, 128], strides = [1, 1]} : vector<4x384xf32> to vector<4x128xf32>
    %90 = tpu.iota {dimensions = array<i32: 0>} : vector<4x4xi32>
    %91 = tpu.iota {dimensions = array<i32: 1>} : vector<4x4xi32>
    %92 = arith.cmpi sle, %91, %90 : vector<4x4xi32>
    %93 = vector.extract_strided_slice %60 {offsets = [0, 0], sizes = [4, 32], strides = [1, 1]} : vector<4x128xf32> to vector<4x32xf32>
    %94 = arith.truncf %93 : vector<4x32xf32> to vector<4x32xbf16>
    %95 = vector.extract_strided_slice %88 {offsets = [0, 0], sizes = [4, 32], strides = [1, 1]} : vector<4x128xf32> to vector<4x32xf32>
    %96 = arith.truncf %95 : vector<4x32xf32> to vector<4x32xbf16>
    %97 = vector.extract_strided_slice %89 {offsets = [0, 0], sizes = [4, 32], strides = [1, 1]} : vector<4x128xf32> to vector<4x32xf32>
    %98 = arith.truncf %97 : vector<4x32xf32> to vector<4x32xbf16>
    %cst_34 = arith.constant dense<0.000000e+00> : vector<4x4xf32>
    %99 = tpu.matmul %94, %96, %cst_34 {dimension_numbers = #tpu.dot_dimension_numbers<[1], [1], [0], [0], [0, 0, 1, 0], [], []>} : vector<4x32xbf16>, vector<4x32xbf16>, vector<4x4xf32> -> vector<4x4xf32>
    %cst_35 = arith.constant 0.176776692 : f32
    %100 = vector.broadcast %cst_35 : f32 to vector<4x4xf32>
    %101 = arith.mulf %99, %100 : vector<4x4xf32>
    %cst_36 = arith.constant -1.000000e+30 : f32
    %102 = vector.broadcast %cst_36 : f32 to vector<4x4xf32>
    %103 = arith.select %92, %101, %102 : vector<4x4xi1>, vector<4x4xf32>
    %cst_37 = arith.constant dense<0xFF800000> : vector<4xf32>
    %104 = vector.multi_reduction <maximumf>, %103, %cst_37 [1] : vector<4x4xf32> to vector<4xf32>
    %105 = vector.shape_cast %104 : vector<4xf32> to vector<4x1xf32>
    %106 = vector.broadcast %105 : vector<4x1xf32> to vector<4x4xf32>
    %107 = arith.subf %103, %106 : vector<4x4xf32>
    %108 = math.exp %107 : vector<4x4xf32>
    %cst_38 = arith.constant dense<0.000000e+00> : vector<4xf32>
    %109 = vector.multi_reduction <add>, %108, %cst_38 [1] : vector<4x4xf32> to vector<4xf32>
    %110 = vector.shape_cast %109 : vector<4xf32> to vector<4x1xf32>
    %111 = tpu.reciprocal %110 {approx = true} : vector<4x1xf32> -> vector<4x1xf32>
    %112 = vector.broadcast %111 : vector<4x1xf32> to vector<4x4xf32>
    %113 = arith.mulf %108, %112 : vector<4x4xf32>
    %114 = arith.truncf %113 : vector<4x4xf32> to vector<4x4xbf16>
    %cst_39 = arith.constant dense<0.000000e+00> : vector<4x32xf32>
    %115 = tpu.matmul %114, %98, %cst_39 {dimension_numbers = #tpu.dot_dimension_numbers<[1], [0], [0], [1], [0, 0, 1, 1], [], []>} : vector<4x4xbf16>, vector<4x32xbf16>, vector<4x32xf32> -> vector<4x32xf32>
    %116 = vector.extract_strided_slice %60 {offsets = [0, 32], sizes = [4, 32], strides = [1, 1]} : vector<4x128xf32> to vector<4x32xf32>
    %117 = arith.truncf %116 : vector<4x32xf32> to vector<4x32xbf16>
    %118 = vector.extract_strided_slice %88 {offsets = [0, 32], sizes = [4, 32], strides = [1, 1]} : vector<4x128xf32> to vector<4x32xf32>
    %119 = arith.truncf %118 : vector<4x32xf32> to vector<4x32xbf16>
    %120 = vector.extract_strided_slice %89 {offsets = [0, 32], sizes = [4, 32], strides = [1, 1]} : vector<4x128xf32> to vector<4x32xf32>
    %121 = arith.truncf %120 : vector<4x32xf32> to vector<4x32xbf16>
    %cst_40 = arith.constant dense<0.000000e+00> : vector<4x4xf32>
    %122 = tpu.matmul %117, %119, %cst_40 {dimension_numbers = #tpu.dot_dimension_numbers<[1], [1], [0], [0], [0, 0, 1, 0], [], []>} : vector<4x32xbf16>, vector<4x32xbf16>, vector<4x4xf32> -> vector<4x4xf32>
    %cst_41 = arith.constant 0.176776692 : f32
    %123 = vector.broadcast %cst_41 : f32 to vector<4x4xf32>
    %124 = arith.mulf %122, %123 : vector<4x4xf32>
    %cst_42 = arith.constant -1.000000e+30 : f32
    %125 = vector.broadcast %cst_42 : f32 to vector<4x4xf32>
    %126 = arith.select %92, %124, %125 : vector<4x4xi1>, vector<4x4xf32>
    %cst_43 = arith.constant dense<0xFF800000> : vector<4xf32>
    %127 = vector.multi_reduction <maximumf>, %126, %cst_43 [1] : vector<4x4xf32> to vector<4xf32>
    %128 = vector.shape_cast %127 : vector<4xf32> to vector<4x1xf32>
    %129 = vector.broadcast %128 : vector<4x1xf32> to vector<4x4xf32>
    %130 = arith.subf %126, %129 : vector<4x4xf32>
    %131 = math.exp %130 : vector<4x4xf32>
    %cst_44 = arith.constant dense<0.000000e+00> : vector<4xf32>
    %132 = vector.multi_reduction <add>, %131, %cst_44 [1] : vector<4x4xf32> to vector<4xf32>
    %133 = vector.shape_cast %132 : vector<4xf32> to vector<4x1xf32>
    %134 = tpu.reciprocal %133 {approx = true} : vector<4x1xf32> -> vector<4x1xf32>
    %135 = vector.broadcast %134 : vector<4x1xf32> to vector<4x4xf32>
    %136 = arith.mulf %131, %135 : vector<4x4xf32>
    %137 = arith.truncf %136 : vector<4x4xf32> to vector<4x4xbf16>
    %cst_45 = arith.constant dense<0.000000e+00> : vector<4x32xf32>
    %138 = tpu.matmul %137, %121, %cst_45 {dimension_numbers = #tpu.dot_dimension_numbers<[1], [0], [0], [1], [0, 0, 1, 1], [], []>} : vector<4x4xbf16>, vector<4x32xbf16>, vector<4x32xf32> -> vector<4x32xf32>
    %139 = vector.extract_strided_slice %60 {offsets = [0, 64], sizes = [4, 32], strides = [1, 1]} : vector<4x128xf32> to vector<4x32xf32>
    %140 = arith.truncf %139 : vector<4x32xf32> to vector<4x32xbf16>
    %141 = vector.extract_strided_slice %88 {offsets = [0, 64], sizes = [4, 32], strides = [1, 1]} : vector<4x128xf32> to vector<4x32xf32>
    %142 = arith.truncf %141 : vector<4x32xf32> to vector<4x32xbf16>
    %143 = vector.extract_strided_slice %89 {offsets = [0, 64], sizes = [4, 32], strides = [1, 1]} : vector<4x128xf32> to vector<4x32xf32>
    %144 = arith.truncf %143 : vector<4x32xf32> to vector<4x32xbf16>
    %cst_46 = arith.constant dense<0.000000e+00> : vector<4x4xf32>
    %145 = tpu.matmul %140, %142, %cst_46 {dimension_numbers = #tpu.dot_dimension_numbers<[1], [1], [0], [0], [0, 0, 1, 0], [], []>} : vector<4x32xbf16>, vector<4x32xbf16>, vector<4x4xf32> -> vector<4x4xf32>
    %cst_47 = arith.constant 0.176776692 : f32
    %146 = vector.broadcast %cst_47 : f32 to vector<4x4xf32>
    %147 = arith.mulf %145, %146 : vector<4x4xf32>
    %cst_48 = arith.constant -1.000000e+30 : f32
    %148 = vector.broadcast %cst_48 : f32 to vector<4x4xf32>
    %149 = arith.select %92, %147, %148 : vector<4x4xi1>, vector<4x4xf32>
    %cst_49 = arith.constant dense<0xFF800000> : vector<4xf32>
    %150 = vector.multi_reduction <maximumf>, %149, %cst_49 [1] : vector<4x4xf32> to vector<4xf32>
    %151 = vector.shape_cast %150 : vector<4xf32> to vector<4x1xf32>
    %152 = vector.broadcast %151 : vector<4x1xf32> to vector<4x4xf32>
    %153 = arith.subf %149, %152 : vector<4x4xf32>
    %154 = math.exp %153 : vector<4x4xf32>
    %cst_50 = arith.constant dense<0.000000e+00> : vector<4xf32>
    %155 = vector.multi_reduction <add>, %154, %cst_50 [1] : vector<4x4xf32> to vector<4xf32>
    %156 = vector.shape_cast %155 : vector<4xf32> to vector<4x1xf32>
    %157 = tpu.reciprocal %156 {approx = true} : vector<4x1xf32> -> vector<4x1xf32>
    %158 = vector.broadcast %157 : vector<4x1xf32> to vector<4x4xf32>
    %159 = arith.mulf %154, %158 : vector<4x4xf32>
    %160 = arith.truncf %159 : vector<4x4xf32> to vector<4x4xbf16>
    %cst_51 = arith.constant dense<0.000000e+00> : vector<4x32xf32>
    %161 = tpu.matmul %160, %144, %cst_51 {dimension_numbers = #tpu.dot_dimension_numbers<[1], [0], [0], [1], [0, 0, 1, 1], [], []>} : vector<4x4xbf16>, vector<4x32xbf16>, vector<4x32xf32> -> vector<4x32xf32>
    %162 = vector.extract_strided_slice %60 {offsets = [0, 96], sizes = [4, 32], strides = [1, 1]} : vector<4x128xf32> to vector<4x32xf32>
    %163 = arith.truncf %162 : vector<4x32xf32> to vector<4x32xbf16>
    %164 = vector.extract_strided_slice %88 {offsets = [0, 96], sizes = [4, 32], strides = [1, 1]} : vector<4x128xf32> to vector<4x32xf32>
    %165 = arith.truncf %164 : vector<4x32xf32> to vector<4x32xbf16>
    %166 = vector.extract_strided_slice %89 {offsets = [0, 96], sizes = [4, 32], strides = [1, 1]} : vector<4x128xf32> to vector<4x32xf32>
    %167 = arith.truncf %166 : vector<4x32xf32> to vector<4x32xbf16>
    %cst_52 = arith.constant dense<0.000000e+00> : vector<4x4xf32>
    %168 = tpu.matmul %163, %165, %cst_52 {dimension_numbers = #tpu.dot_dimension_numbers<[1], [1], [0], [0], [0, 0, 1, 0], [], []>} : vector<4x32xbf16>, vector<4x32xbf16>, vector<4x4xf32> -> vector<4x4xf32>
    %cst_53 = arith.constant 0.176776692 : f32
    %169 = vector.broadcast %cst_53 : f32 to vector<4x4xf32>
    %170 = arith.mulf %168, %169 : vector<4x4xf32>
    %cst_54 = arith.constant -1.000000e+30 : f32
    %171 = vector.broadcast %cst_54 : f32 to vector<4x4xf32>
    %172 = arith.select %92, %170, %171 : vector<4x4xi1>, vector<4x4xf32>
    %cst_55 = arith.constant dense<0xFF800000> : vector<4xf32>
    %173 = vector.multi_reduction <maximumf>, %172, %cst_55 [1] : vector<4x4xf32> to vector<4xf32>
    %174 = vector.shape_cast %173 : vector<4xf32> to vector<4x1xf32>
    %175 = vector.broadcast %174 : vector<4x1xf32> to vector<4x4xf32>
    %176 = arith.subf %172, %175 : vector<4x4xf32>
    %177 = math.exp %176 : vector<4x4xf32>
    %cst_56 = arith.constant dense<0.000000e+00> : vector<4xf32>
    %178 = vector.multi_reduction <add>, %177, %cst_56 [1] : vector<4x4xf32> to vector<4xf32>
    %179 = vector.shape_cast %178 : vector<4xf32> to vector<4x1xf32>
    %180 = tpu.reciprocal %179 {approx = true} : vector<4x1xf32> -> vector<4x1xf32>
    %181 = vector.broadcast %180 : vector<4x1xf32> to vector<4x4xf32>
    %182 = arith.mulf %177, %181 : vector<4x4xf32>
    %183 = arith.truncf %182 : vector<4x4xf32> to vector<4x4xbf16>
    %cst_57 = arith.constant dense<0.000000e+00> : vector<4x32xf32>
    %184 = tpu.matmul %183, %167, %cst_57 {dimension_numbers = #tpu.dot_dimension_numbers<[1], [0], [0], [1], [0, 0, 1, 1], [], []>} : vector<4x4xbf16>, vector<4x32xbf16>, vector<4x32xf32> -> vector<4x32xf32>
    %185 = tpu.concatenate %115, %138, %161, %184 in 1 : vector<4x32xf32>, vector<4x32xf32>, vector<4x32xf32>, vector<4x32xf32> -> vector<4x128xf32>
    %186 = arith.truncf %185 : vector<4x128xf32> to vector<4x128xbf16>
    %c0_58 = arith.constant 0 : index
    %c0_59 = arith.constant 0 : index
    %187 = vector.load %arg6[%c0_58, %c0_59] : memref<128x128xbf16, #tpu.memory_space<vmem>>, vector<128x128xbf16>
    %cst_60 = arith.constant dense<0.000000e+00> : vector<4x128xf32>
    %188 = tpu.matmul %186, %187, %cst_60 {dimension_numbers = #tpu.dot_dimension_numbers<[1], [0], [0], [1], [0, 0, 1, 1], [], []>} : vector<4x128xbf16>, vector<128x128xbf16>, vector<4x128xf32> -> vector<4x128xf32>
    %c0_61 = arith.constant 0 : index
    %c0_62 = arith.constant 0 : index
    %189 = vector.load %arg7[%c0_61, %c0_62] : memref<1x128xf32, #tpu.memory_space<vmem>>, vector<1x128xf32>
    %190 = vector.broadcast %189 : vector<1x128xf32> to vector<4x128xf32>
    %191 = arith.addf %188, %190 : vector<4x128xf32>
    %192 = arith.addf %1, %191 : vector<4x128xf32>
    %c0_63 = arith.constant 0 : index
    %c0_64 = arith.constant 0 : index
    %c0_65 = arith.constant 0 : index
    %c0_66 = arith.constant 0 : index
    %193 = vector.load %arg10[%c0_63, %c0_64, %c0_65, %c0_66] : memref<1x1x4x128xf32, #tpu.memory_space<vmem>>, vector<1x1x4x128xf32>
    %194 = vector.shape_cast %193 : vector<1x1x4x128xf32> to vector<4x128xf32>
    %195 = vector.shape_cast %192 : vector<4x128xf32> to vector<1x1x4x128xf32>
    tpu.vector_store %arg10[%c0_63, %c0_64, %c0_65, %c0_66], %195 {strides = array<i32>} : memref<1x1x4x128xf32, #tpu.memory_space<vmem>>, vector<1x1x4x128xf32>,
    return
  }
  func.func @transform_0(%arg0: i32, %arg1: i32) -> (i32, i32, i32, i32) {
    %c0_i32 = arith.constant 0 : i32
    %c0_i32_0 = arith.constant 0 : i32
    %c0_i32_1 = arith.constant 0 : i32
    return %arg0, %arg1, %c0_i32, %c0_i32_0 : i32, i32, i32, i32
  }
  func.func @transform_1(%arg0: i32, %arg1: i32) -> (i32, i32) {
    %c0_i32 = arith.constant 0 : i32
    %c0_i32_0 = arith.constant 0 : i32
    %c0_i32_1 = arith.constant 0 : i32
    return %c0_i32, %c0_i32_0 : i32, i32
  }
  func.func @transform_2(%arg0: i32, %arg1: i32) -> (i32, i32) {
    %c0_i32 = arith.constant 0 : i32
    %c0_i32_0 = arith.constant 0 : i32
    %c0_i32_1 = arith.constant 0 : i32
    return %c0_i32, %c0_i32_0 : i32, i32
  }
  func.func @transform_3(%arg0: i32, %arg1: i32) -> (i32, i32) {
    %c0_i32 = arith.constant 0 : i32
    %c0_i32_0 = arith.constant 0 : i32
    %c0_i32_1 = arith.constant 0 : i32
    return %c0_i32, %c0_i32_0 : i32, i32
  }
  func.func @transform_4(%arg0: i32, %arg1: i32) -> (i32, i32) {
    %c0_i32 = arith.constant 0 : i32
    %c0_i32_0 = arith.constant 0 : i32
    %c0_i32_1 = arith.constant 0 : i32
    return %c0_i32, %c0_i32_0 : i32, i32
  }
  func.func @transform_5(%arg0: i32, %arg1: i32) -> (i32, i32) {
    %c0_i32 = arith.constant 0 : i32
    %c0_i32_0 = arith.constant 0 : i32
    %c0_i32_1 = arith.constant 0 : i32
    return %c0_i32, %c0_i32_0 : i32, i32
  }
  func.func @transform_6(%arg0: i32, %arg1: i32) -> (i32, i32) {
    %c0_i32 = arith.constant 0 : i32
    %c0_i32_0 = arith.constant 0 : i32
    %c0_i32_1 = arith.constant 0 : i32
    return %c0_i32, %c0_i32_0 : i32, i32
  }
  func.func @transform_7(%arg0: i32, %arg1: i32) -> (i32, i32) {
    %c0_i32 = arith.constant 0 : i32
    %c0_i32_0 = arith.constant 0 : i32
    %c0_i32_1 = arith.constant 0 : i32
    return %c0_i32, %c0_i32_0 : i32, i32
  }
  func.func @transform_8(%arg0: i32, %arg1: i32) -> (i32, i32, i32, i32) {
    %c0_i32 = arith.constant 0 : i32
    %c0_i32_0 = arith.constant 0 : i32
    %c0_i32_1 = arith.constant 0 : i32
    return %arg0, %arg1, %c0_i32, %c0_i32_0 : i32, i32, i32, i32
  }
}

module attributes {stable_mosaic.version = 11 : i64} {
  func.func @_attn_block_kernel(%arg0: i32, %arg1: i32, %arg2: memref<1x1x16x128xf32, #tpu.memory_space<vmem>>, %arg3: memref<1x128xf32, #tpu.memory_space<vmem>>, %arg4: memref<1x128xf32, #tpu.memory_space<vmem>>, %arg5: memref<128x384xbf16, #tpu.memory_space<vmem>>, %arg6: memref<128x128xbf16, #tpu.memory_space<vmem>>, %arg7: memref<1x128xf32, #tpu.memory_space<vmem>>, %arg8: memref<16x128xf32, #tpu.memory_space<vmem>>, %arg9: memref<16x128xf32, #tpu.memory_space<vmem>>, %arg10: memref<1x1x16x128xf32, #tpu.memory_space<vmem>>) attributes {dimension_semantics = [#tpu.dimension_semantics<parallel>, #tpu.dimension_semantics<parallel>], iteration_bounds = array<i64: 2, 4>, scalar_prefetch = 0 : i64, scratch_operands = 0 : i64, tpu.core_type = #tpu.core_type<tc>, window_params = [{transform_indices = @transform_0, window_bounds = array<i64: 1, 1, 16, 128>}, {pipeline_mode = #tpu.pipeline_mode<synchronous>, transform_indices = @transform_1, window_bounds = array<i64: 1, 128>}, {pipeline_mode = #tpu.pipeline_mode<synchronous>, transform_indices = @transform_2, window_bounds = array<i64: 1, 128>}, {pipeline_mode = #tpu.pipeline_mode<synchronous>, transform_indices = @transform_3, window_bounds = array<i64: 128, 384>}, {pipeline_mode = #tpu.pipeline_mode<synchronous>, transform_indices = @transform_4, window_bounds = array<i64: 128, 128>}, {pipeline_mode = #tpu.pipeline_mode<synchronous>, transform_indices = @transform_5, window_bounds = array<i64: 1, 128>}, {pipeline_mode = #tpu.pipeline_mode<synchronous>, transform_indices = @transform_6, window_bounds = array<i64: 16, 128>}, {pipeline_mode = #tpu.pipeline_mode<synchronous>, transform_indices = @transform_7, window_bounds = array<i64: 16, 128>}, {transform_indices = @transform_8, window_bounds = array<i64: 1, 1, 16, 128>}]} {
    %c0 = arith.constant 0 : index
    %c0_0 = arith.constant 0 : index
    %c0_1 = arith.constant 0 : index
    %c0_2 = arith.constant 0 : index
    %0 = vector.load %arg2[%c0, %c0_0, %c0_1, %c0_2] : memref<1x1x16x128xf32, #tpu.memory_space<vmem>>, vector<1x1x16x128xf32>
    %1 = vector.shape_cast %0 : vector<1x1x16x128xf32> to vector<16x128xf32>
    %c0_3 = arith.constant 0 : index
    %c0_4 = arith.constant 0 : index
    %2 = vector.load %arg3[%c0_3, %c0_4] : memref<1x128xf32, #tpu.memory_space<vmem>>, vector<1x128xf32>
    %c0_5 = arith.constant 0 : index
    %c0_6 = arith.constant 0 : index
    %3 = vector.load %arg4[%c0_5, %c0_6] : memref<1x128xf32, #tpu.memory_space<vmem>>, vector<1x128xf32>
    %cst = arith.constant dense<0.000000e+00> : vector<16xf32>
    %4 = vector.multi_reduction <add>, %1, %cst [1] : vector<16x128xf32> to vector<16xf32>
    %5 = vector.shape_cast %4 : vector<16xf32> to vector<16x1xf32>
    %cst_7 = arith.constant 1.280000e+02 : f32
    %6 = vector.broadcast %cst_7 : f32 to vector<16x1xf32>
    %7 = arith.divf %5, %6 : vector<16x1xf32>
    %8 = vector.broadcast %7 : vector<16x1xf32> to vector<16x128xf32>
    %9 = arith.subf %1, %8 : vector<16x128xf32>
    %10 = vector.broadcast %7 : vector<16x1xf32> to vector<16x128xf32>
    %11 = arith.subf %1, %10 : vector<16x128xf32>
    %12 = arith.mulf %9, %11 : vector<16x128xf32>
    %cst_8 = arith.constant dense<0.000000e+00> : vector<16xf32>
    %13 = vector.multi_reduction <add>, %12, %cst_8 [1] : vector<16x128xf32> to vector<16xf32>
    %14 = vector.shape_cast %13 : vector<16xf32> to vector<16x1xf32>
    %cst_9 = arith.constant 1.280000e+02 : f32
    %15 = vector.broadcast %cst_9 : f32 to vector<16x1xf32>
    %16 = arith.divf %14, %15 : vector<16x1xf32>
    %17 = vector.broadcast %7 : vector<16x1xf32> to vector<16x128xf32>
    %18 = arith.subf %1, %17 : vector<16x128xf32>
    %cst_10 = arith.constant 9.99999974E-6 : f32
    %19 = vector.broadcast %cst_10 : f32 to vector<16x1xf32>
    %20 = arith.addf %16, %19 : vector<16x1xf32>
    %21 = math.rsqrt %20 : vector<16x1xf32>
    %22 = vector.broadcast %21 : vector<16x1xf32> to vector<16x128xf32>
    %23 = arith.mulf %18, %22 : vector<16x128xf32>
    %24 = vector.broadcast %2 : vector<1x128xf32> to vector<16x128xf32>
    %25 = arith.mulf %23, %24 : vector<16x128xf32>
    %26 = vector.broadcast %3 : vector<1x128xf32> to vector<16x128xf32>
    %27 = arith.addf %25, %26 : vector<16x128xf32>
    %28 = arith.truncf %27 : vector<16x128xf32> to vector<16x128xbf16>
    %c0_11 = arith.constant 0 : index
    %c0_12 = arith.constant 0 : index
    %29 = vector.load %arg5[%c0_11, %c0_12] : memref<128x384xbf16, #tpu.memory_space<vmem>>, vector<128x384xbf16>
    %cst_13 = arith.constant dense<0.000000e+00> : vector<16x384xf32>
    %30 = tpu.matmul %28, %29, %cst_13 {dimension_numbers = #tpu.dot_dimension_numbers<[1], [0], [0], [1], [0, 0, 1, 1], [], []>} : vector<16x128xbf16>, vector<128x384xbf16>, vector<16x384xf32> -> vector<16x384xf32>
    %c0_14 = arith.constant 0 : index
    %c0_15 = arith.constant 0 : index
    %31 = vector.load %arg8[%c0_14, %c0_15] : memref<16x128xf32, #tpu.memory_space<vmem>>, vector<16x128xf32>
    %c0_16 = arith.constant 0 : index
    %c0_17 = arith.constant 0 : index
    %32 = vector.load %arg9[%c0_16, %c0_17] : memref<16x128xf32, #tpu.memory_space<vmem>>, vector<16x128xf32>
    %33 = vector.extract_strided_slice %30 {offsets = [0, 0], sizes = [16, 128], strides = [1, 1]} : vector<16x384xf32> to vector<16x128xf32>
    %34 = arith.mulf %33, %31 : vector<16x128xf32>
    %c127_i32 = arith.constant 127 : i32
    %35 = tpu.dynamic_rotate %33 by %c127_i32 dim 1 : vector<16x128xf32>, i32 -> vector<16x128xf32>
    %c1_i32 = arith.constant 1 : i32
    %36 = tpu.dynamic_rotate %33 by %c1_i32 dim 1 : vector<16x128xf32>, i32 -> vector<16x128xf32>
    %37 = tpu.iota {dimensions = array<i32: 1>} : vector<16x128xi32>
    %c2_i32 = arith.constant 2 : i32
    %c0_i32 = arith.constant 0 : i32
    %38 = arith.cmpi eq, %c2_i32, %c0_i32 : i32
    %c1_i32_18 = arith.constant 1 : i32
    %39 = arith.select %38, %c1_i32_18, %c2_i32 : i32
    %40 = vector.broadcast %39 : i32 to vector<16x128xi32>
    %41 = arith.remsi %37, %40 : vector<16x128xi32>
    %c0_i32_19 = arith.constant 0 : i32
    %42 = vector.broadcast %c0_i32_19 : i32 to vector<16x128xi32>
    %43 = arith.cmpi ne, %41, %42 : vector<16x128xi32>
    %c0_i32_20 = arith.constant 0 : i32
    %44 = vector.broadcast %c0_i32_20 : i32 to vector<16x128xi32>
    %45 = arith.cmpi slt, %41, %44 : vector<16x128xi32>
    %c0_i32_21 = arith.constant 0 : i32
    %46 = arith.cmpi slt, %39, %c0_i32_21 : i32
    %47 = vector.broadcast %46 : i1 to vector<16x128xi1>
    %48 = vector.broadcast %47 : vector<16x128xi1> to vector<16x128xi1>
    %49 = arith.xori %45, %48 : vector<16x128xi1>
    %50 = arith.andi %49, %43 : vector<16x128xi1>
    %51 = vector.broadcast %39 : i32 to vector<16x128xi32>
    %52 = arith.addi %41, %51 : vector<16x128xi32>
    %53 = arith.select %50, %52, %41 : vector<16x128xi1>, vector<16x128xi32>
    %c0_i32_22 = arith.constant 0 : i32
    %54 = vector.broadcast %c0_i32_22 : i32 to vector<16x128xi32>
    %55 = arith.cmpi eq, %53, %54 : vector<16x128xi32>
    %cst_23 = arith.constant 0.000000e+00 : f32
    %56 = vector.broadcast %cst_23 : f32 to vector<16x128xf32>
    %57 = arith.subf %56, %35 : vector<16x128xf32>
    %58 = arith.select %55, %57, %36 : vector<16x128xi1>, vector<16x128xf32>
    %59 = arith.mulf %58, %32 : vector<16x128xf32>
    %60 = arith.addf %34, %59 : vector<16x128xf32>
    %61 = vector.extract_strided_slice %30 {offsets = [0, 128], sizes = [16, 128], strides = [1, 1]} : vector<16x384xf32> to vector<16x128xf32>
    %62 = arith.mulf %61, %31 : vector<16x128xf32>
    %c127_i32_24 = arith.constant 127 : i32
    %63 = tpu.dynamic_rotate %61 by %c127_i32_24 dim 1 : vector<16x128xf32>, i32 -> vector<16x128xf32>
    %c1_i32_25 = arith.constant 1 : i32
    %64 = tpu.dynamic_rotate %61 by %c1_i32_25 dim 1 : vector<16x128xf32>, i32 -> vector<16x128xf32>
    %65 = tpu.iota {dimensions = array<i32: 1>} : vector<16x128xi32>
    %c2_i32_26 = arith.constant 2 : i32
    %c0_i32_27 = arith.constant 0 : i32
    %66 = arith.cmpi eq, %c2_i32_26, %c0_i32_27 : i32
    %c1_i32_28 = arith.constant 1 : i32
    %67 = arith.select %66, %c1_i32_28, %c2_i32_26 : i32
    %68 = vector.broadcast %67 : i32 to vector<16x128xi32>
    %69 = arith.remsi %65, %68 : vector<16x128xi32>
    %c0_i32_29 = arith.constant 0 : i32
    %70 = vector.broadcast %c0_i32_29 : i32 to vector<16x128xi32>
    %71 = arith.cmpi ne, %69, %70 : vector<16x128xi32>
    %c0_i32_30 = arith.constant 0 : i32
    %72 = vector.broadcast %c0_i32_30 : i32 to vector<16x128xi32>
    %73 = arith.cmpi slt, %69, %72 : vector<16x128xi32>
    %c0_i32_31 = arith.constant 0 : i32
    %74 = arith.cmpi slt, %67, %c0_i32_31 : i32
    %75 = vector.broadcast %74 : i1 to vector<16x128xi1>
    %76 = vector.broadcast %75 : vector<16x128xi1> to vector<16x128xi1>
    %77 = arith.xori %73, %76 : vector<16x128xi1>
    %78 = arith.andi %77, %71 : vector<16x128xi1>
    %79 = vector.broadcast %67 : i32 to vector<16x128xi32>
    %80 = arith.addi %69, %79 : vector<16x128xi32>
    %81 = arith.select %78, %80, %69 : vector<16x128xi1>, vector<16x128xi32>
    %c0_i32_32 = arith.constant 0 : i32
    %82 = vector.broadcast %c0_i32_32 : i32 to vector<16x128xi32>
    %83 = arith.cmpi eq, %81, %82 : vector<16x128xi32>
    %cst_33 = arith.constant 0.000000e+00 : f32
    %84 = vector.broadcast %cst_33 : f32 to vector<16x128xf32>
    %85 = arith.subf %84, %63 : vector<16x128xf32>
    %86 = arith.select %83, %85, %64 : vector<16x128xi1>, vector<16x128xf32>
    %87 = arith.mulf %86, %32 : vector<16x128xf32>
    %88 = arith.addf %62, %87 : vector<16x128xf32>
    %89 = vector.extract_strided_slice %30 {offsets = [0, 256], sizes = [16, 128], strides = [1, 1]} : vector<16x384xf32> to vector<16x128xf32>
    %90 = vector.extract_strided_slice %60 {offsets = [0, 0], sizes = [16, 32], strides = [1, 1]} : vector<16x128xf32> to vector<16x32xf32>
    %91 = arith.truncf %90 : vector<16x32xf32> to vector<16x32xbf16>
    %92 = vector.extract_strided_slice %88 {offsets = [0, 0], sizes = [16, 32], strides = [1, 1]} : vector<16x128xf32> to vector<16x32xf32>
    %93 = arith.truncf %92 : vector<16x32xf32> to vector<16x32xbf16>
    %94 = vector.extract_strided_slice %89 {offsets = [0, 0], sizes = [16, 32], strides = [1, 1]} : vector<16x128xf32> to vector<16x32xf32>
    %95 = arith.truncf %94 : vector<16x32xf32> to vector<16x32xbf16>
    %cst_34 = arith.constant dense<0.000000e+00> : vector<16x16xf32>
    %96 = tpu.matmul %91, %93, %cst_34 {dimension_numbers = #tpu.dot_dimension_numbers<[1], [1], [0], [0], [0, 0, 1, 0], [], []>} : vector<16x32xbf16>, vector<16x32xbf16>, vector<16x16xf32> -> vector<16x16xf32>
    %cst_35 = arith.constant 0.176776692 : f32
    %97 = vector.broadcast %cst_35 : f32 to vector<16x16xf32>
    %98 = arith.mulf %96, %97 : vector<16x16xf32>
    %cst_36 = arith.constant dense<0xFF800000> : vector<16xf32>
    %99 = vector.multi_reduction <maximumf>, %98, %cst_36 [1] : vector<16x16xf32> to vector<16xf32>
    %100 = vector.shape_cast %99 : vector<16xf32> to vector<16x1xf32>
    %101 = vector.broadcast %100 : vector<16x1xf32> to vector<16x16xf32>
    %102 = arith.subf %98, %101 : vector<16x16xf32>
    %103 = math.exp %102 : vector<16x16xf32>
    %cst_37 = arith.constant dense<0.000000e+00> : vector<16xf32>
    %104 = vector.multi_reduction <add>, %103, %cst_37 [1] : vector<16x16xf32> to vector<16xf32>
    %105 = vector.shape_cast %104 : vector<16xf32> to vector<16x1xf32>
    %106 = tpu.reciprocal %105 {approx = true} : vector<16x1xf32> -> vector<16x1xf32>
    %107 = vector.broadcast %106 : vector<16x1xf32> to vector<16x16xf32>
    %108 = arith.mulf %103, %107 : vector<16x16xf32>
    %109 = arith.truncf %108 : vector<16x16xf32> to vector<16x16xbf16>
    %cst_38 = arith.constant dense<0.000000e+00> : vector<16x32xf32>
    %110 = tpu.matmul %109, %95, %cst_38 {dimension_numbers = #tpu.dot_dimension_numbers<[1], [0], [0], [1], [0, 0, 1, 1], [], []>} : vector<16x16xbf16>, vector<16x32xbf16>, vector<16x32xf32> -> vector<16x32xf32>
    %111 = vector.extract_strided_slice %60 {offsets = [0, 32], sizes = [16, 32], strides = [1, 1]} : vector<16x128xf32> to vector<16x32xf32>
    %112 = arith.truncf %111 : vector<16x32xf32> to vector<16x32xbf16>
    %113 = vector.extract_strided_slice %88 {offsets = [0, 32], sizes = [16, 32], strides = [1, 1]} : vector<16x128xf32> to vector<16x32xf32>
    %114 = arith.truncf %113 : vector<16x32xf32> to vector<16x32xbf16>
    %115 = vector.extract_strided_slice %89 {offsets = [0, 32], sizes = [16, 32], strides = [1, 1]} : vector<16x128xf32> to vector<16x32xf32>
    %116 = arith.truncf %115 : vector<16x32xf32> to vector<16x32xbf16>
    %cst_39 = arith.constant dense<0.000000e+00> : vector<16x16xf32>
    %117 = tpu.matmul %112, %114, %cst_39 {dimension_numbers = #tpu.dot_dimension_numbers<[1], [1], [0], [0], [0, 0, 1, 0], [], []>} : vector<16x32xbf16>, vector<16x32xbf16>, vector<16x16xf32> -> vector<16x16xf32>
    %cst_40 = arith.constant 0.176776692 : f32
    %118 = vector.broadcast %cst_40 : f32 to vector<16x16xf32>
    %119 = arith.mulf %117, %118 : vector<16x16xf32>
    %cst_41 = arith.constant dense<0xFF800000> : vector<16xf32>
    %120 = vector.multi_reduction <maximumf>, %119, %cst_41 [1] : vector<16x16xf32> to vector<16xf32>
    %121 = vector.shape_cast %120 : vector<16xf32> to vector<16x1xf32>
    %122 = vector.broadcast %121 : vector<16x1xf32> to vector<16x16xf32>
    %123 = arith.subf %119, %122 : vector<16x16xf32>
    %124 = math.exp %123 : vector<16x16xf32>
    %cst_42 = arith.constant dense<0.000000e+00> : vector<16xf32>
    %125 = vector.multi_reduction <add>, %124, %cst_42 [1] : vector<16x16xf32> to vector<16xf32>
    %126 = vector.shape_cast %125 : vector<16xf32> to vector<16x1xf32>
    %127 = tpu.reciprocal %126 {approx = true} : vector<16x1xf32> -> vector<16x1xf32>
    %128 = vector.broadcast %127 : vector<16x1xf32> to vector<16x16xf32>
    %129 = arith.mulf %124, %128 : vector<16x16xf32>
    %130 = arith.truncf %129 : vector<16x16xf32> to vector<16x16xbf16>
    %cst_43 = arith.constant dense<0.000000e+00> : vector<16x32xf32>
    %131 = tpu.matmul %130, %116, %cst_43 {dimension_numbers = #tpu.dot_dimension_numbers<[1], [0], [0], [1], [0, 0, 1, 1], [], []>} : vector<16x16xbf16>, vector<16x32xbf16>, vector<16x32xf32> -> vector<16x32xf32>
    %132 = vector.extract_strided_slice %60 {offsets = [0, 64], sizes = [16, 32], strides = [1, 1]} : vector<16x128xf32> to vector<16x32xf32>
    %133 = arith.truncf %132 : vector<16x32xf32> to vector<16x32xbf16>
    %134 = vector.extract_strided_slice %88 {offsets = [0, 64], sizes = [16, 32], strides = [1, 1]} : vector<16x128xf32> to vector<16x32xf32>
    %135 = arith.truncf %134 : vector<16x32xf32> to vector<16x32xbf16>
    %136 = vector.extract_strided_slice %89 {offsets = [0, 64], sizes = [16, 32], strides = [1, 1]} : vector<16x128xf32> to vector<16x32xf32>
    %137 = arith.truncf %136 : vector<16x32xf32> to vector<16x32xbf16>
    %cst_44 = arith.constant dense<0.000000e+00> : vector<16x16xf32>
    %138 = tpu.matmul %133, %135, %cst_44 {dimension_numbers = #tpu.dot_dimension_numbers<[1], [1], [0], [0], [0, 0, 1, 0], [], []>} : vector<16x32xbf16>, vector<16x32xbf16>, vector<16x16xf32> -> vector<16x16xf32>
    %cst_45 = arith.constant 0.176776692 : f32
    %139 = vector.broadcast %cst_45 : f32 to vector<16x16xf32>
    %140 = arith.mulf %138, %139 : vector<16x16xf32>
    %cst_46 = arith.constant dense<0xFF800000> : vector<16xf32>
    %141 = vector.multi_reduction <maximumf>, %140, %cst_46 [1] : vector<16x16xf32> to vector<16xf32>
    %142 = vector.shape_cast %141 : vector<16xf32> to vector<16x1xf32>
    %143 = vector.broadcast %142 : vector<16x1xf32> to vector<16x16xf32>
    %144 = arith.subf %140, %143 : vector<16x16xf32>
    %145 = math.exp %144 : vector<16x16xf32>
    %cst_47 = arith.constant dense<0.000000e+00> : vector<16xf32>
    %146 = vector.multi_reduction <add>, %145, %cst_47 [1] : vector<16x16xf32> to vector<16xf32>
    %147 = vector.shape_cast %146 : vector<16xf32> to vector<16x1xf32>
    %148 = tpu.reciprocal %147 {approx = true} : vector<16x1xf32> -> vector<16x1xf32>
    %149 = vector.broadcast %148 : vector<16x1xf32> to vector<16x16xf32>
    %150 = arith.mulf %145, %149 : vector<16x16xf32>
    %151 = arith.truncf %150 : vector<16x16xf32> to vector<16x16xbf16>
    %cst_48 = arith.constant dense<0.000000e+00> : vector<16x32xf32>
    %152 = tpu.matmul %151, %137, %cst_48 {dimension_numbers = #tpu.dot_dimension_numbers<[1], [0], [0], [1], [0, 0, 1, 1], [], []>} : vector<16x16xbf16>, vector<16x32xbf16>, vector<16x32xf32> -> vector<16x32xf32>
    %153 = vector.extract_strided_slice %60 {offsets = [0, 96], sizes = [16, 32], strides = [1, 1]} : vector<16x128xf32> to vector<16x32xf32>
    %154 = arith.truncf %153 : vector<16x32xf32> to vector<16x32xbf16>
    %155 = vector.extract_strided_slice %88 {offsets = [0, 96], sizes = [16, 32], strides = [1, 1]} : vector<16x128xf32> to vector<16x32xf32>
    %156 = arith.truncf %155 : vector<16x32xf32> to vector<16x32xbf16>
    %157 = vector.extract_strided_slice %89 {offsets = [0, 96], sizes = [16, 32], strides = [1, 1]} : vector<16x128xf32> to vector<16x32xf32>
    %158 = arith.truncf %157 : vector<16x32xf32> to vector<16x32xbf16>
    %cst_49 = arith.constant dense<0.000000e+00> : vector<16x16xf32>
    %159 = tpu.matmul %154, %156, %cst_49 {dimension_numbers = #tpu.dot_dimension_numbers<[1], [1], [0], [0], [0, 0, 1, 0], [], []>} : vector<16x32xbf16>, vector<16x32xbf16>, vector<16x16xf32> -> vector<16x16xf32>
    %cst_50 = arith.constant 0.176776692 : f32
    %160 = vector.broadcast %cst_50 : f32 to vector<16x16xf32>
    %161 = arith.mulf %159, %160 : vector<16x16xf32>
    %cst_51 = arith.constant dense<0xFF800000> : vector<16xf32>
    %162 = vector.multi_reduction <maximumf>, %161, %cst_51 [1] : vector<16x16xf32> to vector<16xf32>
    %163 = vector.shape_cast %162 : vector<16xf32> to vector<16x1xf32>
    %164 = vector.broadcast %163 : vector<16x1xf32> to vector<16x16xf32>
    %165 = arith.subf %161, %164 : vector<16x16xf32>
    %166 = math.exp %165 : vector<16x16xf32>
    %cst_52 = arith.constant dense<0.000000e+00> : vector<16xf32>
    %167 = vector.multi_reduction <add>, %166, %cst_52 [1] : vector<16x16xf32> to vector<16xf32>
    %168 = vector.shape_cast %167 : vector<16xf32> to vector<16x1xf32>
    %169 = tpu.reciprocal %168 {approx = true} : vector<16x1xf32> -> vector<16x1xf32>
    %170 = vector.broadcast %169 : vector<16x1xf32> to vector<16x16xf32>
    %171 = arith.mulf %166, %170 : vector<16x16xf32>
    %172 = arith.truncf %171 : vector<16x16xf32> to vector<16x16xbf16>
    %cst_53 = arith.constant dense<0.000000e+00> : vector<16x32xf32>
    %173 = tpu.matmul %172, %158, %cst_53 {dimension_numbers = #tpu.dot_dimension_numbers<[1], [0], [0], [1], [0, 0, 1, 1], [], []>} : vector<16x16xbf16>, vector<16x32xbf16>, vector<16x32xf32> -> vector<16x32xf32>
    %174 = tpu.concatenate %110, %131, %152, %173 in 1 : vector<16x32xf32>, vector<16x32xf32>, vector<16x32xf32>, vector<16x32xf32> -> vector<16x128xf32>
    %175 = arith.truncf %174 : vector<16x128xf32> to vector<16x128xbf16>
    %c0_54 = arith.constant 0 : index
    %c0_55 = arith.constant 0 : index
    %176 = vector.load %arg6[%c0_54, %c0_55] : memref<128x128xbf16, #tpu.memory_space<vmem>>, vector<128x128xbf16>
    %cst_56 = arith.constant dense<0.000000e+00> : vector<16x128xf32>
    %177 = tpu.matmul %175, %176, %cst_56 {dimension_numbers = #tpu.dot_dimension_numbers<[1], [0], [0], [1], [0, 0, 1, 1], [], []>} : vector<16x128xbf16>, vector<128x128xbf16>, vector<16x128xf32> -> vector<16x128xf32>
    %c0_57 = arith.constant 0 : index
    %c0_58 = arith.constant 0 : index
    %178 = vector.load %arg7[%c0_57, %c0_58] : memref<1x128xf32, #tpu.memory_space<vmem>>, vector<1x128xf32>
    %179 = vector.broadcast %178 : vector<1x128xf32> to vector<16x128xf32>
    %180 = arith.addf %177, %179 : vector<16x128xf32>
    %181 = arith.addf %1, %180 : vector<16x128xf32>
    %c0_59 = arith.constant 0 : index
    %c0_60 = arith.constant 0 : index
    %c0_61 = arith.constant 0 : index
    %c0_62 = arith.constant 0 : index
    %182 = vector.load %arg10[%c0_59, %c0_60, %c0_61, %c0_62] : memref<1x1x16x128xf32, #tpu.memory_space<vmem>>, vector<1x1x16x128xf32>
    %183 = vector.shape_cast %182 : vector<1x1x16x128xf32> to vector<16x128xf32>
    %184 = vector.shape_cast %181 : vector<16x128xf32> to vector<1x1x16x128xf32>
    tpu.vector_store %arg10[%c0_59, %c0_60, %c0_61, %c0_62], %184 {strides = array<i32>} : memref<1x1x16x128xf32, #tpu.memory_space<vmem>>, vector<1x1x16x128xf32>,
    return
  }
  func.func @transform_0(%arg0: i32, %arg1: i32) -> (i32, i32, i32, i32) {
    %c0_i32 = arith.constant 0 : i32
    %c0_i32_0 = arith.constant 0 : i32
    %c0_i32_1 = arith.constant 0 : i32
    return %arg0, %arg1, %c0_i32, %c0_i32_0 : i32, i32, i32, i32
  }
  func.func @transform_1(%arg0: i32, %arg1: i32) -> (i32, i32) {
    %c0_i32 = arith.constant 0 : i32
    %c0_i32_0 = arith.constant 0 : i32
    %c0_i32_1 = arith.constant 0 : i32
    return %c0_i32, %c0_i32_0 : i32, i32
  }
  func.func @transform_2(%arg0: i32, %arg1: i32) -> (i32, i32) {
    %c0_i32 = arith.constant 0 : i32
    %c0_i32_0 = arith.constant 0 : i32
    %c0_i32_1 = arith.constant 0 : i32
    return %c0_i32, %c0_i32_0 : i32, i32
  }
  func.func @transform_3(%arg0: i32, %arg1: i32) -> (i32, i32) {
    %c0_i32 = arith.constant 0 : i32
    %c0_i32_0 = arith.constant 0 : i32
    %c0_i32_1 = arith.constant 0 : i32
    return %c0_i32, %c0_i32_0 : i32, i32
  }
  func.func @transform_4(%arg0: i32, %arg1: i32) -> (i32, i32) {
    %c0_i32 = arith.constant 0 : i32
    %c0_i32_0 = arith.constant 0 : i32
    %c0_i32_1 = arith.constant 0 : i32
    return %c0_i32, %c0_i32_0 : i32, i32
  }
  func.func @transform_5(%arg0: i32, %arg1: i32) -> (i32, i32) {
    %c0_i32 = arith.constant 0 : i32
    %c0_i32_0 = arith.constant 0 : i32
    %c0_i32_1 = arith.constant 0 : i32
    return %c0_i32, %c0_i32_0 : i32, i32
  }
  func.func @transform_6(%arg0: i32, %arg1: i32) -> (i32, i32) {
    %c0_i32 = arith.constant 0 : i32
    %c0_i32_0 = arith.constant 0 : i32
    %c0_i32_1 = arith.constant 0 : i32
    return %c0_i32, %c0_i32_0 : i32, i32
  }
  func.func @transform_7(%arg0: i32, %arg1: i32) -> (i32, i32) {
    %c0_i32 = arith.constant 0 : i32
    %c0_i32_0 = arith.constant 0 : i32
    %c0_i32_1 = arith.constant 0 : i32
    return %c0_i32, %c0_i32_0 : i32, i32
  }
  func.func @transform_8(%arg0: i32, %arg1: i32) -> (i32, i32, i32, i32) {
    %c0_i32 = arith.constant 0 : i32
    %c0_i32_0 = arith.constant 0 : i32
    %c0_i32_1 = arith.constant 0 : i32
    return %arg0, %arg1, %c0_i32, %c0_i32_0 : i32, i32, i32, i32
  }
}

module attributes {stable_mosaic.version = 11 : i64} {
  func.func @_mlp_res_kernel(%arg0: i32, %arg1: memref<128x128xf32, #tpu.memory_space<vmem>>, %arg2: memref<1x128xf32, #tpu.memory_space<vmem>>, %arg3: memref<1x128xf32, #tpu.memory_space<vmem>>, %arg4: memref<128x512xbf16, #tpu.memory_space<vmem>>, %arg5: memref<1x512xf32, #tpu.memory_space<vmem>>, %arg6: memref<512x128xbf16, #tpu.memory_space<vmem>>, %arg7: memref<1x128xf32, #tpu.memory_space<vmem>>, %arg8: memref<128x128xf32, #tpu.memory_space<vmem>>) attributes {dimension_semantics = [#tpu.dimension_semantics<parallel>], iteration_bounds = array<i64: 1>, scalar_prefetch = 0 : i64, scratch_operands = 0 : i64, tpu.core_type = #tpu.core_type<tc>, window_params = [{transform_indices = @transform_0, window_bounds = array<i64: 128, 128>}, {pipeline_mode = #tpu.pipeline_mode<synchronous>, transform_indices = @transform_1, window_bounds = array<i64: 1, 128>}, {pipeline_mode = #tpu.pipeline_mode<synchronous>, transform_indices = @transform_2, window_bounds = array<i64: 1, 128>}, {pipeline_mode = #tpu.pipeline_mode<synchronous>, transform_indices = @transform_3, window_bounds = array<i64: 128, 512>}, {pipeline_mode = #tpu.pipeline_mode<synchronous>, transform_indices = @transform_4, window_bounds = array<i64: 1, 512>}, {pipeline_mode = #tpu.pipeline_mode<synchronous>, transform_indices = @transform_5, window_bounds = array<i64: 512, 128>}, {pipeline_mode = #tpu.pipeline_mode<synchronous>, transform_indices = @transform_6, window_bounds = array<i64: 1, 128>}, {transform_indices = @transform_7, window_bounds = array<i64: 128, 128>}]} {
    %c0 = arith.constant 0 : index
    %c0_0 = arith.constant 0 : index
    %0 = vector.load %arg1[%c0, %c0_0] : memref<128x128xf32, #tpu.memory_space<vmem>>, vector<128x128xf32>
    %c0_1 = arith.constant 0 : index
    %c0_2 = arith.constant 0 : index
    %1 = vector.load %arg2[%c0_1, %c0_2] : memref<1x128xf32, #tpu.memory_space<vmem>>, vector<1x128xf32>
    %c0_3 = arith.constant 0 : index
    %c0_4 = arith.constant 0 : index
    %2 = vector.load %arg3[%c0_3, %c0_4] : memref<1x128xf32, #tpu.memory_space<vmem>>, vector<1x128xf32>
    %cst = arith.constant dense<0.000000e+00> : vector<128xf32>
    %3 = vector.multi_reduction <add>, %0, %cst [1] : vector<128x128xf32> to vector<128xf32>
    %4 = vector.shape_cast %3 : vector<128xf32> to vector<128x1xf32>
    %cst_5 = arith.constant 1.280000e+02 : f32
    %5 = vector.broadcast %cst_5 : f32 to vector<128x1xf32>
    %6 = arith.divf %4, %5 : vector<128x1xf32>
    %7 = vector.broadcast %6 : vector<128x1xf32> to vector<128x128xf32>
    %8 = arith.subf %0, %7 : vector<128x128xf32>
    %9 = vector.broadcast %6 : vector<128x1xf32> to vector<128x128xf32>
    %10 = arith.subf %0, %9 : vector<128x128xf32>
    %11 = arith.mulf %8, %10 : vector<128x128xf32>
    %cst_6 = arith.constant dense<0.000000e+00> : vector<128xf32>
    %12 = vector.multi_reduction <add>, %11, %cst_6 [1] : vector<128x128xf32> to vector<128xf32>
    %13 = vector.shape_cast %12 : vector<128xf32> to vector<128x1xf32>
    %cst_7 = arith.constant 1.280000e+02 : f32
    %14 = vector.broadcast %cst_7 : f32 to vector<128x1xf32>
    %15 = arith.divf %13, %14 : vector<128x1xf32>
    %16 = vector.broadcast %6 : vector<128x1xf32> to vector<128x128xf32>
    %17 = arith.subf %0, %16 : vector<128x128xf32>
    %cst_8 = arith.constant 9.99999974E-6 : f32
    %18 = vector.broadcast %cst_8 : f32 to vector<128x1xf32>
    %19 = arith.addf %15, %18 : vector<128x1xf32>
    %20 = math.rsqrt %19 : vector<128x1xf32>
    %21 = vector.broadcast %20 : vector<128x1xf32> to vector<128x128xf32>
    %22 = arith.mulf %17, %21 : vector<128x128xf32>
    %23 = vector.broadcast %1 : vector<1x128xf32> to vector<128x128xf32>
    %24 = arith.mulf %22, %23 : vector<128x128xf32>
    %25 = vector.broadcast %2 : vector<1x128xf32> to vector<128x128xf32>
    %26 = arith.addf %24, %25 : vector<128x128xf32>
    %27 = arith.truncf %26 : vector<128x128xf32> to vector<128x128xbf16>
    %c0_9 = arith.constant 0 : index
    %c0_10 = arith.constant 0 : index
    %28 = vector.load %arg4[%c0_9, %c0_10] : memref<128x512xbf16, #tpu.memory_space<vmem>>, vector<128x512xbf16>
    %cst_11 = arith.constant dense<0.000000e+00> : vector<128x512xf32>
    %29 = tpu.matmul %27, %28, %cst_11 {dimension_numbers = #tpu.dot_dimension_numbers<[1], [0], [0], [1], [0, 0, 1, 1], [], []>} : vector<128x128xbf16>, vector<128x512xbf16>, vector<128x512xf32> -> vector<128x512xf32>
    %c0_12 = arith.constant 0 : index
    %c0_13 = arith.constant 0 : index
    %30 = vector.load %arg5[%c0_12, %c0_13] : memref<1x512xf32, #tpu.memory_space<vmem>>, vector<1x512xf32>
    %31 = vector.broadcast %30 : vector<1x512xf32> to vector<128x512xf32>
    %32 = arith.addf %29, %31 : vector<128x512xf32>
    %cst_14 = arith.constant 5.000000e-01 : f32
    %33 = vector.broadcast %cst_14 : f32 to vector<128x512xf32>
    %34 = arith.mulf %33, %32 : vector<128x512xf32>
    %cst_15 = arith.constant 0.707106769 : f32
    %35 = vector.broadcast %cst_15 : f32 to vector<128x512xf32>
    %36 = arith.mulf %32, %35 : vector<128x512xf32>
    %37 = math.absf %36 : vector<128x512xf32>
    %cst_16 = arith.constant 5.000000e-01 : f32
    %38 = vector.broadcast %cst_16 : f32 to vector<128x512xf32>
    %39 = arith.mulf %38, %37 : vector<128x512xf32>
    %cst_17 = arith.constant 1.000000e+00 : f32
    %40 = vector.broadcast %cst_17 : f32 to vector<128x512xf32>
    %41 = arith.addf %40, %39 : vector<128x512xf32>
    %cst_18 = arith.constant 1.000000e+00 : f32
    %42 = vector.broadcast %cst_18 : f32 to vector<128x512xf32>
    %43 = arith.divf %42, %41 : vector<128x512xf32>
    %cst_19 = arith.constant 0.170872763 : f32
    %44 = vector.broadcast %cst_19 : f32 to vector<128x512xf32>
    %45 = arith.mulf %43, %44 : vector<128x512xf32>
    %cst_20 = arith.constant -0.822152256 : f32
    %46 = vector.broadcast %cst_20 : f32 to vector<128x512xf32>
    %47 = arith.addf %46, %45 : vector<128x512xf32>
    %48 = arith.mulf %43, %47 : vector<128x512xf32>
    %cst_21 = arith.constant 1.48851585 : f32
    %49 = vector.broadcast %cst_21 : f32 to vector<128x512xf32>
    %50 = arith.addf %49, %48 : vector<128x512xf32>
    %51 = arith.mulf %43, %50 : vector<128x512xf32>
    %cst_22 = arith.constant -1.13520396 : f32
    %52 = vector.broadcast %cst_22 : f32 to vector<128x512xf32>
    %53 = arith.addf %52, %51 : vector<128x512xf32>
    %54 = arith.mulf %43, %53 : vector<128x512xf32>
    %cst_23 = arith.constant 0.278868079 : f32
    %55 = vector.broadcast %cst_23 : f32 to vector<128x512xf32>
    %56 = arith.addf %55, %54 : vector<128x512xf32>
    %57 = arith.mulf %43, %56 : vector<128x512xf32>
    %cst_24 = arith.constant -0.186288059 : f32
    %58 = vector.broadcast %cst_24 : f32 to vector<128x512xf32>
    %59 = arith.addf %58, %57 : vector<128x512xf32>
    %60 = arith.mulf %43, %59 : vector<128x512xf32>
    %cst_25 = arith.constant 0.0967841818 : f32
    %61 = vector.broadcast %cst_25 : f32 to vector<128x512xf32>
    %62 = arith.addf %61, %60 : vector<128x512xf32>
    %63 = arith.mulf %43, %62 : vector<128x512xf32>
    %cst_26 = arith.constant 0.374091953 : f32
    %64 = vector.broadcast %cst_26 : f32 to vector<128x512xf32>
    %65 = arith.addf %64, %63 : vector<128x512xf32>
    %66 = arith.mulf %43, %65 : vector<128x512xf32>
    %cst_27 = arith.constant 1.00002372 : f32
    %67 = vector.broadcast %cst_27 : f32 to vector<128x512xf32>
    %68 = arith.addf %67, %66 : vector<128x512xf32>
    %69 = arith.mulf %43, %68 : vector<128x512xf32>
    %cst_28 = arith.constant 0.000000e+00 : f32
    %70 = vector.broadcast %cst_28 : f32 to vector<128x512xf32>
    %71 = arith.subf %70, %37 : vector<128x512xf32>
    %72 = arith.mulf %71, %37 : vector<128x512xf32>
    %cst_29 = arith.constant 1.26551223 : f32
    %73 = vector.broadcast %cst_29 : f32 to vector<128x512xf32>
    %74 = arith.subf %72, %73 : vector<128x512xf32>
    %75 = arith.addf %74, %69 : vector<128x512xf32>
    %76 = math.exp %75 : vector<128x512xf32>
    %77 = arith.mulf %43, %76 : vector<128x512xf32>
    %cst_30 = arith.constant 0.000000e+00 : f32
    %78 = vector.broadcast %cst_30 : f32 to vector<128x512xf32>
    %79 = arith.cmpf oge, %36, %78 : vector<128x512xf32>
    %cst_31 = arith.constant 1.000000e+00 : f32
    %80 = vector.broadcast %cst_31 : f32 to vector<128x512xf32>
    %81 = arith.subf %80, %77 : vector<128x512xf32>
    %cst_32 = arith.constant 1.000000e+00 : f32
    %82 = vector.broadcast %cst_32 : f32 to vector<128x512xf32>
    %83 = arith.subf %77, %82 : vector<128x512xf32>
    %84 = arith.select %79, %81, %83 : vector<128x512xi1>, vector<128x512xf32>
    %cst_33 = arith.constant 1.000000e+00 : f32
    %85 = vector.broadcast %cst_33 : f32 to vector<128x512xf32>
    %86 = arith.addf %85, %84 : vector<128x512xf32>
    %87 = arith.mulf %34, %86 : vector<128x512xf32>
    %88 = arith.truncf %87 : vector<128x512xf32> to vector<128x512xbf16>
    %c0_34 = arith.constant 0 : index
    %c0_35 = arith.constant 0 : index
    %89 = vector.load %arg6[%c0_34, %c0_35] : memref<512x128xbf16, #tpu.memory_space<vmem>>, vector<512x128xbf16>
    %cst_36 = arith.constant dense<0.000000e+00> : vector<128x128xf32>
    %90 = tpu.matmul %88, %89, %cst_36 {dimension_numbers = #tpu.dot_dimension_numbers<[1], [0], [0], [1], [0, 0, 1, 1], [], []>} : vector<128x512xbf16>, vector<512x128xbf16>, vector<128x128xf32> -> vector<128x128xf32>
    %c0_37 = arith.constant 0 : index
    %c0_38 = arith.constant 0 : index
    %91 = vector.load %arg7[%c0_37, %c0_38] : memref<1x128xf32, #tpu.memory_space<vmem>>, vector<1x128xf32>
    %92 = vector.broadcast %91 : vector<1x128xf32> to vector<128x128xf32>
    %93 = arith.addf %90, %92 : vector<128x128xf32>
    %94 = arith.addf %0, %93 : vector<128x128xf32>
    %c0_39 = arith.constant 0 : index
    %c0_40 = arith.constant 0 : index
    %95 = vector.load %arg8[%c0_39, %c0_40] : memref<128x128xf32, #tpu.memory_space<vmem>>, vector<128x128xf32>
    tpu.vector_store %arg8[%c0_39, %c0_40], %94 {strides = array<i32>} : memref<128x128xf32, #tpu.memory_space<vmem>>, vector<128x128xf32>,
    return
  }
  func.func @transform_0(%arg0: i32) -> (i32, i32) {
    %c0_i32 = arith.constant 0 : i32
    %c0_i32_0 = arith.constant 0 : i32
    return %arg0, %c0_i32 : i32, i32
  }
  func.func @transform_1(%arg0: i32) -> (i32, i32) {
    %c0_i32 = arith.constant 0 : i32
    %c0_i32_0 = arith.constant 0 : i32
    %c0_i32_1 = arith.constant 0 : i32
    return %c0_i32, %c0_i32_0 : i32, i32
  }
  func.func @transform_2(%arg0: i32) -> (i32, i32) {
    %c0_i32 = arith.constant 0 : i32
    %c0_i32_0 = arith.constant 0 : i32
    %c0_i32_1 = arith.constant 0 : i32
    return %c0_i32, %c0_i32_0 : i32, i32
  }
  func.func @transform_3(%arg0: i32) -> (i32, i32) {
    %c0_i32 = arith.constant 0 : i32
    %c0_i32_0 = arith.constant 0 : i32
    %c0_i32_1 = arith.constant 0 : i32
    return %c0_i32, %c0_i32_0 : i32, i32
  }
  func.func @transform_4(%arg0: i32) -> (i32, i32) {
    %c0_i32 = arith.constant 0 : i32
    %c0_i32_0 = arith.constant 0 : i32
    %c0_i32_1 = arith.constant 0 : i32
    return %c0_i32, %c0_i32_0 : i32, i32
  }
  func.func @transform_5(%arg0: i32) -> (i32, i32) {
    %c0_i32 = arith.constant 0 : i32
    %c0_i32_0 = arith.constant 0 : i32
    %c0_i32_1 = arith.constant 0 : i32
    return %c0_i32, %c0_i32_0 : i32, i32
  }
  func.func @transform_6(%arg0: i32) -> (i32, i32) {
    %c0_i32 = arith.constant 0 : i32
    %c0_i32_0 = arith.constant 0 : i32
    %c0_i32_1 = arith.constant 0 : i32
    return %c0_i32, %c0_i32_0 : i32, i32
  }
  func.func @transform_7(%arg0: i32) -> (i32, i32) {
    %c0_i32 = arith.constant 0 : i32
    %c0_i32_0 = arith.constant 0 : i32
    return %arg0, %c0_i32 : i32, i32
  }
}

</mosaic_0001>

<llo_original>
// kernel: tile.39
$region0: #{tile.39}
  %s0 = inlined_call_operand.vmem [shape: f32[4,4,32], index: 0, kind: input, shape index: {}]
  %s1 = inlined_call_operand.vmem [shape: f32[4,128], index: 1, kind: output, shape index: {}]
  $region1: #{tile.39} parent=0
    #allocation0 [shape = 'u8[4096]{0}', space=vmem, size = 0x1000, scoped, tag = 'scoped mem for output reshape']
    #allocation1 [shape = 'u8[16384]{0}', space=vmem, size = 0x4000, scoped, tag = 'scoped mem for input reshape']
    %s3 = ssub.s32 16, 1
    %s4 = scalar_lea.vmem %s0, 12
    %v5 = vld [vmem:[%s4] sm:%s3]
    %s6 = scalar_lea.vmem [#allocation1], 24
    %7 = vst [vmem:[%s6] sm:%s3] %v5
    %s8 = scalar_lea.vmem %s0, 8
    %v9 = vld [vmem:[%s8] sm:%s3]
    %s10 = scalar_lea.vmem [#allocation1], 16
    %11 = vst [vmem:[%s10] sm:%s3] %v9
    %s12 = scalar_lea.vmem %s0, 4
    %v13 = vld [vmem:[%s12] sm:%s3]
    %s14 = scalar_lea.vmem [#allocation1], 8
    %15 = vst [vmem:[%s14] sm:%s3] %v13
    %v16 = vld [vmem:[%s0] sm:%s3]
    %17 = vst [vmem:[#allocation1] sm:%s3] %v16
    %v18 = vld [vmem:[#allocation1] ss:$8 sm:$0xf]
    %vm19 = vcmask 261120
    %20 = vst.msk [vmem:[#allocation0] sm:$0xf] %vm19, %v18
    %s21 = scalar_lea.vmem [#allocation1], 3
    %v22 = vld [vmem:[%s21] ss:$8 sm:$0xf]
    %23 = vrot.lane.b32.xlu0 %v22, 96
    %v24 = vpop.permute.xlu0 %23
    %vm25 = vcmask 1048320
    %26 = vst.msk [vmem:[#allocation0] sm:$0xf] %vm25, %v24
    %s27 = scalar_lea.vmem [#allocation1], 2
    %v28 = vld [vmem:[%s27] ss:$8 sm:$0xf]
    %29 = vrot.lane.b32.xlu0 %v28, 64
    %v30 = vpop.permute.xlu0 %29
    %vm31 = vcmask 785920
    %32 = vst.msk [vmem:[#allocation0] sm:$0xf] %vm31, %v30
    %s33 = scalar_lea.vmem [#allocation1], 1
    %v34 = vld [vmem:[%s33] ss:$8 sm:$0xf]
    %35 = vrot.lane.b32.xlu0 %v34, 32
    %v36 = vpop.permute.xlu0 %35
    %vm37 = vcmask 523520
    %38 = vst.msk [vmem:[#allocation0] sm:$0xf] %vm37, %v36
    %s40 = ssub.s32 16, 1
    %v41 = vld [vmem:[#allocation0] sm:%s40]
    %s43 = ssub.s32 16, 1
    %44 = vst [vmem:[%s1] sm:%s43] %v41

// kernel: tile.24
$region0: #{tile.24}
  %s0 = inlined_call_operand.vmem [shape: f32[16,4,32], index: 0, kind: input, shape index: {}]
  %s1 = inlined_call_operand.vmem [shape: f32[16,128], index: 1, kind: output, shape index: {}]
  $region1: #{tile.24} parent=0
    #allocation0 [shape = 'u8[65536]{0}', space=vmem, size = 0x10000, scoped, tag = 'scoped mem for input reshape']
    %s3 = ssub.s32 16, 1
    %s4 = scalar_lea.vmem %s0, 60
    %v5 = vld [vmem:[%s4] sm:%s3]
    %s6 = scalar_lea.vmem [#allocation0], 120
    %7 = vst [vmem:[%s6] sm:%s3] %v5
    %s8 = scalar_lea.vmem %s0, 56
    %v9 = vld [vmem:[%s8] sm:%s3]
    %s10 = scalar_lea.vmem [#allocation0], 112
    %11 = vst [vmem:[%s10] sm:%s3] %v9
    %s12 = scalar_lea.vmem %s0, 52
    %v13 = vld [vmem:[%s12] sm:%s3]
    %s14 = scalar_lea.vmem [#allocation0], 104
    %15 = vst [vmem:[%s14] sm:%s3] %v13
    %s16 = scalar_lea.vmem %s0, 48
    %v17 = vld [vmem:[%s16] sm:%s3]
    %s18 = scalar_lea.vmem [#allocation0], 96
    %19 = vst [vmem:[%s18] sm:%s3] %v17
    %s20 = scalar_lea.vmem %s0, 44
    %v21 = vld [vmem:[%s20] sm:%s3]
    %s22 = scalar_lea.vmem [#allocation0], 88
    %23 = vst [vmem:[%s22] sm:%s3] %v21
    %s24 = scalar_lea.vmem %s0, 40
    %v25 = vld [vmem:[%s24] sm:%s3]
    %s26 = scalar_lea.vmem [#allocation0], 80
    %27 = vst [vmem:[%s26] sm:%s3] %v25
    %s28 = scalar_lea.vmem %s0, 36
    %v29 = vld [vmem:[%s28] sm:%s3]
    %s30 = scalar_lea.vmem [#allocation0], 72
    %31 = vst [vmem:[%s30] sm:%s3] %v29
    %s32 = scalar_lea.vmem %s0, 32
    %v33 = vld [vmem:[%s32] sm:%s3]
    %s34 = scalar_lea.vmem [#allocation0], 64
    %35 = vst [vmem:[%s34] sm:%s3] %v33
    %s36 = scalar_lea.vmem %s0, 28
    %v37 = vld [vmem:[%s36] sm:%s3]
    %s38 = scalar_lea.vmem [#allocation0], 56
    %39 = vst [vmem:[%s38] sm:%s3] %v37
    %s40 = scalar_lea.vmem %s0, 24
    %v41 = vld [vmem:[%s40] sm:%s3]
    %s42 = scalar_lea.vmem [#allocation0], 48
    %43 = vst [vmem:[%s42] sm:%s3] %v41
    %s44 = scalar_lea.vmem %s0, 20
    %v45 = vld [vmem:[%s44] sm:%s3]
    %s46 = scalar_lea.vmem [#allocation0], 40
    %47 = vst [vmem:[%s46] sm:%s3] %v45
    %s48 = scalar_lea.vmem %s0, 16
    %v49 = vld [vmem:[%s48] sm:%s3]
    %s50 = scalar_lea.vmem [#allocation0], 32
    %51 = vst [vmem:[%s50] sm:%s3] %v49
    %s52 = scalar_lea.vmem %s0, 12
    %v53 = vld [vmem:[%s52] sm:%s3]
    %s54 = scalar_lea.vmem [#allocation0], 24
    %55 = vst [vmem:[%s54] sm:%s3] %v53
    %s56 = scalar_lea.vmem %s0, 8
    %v57 = vld [vmem:[%s56] sm:%s3]
    %s58 = scalar_lea.vmem [#allocation0], 16
    %59 = vst [vmem:[%s58] sm:%s3] %v57
    %s60 = scalar_lea.vmem %s0, 4
    %v61 = vld [vmem:[%s60] sm:%s3]
    %s62 = scalar_lea.vmem [#allocation0], 8
    %63 = vst [vmem:[%s62] sm:%s3] %v61
    %v64 = vld [vmem:[%s0] sm:%s3]
    %65 = vst [vmem:[#allocation0] sm:%s3] %v64
    %v66 = vld [vmem:[#allocation0] ss:$8 sm:$0xf]
    %v67 = vld [vmem:[#allocation0] ss:$8 sm:$0xf0]
    %vm68 = vcmask 1047556
    %v69 = vsel %vm68, %v67, %v66
    %vm70 = vcmask 261120
    %71 = vst.msk [vmem:[%s1] sm:$0xff] %vm70, %v69
    %s72 = scalar_lea.vmem [#allocation0], 64
    %v73 = vld [vmem:[%s72] ss:$8 sm:$0xf]
    %s74 = scalar_lea.vmem [#allocation0], 64
    %v75 = vld [vmem:[%s74] ss:$8 sm:$0xf0]
    %vm76 = vcmask 1047556
    %v77 = vsel %vm76, %v75, %v73
    %vm78 = vcmask 261120
    %s79 = scalar_lea.vmem %s1, 8
    %80 = vst.msk [vmem:[%s79] sm:$0xff] %vm78, %v77
    %s81 = scalar_lea.vmem [#allocation0], 3
    %v82 = vld [vmem:[%s81] ss:$8 sm:$0xf]
    %s83 = scalar_lea.vmem [#allocation0], 3
    %v84 = vld [vmem:[%s83] ss:$8 sm:$0xf0]
    %vm85 = vcmask 1047556
    %v86 = vsel %vm85, %v84, %v82
    %87 = vrot.lane.b32.xlu0 %v86, 96
    %v88 = vpop.permute.xlu0 %87
    %vm89 = vcmask 1048320
    %90 = vst.msk [vmem:[%s1] sm:$0xff] %vm89, %v88
    %s91 = scalar_lea.vmem [#allocation0], 67
    %v92 = vld [vmem:[%s91] ss:$8 sm:$0xf]
    %s93 = scalar_lea.vmem [#allocation0], 67
    %v94 = vld [vmem:[%s93] ss:$8 sm:$0xf0]
    %vm95 = vcmask 1047556
    %v96 = vsel %vm95, %v94, %v92
    %97 = vrot.lane.b32.xlu0 %v96, 96
    %v98 = vpop.permute.xlu0 %97
    %vm99 = vcmask 1048320
    %s100 = scalar_lea.vmem %s1, 8
    %101 = vst.msk [vmem:[%s100] sm:$0xff] %vm99, %v98
    %s102 = scalar_lea.vmem [#allocation0], 2
    %v103 = vld [vmem:[%s102] ss:$8 sm:$0xf]
    %s104 = scalar_lea.vmem [#allocation0], 2
    %v105 = vld [vmem:[%s104] ss:$8 sm:$0xf0]
    %vm106 = vcmask 1047556
    %v107 = vsel %vm106, %v105, %v103
    %108 = vrot.lane.b32.xlu0 %v107, 64
    %v109 = vpop.permute.xlu0 %108
    %vm110 = vcmask 785920
    %111 = vst.msk [vmem:[%s1] sm:$0xff] %vm110, %v109
    %s112 = scalar_lea.vmem [#allocation0], 66
    %v113 = vld [vmem:[%s112] ss:$8 sm:$0xf]
    %s114 = scalar_lea.vmem [#allocation0], 66
    %v115 = vld [vmem:[%s114] ss:$8 sm:$0xf0]
    %vm116 = vcmask 1047556
    %v117 = vsel %vm116, %v115, %v113
    %118 = vrot.lane.b32.xlu0 %v117, 64
    %v119 = vpop.permute.xlu0 %118
    %vm120 = vcmask 785920
    %s121 = scalar_lea.vmem %s1, 8
    %122 = vst.msk [vmem:[%s121] sm:$0xff] %vm120, %v119
    %s123 = scalar_lea.vmem [#allocation0], 1
    %v124 = vld [vmem:[%s123] ss:$8 sm:$0xf]
    %s125 = scalar_lea.vmem [#allocation0], 1
    %v126 = vld [vmem:[%s125] ss:$8 sm:$0xf0]
    %vm127 = vcmask 1047556
    %v128 = vsel %vm127, %v126, %v124
    %129 = vrot.lane.b32.xlu0 %v128, 32
    %v130 = vpop.permute.xlu0 %129
    %vm131 = vcmask 523520
    %132 = vst.msk [vmem:[%s1] sm:$0xff] %vm131, %v130
    %s133 = scalar_lea.vmem [#allocation0], 65
    %v134 = vld [vmem:[%s133] ss:$8 sm:$0xf]
    %s135 = scalar_lea.vmem [#allocation0], 65
    %v136 = vld [vmem:[%s135] ss:$8 sm:$0xf0]
    %vm137 = vcmask 1047556
    %v138 = vsel %vm137, %v136, %v134
    %139 = vrot.lane.b32.xlu0 %v138, 32
    %v140 = vpop.permute.xlu0 %139
    %vm141 = vcmask 523520
    %s142 = scalar_lea.vmem %s1, 8
    %143 = vst.msk [vmem:[%s142] sm:$0xff] %vm141, %v140

// kernel: spatio_temporal_block.4
$region0: #{spatio_temporal_block.4}
  #allocation0 [shape = 'u32[]', space=smem, size = 0x4, offset = 0x4, fixed_abs, tag = 'smem constant byte address 0x4 - core index']
  #allocation1 [shape = 'u32[72,128]{1,0:T(1,128)}', space=vmem, size = 0x9000, scoped, tag = 'internal scratch']
  %s0 = inlined_call_operand.vmem [shape: f32[2,16,4,128], index: 0, kind: input, shape index: {}]
  %s1 = inlined_call_operand.vmem [shape: f32[1,128], index: 1, kind: input, shape index: {}]
  %s2 = inlined_call_operand.vmem [shape: f32[1,128], index: 2, kind: input, shape index: {}]
  %s3 = inlined_call_operand.vmem [shape: bf16[128,384], index: 3, kind: input, shape index: {}]
  %s4 = inlined_call_operand.vmem [shape: bf16[128,128], index: 4, kind: input, shape index: {}]
  %s5 = inlined_call_operand.vmem [shape: f32[1,128], index: 5, kind: input, shape index: {}]
  %s6 = inlined_call_operand.vmem [shape: f32[4,128], index: 6, kind: input, shape index: {}]
  %s7 = inlined_call_operand.vmem [shape: f32[4,128], index: 7, kind: input, shape index: {}]
  %s8 = inlined_call_operand.vmem [shape: f32[2,16,4,128], index: 8, kind: output, shape index: {}]
  %s9 = sld [smem:[#allocation0]]
  $region65: #{spatio_temporal_block.4} parent=0
    _
  %s11 = ssub.s32 1, %s9
  %s12 = scalar_select 0, %s11, %s9
  loop: start=0, step=1, limit=34
  $region2: #{spatio_temporal_block.4} parent=0 // loop_pre_header
    _
  $region3: #{spatio_temporal_block.4} parent=0 // loop_header
    %s14 = sphi 0, %s18
    %p15 = scmp.ge.s32.totalorder %s14, 34
    %s21 = sphi 0, %s33
    %s22 = sphi 0, %s29
    %s23 = sphi 0, %s21
    %s24 = sphi 0, %s22
    %s25 = sphi 0, %s23
    %s26 = sphi 0, %s24
    %s38 = sphi 0, %s40
    %s41 = sphi 0, %s38
    %s42 = sphi 0, %s41
    %s58 = sphi 0, %s42
    %s62 = sphi 0, %s62
    %s64 = sphi 0, %s62
    %s65 = sphi 0, %s64
    %s79 = sphi 0, %s65
    %s83 = sphi 0, %s83
    %s85 = sphi 0, %s83
    %s86 = sphi 0, %s85
    %s100 = sphi 0, %s86
    %s104 = sphi 0, %s104
    %s106 = sphi 0, %s104
    %s107 = sphi 0, %s106
    %s121 = sphi 0, %s107
    %s125 = sphi 0, %s125
    %s127 = sphi 0, %s125
    %s128 = sphi 0, %s127
    %s142 = sphi 0, %s128
    %s146 = sphi 0, %s146
    %s148 = sphi 0, %s146
    %s149 = sphi 0, %s148
    %s163 = sphi 0, %s149
    %s167 = sphi 0, %s167
    %s169 = sphi 0, %s167
    %s170 = sphi 0, %s169
    %s184 = sphi 0, %s170
    %s188 = sphi 0, %s188
    %s190 = sphi 0, %s188
    %s191 = sphi 0, %s190
    %s205 = sphi 0, %s191
    %s213 = sphi 0, %s215
    %s216 = sphi 0, %s213
    %s217 = sphi 0, %s216
    %s233 = sphi 0, %s217
  $region4: #{spatio_temporal_block.4} parent=0 // loop_header_branch
    %17 = sbr.rel (%p15) target = $region8
  $region5: #{spatio_temporal_block.4} parent=0 // loop_body
    %s19 = ssub.s32 %s14, 1
    %s20 = ssub.s32 %s14, 2
    %s27 = sadd.s32 1, %s22
    %p28 = scmp.ge.s32.totalorder %s27, 16
    %s29 = scalar_select %p28, 0, %s27
    %s30 = sadd.s32 1, %s21
    %s31 = scalar_select %p28, %s30, %s21
    %p32 = scmp.ge.s32.totalorder %s31, 2
    %s33 = scalar_select %p32, 0, %s31
    %s34 = ssub.s32 %s21, %s33
    %s35 = ssub.s32 %s22, %s29
    %s36 = sor.u32 %s34, %s35
    %p37 = scmp.eq.s32.totalorder %s36, 0
    %s39 = sadd.s32 %s38, 1
    %s40 = scalar_select %p37, %s38, %s39
    %p43 = pneg %p37
    %p44 = scmp.eq.s32.totalorder %s14, 31
    %p45 = por %p43, %p44
    %p46 = scmp.ne.s32.totalorder %s38, %s41
    %p47 = scmp.eq.s32.totalorder %s14, 0
    %p48 = por %p46, %p47
    %p49 = scmp.ne.s32.totalorder %s38, %s41
    %p50 = scmp.eq.s32.totalorder %s19, 31
    %p51 = por %p49, %p50
    %p52 = scmp.ne.s32.totalorder %s41, %s42
    %p53 = scmp.eq.s32.totalorder %s19, 0
    %p54 = por %p52, %p53
    %p55 = scmp.ne.s32.totalorder %s41, %s42
    %p56 = scmp.eq.s32.totalorder %s20, 31
    %p57 = por %p55, %p56
    %p59 = scmp.ne.s32.totalorder %s42, %s58
    %p60 = scmp.eq.s32.totalorder %s20, 0
    %p61 = por %p59, %p60
    %s63 = sadd.s32 %s62, 1
    %p66 = scmp.eq.s32.totalorder %s14, 31
    %p67 = scmp.ne.s32.totalorder %s62, %s64
    %p68 = scmp.eq.s32.totalorder %s14, 0
    %p69 = por %p67, %p68
    %p70 = scmp.ne.s32.totalorder %s62, %s64
    %p71 = scmp.eq.s32.totalorder %s19, 31
    %p72 = por %p70, %p71
    %p73 = scmp.ne.s32.totalorder %s64, %s65
    %p74 = scmp.eq.s32.totalorder %s19, 0
    %p75 = por %p73, %p74
    %p76 = scmp.ne.s32.totalorder %s64, %s65
    %p77 = scmp.eq.s32.totalorder %s20, 31
    %p78 = por %p76, %p77
    %p80 = scmp.ne.s32.totalorder %s65, %s79
    %p81 = scmp.eq.s32.totalorder %s20, 0
    %p82 = por %p80, %p81
    %s84 = sadd.s32 %s83, 1
    %p87 = scmp.eq.s32.totalorder %s14, 31
    %p88 = scmp.ne.s32.totalorder %s83, %s85
    %p89 = scmp.eq.s32.totalorder %s14, 0
    %p90 = por %p88, %p89
    %p91 = scmp.ne.s32.totalorder %s83, %s85
    %p92 = scmp.eq.s32.totalorder %s19, 31
    %p93 = por %p91, %p92
    %p94 = scmp.ne.s32.totalorder %s85, %s86
    %p95 = scmp.eq.s32.totalorder %s19, 0
    %p96 = por %p94, %p95
    %p97 = scmp.ne.s32.totalorder %s85, %s86
    %p98 = scmp.eq.s32.totalorder %s20, 31
    %p99 = por %p97, %p98
    %p101 = scmp.ne.s32.totalorder %s86, %s100
    %p102 = scmp.eq.s32.totalorder %s20, 0
    %p103 = por %p101, %p102
    %s105 = sadd.s32 %s104, 1
    %p108 = scmp.eq.s32.totalorder %s14, 31
    %p109 = scmp.ne.s32.totalorder %s104, %s106
    %p110 = scmp.eq.s32.totalorder %s14, 0
    %p111 = por %p109, %p110
    %p112 = scmp.ne.s32.totalorder %s104, %s106
    %p113 = scmp.eq.s32.totalorder %s19, 31
    %p114 = por %p112, %p113
    %p115 = scmp.ne.s32.totalorder %s106, %s107
    %p116 = scmp.eq.s32.totalorder %s19, 0
    %p117 = por %p115, %p116
    %p118 = scmp.ne.s32.totalorder %s106, %s107
    %p119 = scmp.eq.s32.totalorder %s20, 31
    %p120 = por %p118, %p119
    %p122 = scmp.ne.s32.totalorder %s107, %s121
    %p123 = scmp.eq.s32.totalorder %s20, 0
    %p124 = por %p122, %p123
    %s126 = sadd.s32 %s125, 1
    %p129 = scmp.eq.s32.totalorder %s14, 31
    %p130 = scmp.ne.s32.totalorder %s125, %s127
    %p131 = scmp.eq.s32.totalorder %s14, 0
    %p132 = por %p130, %p131
    %p133 = scmp.ne.s32.totalorder %s125, %s127
    %p134 = scmp.eq.s32.totalorder %s19, 31
    %p135 = por %p133, %p134
    %p136 = scmp.ne.s32.totalorder %s127, %s128
    %p137 = scmp.eq.s32.totalorder %s19, 0
    %p138 = por %p136, %p137
    %p139 = scmp.ne.s32.totalorder %s127, %s128
    %p140 = scmp.eq.s32.totalorder %s20, 31
    %p141 = por %p139, %p140
    %p143 = scmp.ne.s32.totalorder %s128, %s142
    %p144 = scmp.eq.s32.totalorder %s20, 0
    %p145 = por %p143, %p144
    %s147 = sadd.s32 %s146, 1
    %p150 = scmp.eq.s32.totalorder %s14, 31
    %p151 = scmp.ne.s32.totalorder %s146, %s148
    %p152 = scmp.eq.s32.totalorder %s14, 0
    %p153 = por %p151, %p152
    %p154 = scmp.ne.s32.totalorder %s146, %s148
    %p155 = scmp.eq.s32.totalorder %s19, 31
    %p156 = por %p154, %p155
    %p157 = scmp.ne.s32.totalorder %s148, %s149
    %p158 = scmp.eq.s32.totalorder %s19, 0
    %p159 = por %p157, %p158
    %p160 = scmp.ne.s32.totalorder %s148, %s149
    %p161 = scmp.eq.s32.totalorder %s20, 31
    %p162 = por %p160, %p161
    %p164 = scmp.ne.s32.totalorder %s149, %s163
    %p165 = scmp.eq.s32.totalorder %s20, 0
    %p166 = por %p164, %p165
    %s168 = sadd.s32 %s167, 1
    %p171 = scmp.eq.s32.totalorder %s14, 31
    %p172 = scmp.ne.s32.totalorder %s167, %s169
    %p173 = scmp.eq.s32.totalorder %s14, 0
    %p174 = por %p172, %p173
    %p175 = scmp.ne.s32.totalorder %s167, %s169
    %p176 = scmp.eq.s32.totalorder %s19, 31
    %p177 = por %p175, %p176
    %p178 = scmp.ne.s32.totalorder %s169, %s170
    %p179 = scmp.eq.s32.totalorder %s19, 0
    %p180 = por %p178, %p179
    %p181 = scmp.ne.s32.totalorder %s169, %s170
    %p182 = scmp.eq.s32.totalorder %s20, 31
    %p183 = por %p181, %p182
    %p185 = scmp.ne.s32.totalorder %s170, %s184
    %p186 = scmp.eq.s32.totalorder %s20, 0
    %p187 = por %p185, %p186
    %s189 = sadd.s32 %s188, 1
    %p192 = scmp.eq.s32.totalorder %s14, 31
    %p193 = scmp.ne.s32.totalorder %s188, %s190
    %p194 = scmp.eq.s32.totalorder %s14, 0
    %p195 = por %p193, %p194
    %p196 = scmp.ne.s32.totalorder %s188, %s190
    %p197 = scmp.eq.s32.totalorder %s19, 31
    %p198 = por %p196, %p197
    %p199 = scmp.ne.s32.totalorder %s190, %s191
    %p200 = scmp.eq.s32.totalorder %s19, 0
    %p201 = por %p199, %p200
    %p202 = scmp.ne.s32.totalorder %s190, %s191
    %p203 = scmp.eq.s32.totalorder %s20, 31
    %p204 = por %p202, %p203
    %p206 = scmp.ne.s32.totalorder %s191, %s205
    %p207 = scmp.eq.s32.totalorder %s20, 0
    %p208 = por %p206, %p207
    %s209 = ssub.s32 %s21, %s33
    %s210 = ssub.s32 %s22, %s29
    %s211 = sor.u32 %s209, %s210
    %p212 = scmp.eq.s32.totalorder %s211, 0
    %s214 = sadd.s32 %s213, 1
    %s215 = scalar_select %p212, %s213, %s214
    %p218 = pneg %p212
    %p219 = scmp.eq.s32.totalorder %s14, 31
    %p220 = por %p218, %p219
    %p221 = scmp.ne.s32.totalorder %s213, %s216
    %p222 = scmp.eq.s32.totalorder %s14, 0
    %p223 = por %p221, %p222
    %p224 = scmp.ne.s32.totalorder %s213, %s216
    %p225 = scmp.eq.s32.totalorder %s19, 31
    %p226 = por %p224, %p225
    %p227 = scmp.ne.s32.totalorder %s216, %s217
    %p228 = scmp.eq.s32.totalorder %s19, 0
    %p229 = por %p227, %p228
    %p230 = scmp.ne.s32.totalorder %s216, %s217
    %p231 = scmp.eq.s32.totalorder %s20, 31
    %p232 = por %p230, %p231
    %p234 = scmp.ne.s32.totalorder %s217, %s233
    %p235 = scmp.eq.s32.totalorder %s20, 0
    %p236 = por %p234, %p235
    %p237 = scmp.le.s32.totalorder 1, %s14
    %p238 = scmp.lt.s32.totalorder %s14, 33
    %p239 = pnand %p237, %p238
    %p240 = pneg %p239
    // Predicated region
    $region9: #{spatio_temporal_block.4} parent=5 // pred_check
      _
    $region10: #{spatio_temporal_block.4} parent=5 // pred_check_branch
      %242 = sbr.rel (%p239) target = $region12
    $region11: #{spatio_temporal_block.4} parent=5 // pred_region
      %s243 = ssub.s32 %s14, 1
      // Predicated region
      $region13: #{spatio_temporal_block.4} parent=11 // pred_check
        %p244 = pneg %p75
      $region14: #{spatio_temporal_block.4} parent=11 // pred_check_branch
        %246 = sbr.rel (%p244) target = $region16
      $region15: #{spatio_temporal_block.4} parent=11 // pred_region
        _
      $region16: #{spatio_temporal_block.4} parent=11 // pred_fallthru
        _
      // Predicated region
      $region17: #{spatio_temporal_block.4} parent=11 // pred_check
        %p247 = pneg %p96
      $region18: #{spatio_temporal_block.4} parent=11 // pred_check_branch
        %249 = sbr.rel (%p247) target = $region20
      $region19: #{spatio_temporal_block.4} parent=11 // pred_region
        _
      $region20: #{spatio_temporal_block.4} parent=11 // pred_fallthru
        _
      // Predicated region
      $region21: #{spatio_temporal_block.4} parent=11 // pred_check
        %p250 = pneg %p117
      $region22: #{spatio_temporal_block.4} parent=11 // pred_check_branch
        %252 = sbr.rel (%p250) target = $region24
      $region23: #{spatio_temporal_block.4} parent=11 // pred_region
        _
      $region24: #{spatio_temporal_block.4} parent=11 // pred_fallthru
        _
      // Predicated region
      $region25: #{spatio_temporal_block.4} parent=11 // pred_check
        %p253 = pneg %p138
      $region26: #{spatio_temporal_block.4} parent=11 // pred_check_branch
        %255 = sbr.rel (%p253) target = $region28
      $region27: #{spatio_temporal_block.4} parent=11 // pred_region
        _
      $region28: #{spatio_temporal_block.4} parent=11 // pred_fallthru
        _
      // Predicated region
      $region29: #{spatio_temporal_block.4} parent=11 // pred_check
        %p256 = pneg %p159
      $region30: #{spatio_temporal_block.4} parent=11 // pred_check_branch
        %258 = sbr.rel (%p256) target = $region32
      $region31: #{spatio_temporal_block.4} parent=11 // pred_region
        _
      $region32: #{spatio_temporal_block.4} parent=11 // pred_fallthru
        _
      // Predicated region
      $region33: #{spatio_temporal_block.4} parent=11 // pred_check
        %p259 = pneg %p180
      $region34: #{spatio_temporal_block.4} parent=11 // pred_check_branch
        %261 = sbr.rel (%p259) target = $region36
      $region35: #{spatio_temporal_block.4} parent=11 // pred_region
        _
      $region36: #{spatio_temporal_block.4} parent=11 // pred_fallthru
        _
      // Predicated region
      $region37: #{spatio_temporal_block.4} parent=11 // pred_check
        %p262 = pneg %p201
      $region38: #{spatio_temporal_block.4} parent=11 // pred_check_branch
        %264 = sbr.rel (%p262) target = $region40
      $region39: #{spatio_temporal_block.4} parent=11 // pred_region
        _
      $region40: #{spatio_temporal_block.4} parent=11 // pred_fallthru
        _
    $region12: #{spatio_temporal_block.4} parent=5 // pred_fallthru
      _
    %p265 = scmp.lt.s32.totalorder %s14, 32
    // Predicated region
    $region41: #{spatio_temporal_block.4} parent=5 // pred_check
      %p266 = pneg %p265
    $region42: #{spatio_temporal_block.4} parent=5 // pred_check_branch
      %268 = sbr.rel (%p266) target = $region44
    $region43: #{spatio_temporal_block.4} parent=5 // pred_region
      // Predicated region
      $region45: #{spatio_temporal_block.4} parent=43 // pred_check
        %p269 = pneg %p48
      $region46: #{spatio_temporal_block.4} parent=43 // pred_check_branch
        %271 = sbr.rel (%p269) target = $region48
      $region47: #{spatio_temporal_block.4} parent=43 // pred_region
        %p272 = scmp.lt.s32.totalorder %s21, 1
        %s273 = scalar_select %p272, %s21, 1
        %p274 = scmp.lt.s32.totalorder %s22, 15
        %s275 = scalar_select %p274, %s22, 15
        %s276 = smul.addr %s273, 16
        %s277 = sadd.s32 %s275, %s276
        %s278 = smul.addr %s277, 4
        %s279 = scalar_lea.vmem %s0, %s278
      $region48: #{spatio_temporal_block.4} parent=43 // pred_fallthru
        _
    $region44: #{spatio_temporal_block.4} parent=5 // pred_fallthru
      _
    %p280 = scmp.le.s32.totalorder 1, %s14
    %p281 = scmp.lt.s32.totalorder %s14, 33
    %p282 = pnand %p280, %p281
    %p283 = pneg %p282
    // Predicated region
    $region49: #{spatio_temporal_block.4} parent=5 // pred_check
      _
    $region50: #{spatio_temporal_block.4} parent=5 // pred_check_branch
      %285 = sbr.rel (%p282) target = $region52
    $region51: #{spatio_temporal_block.4} parent=5 // pred_region
      %s286 = ssub.s32 %s14, 1
      %p287 = scmp.lt.s32.totalorder %s23, 1
      %s288 = scalar_select %p287, %s23, 1
      %p289 = scmp.lt.s32.totalorder %s24, 15
      %s290 = scalar_select %p289, %s24, 15
      %s291 = smul.addr %s288, 16
      %s292 = sadd.s32 %s290, %s291
      %s293 = smul.addr %s292, 4
      %s294 = scalar_lea.vmem %s0, %s293
      %p295 = pneg %p54
      %p296 = pneg %p51
      %p297 = pneg %p75
      %p298 = pneg %p72
      %p299 = pneg %p96
      %p300 = pneg %p93
      %p301 = pneg %p117
      %p302 = pneg %p114
      %p303 = pneg %p138
      %p304 = pneg %p135
      %p305 = pneg %p159
      %p306 = pneg %p156
      %p307 = pneg %p180
      %p308 = pneg %p177
      %p309 = pneg %p201
      %p310 = pneg %p198
      %p311 = pneg %p229
      %p312 = pneg %p226
      %p313 = scmp.lt.s32.totalorder %s23, 1
      %s314 = scalar_select %p313, %s23, 1
      %p315 = scmp.lt.s32.totalorder %s24, 15
      %s316 = scalar_select %p315, %s24, 15
      %s317 = smul.addr %s314, 16
      %s318 = sadd.s32 %s316, %s317
      %s319 = smul.addr %s318, 4
      %s320 = scalar_lea.vmem %s8, %s319
      %p321 = scmp.lt.s32.totalorder %s23, 1
      %s322 = scalar_select %p321, %s23, 1
      %p323 = scmp.lt.s32.totalorder %s24, 15
      %s324 = scalar_select %p323, %s24, 15
      %s325 = smul.addr %s322, 16
      %s326 = sadd.s32 %s324, %s325
      %s327 = smul.addr %s326, 4
      %s328 = scalar_lea.vmem %s0, %s327
      %p329 = scmp.lt.s32.totalorder %s23, 1
      %s330 = scalar_select %p329, %s23, 1
      %p331 = scmp.lt.s32.totalorder %s24, 15
      %s332 = scalar_select %p331, %s24, 15
      %s333 = smul.addr %s330, 16
      %s334 = sadd.s32 %s332, %s333
      %s335 = smul.addr %s334, 4
      %s336 = scalar_lea.vmem %s8, %s335
      %v338 = vld [vmem:[%s328] sm:$0xf]
      %v339 = vld [vmem:[%s1] sm:$0x1]
      %v340 = vld [vmem:[%s2] sm:$0x1]
      %vm341 = vcmask 1043456
      %v342 = vsel %vm341, %v338, 0.0
      %343 = vadd.xlane.f32.xlu0 %v342
      %v344 = vpop.xlane.xlu0 %343
      %v345 = vrcp.pop 128.0
      %v346 = vmul.f32 128.0, %v345
      %v347 = vsub.f32 1.0, %v346
      %v348 = vmul.f32 %v345, %v347
      %v349 = vadd.f32 %v345, %v348
      %vm350 = vweird.f32 %v345
      %v351 = vsel %vm350, %v345, %v349
      %v352 = vmul.f32 %v344, %v351
      %v353 = vsub.f32 %v338, %v352
      %v354 = vmul.f32 %v353, %v353
      %v355 = vsel %vm341, %v354, 0.0
      %356 = vadd.xlane.f32.xlu0 %v355
      %v357 = vpop.xlane.xlu0 %356
      %v358 = vmul.f32 %v357, %v351
      %v359 = vadd.f32 %v358, 1e-05
      %v360 = vrsqrt.pop %v359
      %v361 = vmul.f32 %v360, %v359
      %v362 = vmul.f32 %v361, %v360
      %v363 = vmul.f32 0.5, %v362
      %v364 = vsub.f32 1.5, %v363
      %v365 = vmul.f32 %v360, %v364
      %vm366 = vweird.f32 %v359
      %vm367 = vweird.f32 %v360
      %vm368 = vmor %vm366, %vm367
      %v369 = vsel %vm368, %v360, %v365
      %v370 = vmul.f32 %v353, %v369
      %v372 = vperm.slane %v339, 0
      %v374 = vmul.f32 %v370, %v372
      %v376 = vperm.slane %v340, 0
      %v378 = vadd.f32 %v374, %v376
      %v379 = vpack.c.bf16 %v378, %v378
      %v380 = vld [vmem:[%s3] sm:$0xff]
      %v381 = vld [vmem:[%s3 + $0x8] sm:$0xf]
      %v382 = vld [vmem:[%s3 + $0xc] sm:$0xff]
      %v383 = vld [vmem:[%s3 + $0x14] sm:$0xf]
      %v384 = vld [vmem:[%s3 + $0x18] sm:$0xff]
      %v385 = vld [vmem:[%s3 + $0x20] sm:$0xf]
      %v386 = vld [vmem:[%s3 + $0x24] sm:$0xff]
      %v387 = vld [vmem:[%s3 + $0x2c] sm:$0xf]
      %v388 = vld [vmem:[%s3 + $0x30] sm:$0xff]
      %v389 = vld [vmem:[%s3 + $0x38] sm:$0xf]
      %v390 = vld [vmem:[%s3 + $0x3c] sm:$0xff]
      %v391 = vld [vmem:[%s3 + $0x44] sm:$0xf]
      %v392 = vld [vmem:[%s3 + $0x48] sm:$0xff]
      %v393 = vld [vmem:[%s3 + $0x50] sm:$0xf]
      %v394 = vld [vmem:[%s3 + $0x54] sm:$0xff]
      %v395 = vld [vmem:[%s3 + $0x5c] sm:$0xf]
      %v396 = vld [vmem:[%s3 + $0x60] sm:$0xff]
      %v397 = vld [vmem:[%s3 + $0x68] sm:$0xf]
      %v398 = vld [vmem:[%s3 + $0x6c] sm:$0xff]
      %v399 = vld [vmem:[%s3 + $0x74] sm:$0xf]
      %v400 = vld [vmem:[%s3 + $0x78] sm:$0xff]
      %v401 = vld [vmem:[%s3 + $0x80] sm:$0xf]
      %v402 = vld [vmem:[%s3 + $0x84] sm:$0xff]
      %v403 = vld [vmem:[%s3 + $0x8c] sm:$0xf]
      %v404 = vld [vmem:[%s3 + $0x90] sm:$0xff]
      %v405 = vld [vmem:[%s3 + $0x98] sm:$0xf]
      %v406 = vld [vmem:[%s3 + $0x9c] sm:$0xff]
      %v407 = vld [vmem:[%s3 + $0xa4] sm:$0xf]
      %v408 = vld [vmem:[%s3 + $0xa8] sm:$0xff]
      %v409 = vld [vmem:[%s3 + $0xb0] sm:$0xf]
      %v410 = vld [vmem:[%s3 + $0xb4] sm:$0xff]
      %v411 = vld [vmem:[%s3 + $0xbc] sm:$0xf]
      %v444 = vunpack.c.l.b16 %v380
      %v445 = vunpack.c.h.b16 %v380
      %v446 = vunpack.c.l.b16 %v381
      %v447 = vunpack.c.l.b16 %v382
      %v448 = vunpack.c.h.b16 %v382
      %v449 = vunpack.c.l.b16 %v383
      %v450 = vunpack.c.l.b16 %v384
      %v451 = vunpack.c.h.b16 %v384
      %v452 = vunpack.c.l.b16 %v385
      %v453 = vunpack.c.l.b16 %v386
      %v454 = vunpack.c.h.b16 %v386
      %v455 = vunpack.c.l.b16 %v387
      %v456 = vunpack.c.l.b16 %v388
      %v457 = vunpack.c.h.b16 %v388
      %v458 = vunpack.c.l.b16 %v389
      %v459 = vunpack.c.l.b16 %v390
      %v460 = vunpack.c.h.b16 %v390
      %v461 = vunpack.c.l.b16 %v391
      %v462 = vunpack.c.l.b16 %v392
      %v463 = vunpack.c.h.b16 %v392
      %v464 = vunpack.c.l.b16 %v393
      %v465 = vunpack.c.l.b16 %v394
      %v466 = vunpack.c.h.b16 %v394
      %v467 = vunpack.c.l.b16 %v395
      %v468 = vunpack.c.l.b16 %v396
      %v469 = vunpack.c.h.b16 %v396
      %v470 = vunpack.c.l.b16 %v397
      %v471 = vunpack.c.l.b16 %v398
      %v472 = vunpack.c.h.b16 %v398
      %v473 = vunpack.c.l.b16 %v399
      %v474 = vunpack.c.l.b16 %v400
      %v475 = vunpack.c.h.b16 %v400
      %v476 = vunpack.c.l.b16 %v401
      %v477 = vunpack.c.l.b16 %v402
      %v478 = vunpack.c.h.b16 %v402
      %v479 = vunpack.c.l.b16 %v403
      %v480 = vunpack.c.l.b16 %v404
      %v481 = vunpack.c.h.b16 %v404
      %v482 = vunpack.c.l.b16 %v405
      %v483 = vunpack.c.l.b16 %v406
      %v484 = vunpack.c.h.b16 %v406
      %v485 = vunpack.c.l.b16 %v407
      %v486 = vunpack.c.l.b16 %v408
      %v487 = vunpack.c.h.b16 %v408
      %v488 = vunpack.c.l.b16 %v409
      %v489 = vunpack.c.l.b16 %v410
      %v490 = vunpack.c.h.b16 %v410
      %v491 = vunpack.c.l.b16 %v411
      %v492 = vpack.c.b16 %v447, %v444
      %v493 = vpack.c.b16 %v448, %v445
      %v494 = vpack.c.b16 %v449, %v446
      %v495 = vpack.c.b16 %v453, %v450
      %v496 = vpack.c.b16 %v454, %v451
      %v497 = vpack.c.b16 %v455, %v452
      %v498 = vpack.c.b16 %v459, %v456
      %v499 = vpack.c.b16 %v460, %v457
      %v500 = vpack.c.b16 %v461, %v458
      %v501 = vpack.c.b16 %v465, %v462
      %v502 = vpack.c.b16 %v466, %v463
      %v503 = vpack.c.b16 %v467, %v464
      %v504 = vpack.c.b16 %v471, %v468
      %v505 = vpack.c.b16 %v472, %v469
      %v506 = vpack.c.b16 %v473, %v470
      %v507 = vpack.c.b16 %v477, %v474
      %v508 = vpack.c.b16 %v478, %v475
      %v509 = vpack.c.b16 %v479, %v476
      %v510 = vpack.c.b16 %v483, %v480
      %v511 = vpack.c.b16 %v484, %v481
      %v512 = vpack.c.b16 %v485, %v482
      %v513 = vpack.c.b16 %v489, %v486
      %v514 = vpack.c.b16 %v490, %v487
      %v515 = vpack.c.b16 %v491, %v488
      %540 = vmatpush.bf16.msra.mxu0 %v513
      %541 = vmatpush.bf16.msra.mxu0 %v510
      %542 = vmatpush.bf16.msra.mxu0 %v507
      %543 = vmatpush.bf16.msra.mxu0 %v504
      %544 = vmatpush.bf16.msra.mxu0 %v501
      %545 = vmatpush.bf16.msra.mxu0 %v498
      %546 = vmatpush.bf16.msra.mxu0 %v495
      %547 = vmatpush.bf16.msra.mxu0 %v492
      %548 = vmatmul.bf16.gmra.mxu0 %v379
      %v549 = vpop.f32.mrf.mxu0
      %v550 = vadd.f32 0.0, %v549
      %v551 = vpop.f32.mrf.mxu0
      %552 = vdwg.mxu0
      %553 = vmatpush.bf16.msra.mxu0 %v514
      %554 = vmatpush.bf16.msra.mxu0 %v511
      %555 = vmatpush.bf16.msra.mxu0 %v508
      %556 = vmatpush.bf16.msra.mxu0 %v505
      %557 = vmatpush.bf16.msra.mxu0 %v502
      %558 = vmatpush.bf16.msra.mxu0 %v499
      %559 = vmatpush.bf16.msra.mxu0 %v496
      %560 = vmatpush.bf16.msra.mxu0 %v493
      %561 = vmatmul.bf16.gmra.mxu0 %v379
      %v562 = vpop.f32.mrf.mxu0
      %v563 = vadd.f32 0.0, %v562
      %v564 = vpop.f32.mrf.mxu0
      %565 = vdwg.mxu0
      %566 = vmatpush.bf16.msra.mxu0 %v515
      %567 = vmatpush.bf16.msra.mxu0 %v512
      %568 = vmatpush.bf16.msra.mxu0 %v509
      %569 = vmatpush.bf16.msra.mxu0 %v506
      %570 = vmatpush.bf16.msra.mxu0 %v503
      %571 = vmatpush.bf16.msra.mxu0 %v500
      %572 = vmatpush.bf16.msra.mxu0 %v497
      %573 = vmatpush.bf16.msra.mxu0 %v494
      %574 = vmatmul.bf16.gmra.mxu0 %v379
      %v575 = vpop.f32.mrf.mxu0
      %v576 = vadd.f32 0.0, %v575
      %v577 = vpop.f32.mrf.mxu0
      %578 = vdwg.mxu0
      %v579 = vld [vmem:[%s6] sm:$0xf]
      %v580 = vld [vmem:[%s7] sm:$0xf]
      %v581 = vmul.f32 %v550, %v579
      %582 = vrot.lane.b32.xlu0 %v550, 127
      %v583 = vpop.permute.xlu0 %582
      %584 = vrot.lane.b32.xlu0 %v550, 1
      %v585 = vpop.permute.xlu0 %584
      %v586 = vlaneseq
      %v587 = vand.u32 %v586, 127
      %vm588 = vcmp.lt.s32.totalorder %v587, 0
      %v589 = vsub.s32 0, %v587
      %v590 = vsel %vm588, %v589, %v587
      %v591 = vshrl.u32 %v590, 1
      %v592 = vand.u32 %v590, 1
      %v593 = vsub.s32 0, %v592
      %v594 = vsel %vm588, %v593, %v592
      %vm595 = vcmp.ne.s32.totalorder %v594, 0
      %vm596 = vcmp.lt.s32.totalorder %v594, 0
      %vm597 = vmand %vm596, %vm595
      %v598 = vadd.s32 %v594, 2
      %v599 = vsel %vm597, %v598, %v594
      %vm600 = vcmp.eq.s32.totalorder %v599, 0
      %v601 = vsub.f32 0.0, %v583
      %v602 = vsel %vm600, %v601, %v585
      %v603 = vmul.f32 %v602, %v580
      %v604 = vadd.f32 %v581, %v603
      %v605 = vmul.f32 %v563, %v579
      %606 = vrot.lane.b32.xlu0 %v563, 127
      %v607 = vpop.permute.xlu0 %606
      %608 = vrot.lane.b32.xlu0 %v563, 1
      %v609 = vpop.permute.xlu0 %608
      %v610 = vsub.f32 0.0, %v607
      %v611 = vsel %vm600, %v610, %v609
      %v612 = vmul.f32 %v611, %v580
      %v613 = vadd.f32 %v605, %v612
      %v614 = vlaneseq
      %v615 = vshrl.u32 %v614, 7
      %vm616 = vcmp.le.s32.totalorder %v587, %v615
      %v617 = vpack.c.bf16 %v604, %v604
      %v618 = vpack.c.bf16 %v613, %v613
      %v619 = vpack.c.bf16 %v576, %v576
      %vm620 = vcmask 261120
      %v622 = vsel %vm620, %v617, 0
      %v625 = vsel %vm620, %v618, 0
      %627 = vmatpush.bf16.xpose.msra.mxu0 0
      %628 = vmatpush.bf16.xpose.msra.mxu0 0
      %629 = vmatpush.bf16.xpose.msra.mxu0 0
      %630 = vmatpush.bf16.xpose.msra.mxu0 0
      %631 = vmatpush.bf16.xpose.msra.mxu0 0
      %632 = vmatpush.bf16.xpose.msra.mxu0 0
      %633 = vmatpush.bf16.xpose.msra.mxu0 0
      %634 = vmatpush.bf16.xpose.msra.mxu0 %v625
      %635 = vmatmul.bf16.gmra.mxu0 %v622
      %v636 = vpop.f32.mrf.mxu0
      %v637 = vadd.f32 0.0, %v636
      %v638 = vpop.f32.mrf.mxu0
      %639 = vdwg.mxu0
      %v640 = vmul.f32 %v637, 0.17677669
      %v641 = vsel %vm616, %v640, -1e+30
      %vm642 = vcmask 27648
      %v643 = vsel %vm642, %v641, -inf
      %644 = vmax.xlane.f32.xlu0 %v643
      %v645 = vpop.xlane.xlu0 %644
      %v646 = vsub.f32 %v641, %v645
      %v647 = vmul.f32 %v646, 1.442695
      %v648 = vpow.pop %v647
      %v649 = vsel %vm642, %v648, 0.0
      %650 = vadd.xlane.f32.xlu0 %v649
      %v651 = vpop.xlane.xlu0 %650
      %v652 = vrcp.pop %v651
      %v653 = vmul.f32 %v648, %v652
      %v654 = vpack.c.bf16 %v653, %v653
      %vm655 = vcmask 31744
      %v657 = vsel %vm655, %v654, 0
      %vm659 = vcmask 1041408
      %v661 = vsel %vm659, %v619, 0
      %663 = vmatpush.bf16.msra.mxu0 0
      %664 = vmatpush.bf16.msra.mxu0 0
      %665 = vmatpush.bf16.msra.mxu0 0
      %666 = vmatpush.bf16.msra.mxu0 0
      %667 = vmatpush.bf16.msra.mxu0 0
      %668 = vmatpush.bf16.msra.mxu0 0
      %669 = vmatpush.bf16.msra.mxu0 0
      %670 = vmatpush.bf16.msra.mxu0 %v661
      %671 = vmatmul.bf16.gmra.mxu0 %v657
      %v672 = vpop.f32.mrf.mxu0
      %v673 = vadd.f32 0.0, %v672
      %v674 = vpop.f32.mrf.mxu0
      %675 = vdwg.mxu0
      %677 = vrot.lane.b32.xlu0 %v617, 96
      %v678 = vpop.permute.xlu0 %677
      %680 = vrot.lane.b32.xlu0 %v618, 96
      %v681 = vpop.permute.xlu0 %680
      %v683 = vsel %vm620, %v678, 0
      %v686 = vsel %vm620, %v681, 0
      %688 = vmatpush.bf16.xpose.msra.mxu0 0
      %689 = vmatpush.bf16.xpose.msra.mxu0 0
      %690 = vmatpush.bf16.xpose.msra.mxu0 0
      %691 = vmatpush.bf16.xpose.msra.mxu0 0
      %692 = vmatpush.bf16.xpose.msra.mxu0 0
      %693 = vmatpush.bf16.xpose.msra.mxu0 0
      %694 = vmatpush.bf16.xpose.msra.mxu0 0
      %695 = vmatpush.bf16.xpose.msra.mxu0 %v686
      %696 = vmatmul.bf16.gmra.mxu0 %v683
      %v697 = vpop.f32.mrf.mxu0
      %v698 = vadd.f32 0.0, %v697
      %v699 = vpop.f32.mrf.mxu0
      %700 = vdwg.mxu0
      %v701 = vmul.f32 %v698, 0.17677669
      %v702 = vsel %vm616, %v701, -1e+30
      %v703 = vsel %vm642, %v702, -inf
      %704 = vmax.xlane.f32.xlu0 %v703
      %v705 = vpop.xlane.xlu0 %704
      %v706 = vsub.f32 %v702, %v705
      %v707 = vmul.f32 %v706, 1.442695
      %v708 = vpow.pop %v707
      %v709 = vsel %vm642, %v708, 0.0
      %710 = vadd.xlane.f32.xlu0 %v709
      %v711 = vpop.xlane.xlu0 %710
      %v712 = vrcp.pop %v711
      %v713 = vmul.f32 %v708, %v712
      %v714 = vpack.c.bf16 %v713, %v713
      %716 = vrot.lane.b32.xlu0 %v619, 96
      %v717 = vpop.permute.xlu0 %716
      %v719 = vsel %vm655, %v714, 0
      %v722 = vsel %vm659, %v717, 0
      %724 = vmatpush.bf16.msra.mxu0 0
      %725 = vmatpush.bf16.msra.mxu0 0
      %726 = vmatpush.bf16.msra.mxu0 0
      %727 = vmatpush.bf16.msra.mxu0 0
      %728 = vmatpush.bf16.msra.mxu0 0
      %729 = vmatpush.bf16.msra.mxu0 0
      %730 = vmatpush.bf16.msra.mxu0 0
      %731 = vmatpush.bf16.msra.mxu0 %v722
      %732 = vmatmul.bf16.gmra.mxu0 %v719
      %v733 = vpop.f32.mrf.mxu0
      %v734 = vadd.f32 0.0, %v733
      %v735 = vpop.f32.mrf.mxu0
      %736 = vdwg.mxu0
      %737 = vrot.lane.b32.xlu0 %v617, 64
      %v738 = vpop.permute.xlu0 %737
      %739 = vrot.lane.b32.xlu0 %v618, 64
      %v740 = vpop.permute.xlu0 %739
      %v742 = vsel %vm620, %v738, 0
      %v745 = vsel %vm620, %v740, 0
      %747 = vmatpush.bf16.xpose.msra.mxu0 0
      %748 = vmatpush.bf16.xpose.msra.mxu0 0
      %749 = vmatpush.bf16.xpose.msra.mxu0 0
      %750 = vmatpush.bf16.xpose.msra.mxu0 0
      %751 = vmatpush.bf16.xpose.msra.mxu0 0
      %752 = vmatpush.bf16.xpose.msra.mxu0 0
      %753 = vmatpush.bf16.xpose.msra.mxu0 0
      %754 = vmatpush.bf16.xpose.msra.mxu0 %v745
      %755 = vmatmul.bf16.gmra.mxu0 %v742
      %v756 = vpop.f32.mrf.mxu0
      %v757 = vadd.f32 0.0, %v756
      %v758 = vpop.f32.mrf.mxu0
      %759 = vdwg.mxu0
      %v760 = vmul.f32 %v757, 0.17677669
      %v761 = vsel %vm616, %v760, -1e+30
      %v762 = vsel %vm642, %v761, -inf
      %763 = vmax.xlane.f32.xlu0 %v762
      %v764 = vpop.xlane.xlu0 %763
      %v765 = vsub.f32 %v761, %v764
      %v766 = vmul.f32 %v765, 1.442695
      %v767 = vpow.pop %v766
      %v768 = vsel %vm642, %v767, 0.0
      %769 = vadd.xlane.f32.xlu0 %v768
      %v770 = vpop.xlane.xlu0 %769
      %v771 = vrcp.pop %v770
      %v772 = vmul.f32 %v767, %v771
      %v773 = vpack.c.bf16 %v772, %v772
      %774 = vrot.lane.b32.xlu0 %v619, 64
      %v775 = vpop.permute.xlu0 %774
      %v777 = vsel %vm655, %v773, 0
      %v780 = vsel %vm659, %v775, 0
      %782 = vmatpush.bf16.msra.mxu0 0
      %783 = vmatpush.bf16.msra.mxu0 0
      %784 = vmatpush.bf16.msra.mxu0 0
      %785 = vmatpush.bf16.msra.mxu0 0
      %786 = vmatpush.bf16.msra.mxu0 0
      %787 = vmatpush.bf16.msra.mxu0 0
      %788 = vmatpush.bf16.msra.mxu0 0
      %789 = vmatpush.bf16.msra.mxu0 %v780
      %790 = vmatmul.bf16.gmra.mxu0 %v777
      %v791 = vpop.f32.mrf.mxu0
      %v792 = vadd.f32 0.0, %v791
      %v793 = vpop.f32.mrf.mxu0
      %794 = vdwg.mxu0
      %795 = vrot.lane.b32.xlu0 %v617, 32
      %v796 = vpop.permute.xlu0 %795
      %797 = vrot.lane.b32.xlu0 %v618, 32
      %v798 = vpop.permute.xlu0 %797
      %v800 = vsel %vm620, %v796, 0
      %v803 = vsel %vm620, %v798, 0
      %805 = vmatpush.bf16.xpose.msra.mxu0 0
      %806 = vmatpush.bf16.xpose.msra.mxu0 0
      %807 = vmatpush.bf16.xpose.msra.mxu0 0
      %808 = vmatpush.bf16.xpose.msra.mxu0 0
      %809 = vmatpush.bf16.xpose.msra.mxu0 0
      %810 = vmatpush.bf16.xpose.msra.mxu0 0
      %811 = vmatpush.bf16.xpose.msra.mxu0 0
      %812 = vmatpush.bf16.xpose.msra.mxu0 %v803
      %813 = vmatmul.bf16.gmra.mxu0 %v800
      %v814 = vpop.f32.mrf.mxu0
      %v815 = vadd.f32 0.0, %v814
      %v816 = vpop.f32.mrf.mxu0
      %817 = vdwg.mxu0
      %v818 = vmul.f32 %v815, 0.17677669
      %v819 = vsel %vm616, %v818, -1e+30
      %v820 = vsel %vm642, %v819, -inf
      %821 = vmax.xlane.f32.xlu0 %v820
      %v822 = vpop.xlane.xlu0 %821
      %v823 = vsub.f32 %v819, %v822
      %v824 = vmul.f32 %v823, 1.442695
      %v825 = vpow.pop %v824
      %v826 = vsel %vm642, %v825, 0.0
      %827 = vadd.xlane.f32.xlu0 %v826
      %v828 = vpop.xlane.xlu0 %827
      %v829 = vrcp.pop %v828
      %v830 = vmul.f32 %v825, %v829
      %v831 = vpack.c.bf16 %v830, %v830
      %832 = vrot.lane.b32.xlu0 %v619, 32
      %v833 = vpop.permute.xlu0 %832
      %v835 = vsel %vm655, %v831, 0
      %v838 = vsel %vm659, %v833, 0
      %840 = vmatpush.bf16.msra.mxu0 0
      %841 = vmatpush.bf16.msra.mxu0 0
      %842 = vmatpush.bf16.msra.mxu0 0
      %843 = vmatpush.bf16.msra.mxu0 0
      %844 = vmatpush.bf16.msra.mxu0 0
      %845 = vmatpush.bf16.msra.mxu0 0
      %846 = vmatpush.bf16.msra.mxu0 0
      %847 = vmatpush.bf16.msra.mxu0 %v838
      %848 = vmatmul.bf16.gmra.mxu0 %v835
      %v849 = vpop.f32.mrf.mxu0
      %v850 = vadd.f32 0.0, %v849
      %v851 = vpop.f32.mrf.mxu0
      %852 = vdwg.mxu0
      %854 = vrot.lane.b32.xlu0 %v734, 32
      %v855 = vpop.permute.xlu0 %854
      %858 = vrot.lane.b32.xlu0 %v792, 64
      %v859 = vpop.permute.xlu0 %858
      %862 = vrot.lane.b32.xlu0 %v850, 96
      %v863 = vpop.permute.xlu0 %862
      %v865 = vsel %vm620, %v673, %v855
      %vm866 = vcmask 523264
      %v867 = vsel %vm866, %v865, %v859
      %vm868 = vcmask 785408
      %v869 = vsel %vm868, %v867, %v863
      %v870 = vpack.c.bf16 %v869, %v869
      %v871 = vld [vmem:[%s4] sm:$0xf]
      %v872 = vld [vmem:[%s4 + $0x4] sm:$0xf]
      %v873 = vld [vmem:[%s4 + $0x8] sm:$0xf]
      %v874 = vld [vmem:[%s4 + $0xc] sm:$0xf]
      %v875 = vld [vmem:[%s4 + $0x10] sm:$0xf]
      %v876 = vld [vmem:[%s4 + $0x14] sm:$0xf]
      %v877 = vld [vmem:[%s4 + $0x18] sm:$0xf]
      %v878 = vld [vmem:[%s4 + $0x1c] sm:$0xf]
      %v879 = vld [vmem:[%s4 + $0x20] sm:$0xf]
      %v880 = vld [vmem:[%s4 + $0x24] sm:$0xf]
      %v881 = vld [vmem:[%s4 + $0x28] sm:$0xf]
      %v882 = vld [vmem:[%s4 + $0x2c] sm:$0xf]
      %v883 = vld [vmem:[%s4 + $0x30] sm:$0xf]
      %v884 = vld [vmem:[%s4 + $0x34] sm:$0xf]
      %v885 = vld [vmem:[%s4 + $0x38] sm:$0xf]
      %v886 = vld [vmem:[%s4 + $0x3c] sm:$0xf]
      %v887 = vld [vmem:[%s5] sm:$0x1]
      %v889 = vperm.slane %v887, 0
      %v907 = vunpack.c.l.b16 %v871
      %v908 = vunpack.c.l.b16 %v872
      %v909 = vunpack.c.l.b16 %v873
      %v910 = vunpack.c.l.b16 %v874
      %v911 = vunpack.c.l.b16 %v875
      %v912 = vunpack.c.l.b16 %v876
      %v913 = vunpack.c.l.b16 %v877
      %v914 = vunpack.c.l.b16 %v878
      %v915 = vunpack.c.l.b16 %v879
      %v916 = vunpack.c.l.b16 %v880
      %v917 = vunpack.c.l.b16 %v881
      %v918 = vunpack.c.l.b16 %v882
      %v919 = vunpack.c.l.b16 %v883
      %v920 = vunpack.c.l.b16 %v884
      %v921 = vunpack.c.l.b16 %v885
      %v922 = vunpack.c.l.b16 %v886
      %v923 = vpack.c.b16 %v908, %v907
      %v924 = vpack.c.b16 %v910, %v909
      %v925 = vpack.c.b16 %v912, %v911
      %v926 = vpack.c.b16 %v914, %v913
      %v927 = vpack.c.b16 %v916, %v915
      %v928 = vpack.c.b16 %v918, %v917
      %v929 = vpack.c.b16 %v920, %v919
      %v930 = vpack.c.b16 %v922, %v921
      %939 = vmatpush.bf16.msra.mxu0 %v930
      %940 = vmatpush.bf16.msra.mxu0 %v929
      %941 = vmatpush.bf16.msra.mxu0 %v928
      %942 = vmatpush.bf16.msra.mxu0 %v927
      %943 = vmatpush.bf16.msra.mxu0 %v926
      %944 = vmatpush.bf16.msra.mxu0 %v925
      %945 = vmatpush.bf16.msra.mxu0 %v924
      %946 = vmatpush.bf16.msra.mxu0 %v923
      %947 = vmatmul.bf16.gmra.mxu0 %v870
      %v948 = vpop.f32.mrf.mxu0
      %v949 = vadd.f32 %v889, %v948
      %v950 = vpop.f32.mrf.mxu0
      %951 = vdwg.mxu0
      %v952 = vadd.f32 %v338, %v949
      %953 = vst [vmem:[%s336] sm:$0xf] %v952
      %p954 = scmp.lt.s32.totalorder %s23, 1
      %s955 = scalar_select %p954, %s23, 1
      %p956 = scmp.lt.s32.totalorder %s24, 15
      %s957 = scalar_select %p956, %s24, 15
      %s958 = smul.addr %s955, 16
      %s959 = sadd.s32 %s957, %s958
      %s960 = smul.addr %s959, 4
      %s961 = scalar_lea.vmem %s8, %s960
      // Predicated region
      $region53: #{spatio_temporal_block.4} parent=51 // pred_check
        %p962 = pneg %p226
      $region54: #{spatio_temporal_block.4} parent=51 // pred_check_branch
        %964 = sbr.rel (%p962) target = $region56
      $region55: #{spatio_temporal_block.4} parent=51 // pred_region
        _
      $region56: #{spatio_temporal_block.4} parent=51 // pred_fallthru
        _
    $region52: #{spatio_temporal_block.4} parent=5 // pred_fallthru
      _
    %p965 = scmp.le.s32.totalorder 2, %s14
    // Predicated region
    $region57: #{spatio_temporal_block.4} parent=5 // pred_check
      %p966 = pneg %p965
    $region58: #{spatio_temporal_block.4} parent=5 // pred_check_branch
      %968 = sbr.rel (%p966) target = $region60
    $region59: #{spatio_temporal_block.4} parent=5 // pred_region
      %s969 = ssub.s32 %s14, 2
      // Predicated region
      $region61: #{spatio_temporal_block.4} parent=59 // pred_check
        %p970 = pneg %p232
      $region62: #{spatio_temporal_block.4} parent=59 // pred_check_branch
        %972 = sbr.rel (%p970) target = $region64
      $region63: #{spatio_temporal_block.4} parent=59 // pred_region
        %p973 = scmp.lt.s32.totalorder %s25, 1
        %s974 = scalar_select %p973, %s25, 1
        %p975 = scmp.lt.s32.totalorder %s26, 15
        %s976 = scalar_select %p975, %s26, 15
        %s977 = smul.addr %s974, 16
        %s978 = sadd.s32 %s976, %s977
        %s979 = smul.addr %s978, 4
        %s980 = scalar_lea.vmem %s8, %s979
      $region64: #{spatio_temporal_block.4} parent=59 // pred_fallthru
        _
    $region60: #{spatio_temporal_block.4} parent=5 // pred_fallthru
      _
  $region6: #{spatio_temporal_block.4} parent=0 // loop_footer
    %s18 = sadd.s32 1, %s14
  $region7: #{spatio_temporal_block.4} parent=0 // loop_footer_branch
    %13 = sbr.rel target = $region3
  $region8: #{spatio_temporal_block.4} parent=0 // loop_exit
    _

// kernel: spatio_temporal_block.3
$region0: #{spatio_temporal_block.3}
  #allocation0 [shape = 'u32[]', space=smem, size = 0x4, offset = 0x4, fixed_abs, tag = 'smem constant byte address 0x4 - core index']
  #allocation1 [shape = 'u32[72,128]{1,0:T(1,128)}', space=vmem, size = 0x9000, scoped, tag = 'internal scratch']
  %s0 = inlined_call_operand.vmem [shape: f32[2,4,16,128], index: 0, kind: input, shape index: {}]
  %s1 = inlined_call_operand.vmem [shape: f32[1,128], index: 1, kind: input, shape index: {}]
  %s2 = inlined_call_operand.vmem [shape: f32[1,128], index: 2, kind: input, shape index: {}]
  %s3 = inlined_call_operand.vmem [shape: bf16[128,384], index: 3, kind: input, shape index: {}]
  %s4 = inlined_call_operand.vmem [shape: bf16[128,128], index: 4, kind: input, shape index: {}]
  %s5 = inlined_call_operand.vmem [shape: f32[1,128], index: 5, kind: input, shape index: {}]
  %s6 = inlined_call_operand.vmem [shape: f32[16,128], index: 6, kind: input, shape index: {}]
  %s7 = inlined_call_operand.vmem [shape: f32[16,128], index: 7, kind: input, shape index: {}]
  %s8 = inlined_call_operand.vmem [shape: f32[2,4,16,128], index: 8, kind: output, shape index: {}]
  %s9 = sld [smem:[#allocation0]]
  $region65: #{spatio_temporal_block.3} parent=0
    _
  %s11 = ssub.s32 1, %s9
  %s12 = scalar_select 0, %s11, %s9
  loop: start=0, step=1, limit=10
  $region2: #{spatio_temporal_block.3} parent=0 // loop_pre_header
    _
  $region3: #{spatio_temporal_block.3} parent=0 // loop_header
    %s14 = sphi 0, %s18
    %p15 = scmp.ge.s32.totalorder %s14, 10
    %s21 = sphi 0, %s33
    %s22 = sphi 0, %s29
    %s23 = sphi 0, %s21
    %s24 = sphi 0, %s22
    %s25 = sphi 0, %s23
    %s26 = sphi 0, %s24
    %s38 = sphi 0, %s40
    %s41 = sphi 0, %s38
    %s42 = sphi 0, %s41
    %s58 = sphi 0, %s42
    %s62 = sphi 0, %s62
    %s64 = sphi 0, %s62
    %s65 = sphi 0, %s64
    %s79 = sphi 0, %s65
    %s83 = sphi 0, %s83
    %s85 = sphi 0, %s83
    %s86 = sphi 0, %s85
    %s100 = sphi 0, %s86
    %s104 = sphi 0, %s104
    %s106 = sphi 0, %s104
    %s107 = sphi 0, %s106
    %s121 = sphi 0, %s107
    %s125 = sphi 0, %s125
    %s127 = sphi 0, %s125
    %s128 = sphi 0, %s127
    %s142 = sphi 0, %s128
    %s146 = sphi 0, %s146
    %s148 = sphi 0, %s146
    %s149 = sphi 0, %s148
    %s163 = sphi 0, %s149
    %s167 = sphi 0, %s167
    %s169 = sphi 0, %s167
    %s170 = sphi 0, %s169
    %s184 = sphi 0, %s170
    %s188 = sphi 0, %s188
    %s190 = sphi 0, %s188
    %s191 = sphi 0, %s190
    %s205 = sphi 0, %s191
    %s213 = sphi 0, %s215
    %s216 = sphi 0, %s213
    %s217 = sphi 0, %s216
    %s233 = sphi 0, %s217
  $region4: #{spatio_temporal_block.3} parent=0 // loop_header_branch
    %17 = sbr.rel (%p15) target = $region8
  $region5: #{spatio_temporal_block.3} parent=0 // loop_body
    %s19 = ssub.s32 %s14, 1
    %s20 = ssub.s32 %s14, 2
    %s27 = sadd.s32 1, %s22
    %p28 = scmp.ge.s32.totalorder %s27, 4
    %s29 = scalar_select %p28, 0, %s27
    %s30 = sadd.s32 1, %s21
    %s31 = scalar_select %p28, %s30, %s21
    %p32 = scmp.ge.s32.totalorder %s31, 2
    %s33 = scalar_select %p32, 0, %s31
    %s34 = ssub.s32 %s21, %s33
    %s35 = ssub.s32 %s22, %s29
    %s36 = sor.u32 %s34, %s35
    %p37 = scmp.eq.s32.totalorder %s36, 0
    %s39 = sadd.s32 %s38, 1
    %s40 = scalar_select %p37, %s38, %s39
    %p43 = pneg %p37
    %p44 = scmp.eq.s32.totalorder %s14, 7
    %p45 = por %p43, %p44
    %p46 = scmp.ne.s32.totalorder %s38, %s41
    %p47 = scmp.eq.s32.totalorder %s14, 0
    %p48 = por %p46, %p47
    %p49 = scmp.ne.s32.totalorder %s38, %s41
    %p50 = scmp.eq.s32.totalorder %s19, 7
    %p51 = por %p49, %p50
    %p52 = scmp.ne.s32.totalorder %s41, %s42
    %p53 = scmp.eq.s32.totalorder %s19, 0
    %p54 = por %p52, %p53
    %p55 = scmp.ne.s32.totalorder %s41, %s42
    %p56 = scmp.eq.s32.totalorder %s20, 7
    %p57 = por %p55, %p56
    %p59 = scmp.ne.s32.totalorder %s42, %s58
    %p60 = scmp.eq.s32.totalorder %s20, 0
    %p61 = por %p59, %p60
    %s63 = sadd.s32 %s62, 1
    %p66 = scmp.eq.s32.totalorder %s14, 7
    %p67 = scmp.ne.s32.totalorder %s62, %s64
    %p68 = scmp.eq.s32.totalorder %s14, 0
    %p69 = por %p67, %p68
    %p70 = scmp.ne.s32.totalorder %s62, %s64
    %p71 = scmp.eq.s32.totalorder %s19, 7
    %p72 = por %p70, %p71
    %p73 = scmp.ne.s32.totalorder %s64, %s65
    %p74 = scmp.eq.s32.totalorder %s19, 0
    %p75 = por %p73, %p74
    %p76 = scmp.ne.s32.totalorder %s64, %s65
    %p77 = scmp.eq.s32.totalorder %s20, 7
    %p78 = por %p76, %p77
    %p80 = scmp.ne.s32.totalorder %s65, %s79
    %p81 = scmp.eq.s32.totalorder %s20, 0
    %p82 = por %p80, %p81
    %s84 = sadd.s32 %s83, 1
    %p87 = scmp.eq.s32.totalorder %s14, 7
    %p88 = scmp.ne.s32.totalorder %s83, %s85
    %p89 = scmp.eq.s32.totalorder %s14, 0
    %p90 = por %p88, %p89
    %p91 = scmp.ne.s32.totalorder %s83, %s85
    %p92 = scmp.eq.s32.totalorder %s19, 7
    %p93 = por %p91, %p92
    %p94 = scmp.ne.s32.totalorder %s85, %s86
    %p95 = scmp.eq.s32.totalorder %s19, 0
    %p96 = por %p94, %p95
    %p97 = scmp.ne.s32.totalorder %s85, %s86
    %p98 = scmp.eq.s32.totalorder %s20, 7
    %p99 = por %p97, %p98
    %p101 = scmp.ne.s32.totalorder %s86, %s100
    %p102 = scmp.eq.s32.totalorder %s20, 0
    %p103 = por %p101, %p102
    %s105 = sadd.s32 %s104, 1
    %p108 = scmp.eq.s32.totalorder %s14, 7
    %p109 = scmp.ne.s32.totalorder %s104, %s106
    %p110 = scmp.eq.s32.totalorder %s14, 0
    %p111 = por %p109, %p110
    %p112 = scmp.ne.s32.totalorder %s104, %s106
    %p113 = scmp.eq.s32.totalorder %s19, 7
    %p114 = por %p112, %p113
    %p115 = scmp.ne.s32.totalorder %s106, %s107
    %p116 = scmp.eq.s32.totalorder %s19, 0
    %p117 = por %p115, %p116
    %p118 = scmp.ne.s32.totalorder %s106, %s107
    %p119 = scmp.eq.s32.totalorder %s20, 7
    %p120 = por %p118, %p119
    %p122 = scmp.ne.s32.totalorder %s107, %s121
    %p123 = scmp.eq.s32.totalorder %s20, 0
    %p124 = por %p122, %p123
    %s126 = sadd.s32 %s125, 1
    %p129 = scmp.eq.s32.totalorder %s14, 7
    %p130 = scmp.ne.s32.totalorder %s125, %s127
    %p131 = scmp.eq.s32.totalorder %s14, 0
    %p132 = por %p130, %p131
    %p133 = scmp.ne.s32.totalorder %s125, %s127
    %p134 = scmp.eq.s32.totalorder %s19, 7
    %p135 = por %p133, %p134
    %p136 = scmp.ne.s32.totalorder %s127, %s128
    %p137 = scmp.eq.s32.totalorder %s19, 0
    %p138 = por %p136, %p137
    %p139 = scmp.ne.s32.totalorder %s127, %s128
    %p140 = scmp.eq.s32.totalorder %s20, 7
    %p141 = por %p139, %p140
    %p143 = scmp.ne.s32.totalorder %s128, %s142
    %p144 = scmp.eq.s32.totalorder %s20, 0
    %p145 = por %p143, %p144
    %s147 = sadd.s32 %s146, 1
    %p150 = scmp.eq.s32.totalorder %s14, 7
    %p151 = scmp.ne.s32.totalorder %s146, %s148
    %p152 = scmp.eq.s32.totalorder %s14, 0
    %p153 = por %p151, %p152
    %p154 = scmp.ne.s32.totalorder %s146, %s148
    %p155 = scmp.eq.s32.totalorder %s19, 7
    %p156 = por %p154, %p155
    %p157 = scmp.ne.s32.totalorder %s148, %s149
    %p158 = scmp.eq.s32.totalorder %s19, 0
    %p159 = por %p157, %p158
    %p160 = scmp.ne.s32.totalorder %s148, %s149
    %p161 = scmp.eq.s32.totalorder %s20, 7
    %p162 = por %p160, %p161
    %p164 = scmp.ne.s32.totalorder %s149, %s163
    %p165 = scmp.eq.s32.totalorder %s20, 0
    %p166 = por %p164, %p165
    %s168 = sadd.s32 %s167, 1
    %p171 = scmp.eq.s32.totalorder %s14, 7
    %p172 = scmp.ne.s32.totalorder %s167, %s169
    %p173 = scmp.eq.s32.totalorder %s14, 0
    %p174 = por %p172, %p173
    %p175 = scmp.ne.s32.totalorder %s167, %s169
    %p176 = scmp.eq.s32.totalorder %s19, 7
    %p177 = por %p175, %p176
    %p178 = scmp.ne.s32.totalorder %s169, %s170
    %p179 = scmp.eq.s32.totalorder %s19, 0
    %p180 = por %p178, %p179
    %p181 = scmp.ne.s32.totalorder %s169, %s170
    %p182 = scmp.eq.s32.totalorder %s20, 7
    %p183 = por %p181, %p182
    %p185 = scmp.ne.s32.totalorder %s170, %s184
    %p186 = scmp.eq.s32.totalorder %s20, 0
    %p187 = por %p185, %p186
    %s189 = sadd.s32 %s188, 1
    %p192 = scmp.eq.s32.totalorder %s14, 7
    %p193 = scmp.ne.s32.totalorder %s188, %s190
    %p194 = scmp.eq.s32.totalorder %s14, 0
    %p195 = por %p193, %p194
    %p196 = scmp.ne.s32.totalorder %s188, %s190
    %p197 = scmp.eq.s32.totalorder %s19, 7
    %p198 = por %p196, %p197
    %p199 = scmp.ne.s32.totalorder %s190, %s191
    %p200 = scmp.eq.s32.totalorder %s19, 0
    %p201 = por %p199, %p200
    %p202 = scmp.ne.s32.totalorder %s190, %s191
    %p203 = scmp.eq.s32.totalorder %s20, 7
    %p204 = por %p202, %p203
    %p206 = scmp.ne.s32.totalorder %s191, %s205
    %p207 = scmp.eq.s32.totalorder %s20, 0
    %p208 = por %p206, %p207
    %s209 = ssub.s32 %s21, %s33
    %s210 = ssub.s32 %s22, %s29
    %s211 = sor.u32 %s209, %s210
    %p212 = scmp.eq.s32.totalorder %s211, 0
    %s214 = sadd.s32 %s213, 1
    %s215 = scalar_select %p212, %s213, %s214
    %p218 = pneg %p212
    %p219 = scmp.eq.s32.totalorder %s14, 7
    %p220 = por %p218, %p219
    %p221 = scmp.ne.s32.totalorder %s213, %s216
    %p222 = scmp.eq.s32.totalorder %s14, 0
    %p223 = por %p221, %p222
    %p224 = scmp.ne.s32.totalorder %s213, %s216
    %p225 = scmp.eq.s32.totalorder %s19, 7
    %p226 = por %p224, %p225
    %p227 = scmp.ne.s32.totalorder %s216, %s217
    %p228 = scmp.eq.s32.totalorder %s19, 0
    %p229 = por %p227, %p228
    %p230 = scmp.ne.s32.totalorder %s216, %s217
    %p231 = scmp.eq.s32.totalorder %s20, 7
    %p232 = por %p230, %p231
    %p234 = scmp.ne.s32.totalorder %s217, %s233
    %p235 = scmp.eq.s32.totalorder %s20, 0
    %p236 = por %p234, %p235
    %p237 = scmp.le.s32.totalorder 1, %s14
    %p238 = scmp.lt.s32.totalorder %s14, 9
    %p239 = pnand %p237, %p238
    %p240 = pneg %p239
    // Predicated region
    $region9: #{spatio_temporal_block.3} parent=5 // pred_check
      _
    $region10: #{spatio_temporal_block.3} parent=5 // pred_check_branch
      %242 = sbr.rel (%p239) target = $region12
    $region11: #{spatio_temporal_block.3} parent=5 // pred_region
      %s243 = ssub.s32 %s14, 1
      // Predicated region
      $region13: #{spatio_temporal_block.3} parent=11 // pred_check
        %p244 = pneg %p75
      $region14: #{spatio_temporal_block.3} parent=11 // pred_check_branch
        %246 = sbr.rel (%p244) target = $region16
      $region15: #{spatio_temporal_block.3} parent=11 // pred_region
        _
      $region16: #{spatio_temporal_block.3} parent=11 // pred_fallthru
        _
      // Predicated region
      $region17: #{spatio_temporal_block.3} parent=11 // pred_check
        %p247 = pneg %p96
      $region18: #{spatio_temporal_block.3} parent=11 // pred_check_branch
        %249 = sbr.rel (%p247) target = $region20
      $region19: #{spatio_temporal_block.3} parent=11 // pred_region
        _
      $region20: #{spatio_temporal_block.3} parent=11 // pred_fallthru
        _
      // Predicated region
      $region21: #{spatio_temporal_block.3} parent=11 // pred_check
        %p250 = pneg %p117
      $region22: #{spatio_temporal_block.3} parent=11 // pred_check_branch
        %252 = sbr.rel (%p250) target = $region24
      $region23: #{spatio_temporal_block.3} parent=11 // pred_region
        _
      $region24: #{spatio_temporal_block.3} parent=11 // pred_fallthru
        _
      // Predicated region
      $region25: #{spatio_temporal_block.3} parent=11 // pred_check
        %p253 = pneg %p138
      $region26: #{spatio_temporal_block.3} parent=11 // pred_check_branch
        %255 = sbr.rel (%p253) target = $region28
      $region27: #{spatio_temporal_block.3} parent=11 // pred_region
        _
      $region28: #{spatio_temporal_block.3} parent=11 // pred_fallthru
        _
      // Predicated region
      $region29: #{spatio_temporal_block.3} parent=11 // pred_check
        %p256 = pneg %p159
      $region30: #{spatio_temporal_block.3} parent=11 // pred_check_branch
        %258 = sbr.rel (%p256) target = $region32
      $region31: #{spatio_temporal_block.3} parent=11 // pred_region
        _
      $region32: #{spatio_temporal_block.3} parent=11 // pred_fallthru
        _
      // Predicated region
      $region33: #{spatio_temporal_block.3} parent=11 // pred_check
        %p259 = pneg %p180
      $region34: #{spatio_temporal_block.3} parent=11 // pred_check_branch
        %261 = sbr.rel (%p259) target = $region36
      $region35: #{spatio_temporal_block.3} parent=11 // pred_region
        _
      $region36: #{spatio_temporal_block.3} parent=11 // pred_fallthru
        _
      // Predicated region
      $region37: #{spatio_temporal_block.3} parent=11 // pred_check
        %p262 = pneg %p201
      $region38: #{spatio_temporal_block.3} parent=11 // pred_check_branch
        %264 = sbr.rel (%p262) target = $region40
      $region39: #{spatio_temporal_block.3} parent=11 // pred_region
        _
      $region40: #{spatio_temporal_block.3} parent=11 // pred_fallthru
        _
    $region12: #{spatio_temporal_block.3} parent=5 // pred_fallthru
      _
    %p265 = scmp.lt.s32.totalorder %s14, 8
    // Predicated region
    $region41: #{spatio_temporal_block.3} parent=5 // pred_check
      %p266 = pneg %p265
    $region42: #{spatio_temporal_block.3} parent=5 // pred_check_branch
      %268 = sbr.rel (%p266) target = $region44
    $region43: #{spatio_temporal_block.3} parent=5 // pred_region
      // Predicated region
      $region45: #{spatio_temporal_block.3} parent=43 // pred_check
        %p269 = pneg %p48
      $region46: #{spatio_temporal_block.3} parent=43 // pred_check_branch
        %271 = sbr.rel (%p269) target = $region48
      $region47: #{spatio_temporal_block.3} parent=43 // pred_region
        %p272 = scmp.lt.s32.totalorder %s21, 1
        %s273 = scalar_select %p272, %s21, 1
        %p274 = scmp.lt.s32.totalorder %s22, 3
        %s275 = scalar_select %p274, %s22, 3
        %s276 = smul.addr %s275, 2
        %s277 = smul.addr %s273, 8
        %s278 = sadd.s32 %s276, %s277
        %s279 = smul.addr %s278, 8
        %s280 = scalar_lea.vmem %s0, %s279
      $region48: #{spatio_temporal_block.3} parent=43 // pred_fallthru
        _
    $region44: #{spatio_temporal_block.3} parent=5 // pred_fallthru
      _
    %p281 = scmp.le.s32.totalorder 1, %s14
    %p282 = scmp.lt.s32.totalorder %s14, 9
    %p283 = pnand %p281, %p282
    %p284 = pneg %p283
    // Predicated region
    $region49: #{spatio_temporal_block.3} parent=5 // pred_check
      _
    $region50: #{spatio_temporal_block.3} parent=5 // pred_check_branch
      %286 = sbr.rel (%p283) target = $region52
    $region51: #{spatio_temporal_block.3} parent=5 // pred_region
      %s287 = ssub.s32 %s14, 1
      %p288 = scmp.lt.s32.totalorder %s23, 1
      %s289 = scalar_select %p288, %s23, 1
      %p290 = scmp.lt.s32.totalorder %s24, 3
      %s291 = scalar_select %p290, %s24, 3
      %s292 = smul.addr %s291, 2
      %s293 = smul.addr %s289, 8
      %s294 = sadd.s32 %s292, %s293
      %s295 = smul.addr %s294, 8
      %s296 = scalar_lea.vmem %s0, %s295
      %p297 = pneg %p54
      %p298 = pneg %p51
      %p299 = pneg %p75
      %p300 = pneg %p72
      %p301 = pneg %p96
      %p302 = pneg %p93
      %p303 = pneg %p117
      %p304 = pneg %p114
      %p305 = pneg %p138
      %p306 = pneg %p135
      %p307 = pneg %p159
      %p308 = pneg %p156
      %p309 = pneg %p180
      %p310 = pneg %p177
      %p311 = pneg %p201
      %p312 = pneg %p198
      %p313 = pneg %p229
      %p314 = pneg %p226
      %p315 = scmp.lt.s32.totalorder %s23, 1
      %s316 = scalar_select %p315, %s23, 1
      %p317 = scmp.lt.s32.totalorder %s24, 3
      %s318 = scalar_select %p317, %s24, 3
      %s319 = smul.addr %s318, 2
      %s320 = smul.addr %s316, 8
      %s321 = sadd.s32 %s319, %s320
      %s322 = smul.addr %s321, 8
      %s323 = scalar_lea.vmem %s8, %s322
      %p324 = scmp.lt.s32.totalorder %s23, 1
      %s325 = scalar_select %p324, %s23, 1
      %p326 = scmp.lt.s32.totalorder %s24, 3
      %s327 = scalar_select %p326, %s24, 3
      %s328 = smul.addr %s327, 2
      %s329 = smul.addr %s325, 8
      %s330 = sadd.s32 %s328, %s329
      %s331 = smul.addr %s330, 8
      %s332 = scalar_lea.vmem %s0, %s331
      %p333 = scmp.lt.s32.totalorder %s23, 1
      %s334 = scalar_select %p333, %s23, 1
      %p335 = scmp.lt.s32.totalorder %s24, 3
      %s336 = scalar_select %p335, %s24, 3
      %s337 = smul.addr %s336, 2
      %s338 = smul.addr %s334, 8
      %s339 = sadd.s32 %s337, %s338
      %s340 = smul.addr %s339, 8
      %s341 = scalar_lea.vmem %s8, %s340
      %v343 = vld [vmem:[%s332] sm:$0xff]
      %v344 = vld [vmem:[%s332 + $0x8] sm:$0xff]
      %v345 = vld [vmem:[%s1] sm:$0x1]
      %v346 = vld [vmem:[%s2] sm:$0x1]
      %347 = vadd.xlane.f32.xlu0 %v343
      %v348 = vpop.xlane.xlu0 %347
      %349 = vadd.xlane.f32.xlu0 %v344
      %v350 = vpop.xlane.xlu0 %349
      %v351 = vrcp.pop 128.0
      %v352 = vmul.f32 128.0, %v351
      %v353 = vsub.f32 1.0, %v352
      %v354 = vmul.f32 %v351, %v353
      %v355 = vadd.f32 %v351, %v354
      %vm356 = vweird.f32 %v351
      %v357 = vsel %vm356, %v351, %v355
      %v358 = vmul.f32 %v348, %v357
      %v359 = vmul.f32 %v350, %v357
      %v360 = vsub.f32 %v343, %v358
      %v361 = vsub.f32 %v344, %v359
      %v362 = vmul.f32 %v360, %v360
      %v363 = vmul.f32 %v361, %v361
      %364 = vadd.xlane.f32.xlu0 %v362
      %v365 = vpop.xlane.xlu0 %364
      %366 = vadd.xlane.f32.xlu0 %v363
      %v367 = vpop.xlane.xlu0 %366
      %v368 = vmul.f32 %v365, %v357
      %v369 = vmul.f32 %v367, %v357
      %v370 = vadd.f32 %v368, 1e-05
      %v371 = vadd.f32 %v369, 1e-05
      %v372 = vrsqrt.pop %v370
      %v373 = vmul.f32 %v372, %v370
      %v374 = vmul.f32 %v373, %v372
      %v375 = vmul.f32 0.5, %v374
      %v376 = vsub.f32 1.5, %v375
      %v377 = vmul.f32 %v372, %v376
      %vm378 = vweird.f32 %v370
      %vm379 = vweird.f32 %v372
      %vm380 = vmor %vm378, %vm379
      %v381 = vsel %vm380, %v372, %v377
      %v382 = vrsqrt.pop %v371
      %v383 = vmul.f32 %v382, %v371
      %v384 = vmul.f32 %v383, %v382
      %v385 = vmul.f32 0.5, %v384
      %v386 = vsub.f32 1.5, %v385
      %v387 = vmul.f32 %v382, %v386
      %vm388 = vweird.f32 %v371
      %vm389 = vweird.f32 %v382
      %vm390 = vmor %vm388, %vm389
      %v391 = vsel %vm390, %v382, %v387
      %v392 = vmul.f32 %v360, %v381
      %v393 = vmul.f32 %v361, %v391
      %v395 = vperm.slane %v345, 0
      %v397 = vmul.f32 %v392, %v395
      %v398 = vmul.f32 %v393, %v395
      %v400 = vperm.slane %v346, 0
      %v402 = vadd.f32 %v397, %v400
      %v403 = vadd.f32 %v398, %v400
      %v404 = vpack.c.bf16 %v403, %v402
      %v405 = vld [vmem:[%s3] sm:$0xff]
      %v406 = vld [vmem:[%s3 + $0x8] sm:$0xf]
      %v407 = vld [vmem:[%s3 + $0xc] sm:$0xff]
      %v408 = vld [vmem:[%s3 + $0x14] sm:$0xf]
      %v409 = vld [vmem:[%s3 + $0x18] sm:$0xff]
      %v410 = vld [vmem:[%s3 + $0x20] sm:$0xf]
      %v411 = vld [vmem:[%s3 + $0x24] sm:$0xff]
      %v412 = vld [vmem:[%s3 + $0x2c] sm:$0xf]
      %v413 = vld [vmem:[%s3 + $0x30] sm:$0xff]
      %v414 = vld [vmem:[%s3 + $0x38] sm:$0xf]
      %v415 = vld [vmem:[%s3 + $0x3c] sm:$0xff]
      %v416 = vld [vmem:[%s3 + $0x44] sm:$0xf]
      %v417 = vld [vmem:[%s3 + $0x48] sm:$0xff]
      %v418 = vld [vmem:[%s3 + $0x50] sm:$0xf]
      %v419 = vld [vmem:[%s3 + $0x54] sm:$0xff]
      %v420 = vld [vmem:[%s3 + $0x5c] sm:$0xf]
      %v421 = vld [vmem:[%s3 + $0x60] sm:$0xff]
      %v422 = vld [vmem:[%s3 + $0x68] sm:$0xf]
      %v423 = vld [vmem:[%s3 + $0x6c] sm:$0xff]
      %v424 = vld [vmem:[%s3 + $0x74] sm:$0xf]
      %v425 = vld [vmem:[%s3 + $0x78] sm:$0xff]
      %v426 = vld [vmem:[%s3 + $0x80] sm:$0xf]
      %v427 = vld [vmem:[%s3 + $0x84] sm:$0xff]
      %v428 = vld [vmem:[%s3 + $0x8c] sm:$0xf]
      %v429 = vld [vmem:[%s3 + $0x90] sm:$0xff]
      %v430 = vld [vmem:[%s3 + $0x98] sm:$0xf]
      %v431 = vld [vmem:[%s3 + $0x9c] sm:$0xff]
      %v432 = vld [vmem:[%s3 + $0xa4] sm:$0xf]
      %v433 = vld [vmem:[%s3 + $0xa8] sm:$0xff]
      %v434 = vld [vmem:[%s3 + $0xb0] sm:$0xf]
      %v435 = vld [vmem:[%s3 + $0xb4] sm:$0xff]
      %v436 = vld [vmem:[%s3 + $0xbc] sm:$0xf]
      %v469 = vunpack.c.l.b16 %v405
      %v470 = vunpack.c.h.b16 %v405
      %v471 = vunpack.c.l.b16 %v406
      %v472 = vunpack.c.l.b16 %v407
      %v473 = vunpack.c.h.b16 %v407
      %v474 = vunpack.c.l.b16 %v408
      %v475 = vunpack.c.l.b16 %v409
      %v476 = vunpack.c.h.b16 %v409
      %v477 = vunpack.c.l.b16 %v410
      %v478 = vunpack.c.l.b16 %v411
      %v479 = vunpack.c.h.b16 %v411
      %v480 = vunpack.c.l.b16 %v412
      %v481 = vunpack.c.l.b16 %v413
      %v482 = vunpack.c.h.b16 %v413
      %v483 = vunpack.c.l.b16 %v414
      %v484 = vunpack.c.l.b16 %v415
      %v485 = vunpack.c.h.b16 %v415
      %v486 = vunpack.c.l.b16 %v416
      %v487 = vunpack.c.l.b16 %v417
      %v488 = vunpack.c.h.b16 %v417
      %v489 = vunpack.c.l.b16 %v418
      %v490 = vunpack.c.l.b16 %v419
      %v491 = vunpack.c.h.b16 %v419
      %v492 = vunpack.c.l.b16 %v420
      %v493 = vunpack.c.l.b16 %v421
      %v494 = vunpack.c.h.b16 %v421
      %v495 = vunpack.c.l.b16 %v422
      %v496 = vunpack.c.l.b16 %v423
      %v497 = vunpack.c.h.b16 %v423
      %v498 = vunpack.c.l.b16 %v424
      %v499 = vunpack.c.l.b16 %v425
      %v500 = vunpack.c.h.b16 %v425
      %v501 = vunpack.c.l.b16 %v426
      %v502 = vunpack.c.l.b16 %v427
      %v503 = vunpack.c.h.b16 %v427
      %v504 = vunpack.c.l.b16 %v428
      %v505 = vunpack.c.l.b16 %v429
      %v506 = vunpack.c.h.b16 %v429
      %v507 = vunpack.c.l.b16 %v430
      %v508 = vunpack.c.l.b16 %v431
      %v509 = vunpack.c.h.b16 %v431
      %v510 = vunpack.c.l.b16 %v432
      %v511 = vunpack.c.l.b16 %v433
      %v512 = vunpack.c.h.b16 %v433
      %v513 = vunpack.c.l.b16 %v434
      %v514 = vunpack.c.l.b16 %v435
      %v515 = vunpack.c.h.b16 %v435
      %v516 = vunpack.c.l.b16 %v436
      %v517 = vpack.c.b16 %v472, %v469
      %v518 = vpack.c.b16 %v473, %v470
      %v519 = vpack.c.b16 %v474, %v471
      %v520 = vpack.c.b16 %v478, %v475
      %v521 = vpack.c.b16 %v479, %v476
      %v522 = vpack.c.b16 %v480, %v477
      %v523 = vpack.c.b16 %v484, %v481
      %v524 = vpack.c.b16 %v485, %v482
      %v525 = vpack.c.b16 %v486, %v483
      %v526 = vpack.c.b16 %v490, %v487
      %v527 = vpack.c.b16 %v491, %v488
      %v528 = vpack.c.b16 %v492, %v489
      %v529 = vpack.c.b16 %v496, %v493
      %v530 = vpack.c.b16 %v497, %v494
      %v531 = vpack.c.b16 %v498, %v495
      %v532 = vpack.c.b16 %v502, %v499
      %v533 = vpack.c.b16 %v503, %v500
      %v534 = vpack.c.b16 %v504, %v501
      %v535 = vpack.c.b16 %v508, %v505
      %v536 = vpack.c.b16 %v509, %v506
      %v537 = vpack.c.b16 %v510, %v507
      %v538 = vpack.c.b16 %v514, %v511
      %v539 = vpack.c.b16 %v515, %v512
      %v540 = vpack.c.b16 %v516, %v513
      %565 = vmatpush.bf16.msra.mxu0 %v538
      %566 = vmatpush.bf16.msra.mxu0 %v535
      %567 = vmatpush.bf16.msra.mxu0 %v532
      %568 = vmatpush.bf16.msra.mxu0 %v529
      %569 = vmatpush.bf16.msra.mxu0 %v526
      %570 = vmatpush.bf16.msra.mxu0 %v523
      %571 = vmatpush.bf16.msra.mxu0 %v520
      %572 = vmatpush.bf16.msra.mxu0 %v517
      %573 = vmatmul.bf16.gmra.mxu0 %v404
      %v574 = vpop.f32.mrf.mxu0
      %v575 = vadd.f32 0.0, %v574
      %v576 = vpop.f32.mrf.mxu0
      %v577 = vadd.f32 0.0, %v576
      %578 = vdwg.mxu0
      %579 = vmatpush.bf16.msra.mxu0 %v539
      %580 = vmatpush.bf16.msra.mxu0 %v536
      %581 = vmatpush.bf16.msra.mxu0 %v533
      %582 = vmatpush.bf16.msra.mxu0 %v530
      %583 = vmatpush.bf16.msra.mxu0 %v527
      %584 = vmatpush.bf16.msra.mxu0 %v524
      %585 = vmatpush.bf16.msra.mxu0 %v521
      %586 = vmatpush.bf16.msra.mxu0 %v518
      %587 = vmatmul.bf16.gmra.mxu0 %v404
      %v588 = vpop.f32.mrf.mxu0
      %v589 = vadd.f32 0.0, %v588
      %v590 = vpop.f32.mrf.mxu0
      %v591 = vadd.f32 0.0, %v590
      %592 = vdwg.mxu0
      %593 = vmatpush.bf16.msra.mxu0 %v540
      %594 = vmatpush.bf16.msra.mxu0 %v537
      %595 = vmatpush.bf16.msra.mxu0 %v534
      %596 = vmatpush.bf16.msra.mxu0 %v531
      %597 = vmatpush.bf16.msra.mxu0 %v528
      %598 = vmatpush.bf16.msra.mxu0 %v525
      %599 = vmatpush.bf16.msra.mxu0 %v522
      %600 = vmatpush.bf16.msra.mxu0 %v519
      %601 = vmatmul.bf16.gmra.mxu0 %v404
      %v602 = vpop.f32.mrf.mxu0
      %v603 = vadd.f32 0.0, %v602
      %v604 = vpop.f32.mrf.mxu0
      %v605 = vadd.f32 0.0, %v604
      %606 = vdwg.mxu0
      %v607 = vld [vmem:[%s6] sm:$0xff]
      %v608 = vld [vmem:[%s6 + $0x8] sm:$0xff]
      %v609 = vld [vmem:[%s7] sm:$0xff]
      %v610 = vld [vmem:[%s7 + $0x8] sm:$0xff]
      %v611 = vmul.f32 %v575, %v607
      %v612 = vmul.f32 %v577, %v608
      %613 = vrot.lane.b32.xlu0 %v575, 127
      %v614 = vpop.permute.xlu0 %613
      %615 = vrot.lane.b32.xlu0 %v577, 127
      %v616 = vpop.permute.xlu0 %615
      %617 = vrot.lane.b32.xlu0 %v575, 1
      %v618 = vpop.permute.xlu0 %617
      %619 = vrot.lane.b32.xlu0 %v577, 1
      %v620 = vpop.permute.xlu0 %619
      %v621 = vlaneseq
      %v622 = vand.u32 %v621, 127
      %vm623 = vcmp.lt.s32.totalorder %v622, 0
      %v624 = vsub.s32 0, %v622
      %v625 = vsel %vm623, %v624, %v622
      %v626 = vshrl.u32 %v625, 1
      %v627 = vand.u32 %v625, 1
      %v628 = vsub.s32 0, %v627
      %v629 = vsel %vm623, %v628, %v627
      %vm630 = vcmp.ne.s32.totalorder %v629, 0
      %vm631 = vcmp.lt.s32.totalorder %v629, 0
      %vm632 = vmand %vm631, %vm630
      %v633 = vadd.s32 %v629, 2
      %v634 = vsel %vm632, %v633, %v629
      %vm635 = vcmp.eq.s32.totalorder %v634, 0
      %v636 = vsub.f32 0.0, %v614
      %v637 = vsub.f32 0.0, %v616
      %v638 = vsel %vm635, %v636, %v618
      %v639 = vsel %vm635, %v637, %v620
      %v640 = vmul.f32 %v638, %v609
      %v641 = vmul.f32 %v639, %v610
      %v642 = vadd.f32 %v611, %v640
      %v643 = vadd.f32 %v612, %v641
      %v644 = vmul.f32 %v589, %v607
      %v645 = vmul.f32 %v591, %v608
      %646 = vrot.lane.b32.xlu0 %v589, 127
      %v647 = vpop.permute.xlu0 %646
      %648 = vrot.lane.b32.xlu0 %v591, 127
      %v649 = vpop.permute.xlu0 %648
      %650 = vrot.lane.b32.xlu0 %v589, 1
      %v651 = vpop.permute.xlu0 %650
      %652 = vrot.lane.b32.xlu0 %v591, 1
      %v653 = vpop.permute.xlu0 %652
      %v654 = vsub.f32 0.0, %v647
      %v655 = vsub.f32 0.0, %v649
      %v656 = vsel %vm635, %v654, %v651
      %v657 = vsel %vm635, %v655, %v653
      %v658 = vmul.f32 %v656, %v609
      %v659 = vmul.f32 %v657, %v610
      %v660 = vadd.f32 %v644, %v658
      %v661 = vadd.f32 %v645, %v659
      %v662 = vpack.c.bf16 %v643, %v642
      %v663 = vpack.c.bf16 %v661, %v660
      %v664 = vpack.c.bf16 %v605, %v603
      %vm665 = vcmask 261120
      %v667 = vsel %vm665, %v662, 0
      %v670 = vsel %vm665, %v663, 0
      %672 = vmatpush.bf16.xpose.msra.mxu0 0
      %673 = vmatpush.bf16.xpose.msra.mxu0 0
      %674 = vmatpush.bf16.xpose.msra.mxu0 0
      %675 = vmatpush.bf16.xpose.msra.mxu0 0
      %676 = vmatpush.bf16.xpose.msra.mxu0 0
      %677 = vmatpush.bf16.xpose.msra.mxu0 0
      %678 = vmatpush.bf16.xpose.msra.mxu0 0
      %679 = vmatpush.bf16.xpose.msra.mxu0 %v670
      %680 = vmatmul.bf16.gmra.mxu0 %v667
      %v681 = vpop.f32.mrf.mxu0
      %v682 = vadd.f32 0.0, %v681
      %v683 = vpop.f32.mrf.mxu0
      %v684 = vadd.f32 0.0, %v683
      %685 = vdwg.mxu0
      %v686 = vmul.f32 %v682, 0.17677669
      %v687 = vmul.f32 %v684, 0.17677669
      %vm688 = vcmask 130048
      %v689 = vsel %vm688, %v686, -inf
      %690 = vmax.xlane.f32.xlu0 %v689
      %v691 = vpop.xlane.xlu0 %690
      %v692 = vsel %vm688, %v687, -inf
      %693 = vmax.xlane.f32.xlu0 %v692
      %v694 = vpop.xlane.xlu0 %693
      %v695 = vsub.f32 %v686, %v691
      %v696 = vsub.f32 %v687, %v694
      %v697 = vmul.f32 %v695, 1.442695
      %v698 = vpow.pop %v697
      %v699 = vmul.f32 %v696, 1.442695
      %v700 = vpow.pop %v699
      %v701 = vsel %vm688, %v698, 0.0
      %702 = vadd.xlane.f32.xlu0 %v701
      %v703 = vpop.xlane.xlu0 %702
      %v704 = vsel %vm688, %v700, 0.0
      %705 = vadd.xlane.f32.xlu0 %v704
      %v706 = vpop.xlane.xlu0 %705
      %v707 = vrcp.pop %v703
      %v708 = vrcp.pop %v706
      %v709 = vmul.f32 %v698, %v707
      %v710 = vmul.f32 %v700, %v708
      %v711 = vpack.c.bf16 %v710, %v709
      %v713 = vsel %vm688, %v711, 0
      %715 = vmatpush.bf16.msra.mxu0 0
      %716 = vmatpush.bf16.msra.mxu0 0
      %717 = vmatpush.bf16.msra.mxu0 0
      %718 = vmatpush.bf16.msra.mxu0 0
      %719 = vmatpush.bf16.msra.mxu0 0
      %720 = vmatpush.bf16.msra.mxu0 0
      %721 = vmatpush.bf16.msra.mxu0 0
      %722 = vmatpush.bf16.msra.mxu0 %v664
      %723 = vmatmul.bf16.gmra.mxu0 %v713
      %v724 = vpop.f32.mrf.mxu0
      %v725 = vadd.f32 0.0, %v724
      %v726 = vpop.f32.mrf.mxu0
      %v727 = vadd.f32 0.0, %v726
      %728 = vdwg.mxu0
      %730 = vrot.lane.b32.xlu0 %v662, 96
      %v731 = vpop.permute.xlu0 %730
      %733 = vrot.lane.b32.xlu0 %v663, 96
      %v734 = vpop.permute.xlu0 %733
      %v736 = vsel %vm665, %v731, 0
      %v739 = vsel %vm665, %v734, 0
      %741 = vmatpush.bf16.xpose.msra.mxu0 0
      %742 = vmatpush.bf16.xpose.msra.mxu0 0
      %743 = vmatpush.bf16.xpose.msra.mxu0 0
      %744 = vmatpush.bf16.xpose.msra.mxu0 0
      %745 = vmatpush.bf16.xpose.msra.mxu0 0
      %746 = vmatpush.bf16.xpose.msra.mxu0 0
      %747 = vmatpush.bf16.xpose.msra.mxu0 0
      %748 = vmatpush.bf16.xpose.msra.mxu0 %v739
      %749 = vmatmul.bf16.gmra.mxu0 %v736
      %v750 = vpop.f32.mrf.mxu0
      %v751 = vadd.f32 0.0, %v750
      %v752 = vpop.f32.mrf.mxu0
      %v753 = vadd.f32 0.0, %v752
      %754 = vdwg.mxu0
      %v755 = vmul.f32 %v751, 0.17677669
      %v756 = vmul.f32 %v753, 0.17677669
      %v757 = vsel %vm688, %v755, -inf
      %758 = vmax.xlane.f32.xlu0 %v757
      %v759 = vpop.xlane.xlu0 %758
      %v760 = vsel %vm688, %v756, -inf
      %761 = vmax.xlane.f32.xlu0 %v760
      %v762 = vpop.xlane.xlu0 %761
      %v763 = vsub.f32 %v755, %v759
      %v764 = vsub.f32 %v756, %v762
      %v765 = vmul.f32 %v763, 1.442695
      %v766 = vpow.pop %v765
      %v767 = vmul.f32 %v764, 1.442695
      %v768 = vpow.pop %v767
      %v769 = vsel %vm688, %v766, 0.0
      %770 = vadd.xlane.f32.xlu0 %v769
      %v771 = vpop.xlane.xlu0 %770
      %v772 = vsel %vm688, %v768, 0.0
      %773 = vadd.xlane.f32.xlu0 %v772
      %v774 = vpop.xlane.xlu0 %773
      %v775 = vrcp.pop %v771
      %v776 = vrcp.pop %v774
      %v777 = vmul.f32 %v766, %v775
      %v778 = vmul.f32 %v768, %v776
      %v779 = vpack.c.bf16 %v778, %v777
      %781 = vrot.lane.b32.xlu0 %v664, 96
      %v782 = vpop.permute.xlu0 %781
      %v785 = vsel %vm688, %v779, 0
      %787 = vmatpush.bf16.msra.mxu0 0
      %788 = vmatpush.bf16.msra.mxu0 0
      %789 = vmatpush.bf16.msra.mxu0 0
      %790 = vmatpush.bf16.msra.mxu0 0
      %791 = vmatpush.bf16.msra.mxu0 0
      %792 = vmatpush.bf16.msra.mxu0 0
      %793 = vmatpush.bf16.msra.mxu0 0
      %794 = vmatpush.bf16.msra.mxu0 %v782
      %795 = vmatmul.bf16.gmra.mxu0 %v785
      %v796 = vpop.f32.mrf.mxu0
      %v797 = vadd.f32 0.0, %v796
      %v798 = vpop.f32.mrf.mxu0
      %v799 = vadd.f32 0.0, %v798
      %800 = vdwg.mxu0
      %801 = vrot.lane.b32.xlu0 %v662, 64
      %v802 = vpop.permute.xlu0 %801
      %803 = vrot.lane.b32.xlu0 %v663, 64
      %v804 = vpop.permute.xlu0 %803
      %v806 = vsel %vm665, %v802, 0
      %v809 = vsel %vm665, %v804, 0
      %811 = vmatpush.bf16.xpose.msra.mxu0 0
      %812 = vmatpush.bf16.xpose.msra.mxu0 0
      %813 = vmatpush.bf16.xpose.msra.mxu0 0
      %814 = vmatpush.bf16.xpose.msra.mxu0 0
      %815 = vmatpush.bf16.xpose.msra.mxu0 0
      %816 = vmatpush.bf16.xpose.msra.mxu0 0
      %817 = vmatpush.bf16.xpose.msra.mxu0 0
      %818 = vmatpush.bf16.xpose.msra.mxu0 %v809
      %819 = vmatmul.bf16.gmra.mxu0 %v806
      %v820 = vpop.f32.mrf.mxu0
      %v821 = vadd.f32 0.0, %v820
      %v822 = vpop.f32.mrf.mxu0
      %v823 = vadd.f32 0.0, %v822
      %824 = vdwg.mxu0
      %v825 = vmul.f32 %v821, 0.17677669
      %v826 = vmul.f32 %v823, 0.17677669
      %v827 = vsel %vm688, %v825, -inf
      %828 = vmax.xlane.f32.xlu0 %v827
      %v829 = vpop.xlane.xlu0 %828
      %v830 = vsel %vm688, %v826, -inf
      %831 = vmax.xlane.f32.xlu0 %v830
      %v832 = vpop.xlane.xlu0 %831
      %v833 = vsub.f32 %v825, %v829
      %v834 = vsub.f32 %v826, %v832
      %v835 = vmul.f32 %v833, 1.442695
      %v836 = vpow.pop %v835
      %v837 = vmul.f32 %v834, 1.442695
      %v838 = vpow.pop %v837
      %v839 = vsel %vm688, %v836, 0.0
      %840 = vadd.xlane.f32.xlu0 %v839
      %v841 = vpop.xlane.xlu0 %840
      %v842 = vsel %vm688, %v838, 0.0
      %843 = vadd.xlane.f32.xlu0 %v842
      %v844 = vpop.xlane.xlu0 %843
      %v845 = vrcp.pop %v841
      %v846 = vrcp.pop %v844
      %v847 = vmul.f32 %v836, %v845
      %v848 = vmul.f32 %v838, %v846
      %v849 = vpack.c.bf16 %v848, %v847
      %850 = vrot.lane.b32.xlu0 %v664, 64
      %v851 = vpop.permute.xlu0 %850
      %v854 = vsel %vm688, %v849, 0
      %856 = vmatpush.bf16.msra.mxu0 0
      %857 = vmatpush.bf16.msra.mxu0 0
      %858 = vmatpush.bf16.msra.mxu0 0
      %859 = vmatpush.bf16.msra.mxu0 0
      %860 = vmatpush.bf16.msra.mxu0 0
      %861 = vmatpush.bf16.msra.mxu0 0
      %862 = vmatpush.bf16.msra.mxu0 0
      %863 = vmatpush.bf16.msra.mxu0 %v851
      %864 = vmatmul.bf16.gmra.mxu0 %v854
      %v865 = vpop.f32.mrf.mxu0
      %v866 = vadd.f32 0.0, %v865
      %v867 = vpop.f32.mrf.mxu0
      %v868 = vadd.f32 0.0, %v867
      %869 = vdwg.mxu0
      %870 = vrot.lane.b32.xlu0 %v662, 32
      %v871 = vpop.permute.xlu0 %870
      %872 = vrot.lane.b32.xlu0 %v663, 32
      %v873 = vpop.permute.xlu0 %872
      %v875 = vsel %vm665, %v871, 0
      %v878 = vsel %vm665, %v873, 0
      %880 = vmatpush.bf16.xpose.msra.mxu0 0
      %881 = vmatpush.bf16.xpose.msra.mxu0 0
      %882 = vmatpush.bf16.xpose.msra.mxu0 0
      %883 = vmatpush.bf16.xpose.msra.mxu0 0
      %884 = vmatpush.bf16.xpose.msra.mxu0 0
      %885 = vmatpush.bf16.xpose.msra.mxu0 0
      %886 = vmatpush.bf16.xpose.msra.mxu0 0
      %887 = vmatpush.bf16.xpose.msra.mxu0 %v878
      %888 = vmatmul.bf16.gmra.mxu0 %v875
      %v889 = vpop.f32.mrf.mxu0
      %v890 = vadd.f32 0.0, %v889
      %v891 = vpop.f32.mrf.mxu0
      %v892 = vadd.f32 0.0, %v891
      %893 = vdwg.mxu0
      %v894 = vmul.f32 %v890, 0.17677669
      %v895 = vmul.f32 %v892, 0.17677669
      %v896 = vsel %vm688, %v894, -inf
      %897 = vmax.xlane.f32.xlu0 %v896
      %v898 = vpop.xlane.xlu0 %897
      %v899 = vsel %vm688, %v895, -inf
      %900 = vmax.xlane.f32.xlu0 %v899
      %v901 = vpop.xlane.xlu0 %900
      %v902 = vsub.f32 %v894, %v898
      %v903 = vsub.f32 %v895, %v901
      %v904 = vmul.f32 %v902, 1.442695
      %v905 = vpow.pop %v904
      %v906 = vmul.f32 %v903, 1.442695
      %v907 = vpow.pop %v906
      %v908 = vsel %vm688, %v905, 0.0
      %909 = vadd.xlane.f32.xlu0 %v908
      %v910 = vpop.xlane.xlu0 %909
      %v911 = vsel %vm688, %v907, 0.0
      %912 = vadd.xlane.f32.xlu0 %v911
      %v913 = vpop.xlane.xlu0 %912
      %v914 = vrcp.pop %v910
      %v915 = vrcp.pop %v913
      %v916 = vmul.f32 %v905, %v914
      %v917 = vmul.f32 %v907, %v915
      %v918 = vpack.c.bf16 %v917, %v916
      %919 = vrot.lane.b32.xlu0 %v664, 32
      %v920 = vpop.permute.xlu0 %919
      %v923 = vsel %vm688, %v918, 0
      %925 = vmatpush.bf16.msra.mxu0 0
      %926 = vmatpush.bf16.msra.mxu0 0
      %927 = vmatpush.bf16.msra.mxu0 0
      %928 = vmatpush.bf16.msra.mxu0 0
      %929 = vmatpush.bf16.msra.mxu0 0
      %930 = vmatpush.bf16.msra.mxu0 0
      %931 = vmatpush.bf16.msra.mxu0 0
      %932 = vmatpush.bf16.msra.mxu0 %v920
      %933 = vmatmul.bf16.gmra.mxu0 %v923
      %v934 = vpop.f32.mrf.mxu0
      %v935 = vadd.f32 0.0, %v934
      %v936 = vpop.f32.mrf.mxu0
      %v937 = vadd.f32 0.0, %v936
      %938 = vdwg.mxu0
      %941 = vrot.lane.b32.xlu0 %v797, 32
      %v942 = vpop.permute.xlu0 %941
      %943 = vrot.lane.b32.xlu0 %v799, 32
      %v944 = vpop.permute.xlu0 %943
      %949 = vrot.lane.b32.xlu0 %v866, 64
      %v950 = vpop.permute.xlu0 %949
      %951 = vrot.lane.b32.xlu0 %v868, 64
      %v952 = vpop.permute.xlu0 %951
      %957 = vrot.lane.b32.xlu0 %v935, 96
      %v958 = vpop.permute.xlu0 %957
      %959 = vrot.lane.b32.xlu0 %v937, 96
      %v960 = vpop.permute.xlu0 %959
      %v963 = vsel %vm665, %v725, %v942
      %v964 = vsel %vm665, %v727, %v944
      %vm965 = vcmask 523264
      %v966 = vsel %vm965, %v963, %v950
      %v967 = vsel %vm965, %v964, %v952
      %vm968 = vcmask 785408
      %v969 = vsel %vm968, %v966, %v958
      %v970 = vsel %vm968, %v967, %v960
      %v971 = vpack.c.bf16 %v970, %v969
      %v972 = vld [vmem:[%s4] sm:$0xf]
      %v973 = vld [vmem:[%s4 + $0x4] sm:$0xf]
      %v974 = vld [vmem:[%s4 + $0x8] sm:$0xf]
      %v975 = vld [vmem:[%s4 + $0xc] sm:$0xf]
      %v976 = vld [vmem:[%s4 + $0x10] sm:$0xf]
      %v977 = vld [vmem:[%s4 + $0x14] sm:$0xf]
      %v978 = vld [vmem:[%s4 + $0x18] sm:$0xf]
      %v979 = vld [vmem:[%s4 + $0x1c] sm:$0xf]
      %v980 = vld [vmem:[%s4 + $0x20] sm:$0xf]
      %v981 = vld [vmem:[%s4 + $0x24] sm:$0xf]
      %v982 = vld [vmem:[%s4 + $0x28] sm:$0xf]
      %v983 = vld [vmem:[%s4 + $0x2c] sm:$0xf]
      %v984 = vld [vmem:[%s4 + $0x30] sm:$0xf]
      %v985 = vld [vmem:[%s4 + $0x34] sm:$0xf]
      %v986 = vld [vmem:[%s4 + $0x38] sm:$0xf]
      %v987 = vld [vmem:[%s4 + $0x3c] sm:$0xf]
      %v988 = vld [vmem:[%s5] sm:$0x1]
      %v990 = vperm.slane %v988, 0
      %v1008 = vunpack.c.l.b16 %v972
      %v1009 = vunpack.c.l.b16 %v973
      %v1010 = vunpack.c.l.b16 %v974
      %v1011 = vunpack.c.l.b16 %v975
      %v1012 = vunpack.c.l.b16 %v976
      %v1013 = vunpack.c.l.b16 %v977
      %v1014 = vunpack.c.l.b16 %v978
      %v1015 = vunpack.c.l.b16 %v979
      %v1016 = vunpack.c.l.b16 %v980
      %v1017 = vunpack.c.l.b16 %v981
      %v1018 = vunpack.c.l.b16 %v982
      %v1019 = vunpack.c.l.b16 %v983
      %v1020 = vunpack.c.l.b16 %v984
      %v1021 = vunpack.c.l.b16 %v985
      %v1022 = vunpack.c.l.b16 %v986
      %v1023 = vunpack.c.l.b16 %v987
      %v1024 = vpack.c.b16 %v1009, %v1008
      %v1025 = vpack.c.b16 %v1011, %v1010
      %v1026 = vpack.c.b16 %v1013, %v1012
      %v1027 = vpack.c.b16 %v1015, %v1014
      %v1028 = vpack.c.b16 %v1017, %v1016
      %v1029 = vpack.c.b16 %v1019, %v1018
      %v1030 = vpack.c.b16 %v1021, %v1020
      %v1031 = vpack.c.b16 %v1023, %v1022
      %1040 = vmatpush.bf16.msra.mxu0 %v1031
      %1041 = vmatpush.bf16.msra.mxu0 %v1030
      %1042 = vmatpush.bf16.msra.mxu0 %v1029
      %1043 = vmatpush.bf16.msra.mxu0 %v1028
      %1044 = vmatpush.bf16.msra.mxu0 %v1027
      %1045 = vmatpush.bf16.msra.mxu0 %v1026
      %1046 = vmatpush.bf16.msra.mxu0 %v1025
      %1047 = vmatpush.bf16.msra.mxu0 %v1024
      %1048 = vmatmul.bf16.gmra.mxu0 %v971
      %v1049 = vpop.f32.mrf.mxu0
      %v1050 = vadd.f32 %v990, %v1049
      %v1051 = vpop.f32.mrf.mxu0
      %v1052 = vadd.f32 %v990, %v1051
      %1053 = vdwg.mxu0
      %v1054 = vadd.f32 %v343, %v1050
      %v1055 = vadd.f32 %v344, %v1052
      %1056 = vst [vmem:[%s341] sm:$0xff] %v1054
      %1057 = vst [vmem:[%s341 + $0x8] sm:$0xff] %v1055
      %p1058 = scmp.lt.s32.totalorder %s23, 1
      %s1059 = scalar_select %p1058, %s23, 1
      %p1060 = scmp.lt.s32.totalorder %s24, 3
      %s1061 = scalar_select %p1060, %s24, 3
      %s1062 = smul.addr %s1061, 2
      %s1063 = smul.addr %s1059, 8
      %s1064 = sadd.s32 %s1062, %s1063
      %s1065 = smul.addr %s1064, 8
      %s1066 = scalar_lea.vmem %s8, %s1065
      // Predicated region
      $region53: #{spatio_temporal_block.3} parent=51 // pred_check
        %p1067 = pneg %p226
      $region54: #{spatio_temporal_block.3} parent=51 // pred_check_branch
        %1069 = sbr.rel (%p1067) target = $region56
      $region55: #{spatio_temporal_block.3} parent=51 // pred_region
        _
      $region56: #{spatio_temporal_block.3} parent=51 // pred_fallthru
        _
    $region52: #{spatio_temporal_block.3} parent=5 // pred_fallthru
      _
    %p1070 = scmp.le.s32.totalorder 2, %s14
    // Predicated region
    $region57: #{spatio_temporal_block.3} parent=5 // pred_check
      %p1071 = pneg %p1070
    $region58: #{spatio_temporal_block.3} parent=5 // pred_check_branch
      %1073 = sbr.rel (%p1071) target = $region60
    $region59: #{spatio_temporal_block.3} parent=5 // pred_region
      %s1074 = ssub.s32 %s14, 2
      // Predicated region
      $region61: #{spatio_temporal_block.3} parent=59 // pred_check
        %p1075 = pneg %p232
      $region62: #{spatio_temporal_block.3} parent=59 // pred_check_branch
        %1077 = sbr.rel (%p1075) target = $region64
      $region63: #{spatio_temporal_block.3} parent=59 // pred_region
        %p1078 = scmp.lt.s32.totalorder %s25, 1
        %s1079 = scalar_select %p1078, %s25, 1
        %p1080 = scmp.lt.s32.totalorder %s26, 3
        %s1081 = scalar_select %p1080, %s26, 3
        %s1082 = smul.addr %s1081, 2
        %s1083 = smul.addr %s1079, 8
        %s1084 = sadd.s32 %s1082, %s1083
        %s1085 = smul.addr %s1084, 8
        %s1086 = scalar_lea.vmem %s8, %s1085
      $region64: #{spatio_temporal_block.3} parent=59 // pred_fallthru
        _
    $region60: #{spatio_temporal_block.3} parent=5 // pred_fallthru
      _
  $region6: #{spatio_temporal_block.3} parent=0 // loop_footer
    %s18 = sadd.s32 1, %s14
  $region7: #{spatio_temporal_block.3} parent=0 // loop_footer_branch
    %13 = sbr.rel target = $region3
  $region8: #{spatio_temporal_block.3} parent=0 // loop_exit
    _

// kernel: spatio_temporal_block.5
$region0: #{spatio_temporal_block.5}
  #allocation0 [shape = 'u32[]', space=smem, size = 0x4, offset = 0x4, fixed_abs, tag = 'smem constant byte address 0x4 - core index']
  #allocation1 [shape = 'u32[72,128]{1,0:T(1,128)}', space=vmem, size = 0x9000, scoped, tag = 'internal scratch']
  %s0 = inlined_call_operand.vmem [shape: f32[128,128], index: 0, kind: input, shape index: {}]
  %s1 = inlined_call_operand.vmem [shape: f32[1,128], index: 1, kind: input, shape index: {}]
  %s2 = inlined_call_operand.vmem [shape: f32[1,128], index: 2, kind: input, shape index: {}]
  %s3 = inlined_call_operand.vmem [shape: bf16[128,512], index: 3, kind: input, shape index: {}]
  %s4 = inlined_call_operand.vmem [shape: f32[1,512], index: 4, kind: input, shape index: {}]
  %s5 = inlined_call_operand.vmem [shape: bf16[512,128], index: 5, kind: input, shape index: {}]
  %s6 = inlined_call_operand.vmem [shape: f32[1,128], index: 6, kind: input, shape index: {}]
  %s7 = inlined_call_operand.hbm [shape: f32[128,128], index: 7, kind: output, shape index: {}]
  %s8 = sld [smem:[#allocation0]]
  $region38: #{spatio_temporal_block.5} parent=0
    _
  %s10 = ssub.s32 1, %s8
  %s11 = scalar_select 0, %s10, %s8
  $region1: #{spatio_temporal_block.5} parent=0
    #allocation2 [shape = 'u8[65536]{0}', space=vmem, size = 0x10000, scoped, tag = 'output window, operand 0, single buffered']
    #allocation3 [shape = 's32[1]{0}', space=sflag, size = 0x4, scoped, tag = 'scoped memory for spatio_temporal_block.5']
    %12 = vsyncpa [#allocation3], 0
    // Predicated region
    $region2: #{spatio_temporal_block.5} parent=1 // pred_check
      _
    $region3: #{spatio_temporal_block.5} parent=1 // pred_check_branch
      %14 = sbr.rel (0) target = $region5
    $region4: #{spatio_temporal_block.5} parent=1 // pred_region
      _
    $region5: #{spatio_temporal_block.5} parent=1 // pred_fallthru
      _
    // Predicated region
    $region6: #{spatio_temporal_block.5} parent=1 // pred_check
      _
    $region7: #{spatio_temporal_block.5} parent=1 // pred_check_branch
      %16 = sbr.rel (0) target = $region9
    $region8: #{spatio_temporal_block.5} parent=1 // pred_region
      _
    $region9: #{spatio_temporal_block.5} parent=1 // pred_fallthru
      _
    // Predicated region
    $region10: #{spatio_temporal_block.5} parent=1 // pred_check
      _
    $region11: #{spatio_temporal_block.5} parent=1 // pred_check_branch
      %18 = sbr.rel (0) target = $region13
    $region12: #{spatio_temporal_block.5} parent=1 // pred_region
      _
    $region13: #{spatio_temporal_block.5} parent=1 // pred_fallthru
      _
    // Predicated region
    $region14: #{spatio_temporal_block.5} parent=1 // pred_check
      _
    $region15: #{spatio_temporal_block.5} parent=1 // pred_check_branch
      %20 = sbr.rel (0) target = $region17
    $region16: #{spatio_temporal_block.5} parent=1 // pred_region
      _
    $region17: #{spatio_temporal_block.5} parent=1 // pred_fallthru
      _
    // Predicated region
    $region18: #{spatio_temporal_block.5} parent=1 // pred_check
      _
    $region19: #{spatio_temporal_block.5} parent=1 // pred_check_branch
      %22 = sbr.rel (0) target = $region21
    $region20: #{spatio_temporal_block.5} parent=1 // pred_region
      _
    $region21: #{spatio_temporal_block.5} parent=1 // pred_fallthru
      _
    // Predicated region
    $region22: #{spatio_temporal_block.5} parent=1 // pred_check
      _
    $region23: #{spatio_temporal_block.5} parent=1 // pred_check_branch
      %24 = sbr.rel (0) target = $region25
    $region24: #{spatio_temporal_block.5} parent=1 // pred_region
      _
    $region25: #{spatio_temporal_block.5} parent=1 // pred_fallthru
      _
    // Predicated region
    $region26: #{spatio_temporal_block.5} parent=1 // pred_check
      _
    $region27: #{spatio_temporal_block.5} parent=1 // pred_check_branch
      %26 = sbr.rel (0) target = $region29
    $region28: #{spatio_temporal_block.5} parent=1 // pred_region
      _
    $region29: #{spatio_temporal_block.5} parent=1 // pred_fallthru
      _
    %v27 = vld [vmem:[%s0] sm:$0xff]
    %v28 = vld [vmem:[%s0 + $0x8] sm:$0xff]
    %v29 = vld [vmem:[%s0 + $0x10] sm:$0xff]
    %v30 = vld [vmem:[%s0 + $0x18] sm:$0xff]
    %v31 = vld [vmem:[%s0 + $0x20] sm:$0xff]
    %v32 = vld [vmem:[%s0 + $0x28] sm:$0xff]
    %v33 = vld [vmem:[%s0 + $0x30] sm:$0xff]
    %v34 = vld [vmem:[%s0 + $0x38] sm:$0xff]
    %v35 = vld [vmem:[%s0 + $0x40] sm:$0xff]
    %v36 = vld [vmem:[%s0 + $0x48] sm:$0xff]
    %v37 = vld [vmem:[%s0 + $0x50] sm:$0xff]
    %v38 = vld [vmem:[%s0 + $0x58] sm:$0xff]
    %v39 = vld [vmem:[%s0 + $0x60] sm:$0xff]
    %v40 = vld [vmem:[%s0 + $0x68] sm:$0xff]
    %v41 = vld [vmem:[%s0 + $0x70] sm:$0xff]
    %v42 = vld [vmem:[%s0 + $0x78] sm:$0xff]
    %v43 = vld [vmem:[%s1] sm:$0x1]
    %v44 = vld [vmem:[%s2] sm:$0x1]
    %45 = vadd.xlane.f32.xlu0 %v27
    %v46 = vpop.xlane.xlu0 %45
    %47 = vadd.xlane.f32.xlu0 %v28
    %v48 = vpop.xlane.xlu0 %47
    %49 = vadd.xlane.f32.xlu0 %v29
    %v50 = vpop.xlane.xlu0 %49
    %51 = vadd.xlane.f32.xlu0 %v30
    %v52 = vpop.xlane.xlu0 %51
    %53 = vadd.xlane.f32.xlu0 %v31
    %v54 = vpop.xlane.xlu0 %53
    %55 = vadd.xlane.f32.xlu0 %v32
    %v56 = vpop.xlane.xlu0 %55
    %57 = vadd.xlane.f32.xlu0 %v33
    %v58 = vpop.xlane.xlu0 %57
    %59 = vadd.xlane.f32.xlu0 %v34
    %v60 = vpop.xlane.xlu0 %59
    %61 = vadd.xlane.f32.xlu0 %v35
    %v62 = vpop.xlane.xlu0 %61
    %63 = vadd.xlane.f32.xlu0 %v36
    %v64 = vpop.xlane.xlu0 %63
    %65 = vadd.xlane.f32.xlu0 %v37
    %v66 = vpop.xlane.xlu0 %65
    %67 = vadd.xlane.f32.xlu0 %v38
    %v68 = vpop.xlane.xlu0 %67
    %69 = vadd.xlane.f32.xlu0 %v39
    %v70 = vpop.xlane.xlu0 %69
    %71 = vadd.xlane.f32.xlu0 %v40
    %v72 = vpop.xlane.xlu0 %71
    %73 = vadd.xlane.f32.xlu0 %v41
    %v74 = vpop.xlane.xlu0 %73
    %75 = vadd.xlane.f32.xlu0 %v42
    %v76 = vpop.xlane.xlu0 %75
    %v77 = vrcp.pop 128.0
    %v78 = vmul.f32 128.0, %v77
    %v79 = vsub.f32 1.0, %v78
    %v80 = vmul.f32 %v77, %v79
    %v81 = vadd.f32 %v77, %v80
    %vm82 = vweird.f32 %v77
    %v83 = vsel %vm82, %v77, %v81
    %v84 = vmul.f32 %v46, %v83
    %v85 = vmul.f32 %v48, %v83
    %v86 = vmul.f32 %v50, %v83
    %v87 = vmul.f32 %v52, %v83
    %v88 = vmul.f32 %v54, %v83
    %v89 = vmul.f32 %v56, %v83
    %v90 = vmul.f32 %v58, %v83
    %v91 = vmul.f32 %v60, %v83
    %v92 = vmul.f32 %v62, %v83
    %v93 = vmul.f32 %v64, %v83
    %v94 = vmul.f32 %v66, %v83
    %v95 = vmul.f32 %v68, %v83
    %v96 = vmul.f32 %v70, %v83
    %v97 = vmul.f32 %v72, %v83
    %v98 = vmul.f32 %v74, %v83
    %v99 = vmul.f32 %v76, %v83
    %v100 = vsub.f32 %v27, %v84
    %v101 = vsub.f32 %v28, %v85
    %v102 = vsub.f32 %v29, %v86
    %v103 = vsub.f32 %v30, %v87
    %v104 = vsub.f32 %v31, %v88
    %v105 = vsub.f32 %v32, %v89
    %v106 = vsub.f32 %v33, %v90
    %v107 = vsub.f32 %v34, %v91
    %v108 = vsub.f32 %v35, %v92
    %v109 = vsub.f32 %v36, %v93
    %v110 = vsub.f32 %v37, %v94
    %v111 = vsub.f32 %v38, %v95
    %v112 = vsub.f32 %v39, %v96
    %v113 = vsub.f32 %v40, %v97
    %v114 = vsub.f32 %v41, %v98
    %v115 = vsub.f32 %v42, %v99
    %v116 = vmul.f32 %v100, %v100
    %v117 = vmul.f32 %v101, %v101
    %v118 = vmul.f32 %v102, %v102
    %v119 = vmul.f32 %v103, %v103
    %v120 = vmul.f32 %v104, %v104
    %v121 = vmul.f32 %v105, %v105
    %v122 = vmul.f32 %v106, %v106
    %v123 = vmul.f32 %v107, %v107
    %v124 = vmul.f32 %v108, %v108
    %v125 = vmul.f32 %v109, %v109
    %v126 = vmul.f32 %v110, %v110
    %v127 = vmul.f32 %v111, %v111
    %v128 = vmul.f32 %v112, %v112
    %v129 = vmul.f32 %v113, %v113
    %v130 = vmul.f32 %v114, %v114
    %v131 = vmul.f32 %v115, %v115
    %132 = vadd.xlane.f32.xlu0 %v116
    %v133 = vpop.xlane.xlu0 %132
    %134 = vadd.xlane.f32.xlu0 %v117
    %v135 = vpop.xlane.xlu0 %134
    %136 = vadd.xlane.f32.xlu0 %v118
    %v137 = vpop.xlane.xlu0 %136
    %138 = vadd.xlane.f32.xlu0 %v119
    %v139 = vpop.xlane.xlu0 %138
    %140 = vadd.xlane.f32.xlu0 %v120
    %v141 = vpop.xlane.xlu0 %140
    %142 = vadd.xlane.f32.xlu0 %v121
    %v143 = vpop.xlane.xlu0 %142
    %144 = vadd.xlane.f32.xlu0 %v122
    %v145 = vpop.xlane.xlu0 %144
    %146 = vadd.xlane.f32.xlu0 %v123
    %v147 = vpop.xlane.xlu0 %146
    %148 = vadd.xlane.f32.xlu0 %v124
    %v149 = vpop.xlane.xlu0 %148
    %150 = vadd.xlane.f32.xlu0 %v125
    %v151 = vpop.xlane.xlu0 %150
    %152 = vadd.xlane.f32.xlu0 %v126
    %v153 = vpop.xlane.xlu0 %152
    %154 = vadd.xlane.f32.xlu0 %v127
    %v155 = vpop.xlane.xlu0 %154
    %156 = vadd.xlane.f32.xlu0 %v128
    %v157 = vpop.xlane.xlu0 %156
    %158 = vadd.xlane.f32.xlu0 %v129
    %v159 = vpop.xlane.xlu0 %158
    %160 = vadd.xlane.f32.xlu0 %v130
    %v161 = vpop.xlane.xlu0 %160
    %162 = vadd.xlane.f32.xlu0 %v131
    %v163 = vpop.xlane.xlu0 %162
    %v164 = vmul.f32 %v133, %v83
    %v165 = vmul.f32 %v135, %v83
    %v166 = vmul.f32 %v137, %v83
    %v167 = vmul.f32 %v139, %v83
    %v168 = vmul.f32 %v141, %v83
    %v169 = vmul.f32 %v143, %v83
    %v170 = vmul.f32 %v145, %v83
    %v171 = vmul.f32 %v147, %v83
    %v172 = vmul.f32 %v149, %v83
    %v173 = vmul.f32 %v151, %v83
    %v174 = vmul.f32 %v153, %v83
    %v175 = vmul.f32 %v155, %v83
    %v176 = vmul.f32 %v157, %v83
    %v177 = vmul.f32 %v159, %v83
    %v178 = vmul.f32 %v161, %v83
    %v179 = vmul.f32 %v163, %v83
    %v180 = vadd.f32 %v164, 1e-05
    %v181 = vadd.f32 %v165, 1e-05
    %v182 = vadd.f32 %v166, 1e-05
    %v183 = vadd.f32 %v167, 1e-05
    %v184 = vadd.f32 %v168, 1e-05
    %v185 = vadd.f32 %v169, 1e-05
    %v186 = vadd.f32 %v170, 1e-05
    %v187 = vadd.f32 %v171, 1e-05
    %v188 = vadd.f32 %v172, 1e-05
    %v189 = vadd.f32 %v173, 1e-05
    %v190 = vadd.f32 %v174, 1e-05
    %v191 = vadd.f32 %v175, 1e-05
    %v192 = vadd.f32 %v176, 1e-05
    %v193 = vadd.f32 %v177, 1e-05
    %v194 = vadd.f32 %v178, 1e-05
    %v195 = vadd.f32 %v179, 1e-05
    %v196 = vrsqrt.pop %v180
    %v197 = vmul.f32 %v196, %v180
    %v198 = vmul.f32 %v197, %v196
    %v199 = vmul.f32 0.5, %v198
    %v200 = vsub.f32 1.5, %v199
    %v201 = vmul.f32 %v196, %v200
    %vm202 = vweird.f32 %v180
    %vm203 = vweird.f32 %v196
    %vm204 = vmor %vm202, %vm203
    %v205 = vsel %vm204, %v196, %v201
    %v206 = vrsqrt.pop %v181
    %v207 = vmul.f32 %v206, %v181
    %v208 = vmul.f32 %v207, %v206
    %v209 = vmul.f32 0.5, %v208
    %v210 = vsub.f32 1.5, %v209
    %v211 = vmul.f32 %v206, %v210
    %vm212 = vweird.f32 %v181
    %vm213 = vweird.f32 %v206
    %vm214 = vmor %vm212, %vm213
    %v215 = vsel %vm214, %v206, %v211
    %v216 = vrsqrt.pop %v182
    %v217 = vmul.f32 %v216, %v182
    %v218 = vmul.f32 %v217, %v216
    %v219 = vmul.f32 0.5, %v218
    %v220 = vsub.f32 1.5, %v219
    %v221 = vmul.f32 %v216, %v220
    %vm222 = vweird.f32 %v182
    %vm223 = vweird.f32 %v216
    %vm224 = vmor %vm222, %vm223
    %v225 = vsel %vm224, %v216, %v221
    %v226 = vrsqrt.pop %v183
    %v227 = vmul.f32 %v226, %v183
    %v228 = vmul.f32 %v227, %v226
    %v229 = vmul.f32 0.5, %v228
    %v230 = vsub.f32 1.5, %v229
    %v231 = vmul.f32 %v226, %v230
    %vm232 = vweird.f32 %v183
    %vm233 = vweird.f32 %v226
    %vm234 = vmor %vm232, %vm233
    %v235 = vsel %vm234, %v226, %v231
    %v236 = vrsqrt.pop %v184
    %v237 = vmul.f32 %v236, %v184
    %v238 = vmul.f32 %v237, %v236
    %v239 = vmul.f32 0.5, %v238
    %v240 = vsub.f32 1.5, %v239
    %v241 = vmul.f32 %v236, %v240
    %vm242 = vweird.f32 %v184
    %vm243 = vweird.f32 %v236
    %vm244 = vmor %vm242, %vm243
    %v245 = vsel %vm244, %v236, %v241
    %v246 = vrsqrt.pop %v185
    %v247 = vmul.f32 %v246, %v185
    %v248 = vmul.f32 %v247, %v246
    %v249 = vmul.f32 0.5, %v248
    %v250 = vsub.f32 1.5, %v249
    %v251 = vmul.f32 %v246, %v250
    %vm252 = vweird.f32 %v185
    %vm253 = vweird.f32 %v246
    %vm254 = vmor %vm252, %vm253
    %v255 = vsel %vm254, %v246, %v251
    %v256 = vrsqrt.pop %v186
    %v257 = vmul.f32 %v256, %v186
    %v258 = vmul.f32 %v257, %v256
    %v259 = vmul.f32 0.5, %v258
    %v260 = vsub.f32 1.5, %v259
    %v261 = vmul.f32 %v256, %v260
    %vm262 = vweird.f32 %v186
    %vm263 = vweird.f32 %v256
    %vm264 = vmor %vm262, %vm263
    %v265 = vsel %vm264, %v256, %v261
    %v266 = vrsqrt.pop %v187
    %v267 = vmul.f32 %v266, %v187
    %v268 = vmul.f32 %v267, %v266
    %v269 = vmul.f32 0.5, %v268
    %v270 = vsub.f32 1.5, %v269
    %v271 = vmul.f32 %v266, %v270
    %vm272 = vweird.f32 %v187
    %vm273 = vweird.f32 %v266
    %vm274 = vmor %vm272, %vm273
    %v275 = vsel %vm274, %v266, %v271
    %v276 = vrsqrt.pop %v188
    %v277 = vmul.f32 %v276, %v188
    %v278 = vmul.f32 %v277, %v276
    %v279 = vmul.f32 0.5, %v278
    %v280 = vsub.f32 1.5, %v279
    %v281 = vmul.f32 %v276, %v280
    %vm282 = vweird.f32 %v188
    %vm283 = vweird.f32 %v276
    %vm284 = vmor %vm282, %vm283
    %v285 = vsel %vm284, %v276, %v281
    %v286 = vrsqrt.pop %v189
    %v287 = vmul.f32 %v286, %v189
    %v288 = vmul.f32 %v287, %v286
    %v289 = vmul.f32 0.5, %v288
    %v290 = vsub.f32 1.5, %v289
    %v291 = vmul.f32 %v286, %v290
    %vm292 = vweird.f32 %v189
    %vm293 = vweird.f32 %v286
    %vm294 = vmor %vm292, %vm293
    %v295 = vsel %vm294, %v286, %v291
    %v296 = vrsqrt.pop %v190
    %v297 = vmul.f32 %v296, %v190
    %v298 = vmul.f32 %v297, %v296
    %v299 = vmul.f32 0.5, %v298
    %v300 = vsub.f32 1.5, %v299
    %v301 = vmul.f32 %v296, %v300
    %vm302 = vweird.f32 %v190
    %vm303 = vweird.f32 %v296
    %vm304 = vmor %vm302, %vm303
    %v305 = vsel %vm304, %v296, %v301
    %v306 = vrsqrt.pop %v191
    %v307 = vmul.f32 %v306, %v191
    %v308 = vmul.f32 %v307, %v306
    %v309 = vmul.f32 0.5, %v308
    %v310 = vsub.f32 1.5, %v309
    %v311 = vmul.f32 %v306, %v310
    %vm312 = vweird.f32 %v191
    %vm313 = vweird.f32 %v306
    %vm314 = vmor %vm312, %vm313
    %v315 = vsel %vm314, %v306, %v311
    %v316 = vrsqrt.pop %v192
    %v317 = vmul.f32 %v316, %v192
    %v318 = vmul.f32 %v317, %v316
    %v319 = vmul.f32 0.5, %v318
    %v320 = vsub.f32 1.5, %v319
    %v321 = vmul.f32 %v316, %v320
    %vm322 = vweird.f32 %v192
    %vm323 = vweird.f32 %v316
    %vm324 = vmor %vm322, %vm323
    %v325 = vsel %vm324, %v316, %v321
    %v326 = vrsqrt.pop %v193
    %v327 = vmul.f32 %v326, %v193
    %v328 = vmul.f32 %v327, %v326
    %v329 = vmul.f32 0.5, %v328
    %v330 = vsub.f32 1.5, %v329
    %v331 = vmul.f32 %v326, %v330
    %vm332 = vweird.f32 %v193
    %vm333 = vweird.f32 %v326
    %vm334 = vmor %vm332, %vm333
    %v335 = vsel %vm334, %v326, %v331
    %v336 = vrsqrt.pop %v194
    %v337 = vmul.f32 %v336, %v194
    %v338 = vmul.f32 %v337, %v336
    %v339 = vmul.f32 0.5, %v338
    %v340 = vsub.f32 1.5, %v339
    %v341 = vmul.f32 %v336, %v340
    %vm342 = vweird.f32 %v194
    %vm343 = vweird.f32 %v336
    %vm344 = vmor %vm342, %vm343
    %v345 = vsel %vm344, %v336, %v341
    %v346 = vrsqrt.pop %v195
    %v347 = vmul.f32 %v346, %v195
    %v348 = vmul.f32 %v347, %v346
    %v349 = vmul.f32 0.5, %v348
    %v350 = vsub.f32 1.5, %v349
    %v351 = vmul.f32 %v346, %v350
    %vm352 = vweird.f32 %v195
    %vm353 = vweird.f32 %v346
    %vm354 = vmor %vm352, %vm353
    %v355 = vsel %vm354, %v346, %v351
    %v356 = vmul.f32 %v100, %v205
    %v357 = vmul.f32 %v101, %v215
    %v358 = vmul.f32 %v102, %v225
    %v359 = vmul.f32 %v103, %v235
    %v360 = vmul.f32 %v104, %v245
    %v361 = vmul.f32 %v105, %v255
    %v362 = vmul.f32 %v106, %v265
    %v363 = vmul.f32 %v107, %v275
    %v364 = vmul.f32 %v108, %v285
    %v365 = vmul.f32 %v109, %v295
    %v366 = vmul.f32 %v110, %v305
    %v367 = vmul.f32 %v111, %v315
    %v368 = vmul.f32 %v112, %v325
    %v369 = vmul.f32 %v113, %v335
    %v370 = vmul.f32 %v114, %v345
    %v371 = vmul.f32 %v115, %v355
    %v373 = vperm.slane %v43, 0
    %v375 = vmul.f32 %v356, %v373
    %v376 = vmul.f32 %v357, %v373
    %v377 = vmul.f32 %v358, %v373
    %v378 = vmul.f32 %v359, %v373
    %v379 = vmul.f32 %v360, %v373
    %v380 = vmul.f32 %v361, %v373
    %v381 = vmul.f32 %v362, %v373
    %v382 = vmul.f32 %v363, %v373
    %v383 = vmul.f32 %v364, %v373
    %v384 = vmul.f32 %v365, %v373
    %v385 = vmul.f32 %v366, %v373
    %v386 = vmul.f32 %v367, %v373
    %v387 = vmul.f32 %v368, %v373
    %v388 = vmul.f32 %v369, %v373
    %v389 = vmul.f32 %v370, %v373
    %v390 = vmul.f32 %v371, %v373
    %v392 = vperm.slane %v44, 0
    %v394 = vadd.f32 %v375, %v392
    %v395 = vadd.f32 %v376, %v392
    %v396 = vadd.f32 %v377, %v392
    %v397 = vadd.f32 %v378, %v392
    %v398 = vadd.f32 %v379, %v392
    %v399 = vadd.f32 %v380, %v392
    %v400 = vadd.f32 %v381, %v392
    %v401 = vadd.f32 %v382, %v392
    %v402 = vadd.f32 %v383, %v392
    %v403 = vadd.f32 %v384, %v392
    %v404 = vadd.f32 %v385, %v392
    %v405 = vadd.f32 %v386, %v392
    %v406 = vadd.f32 %v387, %v392
    %v407 = vadd.f32 %v388, %v392
    %v408 = vadd.f32 %v389, %v392
    %v409 = vadd.f32 %v390, %v392
    %v410 = vpack.c.bf16 %v395, %v394
    %v411 = vpack.c.bf16 %v397, %v396
    %v412 = vpack.c.bf16 %v399, %v398
    %v413 = vpack.c.bf16 %v401, %v400
    %v414 = vpack.c.bf16 %v403, %v402
    %v415 = vpack.c.bf16 %v405, %v404
    %v416 = vpack.c.bf16 %v407, %v406
    %v417 = vpack.c.bf16 %v409, %v408
    %v418 = vld [vmem:[%s3] sm:$0xff]
    %v419 = vld [vmem:[%s3 + $0x8] sm:$0xff]
    %v420 = vld [vmem:[%s3 + $0x10] sm:$0xff]
    %v421 = vld [vmem:[%s3 + $0x18] sm:$0xff]
    %v422 = vld [vmem:[%s3 + $0x20] sm:$0xff]
    %v423 = vld [vmem:[%s3 + $0x28] sm:$0xff]
    %v424 = vld [vmem:[%s3 + $0x30] sm:$0xff]
    %v425 = vld [vmem:[%s3 + $0x38] sm:$0xff]
    %v426 = vld [vmem:[%s3 + $0x40] sm:$0xff]
    %v427 = vld [vmem:[%s3 + $0x48] sm:$0xff]
    %v428 = vld [vmem:[%s3 + $0x50] sm:$0xff]
    %v429 = vld [vmem:[%s3 + $0x58] sm:$0xff]
    %v430 = vld [vmem:[%s3 + $0x60] sm:$0xff]
    %v431 = vld [vmem:[%s3 + $0x68] sm:$0xff]
    %v432 = vld [vmem:[%s3 + $0x70] sm:$0xff]
    %v433 = vld [vmem:[%s3 + $0x78] sm:$0xff]
    %v434 = vld [vmem:[%s3 + $0x80] sm:$0xff]
    %v435 = vld [vmem:[%s3 + $0x88] sm:$0xff]
    %v436 = vld [vmem:[%s3 + $0x90] sm:$0xff]
    %v437 = vld [vmem:[%s3 + $0x98] sm:$0xff]
    %v438 = vld [vmem:[%s3 + $0xa0] sm:$0xff]
    %v439 = vld [vmem:[%s3 + $0xa8] sm:$0xff]
    %v440 = vld [vmem:[%s3 + $0xb0] sm:$0xff]
    %v441 = vld [vmem:[%s3 + $0xb8] sm:$0xff]
    %v442 = vld [vmem:[%s3 + $0xc0] sm:$0xff]
    %v443 = vld [vmem:[%s3 + $0xc8] sm:$0xff]
    %v444 = vld [vmem:[%s3 + $0xd0] sm:$0xff]
    %v445 = vld [vmem:[%s3 + $0xd8] sm:$0xff]
    %v446 = vld [vmem:[%s3 + $0xe0] sm:$0xff]
    %v447 = vld [vmem:[%s3 + $0xe8] sm:$0xff]
    %v448 = vld [vmem:[%s3 + $0xf0] sm:$0xff]
    %v449 = vld [vmem:[%s3 + $0xf8] sm:$0xff]
    %v450 = vld [vmem:[%s4] sm:$0xf]
    %v452 = vperm.slane %v450, 0
    %v453 = vperm.slane %v450, 1
    %v454 = vperm.slane %v450, 2
    %v455 = vperm.slane %v450, 3
    %v492 = vunpack.c.l.b16 %v418
    %v493 = vunpack.c.h.b16 %v418
    %v494 = vunpack.c.l.b16 %v419
    %v495 = vunpack.c.h.b16 %v419
    %v496 = vunpack.c.l.b16 %v420
    %v497 = vunpack.c.h.b16 %v420
    %v498 = vunpack.c.l.b16 %v421
    %v499 = vunpack.c.h.b16 %v421
    %v500 = vunpack.c.l.b16 %v422
    %v501 = vunpack.c.h.b16 %v422
    %v502 = vunpack.c.l.b16 %v423
    %v503 = vunpack.c.h.b16 %v423
    %v504 = vunpack.c.l.b16 %v424
    %v505 = vunpack.c.h.b16 %v424
    %v506 = vunpack.c.l.b16 %v425
    %v507 = vunpack.c.h.b16 %v425
    %v508 = vunpack.c.l.b16 %v426
    %v509 = vunpack.c.h.b16 %v426
    %v510 = vunpack.c.l.b16 %v427
    %v511 = vunpack.c.h.b16 %v427
    %v512 = vunpack.c.l.b16 %v428
    %v513 = vunpack.c.h.b16 %v428
    %v514 = vunpack.c.l.b16 %v429
    %v515 = vunpack.c.h.b16 %v429
    %v516 = vunpack.c.l.b16 %v430
    %v517 = vunpack.c.h.b16 %v430
    %v518 = vunpack.c.l.b16 %v431
    %v519 = vunpack.c.h.b16 %v431
    %v520 = vunpack.c.l.b16 %v432
    %v521 = vunpack.c.h.b16 %v432
    %v522 = vunpack.c.l.b16 %v433
    %v523 = vunpack.c.h.b16 %v433
    %v524 = vunpack.c.l.b16 %v434
    %v525 = vunpack.c.h.b16 %v434
    %v526 = vunpack.c.l.b16 %v435
    %v527 = vunpack.c.h.b16 %v435
    %v528 = vunpack.c.l.b16 %v436
    %v529 = vunpack.c.h.b16 %v436
    %v530 = vunpack.c.l.b16 %v437
    %v531 = vunpack.c.h.b16 %v437
    %v532 = vunpack.c.l.b16 %v438
    %v533 = vunpack.c.h.b16 %v438
    %v534 = vunpack.c.l.b16 %v439
    %v535 = vunpack.c.h.b16 %v439
    %v536 = vunpack.c.l.b16 %v440
    %v537 = vunpack.c.h.b16 %v440
    %v538 = vunpack.c.l.b16 %v441
    %v539 = vunpack.c.h.b16 %v441
    %v540 = vunpack.c.l.b16 %v442
    %v541 = vunpack.c.h.b16 %v442
    %v542 = vunpack.c.l.b16 %v443
    %v543 = vunpack.c.h.b16 %v443
    %v544 = vunpack.c.l.b16 %v444
    %v545 = vunpack.c.h.b16 %v444
    %v546 = vunpack.c.l.b16 %v445
    %v547 = vunpack.c.h.b16 %v445
    %v548 = vunpack.c.l.b16 %v446
    %v549 = vunpack.c.h.b16 %v446
    %v550 = vunpack.c.l.b16 %v447
    %v551 = vunpack.c.h.b16 %v447
    %v552 = vunpack.c.l.b16 %v448
    %v553 = vunpack.c.h.b16 %v448
    %v554 = vunpack.c.l.b16 %v449
    %v555 = vunpack.c.h.b16 %v449
    %v556 = vpack.c.b16 %v496, %v492
    %v557 = vpack.c.b16 %v497, %v493
    %v558 = vpack.c.b16 %v498, %v494
    %v559 = vpack.c.b16 %v499, %v495
    %v560 = vpack.c.b16 %v504, %v500
    %v561 = vpack.c.b16 %v505, %v501
    %v562 = vpack.c.b16 %v506, %v502
    %v563 = vpack.c.b16 %v507, %v503
    %v564 = vpack.c.b16 %v512, %v508
    %v565 = vpack.c.b16 %v513, %v509
    %v566 = vpack.c.b16 %v514, %v510
    %v567 = vpack.c.b16 %v515, %v511
    %v568 = vpack.c.b16 %v520, %v516
    %v569 = vpack.c.b16 %v521, %v517
    %v570 = vpack.c.b16 %v522, %v518
    %v571 = vpack.c.b16 %v523, %v519
    %v572 = vpack.c.b16 %v528, %v524
    %v573 = vpack.c.b16 %v529, %v525
    %v574 = vpack.c.b16 %v530, %v526
    %v575 = vpack.c.b16 %v531, %v527
    %v576 = vpack.c.b16 %v536, %v532
    %v577 = vpack.c.b16 %v537, %v533
    %v578 = vpack.c.b16 %v538, %v534
    %v579 = vpack.c.b16 %v539, %v535
    %v580 = vpack.c.b16 %v544, %v540
    %v581 = vpack.c.b16 %v545, %v541
    %v582 = vpack.c.b16 %v546, %v542
    %v583 = vpack.c.b16 %v547, %v543
    %v584 = vpack.c.b16 %v552, %v548
    %v585 = vpack.c.b16 %v553, %v549
    %v586 = vpack.c.b16 %v554, %v550
    %v587 = vpack.c.b16 %v555, %v551
    %620 = vmatpush.bf16.msra.mxu0 %v584
    %621 = vmatpush.bf16.msra.mxu0 %v580
    %622 = vmatpush.bf16.msra.mxu0 %v576
    %623 = vmatpush.bf16.msra.mxu0 %v572
    %624 = vmatpush.bf16.msra.mxu0 %v568
    %625 = vmatpush.bf16.msra.mxu0 %v564
    %626 = vmatpush.bf16.msra.mxu0 %v560
    %627 = vmatpush.bf16.msra.mxu0 %v556
    %628 = vmatmul.bf16.gmra.mxu0 %v410
    %v629 = vpop.f32.mrf.mxu0
    %v630 = vadd.f32 %v452, %v629
    %v631 = vpop.f32.mrf.mxu0
    %v632 = vadd.f32 %v452, %v631
    %633 = vmatmul.bf16.gmra.mxu0 %v411
    %v634 = vpop.f32.mrf.mxu0
    %v635 = vadd.f32 %v452, %v634
    %v636 = vpop.f32.mrf.mxu0
    %v637 = vadd.f32 %v452, %v636
    %638 = vmatmul.bf16.gmra.mxu0 %v412
    %v639 = vpop.f32.mrf.mxu0
    %v640 = vadd.f32 %v452, %v639
    %v641 = vpop.f32.mrf.mxu0
    %v642 = vadd.f32 %v452, %v641
    %643 = vmatmul.bf16.gmra.mxu0 %v413
    %v644 = vpop.f32.mrf.mxu0
    %v645 = vadd.f32 %v452, %v644
    %v646 = vpop.f32.mrf.mxu0
    %v647 = vadd.f32 %v452, %v646
    %648 = vmatmul.bf16.gmra.mxu0 %v414
    %v649 = vpop.f32.mrf.mxu0
    %v650 = vadd.f32 %v452, %v649
    %v651 = vpop.f32.mrf.mxu0
    %v652 = vadd.f32 %v452, %v651
    %653 = vmatmul.bf16.gmra.mxu0 %v415
    %v654 = vpop.f32.mrf.mxu0
    %v655 = vadd.f32 %v452, %v654
    %v656 = vpop.f32.mrf.mxu0
    %v657 = vadd.f32 %v452, %v656
    %658 = vmatmul.bf16.gmra.mxu0 %v416
    %v659 = vpop.f32.mrf.mxu0
    %v660 = vadd.f32 %v452, %v659
    %v661 = vpop.f32.mrf.mxu0
    %v662 = vadd.f32 %v452, %v661
    %663 = vmatmul.bf16.gmra.mxu0 %v417
    %v664 = vpop.f32.mrf.mxu0
    %v665 = vadd.f32 %v452, %v664
    %v666 = vpop.f32.mrf.mxu0
    %v667 = vadd.f32 %v452, %v666
    %668 = vdwg.mxu0
    %669 = vmatpush.bf16.msra.mxu0 %v585
    %670 = vmatpush.bf16.msra.mxu0 %v581
    %671 = vmatpush.bf16.msra.mxu0 %v577
    %672 = vmatpush.bf16.msra.mxu0 %v573
    %673 = vmatpush.bf16.msra.mxu0 %v569
    %674 = vmatpush.bf16.msra.mxu0 %v565
    %675 = vmatpush.bf16.msra.mxu0 %v561
    %676 = vmatpush.bf16.msra.mxu0 %v557
    %677 = vmatmul.bf16.gmra.mxu0 %v410
    %v678 = vpop.f32.mrf.mxu0
    %v679 = vadd.f32 %v453, %v678
    %v680 = vpop.f32.mrf.mxu0
    %v681 = vadd.f32 %v453, %v680
    %682 = vmatmul.bf16.gmra.mxu0 %v411
    %v683 = vpop.f32.mrf.mxu0
    %v684 = vadd.f32 %v453, %v683
    %v685 = vpop.f32.mrf.mxu0
    %v686 = vadd.f32 %v453, %v685
    %687 = vmatmul.bf16.gmra.mxu0 %v412
    %v688 = vpop.f32.mrf.mxu0
    %v689 = vadd.f32 %v453, %v688
    %v690 = vpop.f32.mrf.mxu0
    %v691 = vadd.f32 %v453, %v690
    %692 = vmatmul.bf16.gmra.mxu0 %v413
    %v693 = vpop.f32.mrf.mxu0
    %v694 = vadd.f32 %v453, %v693
    %v695 = vpop.f32.mrf.mxu0
    %v696 = vadd.f32 %v453, %v695
    %697 = vmatmul.bf16.gmra.mxu0 %v414
    %v698 = vpop.f32.mrf.mxu0
    %v699 = vadd.f32 %v453, %v698
    %v700 = vpop.f32.mrf.mxu0
    %v701 = vadd.f32 %v453, %v700
    %702 = vmatmul.bf16.gmra.mxu0 %v415
    %v703 = vpop.f32.mrf.mxu0
    %v704 = vadd.f32 %v453, %v703
    %v705 = vpop.f32.mrf.mxu0
    %v706 = vadd.f32 %v453, %v705
    %707 = vmatmul.bf16.gmra.mxu0 %v416
    %v708 = vpop.f32.mrf.mxu0
    %v709 = vadd.f32 %v453, %v708
    %v710 = vpop.f32.mrf.mxu0
    %v711 = vadd.f32 %v453, %v710
    %712 = vmatmul.bf16.gmra.mxu0 %v417
    %v713 = vpop.f32.mrf.mxu0
    %v714 = vadd.f32 %v453, %v713
    %v715 = vpop.f32.mrf.mxu0
    %v716 = vadd.f32 %v453, %v715
    %717 = vdwg.mxu0
    %718 = vmatpush.bf16.msra.mxu0 %v586
    %719 = vmatpush.bf16.msra.mxu0 %v582
    %720 = vmatpush.bf16.msra.mxu0 %v578
    %721 = vmatpush.bf16.msra.mxu0 %v574
    %722 = vmatpush.bf16.msra.mxu0 %v570
    %723 = vmatpush.bf16.msra.mxu0 %v566
    %724 = vmatpush.bf16.msra.mxu0 %v562
    %725 = vmatpush.bf16.msra.mxu0 %v558
    %726 = vmatmul.bf16.gmra.mxu0 %v410
    %v727 = vpop.f32.mrf.mxu0
    %v728 = vadd.f32 %v454, %v727
    %v729 = vpop.f32.mrf.mxu0
    %v730 = vadd.f32 %v454, %v729
    %731 = vmatmul.bf16.gmra.mxu0 %v411
    %v732 = vpop.f32.mrf.mxu0
    %v733 = vadd.f32 %v454, %v732
    %v734 = vpop.f32.mrf.mxu0
    %v735 = vadd.f32 %v454, %v734
    %736 = vmatmul.bf16.gmra.mxu0 %v412
    %v737 = vpop.f32.mrf.mxu0
    %v738 = vadd.f32 %v454, %v737
    %v739 = vpop.f32.mrf.mxu0
    %v740 = vadd.f32 %v454, %v739
    %741 = vmatmul.bf16.gmra.mxu0 %v413
    %v742 = vpop.f32.mrf.mxu0
    %v743 = vadd.f32 %v454, %v742
    %v744 = vpop.f32.mrf.mxu0
    %v745 = vadd.f32 %v454, %v744
    %746 = vmatmul.bf16.gmra.mxu0 %v414
    %v747 = vpop.f32.mrf.mxu0
    %v748 = vadd.f32 %v454, %v747
    %v749 = vpop.f32.mrf.mxu0
    %v750 = vadd.f32 %v454, %v749
    %751 = vmatmul.bf16.gmra.mxu0 %v415
    %v752 = vpop.f32.mrf.mxu0
    %v753 = vadd.f32 %v454, %v752
    %v754 = vpop.f32.mrf.mxu0
    %v755 = vadd.f32 %v454, %v754
    %756 = vmatmul.bf16.gmra.mxu0 %v416
    %v757 = vpop.f32.mrf.mxu0
    %v758 = vadd.f32 %v454, %v757
    %v759 = vpop.f32.mrf.mxu0
    %v760 = vadd.f32 %v454, %v759
    %761 = vmatmul.bf16.gmra.mxu0 %v417
    %v762 = vpop.f32.mrf.mxu0
    %v763 = vadd.f32 %v454, %v762
    %v764 = vpop.f32.mrf.mxu0
    %v765 = vadd.f32 %v454, %v764
    %766 = vdwg.mxu0
    %767 = vmatpush.bf16.msra.mxu0 %v587
    %768 = vmatpush.bf16.msra.mxu0 %v583
    %769 = vmatpush.bf16.msra.mxu0 %v579
    %770 = vmatpush.bf16.msra.mxu0 %v575
    %771 = vmatpush.bf16.msra.mxu0 %v571
    %772 = vmatpush.bf16.msra.mxu0 %v567
    %773 = vmatpush.bf16.msra.mxu0 %v563
    %774 = vmatpush.bf16.msra.mxu0 %v559
    %775 = vmatmul.bf16.gmra.mxu0 %v410
    %v776 = vpop.f32.mrf.mxu0
    %v777 = vadd.f32 %v455, %v776
    %v778 = vpop.f32.mrf.mxu0
    %v779 = vadd.f32 %v455, %v778
    %780 = vmatmul.bf16.gmra.mxu0 %v411
    %v781 = vpop.f32.mrf.mxu0
    %v782 = vadd.f32 %v455, %v781
    %v783 = vpop.f32.mrf.mxu0
    %v784 = vadd.f32 %v455, %v783
    %785 = vmatmul.bf16.gmra.mxu0 %v412
    %v786 = vpop.f32.mrf.mxu0
    %v787 = vadd.f32 %v455, %v786
    %v788 = vpop.f32.mrf.mxu0
    %v789 = vadd.f32 %v455, %v788
    %790 = vmatmul.bf16.gmra.mxu0 %v413
    %v791 = vpop.f32.mrf.mxu0
    %v792 = vadd.f32 %v455, %v791
    %v793 = vpop.f32.mrf.mxu0
    %v794 = vadd.f32 %v455, %v793
    %795 = vmatmul.bf16.gmra.mxu0 %v414
    %v796 = vpop.f32.mrf.mxu0
    %v797 = vadd.f32 %v455, %v796
    %v798 = vpop.f32.mrf.mxu0
    %v799 = vadd.f32 %v455, %v798
    %800 = vmatmul.bf16.gmra.mxu0 %v415
    %v801 = vpop.f32.mrf.mxu0
    %v802 = vadd.f32 %v455, %v801
    %v803 = vpop.f32.mrf.mxu0
    %v804 = vadd.f32 %v455, %v803
    %805 = vmatmul.bf16.gmra.mxu0 %v416
    %v806 = vpop.f32.mrf.mxu0
    %v807 = vadd.f32 %v455, %v806
    %v808 = vpop.f32.mrf.mxu0
    %v809 = vadd.f32 %v455, %v808
    %810 = vmatmul.bf16.gmra.mxu0 %v417
    %v811 = vpop.f32.mrf.mxu0
    %v812 = vadd.f32 %v455, %v811
    %v813 = vpop.f32.mrf.mxu0
    %v814 = vadd.f32 %v455, %v813
    %815 = vdwg.mxu0
    %v816 = vmul.f32 %v630, 0.5
    %v817 = vmul.f32 %v679, 0.5
    %v818 = vmul.f32 %v728, 0.5
    %v819 = vmul.f32 %v777, 0.5
    %v820 = vmul.f32 %v632, 0.5
    %v821 = vmul.f32 %v681, 0.5
    %v822 = vmul.f32 %v730, 0.5
    %v823 = vmul.f32 %v779, 0.5
    %v824 = vmul.f32 %v635, 0.5
    %v825 = vmul.f32 %v684, 0.5
    %v826 = vmul.f32 %v733, 0.5
    %v827 = vmul.f32 %v782, 0.5
    %v828 = vmul.f32 %v637, 0.5
    %v829 = vmul.f32 %v686, 0.5
    %v830 = vmul.f32 %v735, 0.5
    %v831 = vmul.f32 %v784, 0.5
    %v832 = vmul.f32 %v640, 0.5
    %v833 = vmul.f32 %v689, 0.5
    %v834 = vmul.f32 %v738, 0.5
    %v835 = vmul.f32 %v787, 0.5
    %v836 = vmul.f32 %v642, 0.5
    %v837 = vmul.f32 %v691, 0.5
    %v838 = vmul.f32 %v740, 0.5
    %v839 = vmul.f32 %v789, 0.5
    %v840 = vmul.f32 %v645, 0.5
    %v841 = vmul.f32 %v694, 0.5
    %v842 = vmul.f32 %v743, 0.5
    %v843 = vmul.f32 %v792, 0.5
    %v844 = vmul.f32 %v647, 0.5
    %v845 = vmul.f32 %v696, 0.5
    %v846 = vmul.f32 %v745, 0.5
    %v847 = vmul.f32 %v794, 0.5
    %v848 = vmul.f32 %v650, 0.5
    %v849 = vmul.f32 %v699, 0.5
    %v850 = vmul.f32 %v748, 0.5
    %v851 = vmul.f32 %v797, 0.5
    %v852 = vmul.f32 %v652, 0.5
    %v853 = vmul.f32 %v701, 0.5
    %v854 = vmul.f32 %v750, 0.5
    %v855 = vmul.f32 %v799, 0.5
    %v856 = vmul.f32 %v655, 0.5
    %v857 = vmul.f32 %v704, 0.5
    %v858 = vmul.f32 %v753, 0.5
    %v859 = vmul.f32 %v802, 0.5
    %v860 = vmul.f32 %v657, 0.5
    %v861 = vmul.f32 %v706, 0.5
    %v862 = vmul.f32 %v755, 0.5
    %v863 = vmul.f32 %v804, 0.5
    %v864 = vmul.f32 %v660, 0.5
    %v865 = vmul.f32 %v709, 0.5
    %v866 = vmul.f32 %v758, 0.5
    %v867 = vmul.f32 %v807, 0.5
    %v868 = vmul.f32 %v662, 0.5
    %v869 = vmul.f32 %v711, 0.5
    %v870 = vmul.f32 %v760, 0.5
    %v871 = vmul.f32 %v809, 0.5
    %v872 = vmul.f32 %v665, 0.5
    %v873 = vmul.f32 %v714, 0.5
    %v874 = vmul.f32 %v763, 0.5
    %v875 = vmul.f32 %v812, 0.5
    %v876 = vmul.f32 %v667, 0.5
    %v877 = vmul.f32 %v716, 0.5
    %v878 = vmul.f32 %v765, 0.5
    %v879 = vmul.f32 %v814, 0.5
    %v880 = vmul.f32 %v630, 0.70710677
    %v881 = vmul.f32 %v679, 0.70710677
    %v882 = vmul.f32 %v728, 0.70710677
    %v883 = vmul.f32 %v777, 0.70710677
    %v884 = vmul.f32 %v632, 0.70710677
    %v885 = vmul.f32 %v681, 0.70710677
    %v886 = vmul.f32 %v730, 0.70710677
    %v887 = vmul.f32 %v779, 0.70710677
    %v888 = vmul.f32 %v635, 0.70710677
    %v889 = vmul.f32 %v684, 0.70710677
    %v890 = vmul.f32 %v733, 0.70710677
    %v891 = vmul.f32 %v782, 0.70710677
    %v892 = vmul.f32 %v637, 0.70710677
    %v893 = vmul.f32 %v686, 0.70710677
    %v894 = vmul.f32 %v735, 0.70710677
    %v895 = vmul.f32 %v784, 0.70710677
    %v896 = vmul.f32 %v640, 0.70710677
    %v897 = vmul.f32 %v689, 0.70710677
    %v898 = vmul.f32 %v738, 0.70710677
    %v899 = vmul.f32 %v787, 0.70710677
    %v900 = vmul.f32 %v642, 0.70710677
    %v901 = vmul.f32 %v691, 0.70710677
    %v902 = vmul.f32 %v740, 0.70710677
    %v903 = vmul.f32 %v789, 0.70710677
    %v904 = vmul.f32 %v645, 0.70710677
    %v905 = vmul.f32 %v694, 0.70710677
    %v906 = vmul.f32 %v743, 0.70710677
    %v907 = vmul.f32 %v792, 0.70710677
    %v908 = vmul.f32 %v647, 0.70710677
    %v909 = vmul.f32 %v696, 0.70710677
    %v910 = vmul.f32 %v745, 0.70710677
    %v911 = vmul.f32 %v794, 0.70710677
    %v912 = vmul.f32 %v650, 0.70710677
    %v913 = vmul.f32 %v699, 0.70710677
    %v914 = vmul.f32 %v748, 0.70710677
    %v915 = vmul.f32 %v797, 0.70710677
    %v916 = vmul.f32 %v652, 0.70710677
    %v917 = vmul.f32 %v701, 0.70710677
    %v918 = vmul.f32 %v750, 0.70710677
    %v919 = vmul.f32 %v799, 0.70710677
    %v920 = vmul.f32 %v655, 0.70710677
    %v921 = vmul.f32 %v704, 0.70710677
    %v922 = vmul.f32 %v753, 0.70710677
    %v923 = vmul.f32 %v802, 0.70710677
    %v924 = vmul.f32 %v657, 0.70710677
    %v925 = vmul.f32 %v706, 0.70710677
    %v926 = vmul.f32 %v755, 0.70710677
    %v927 = vmul.f32 %v804, 0.70710677
    %v928 = vmul.f32 %v660, 0.70710677
    %v929 = vmul.f32 %v709, 0.70710677
    %v930 = vmul.f32 %v758, 0.70710677
    %v931 = vmul.f32 %v807, 0.70710677
    %v932 = vmul.f32 %v662, 0.70710677
    %v933 = vmul.f32 %v711, 0.70710677
    %v934 = vmul.f32 %v760, 0.70710677
    %v935 = vmul.f32 %v809, 0.70710677
    %v936 = vmul.f32 %v665, 0.70710677
    %v937 = vmul.f32 %v714, 0.70710677
    %v938 = vmul.f32 %v763, 0.70710677
    %v939 = vmul.f32 %v812, 0.70710677
    %v940 = vmul.f32 %v667, 0.70710677
    %v941 = vmul.f32 %v716, 0.70710677
    %v942 = vmul.f32 %v765, 0.70710677
    %v943 = vmul.f32 %v814, 0.70710677
    %v944 = vand.u32 2147483647, %v880
    %v945 = vand.u32 2147483647, %v881
    %v946 = vand.u32 2147483647, %v882
    %v947 = vand.u32 2147483647, %v883
    %v948 = vand.u32 2147483647, %v884
    %v949 = vand.u32 2147483647, %v885
    %v950 = vand.u32 2147483647, %v886
    %v951 = vand.u32 2147483647, %v887
    %v952 = vand.u32 2147483647, %v888
    %v953 = vand.u32 2147483647, %v889
    %v954 = vand.u32 2147483647, %v890
    %v955 = vand.u32 2147483647, %v891
    %v956 = vand.u32 2147483647, %v892
    %v957 = vand.u32 2147483647, %v893
    %v958 = vand.u32 2147483647, %v894
    %v959 = vand.u32 2147483647, %v895
    %v960 = vand.u32 2147483647, %v896
    %v961 = vand.u32 2147483647, %v897
    %v962 = vand.u32 2147483647, %v898
    %v963 = vand.u32 2147483647, %v899
    %v964 = vand.u32 2147483647, %v900
    %v965 = vand.u32 2147483647, %v901
    %v966 = vand.u32 2147483647, %v902
    %v967 = vand.u32 2147483647, %v903
    %v968 = vand.u32 2147483647, %v904
    %v969 = vand.u32 2147483647, %v905
    %v970 = vand.u32 2147483647, %v906
    %v971 = vand.u32 2147483647, %v907
    %v972 = vand.u32 2147483647, %v908
    %v973 = vand.u32 2147483647, %v909
    %v974 = vand.u32 2147483647, %v910
    %v975 = vand.u32 2147483647, %v911
    %v976 = vand.u32 2147483647, %v912
    %v977 = vand.u32 2147483647, %v913
    %v978 = vand.u32 2147483647, %v914
    %v979 = vand.u32 2147483647, %v915
    %v980 = vand.u32 2147483647, %v916
    %v981 = vand.u32 2147483647, %v917
    %v982 = vand.u32 2147483647, %v918
    %v983 = vand.u32 2147483647, %v919
    %v984 = vand.u32 2147483647, %v920
    %v985 = vand.u32 2147483647, %v921
    %v986 = vand.u32 2147483647, %v922
    %v987 = vand.u32 2147483647, %v923
    %v988 = vand.u32 2147483647, %v924
    %v989 = vand.u32 2147483647, %v925
    %v990 = vand.u32 2147483647, %v926
    %v991 = vand.u32 2147483647, %v927
    %v992 = vand.u32 2147483647, %v928
    %v993 = vand.u32 2147483647, %v929
    %v994 = vand.u32 2147483647, %v930
    %v995 = vand.u32 2147483647, %v931
    %v996 = vand.u32 2147483647, %v932
    %v997 = vand.u32 2147483647, %v933
    %v998 = vand.u32 2147483647, %v934
    %v999 = vand.u32 2147483647, %v935
    %v1000 = vand.u32 2147483647, %v936
    %v1001 = vand.u32 2147483647, %v937
    %v1002 = vand.u32 2147483647, %v938
    %v1003 = vand.u32 2147483647, %v939
    %v1004 = vand.u32 2147483647, %v940
    %v1005 = vand.u32 2147483647, %v941
    %v1006 = vand.u32 2147483647, %v942
    %v1007 = vand.u32 2147483647, %v943
    %v1008 = vmul.f32 %v944, 0.5
    %v1009 = vmul.f32 %v945, 0.5
    %v1010 = vmul.f32 %v946, 0.5
    %v1011 = vmul.f32 %v947, 0.5
    %v1012 = vmul.f32 %v948, 0.5
    %v1013 = vmul.f32 %v949, 0.5
    %v1014 = vmul.f32 %v950, 0.5
    %v1015 = vmul.f32 %v951, 0.5
    %v1016 = vmul.f32 %v952, 0.5
    %v1017 = vmul.f32 %v953, 0.5
    %v1018 = vmul.f32 %v954, 0.5
    %v1019 = vmul.f32 %v955, 0.5
    %v1020 = vmul.f32 %v956, 0.5
    %v1021 = vmul.f32 %v957, 0.5
    %v1022 = vmul.f32 %v958, 0.5
    %v1023 = vmul.f32 %v959, 0.5
    %v1024 = vmul.f32 %v960, 0.5
    %v1025 = vmul.f32 %v961, 0.5
    %v1026 = vmul.f32 %v962, 0.5
    %v1027 = vmul.f32 %v963, 0.5
    %v1028 = vmul.f32 %v964, 0.5
    %v1029 = vmul.f32 %v965, 0.5
    %v1030 = vmul.f32 %v966, 0.5
    %v1031 = vmul.f32 %v967, 0.5
    %v1032 = vmul.f32 %v968, 0.5
    %v1033 = vmul.f32 %v969, 0.5
    %v1034 = vmul.f32 %v970, 0.5
    %v1035 = vmul.f32 %v971, 0.5
    %v1036 = vmul.f32 %v972, 0.5
    %v1037 = vmul.f32 %v973, 0.5
    %v1038 = vmul.f32 %v974, 0.5
    %v1039 = vmul.f32 %v975, 0.5
    %v1040 = vmul.f32 %v976, 0.5
    %v1041 = vmul.f32 %v977, 0.5
    %v1042 = vmul.f32 %v978, 0.5
    %v1043 = vmul.f32 %v979, 0.5
    %v1044 = vmul.f32 %v980, 0.5
    %v1045 = vmul.f32 %v981, 0.5
    %v1046 = vmul.f32 %v982, 0.5
    %v1047 = vmul.f32 %v983, 0.5
    %v1048 = vmul.f32 %v984, 0.5
    %v1049 = vmul.f32 %v985, 0.5
    %v1050 = vmul.f32 %v986, 0.5
    %v1051 = vmul.f32 %v987, 0.5
    %v1052 = vmul.f32 %v988, 0.5
    %v1053 = vmul.f32 %v989, 0.5
    %v1054 = vmul.f32 %v990, 0.5
    %v1055 = vmul.f32 %v991, 0.5
    %v1056 = vmul.f32 %v992, 0.5
    %v1057 = vmul.f32 %v993, 0.5
    %v1058 = vmul.f32 %v994, 0.5
    %v1059 = vmul.f32 %v995, 0.5
    %v1060 = vmul.f32 %v996, 0.5
    %v1061 = vmul.f32 %v997, 0.5
    %v1062 = vmul.f32 %v998, 0.5
    %v1063 = vmul.f32 %v999, 0.5
    %v1064 = vmul.f32 %v1000, 0.5
    %v1065 = vmul.f32 %v1001, 0.5
    %v1066 = vmul.f32 %v1002, 0.5
    %v1067 = vmul.f32 %v1003, 0.5
    %v1068 = vmul.f32 %v1004, 0.5
    %v1069 = vmul.f32 %v1005, 0.5
    %v1070 = vmul.f32 %v1006, 0.5
    %v1071 = vmul.f32 %v1007, 0.5
    %v1072 = vadd.f32 %v1008, 1.0
    %v1073 = vadd.f32 %v1009, 1.0
    %v1074 = vadd.f32 %v1010, 1.0
    %v1075 = vadd.f32 %v1011, 1.0
    %v1076 = vadd.f32 %v1012, 1.0
    %v1077 = vadd.f32 %v1013, 1.0
    %v1078 = vadd.f32 %v1014, 1.0
    %v1079 = vadd.f32 %v1015, 1.0
    %v1080 = vadd.f32 %v1016, 1.0
    %v1081 = vadd.f32 %v1017, 1.0
    %v1082 = vadd.f32 %v1018, 1.0
    %v1083 = vadd.f32 %v1019, 1.0
    %v1084 = vadd.f32 %v1020, 1.0
    %v1085 = vadd.f32 %v1021, 1.0
    %v1086 = vadd.f32 %v1022, 1.0
    %v1087 = vadd.f32 %v1023, 1.0
    %v1088 = vadd.f32 %v1024, 1.0
    %v1089 = vadd.f32 %v1025, 1.0
    %v1090 = vadd.f32 %v1026, 1.0
    %v1091 = vadd.f32 %v1027, 1.0
    %v1092 = vadd.f32 %v1028, 1.0
    %v1093 = vadd.f32 %v1029, 1.0
    %v1094 = vadd.f32 %v1030, 1.0
    %v1095 = vadd.f32 %v1031, 1.0
    %v1096 = vadd.f32 %v1032, 1.0
    %v1097 = vadd.f32 %v1033, 1.0
    %v1098 = vadd.f32 %v1034, 1.0
    %v1099 = vadd.f32 %v1035, 1.0
    %v1100 = vadd.f32 %v1036, 1.0
    %v1101 = vadd.f32 %v1037, 1.0
    %v1102 = vadd.f32 %v1038, 1.0
    %v1103 = vadd.f32 %v1039, 1.0
    %v1104 = vadd.f32 %v1040, 1.0
    %v1105 = vadd.f32 %v1041, 1.0
    %v1106 = vadd.f32 %v1042, 1.0
    %v1107 = vadd.f32 %v1043, 1.0
    %v1108 = vadd.f32 %v1044, 1.0
    %v1109 = vadd.f32 %v1045, 1.0
    %v1110 = vadd.f32 %v1046, 1.0
    %v1111 = vadd.f32 %v1047, 1.0
    %v1112 = vadd.f32 %v1048, 1.0
    %v1113 = vadd.f32 %v1049, 1.0
    %v1114 = vadd.f32 %v1050, 1.0
    %v1115 = vadd.f32 %v1051, 1.0
    %v1116 = vadd.f32 %v1052, 1.0
    %v1117 = vadd.f32 %v1053, 1.0
    %v1118 = vadd.f32 %v1054, 1.0
    %v1119 = vadd.f32 %v1055, 1.0
    %v1120 = vadd.f32 %v1056, 1.0
    %v1121 = vadd.f32 %v1057, 1.0
    %v1122 = vadd.f32 %v1058, 1.0
    %v1123 = vadd.f32 %v1059, 1.0
    %v1124 = vadd.f32 %v1060, 1.0
    %v1125 = vadd.f32 %v1061, 1.0
    %v1126 = vadd.f32 %v1062, 1.0
    %v1127 = vadd.f32 %v1063, 1.0
    %v1128 = vadd.f32 %v1064, 1.0
    %v1129 = vadd.f32 %v1065, 1.0
    %v1130 = vadd.f32 %v1066, 1.0
    %v1131 = vadd.f32 %v1067, 1.0
    %v1132 = vadd.f32 %v1068, 1.0
    %v1133 = vadd.f32 %v1069, 1.0
    %v1134 = vadd.f32 %v1070, 1.0
    %v1135 = vadd.f32 %v1071, 1.0
    %v1136 = vrcp.pop %v1072
    %v1137 = vmul.f32 %v1072, %v1136
    %v1138 = vsub.f32 1.0, %v1137
    %v1139 = vmul.f32 %v1136, %v1138
    %v1140 = vadd.f32 %v1136, %v1139
    %vm1141 = vweird.f32 %v1072
    %vm1142 = vweird.f32 %v1136
    %vm1143 = vmor %vm1141, %vm1142
    %v1144 = vsel %vm1143, %v1136, %v1140
    %v1145 = vand.u32 2147483647, %v1072
    %vm1146 = vcmp.eq.f32.partialorder %v1145, 8.507059e+37
    %v1147 = vand.u32 %v1072, 2147483648
    %v1148 = vor.u32 1.1754944e-38, %v1147
    %v1149 = vsel %vm1146, %v1148, %v1144
    %v1150 = vmul.f32 1.0, %v1149
    %v1151 = vrcp.pop %v1073
    %v1152 = vmul.f32 %v1073, %v1151
    %v1153 = vsub.f32 1.0, %v1152
    %v1154 = vmul.f32 %v1151, %v1153
    %v1155 = vadd.f32 %v1151, %v1154
    %vm1156 = vweird.f32 %v1073
    %vm1157 = vweird.f32 %v1151
    %vm1158 = vmor %vm1156, %vm1157
    %v1159 = vsel %vm1158, %v1151, %v1155
    %v1160 = vand.u32 2147483647, %v1073
    %vm1161 = vcmp.eq.f32.partialorder %v1160, 8.507059e+37
    %v1162 = vand.u32 %v1073, 2147483648
    %v1163 = vor.u32 1.1754944e-38, %v1162
    %v1164 = vsel %vm1161, %v1163, %v1159
    %v1165 = vmul.f32 1.0, %v1164
    %v1166 = vrcp.pop %v1074
    %v1167 = vmul.f32 %v1074, %v1166
    %v1168 = vsub.f32 1.0, %v1167
    %v1169 = vmul.f32 %v1166, %v1168
    %v1170 = vadd.f32 %v1166, %v1169
    %vm1171 = vweird.f32 %v1074
    %vm1172 = vweird.f32 %v1166
    %vm1173 = vmor %vm1171, %vm1172
    %v1174 = vsel %vm1173, %v1166, %v1170
    %v1175 = vand.u32 2147483647, %v1074
    %vm1176 = vcmp.eq.f32.partialorder %v1175, 8.507059e+37
    %v1177 = vand.u32 %v1074, 2147483648
    %v1178 = vor.u32 1.1754944e-38, %v1177
    %v1179 = vsel %vm1176, %v1178, %v1174
    %v1180 = vmul.f32 1.0, %v1179
    %v1181 = vrcp.pop %v1075
    %v1182 = vmul.f32 %v1075, %v1181
    %v1183 = vsub.f32 1.0, %v1182
    %v1184 = vmul.f32 %v1181, %v1183
    %v1185 = vadd.f32 %v1181, %v1184
    %vm1186 = vweird.f32 %v1075
    %vm1187 = vweird.f32 %v1181
    %vm1188 = vmor %vm1186, %vm1187
    %v1189 = vsel %vm1188, %v1181, %v1185
    %v1190 = vand.u32 2147483647, %v1075
    %vm1191 = vcmp.eq.f32.partialorder %v1190, 8.507059e+37
    %v1192 = vand.u32 %v1075, 2147483648
    %v1193 = vor.u32 1.1754944e-38, %v1192
    %v1194 = vsel %vm1191, %v1193, %v1189
    %v1195 = vmul.f32 1.0, %v1194
    %v1196 = vrcp.pop %v1076
    %v1197 = vmul.f32 %v1076, %v1196
    %v1198 = vsub.f32 1.0, %v1197
    %v1199 = vmul.f32 %v1196, %v1198
    %v1200 = vadd.f32 %v1196, %v1199
    %vm1201 = vweird.f32 %v1076
    %vm1202 = vweird.f32 %v1196
    %vm1203 = vmor %vm1201, %vm1202
    %v1204 = vsel %vm1203, %v1196, %v1200
    %v1205 = vand.u32 2147483647, %v1076
    %vm1206 = vcmp.eq.f32.partialorder %v1205, 8.507059e+37
    %v1207 = vand.u32 %v1076, 2147483648
    %v1208 = vor.u32 1.1754944e-38, %v1207
    %v1209 = vsel %vm1206, %v1208, %v1204
    %v1210 = vmul.f32 1.0, %v1209
    %v1211 = vrcp.pop %v1077
    %v1212 = vmul.f32 %v1077, %v1211
    %v1213 = vsub.f32 1.0, %v1212
    %v1214 = vmul.f32 %v1211, %v1213
    %v1215 = vadd.f32 %v1211, %v1214
    %vm1216 = vweird.f32 %v1077
    %vm1217 = vweird.f32 %v1211
    %vm1218 = vmor %vm1216, %vm1217
    %v1219 = vsel %vm1218, %v1211, %v1215
    %v1220 = vand.u32 2147483647, %v1077
    %vm1221 = vcmp.eq.f32.partialorder %v1220, 8.507059e+37
    %v1222 = vand.u32 %v1077, 2147483648
    %v1223 = vor.u32 1.1754944e-38, %v1222
    %v1224 = vsel %vm1221, %v1223, %v1219
    %v1225 = vmul.f32 1.0, %v1224
    %v1226 = vrcp.pop %v1078
    %v1227 = vmul.f32 %v1078, %v1226
    %v1228 = vsub.f32 1.0, %v1227
    %v1229 = vmul.f32 %v1226, %v1228
    %v1230 = vadd.f32 %v1226, %v1229
    %vm1231 = vweird.f32 %v1078
    %vm1232 = vweird.f32 %v1226
    %vm1233 = vmor %vm1231, %vm1232
    %v1234 = vsel %vm1233, %v1226, %v1230
    %v1235 = vand.u32 2147483647, %v1078
    %vm1236 = vcmp.eq.f32.partialorder %v1235, 8.507059e+37
    %v1237 = vand.u32 %v1078, 2147483648
    %v1238 = vor.u32 1.1754944e-38, %v1237
    %v1239 = vsel %vm1236, %v1238, %v1234
    %v1240 = vmul.f32 1.0, %v1239
    %v1241 = vrcp.pop %v1079
    %v1242 = vmul.f32 %v1079, %v1241
    %v1243 = vsub.f32 1.0, %v1242
    %v1244 = vmul.f32 %v1241, %v1243
    %v1245 = vadd.f32 %v1241, %v1244
    %vm1246 = vweird.f32 %v1079
    %vm1247 = vweird.f32 %v1241
    %vm1248 = vmor %vm1246, %vm1247
    %v1249 = vsel %vm1248, %v1241, %v1245
    %v1250 = vand.u32 2147483647, %v1079
    %vm1251 = vcmp.eq.f32.partialorder %v1250, 8.507059e+37
    %v1252 = vand.u32 %v1079, 2147483648
    %v1253 = vor.u32 1.1754944e-38, %v1252
    %v1254 = vsel %vm1251, %v1253, %v1249
    %v1255 = vmul.f32 1.0, %v1254
    %v1256 = vrcp.pop %v1080
    %v1257 = vmul.f32 %v1080, %v1256
    %v1258 = vsub.f32 1.0, %v1257
    %v1259 = vmul.f32 %v1256, %v1258
    %v1260 = vadd.f32 %v1256, %v1259
    %vm1261 = vweird.f32 %v1080
    %vm1262 = vweird.f32 %v1256
    %vm1263 = vmor %vm1261, %vm1262
    %v1264 = vsel %vm1263, %v1256, %v1260
    %v1265 = vand.u32 2147483647, %v1080
    %vm1266 = vcmp.eq.f32.partialorder %v1265, 8.507059e+37
    %v1267 = vand.u32 %v1080, 2147483648
    %v1268 = vor.u32 1.1754944e-38, %v1267
    %v1269 = vsel %vm1266, %v1268, %v1264
    %v1270 = vmul.f32 1.0, %v1269
    %v1271 = vrcp.pop %v1081
    %v1272 = vmul.f32 %v1081, %v1271
    %v1273 = vsub.f32 1.0, %v1272
    %v1274 = vmul.f32 %v1271, %v1273
    %v1275 = vadd.f32 %v1271, %v1274
    %vm1276 = vweird.f32 %v1081
    %vm1277 = vweird.f32 %v1271
    %vm1278 = vmor %vm1276, %vm1277
    %v1279 = vsel %vm1278, %v1271, %v1275
    %v1280 = vand.u32 2147483647, %v1081
    %vm1281 = vcmp.eq.f32.partialorder %v1280, 8.507059e+37
    %v1282 = vand.u32 %v1081, 2147483648
    %v1283 = vor.u32 1.1754944e-38, %v1282
    %v1284 = vsel %vm1281, %v1283, %v1279
    %v1285 = vmul.f32 1.0, %v1284
    %v1286 = vrcp.pop %v1082
    %v1287 = vmul.f32 %v1082, %v1286
    %v1288 = vsub.f32 1.0, %v1287
    %v1289 = vmul.f32 %v1286, %v1288
    %v1290 = vadd.f32 %v1286, %v1289
    %vm1291 = vweird.f32 %v1082
    %vm1292 = vweird.f32 %v1286
    %vm1293 = vmor %vm1291, %vm1292
    %v1294 = vsel %vm1293, %v1286, %v1290
    %v1295 = vand.u32 2147483647, %v1082
    %vm1296 = vcmp.eq.f32.partialorder %v1295, 8.507059e+37
    %v1297 = vand.u32 %v1082, 2147483648
    %v1298 = vor.u32 1.1754944e-38, %v1297
    %v1299 = vsel %vm1296, %v1298, %v1294
    %v1300 = vmul.f32 1.0, %v1299
    %v1301 = vrcp.pop %v1083
    %v1302 = vmul.f32 %v1083, %v1301
    %v1303 = vsub.f32 1.0, %v1302
    %v1304 = vmul.f32 %v1301, %v1303
    %v1305 = vadd.f32 %v1301, %v1304
    %vm1306 = vweird.f32 %v1083
    %vm1307 = vweird.f32 %v1301
    %vm1308 = vmor %vm1306, %vm1307
    %v1309 = vsel %vm1308, %v1301, %v1305
    %v1310 = vand.u32 2147483647, %v1083
    %vm1311 = vcmp.eq.f32.partialorder %v1310, 8.507059e+37
    %v1312 = vand.u32 %v1083, 2147483648
    %v1313 = vor.u32 1.1754944e-38, %v1312
    %v1314 = vsel %vm1311, %v1313, %v1309
    %v1315 = vmul.f32 1.0, %v1314
    %v1316 = vrcp.pop %v1084
    %v1317 = vmul.f32 %v1084, %v1316
    %v1318 = vsub.f32 1.0, %v1317
    %v1319 = vmul.f32 %v1316, %v1318
    %v1320 = vadd.f32 %v1316, %v1319
    %vm1321 = vweird.f32 %v1084
    %vm1322 = vweird.f32 %v1316
    %vm1323 = vmor %vm1321, %vm1322
    %v1324 = vsel %vm1323, %v1316, %v1320
    %v1325 = vand.u32 2147483647, %v1084
    %vm1326 = vcmp.eq.f32.partialorder %v1325, 8.507059e+37
    %v1327 = vand.u32 %v1084, 2147483648
    %v1328 = vor.u32 1.1754944e-38, %v1327
    %v1329 = vsel %vm1326, %v1328, %v1324
    %v1330 = vmul.f32 1.0, %v1329
    %v1331 = vrcp.pop %v1085
    %v1332 = vmul.f32 %v1085, %v1331
    %v1333 = vsub.f32 1.0, %v1332
    %v1334 = vmul.f32 %v1331, %v1333
    %v1335 = vadd.f32 %v1331, %v1334
    %vm1336 = vweird.f32 %v1085
    %vm1337 = vweird.f32 %v1331
    %vm1338 = vmor %vm1336, %vm1337
    %v1339 = vsel %vm1338, %v1331, %v1335
    %v1340 = vand.u32 2147483647, %v1085
    %vm1341 = vcmp.eq.f32.partialorder %v1340, 8.507059e+37
    %v1342 = vand.u32 %v1085, 2147483648
    %v1343 = vor.u32 1.1754944e-38, %v1342
    %v1344 = vsel %vm1341, %v1343, %v1339
    %v1345 = vmul.f32 1.0, %v1344
    %v1346 = vrcp.pop %v1086
    %v1347 = vmul.f32 %v1086, %v1346
    %v1348 = vsub.f32 1.0, %v1347
    %v1349 = vmul.f32 %v1346, %v1348
    %v1350 = vadd.f32 %v1346, %v1349
    %vm1351 = vweird.f32 %v1086
    %vm1352 = vweird.f32 %v1346
    %vm1353 = vmor %vm1351, %vm1352
    %v1354 = vsel %vm1353, %v1346, %v1350
    %v1355 = vand.u32 2147483647, %v1086
    %vm1356 = vcmp.eq.f32.partialorder %v1355, 8.507059e+37
    %v1357 = vand.u32 %v1086, 2147483648
    %v1358 = vor.u32 1.1754944e-38, %v1357
    %v1359 = vsel %vm1356, %v1358, %v1354
    %v1360 = vmul.f32 1.0, %v1359
    %v1361 = vrcp.pop %v1087
    %v1362 = vmul.f32 %v1087, %v1361
    %v1363 = vsub.f32 1.0, %v1362
    %v1364 = vmul.f32 %v1361, %v1363
    %v1365 = vadd.f32 %v1361, %v1364
    %vm1366 = vweird.f32 %v1087
    %vm1367 = vweird.f32 %v1361
    %vm1368 = vmor %vm1366, %vm1367
    %v1369 = vsel %vm1368, %v1361, %v1365
    %v1370 = vand.u32 2147483647, %v1087
    %vm1371 = vcmp.eq.f32.partialorder %v1370, 8.507059e+37
    %v1372 = vand.u32 %v1087, 2147483648
    %v1373 = vor.u32 1.1754944e-38, %v1372
    %v1374 = vsel %vm1371, %v1373, %v1369
    %v1375 = vmul.f32 1.0, %v1374
    %v1376 = vrcp.pop %v1088
    %v1377 = vmul.f32 %v1088, %v1376
    %v1378 = vsub.f32 1.0, %v1377
    %v1379 = vmul.f32 %v1376, %v1378
    %v1380 = vadd.f32 %v1376, %v1379
    %vm1381 = vweird.f32 %v1088
    %vm1382 = vweird.f32 %v1376
    %vm1383 = vmor %vm1381, %vm1382
    %v1384 = vsel %vm1383, %v1376, %v1380
    %v1385 = vand.u32 2147483647, %v1088
    %vm1386 = vcmp.eq.f32.partialorder %v1385, 8.507059e+37
    %v1387 = vand.u32 %v1088, 2147483648
    %v1388 = vor.u32 1.1754944e-38, %v1387
    %v1389 = vsel %vm1386, %v1388, %v1384
    %v1390 = vmul.f32 1.0, %v1389
    %v1391 = vrcp.pop %v1089
    %v1392 = vmul.f32 %v1089, %v1391
    %v1393 = vsub.f32 1.0, %v1392
    %v1394 = vmul.f32 %v1391, %v1393
    %v1395 = vadd.f32 %v1391, %v1394
    %vm1396 = vweird.f32 %v1089
    %vm1397 = vweird.f32 %v1391
    %vm1398 = vmor %vm1396, %vm1397
    %v1399 = vsel %vm1398, %v1391, %v1395
    %v1400 = vand.u32 2147483647, %v1089
    %vm1401 = vcmp.eq.f32.partialorder %v1400, 8.507059e+37
    %v1402 = vand.u32 %v1089, 2147483648
    %v1403 = vor.u32 1.1754944e-38, %v1402
    %v1404 = vsel %vm1401, %v1403, %v1399
    %v1405 = vmul.f32 1.0, %v1404
    %v1406 = vrcp.pop %v1090
    %v1407 = vmul.f32 %v1090, %v1406
    %v1408 = vsub.f32 1.0, %v1407
    %v1409 = vmul.f32 %v1406, %v1408
    %v1410 = vadd.f32 %v1406, %v1409
    %vm1411 = vweird.f32 %v1090
    %vm1412 = vweird.f32 %v1406
    %vm1413 = vmor %vm1411, %vm1412
    %v1414 = vsel %vm1413, %v1406, %v1410
    %v1415 = vand.u32 2147483647, %v1090
    %vm1416 = vcmp.eq.f32.partialorder %v1415, 8.507059e+37
    %v1417 = vand.u32 %v1090, 2147483648
    %v1418 = vor.u32 1.1754944e-38, %v1417
    %v1419 = vsel %vm1416, %v1418, %v1414
    %v1420 = vmul.f32 1.0, %v1419
    %v1421 = vrcp.pop %v1091
    %v1422 = vmul.f32 %v1091, %v1421
    %v1423 = vsub.f32 1.0, %v1422
    %v1424 = vmul.f32 %v1421, %v1423
    %v1425 = vadd.f32 %v1421, %v1424
    %vm1426 = vweird.f32 %v1091
    %vm1427 = vweird.f32 %v1421
    %vm1428 = vmor %vm1426, %vm1427
    %v1429 = vsel %vm1428, %v1421, %v1425
    %v1430 = vand.u32 2147483647, %v1091
    %vm1431 = vcmp.eq.f32.partialorder %v1430, 8.507059e+37
    %v1432 = vand.u32 %v1091, 2147483648
    %v1433 = vor.u32 1.1754944e-38, %v1432
    %v1434 = vsel %vm1431, %v1433, %v1429
    %v1435 = vmul.f32 1.0, %v1434
    %v1436 = vrcp.pop %v1092
    %v1437 = vmul.f32 %v1092, %v1436
    %v1438 = vsub.f32 1.0, %v1437
    %v1439 = vmul.f32 %v1436, %v1438
    %v1440 = vadd.f32 %v1436, %v1439
    %vm1441 = vweird.f32 %v1092
    %vm1442 = vweird.f32 %v1436
    %vm1443 = vmor %vm1441, %vm1442
    %v1444 = vsel %vm1443, %v1436, %v1440
    %v1445 = vand.u32 2147483647, %v1092
    %vm1446 = vcmp.eq.f32.partialorder %v1445, 8.507059e+37
    %v1447 = vand.u32 %v1092, 2147483648
    %v1448 = vor.u32 1.1754944e-38, %v1447
    %v1449 = vsel %vm1446, %v1448, %v1444
    %v1450 = vmul.f32 1.0, %v1449
    %v1451 = vrcp.pop %v1093
    %v1452 = vmul.f32 %v1093, %v1451
    %v1453 = vsub.f32 1.0, %v1452
    %v1454 = vmul.f32 %v1451, %v1453
    %v1455 = vadd.f32 %v1451, %v1454
    %vm1456 = vweird.f32 %v1093
    %vm1457 = vweird.f32 %v1451
    %vm1458 = vmor %vm1456, %vm1457
    %v1459 = vsel %vm1458, %v1451, %v1455
    %v1460 = vand.u32 2147483647, %v1093
    %vm1461 = vcmp.eq.f32.partialorder %v1460, 8.507059e+37
    %v1462 = vand.u32 %v1093, 2147483648
    %v1463 = vor.u32 1.1754944e-38, %v1462
    %v1464 = vsel %vm1461, %v1463, %v1459
    %v1465 = vmul.f32 1.0, %v1464
    %v1466 = vrcp.pop %v1094
    %v1467 = vmul.f32 %v1094, %v1466
    %v1468 = vsub.f32 1.0, %v1467
    %v1469 = vmul.f32 %v1466, %v1468
    %v1470 = vadd.f32 %v1466, %v1469
    %vm1471 = vweird.f32 %v1094
    %vm1472 = vweird.f32 %v1466
    %vm1473 = vmor %vm1471, %vm1472
    %v1474 = vsel %vm1473, %v1466, %v1470
    %v1475 = vand.u32 2147483647, %v1094
    %vm1476 = vcmp.eq.f32.partialorder %v1475, 8.507059e+37
    %v1477 = vand.u32 %v1094, 2147483648
    %v1478 = vor.u32 1.1754944e-38, %v1477
    %v1479 = vsel %vm1476, %v1478, %v1474
    %v1480 = vmul.f32 1.0, %v1479
    %v1481 = vrcp.pop %v1095
    %v1482 = vmul.f32 %v1095, %v1481
    %v1483 = vsub.f32 1.0, %v1482
    %v1484 = vmul.f32 %v1481, %v1483
    %v1485 = vadd.f32 %v1481, %v1484
    %vm1486 = vweird.f32 %v1095
    %vm1487 = vweird.f32 %v1481
    %vm1488 = vmor %vm1486, %vm1487
    %v1489 = vsel %vm1488, %v1481, %v1485
    %v1490 = vand.u32 2147483647, %v1095
    %vm1491 = vcmp.eq.f32.partialorder %v1490, 8.507059e+37
    %v1492 = vand.u32 %v1095, 2147483648
    %v1493 = vor.u32 1.1754944e-38, %v1492
    %v1494 = vsel %vm1491, %v1493, %v1489
    %v1495 = vmul.f32 1.0, %v1494
    %v1496 = vrcp.pop %v1096
    %v1497 = vmul.f32 %v1096, %v1496
    %v1498 = vsub.f32 1.0, %v1497
    %v1499 = vmul.f32 %v1496, %v1498
    %v1500 = vadd.f32 %v1496, %v1499
    %vm1501 = vweird.f32 %v1096
    %vm1502 = vweird.f32 %v1496
    %vm1503 = vmor %vm1501, %vm1502
    %v1504 = vsel %vm1503, %v1496, %v1500
    %v1505 = vand.u32 2147483647, %v1096
    %vm1506 = vcmp.eq.f32.partialorder %v1505, 8.507059e+37
    %v1507 = vand.u32 %v1096, 2147483648
    %v1508 = vor.u32 1.1754944e-38, %v1507
    %v1509 = vsel %vm1506, %v1508, %v1504
    %v1510 = vmul.f32 1.0, %v1509
    %v1511 = vrcp.pop %v1097
    %v1512 = vmul.f32 %v1097, %v1511
    %v1513 = vsub.f32 1.0, %v1512
    %v1514 = vmul.f32 %v1511, %v1513
    %v1515 = vadd.f32 %v1511, %v1514
    %vm1516 = vweird.f32 %v1097
    %vm1517 = vweird.f32 %v1511
    %vm1518 = vmor %vm1516, %vm1517
    %v1519 = vsel %vm1518, %v1511, %v1515
    %v1520 = vand.u32 2147483647, %v1097
    %vm1521 = vcmp.eq.f32.partialorder %v1520, 8.507059e+37
    %v1522 = vand.u32 %v1097, 2147483648
    %v1523 = vor.u32 1.1754944e-38, %v1522
    %v1524 = vsel %vm1521, %v1523, %v1519
    %v1525 = vmul.f32 1.0, %v1524
    %v1526 = vrcp.pop %v1098
    %v1527 = vmul.f32 %v1098, %v1526
    %v1528 = vsub.f32 1.0, %v1527
    %v1529 = vmul.f32 %v1526, %v1528
    %v1530 = vadd.f32 %v1526, %v1529
    %vm1531 = vweird.f32 %v1098
    %vm1532 = vweird.f32 %v1526
    %vm1533 = vmor %vm1531, %vm1532
    %v1534 = vsel %vm1533, %v1526, %v1530
    %v1535 = vand.u32 2147483647, %v1098
    %vm1536 = vcmp.eq.f32.partialorder %v1535, 8.507059e+37
    %v1537 = vand.u32 %v1098, 2147483648
    %v1538 = vor.u32 1.1754944e-38, %v1537
    %v1539 = vsel %vm1536, %v1538, %v1534
    %v1540 = vmul.f32 1.0, %v1539
    %v1541 = vrcp.pop %v1099
    %v1542 = vmul.f32 %v1099, %v1541
    %v1543 = vsub.f32 1.0, %v1542
    %v1544 = vmul.f32 %v1541, %v1543
    %v1545 = vadd.f32 %v1541, %v1544
    %vm1546 = vweird.f32 %v1099
    %vm1547 = vweird.f32 %v1541
    %vm1548 = vmor %vm1546, %vm1547
    %v1549 = vsel %vm1548, %v1541, %v1545
    %v1550 = vand.u32 2147483647, %v1099
    %vm1551 = vcmp.eq.f32.partialorder %v1550, 8.507059e+37
    %v1552 = vand.u32 %v1099, 2147483648
    %v1553 = vor.u32 1.1754944e-38, %v1552
    %v1554 = vsel %vm1551, %v1553, %v1549
    %v1555 = vmul.f32 1.0, %v1554
    %v1556 = vrcp.pop %v1100
    %v1557 = vmul.f32 %v1100, %v1556
    %v1558 = vsub.f32 1.0, %v1557
    %v1559 = vmul.f32 %v1556, %v1558
    %v1560 = vadd.f32 %v1556, %v1559
    %vm1561 = vweird.f32 %v1100
    %vm1562 = vweird.f32 %v1556
    %vm1563 = vmor %vm1561, %vm1562
    %v1564 = vsel %vm1563, %v1556, %v1560
    %v1565 = vand.u32 2147483647, %v1100
    %vm1566 = vcmp.eq.f32.partialorder %v1565, 8.507059e+37
    %v1567 = vand.u32 %v1100, 2147483648
    %v1568 = vor.u32 1.1754944e-38, %v1567
    %v1569 = vsel %vm1566, %v1568, %v1564
    %v1570 = vmul.f32 1.0, %v1569
    %v1571 = vrcp.pop %v1101
    %v1572 = vmul.f32 %v1101, %v1571
    %v1573 = vsub.f32 1.0, %v1572
    %v1574 = vmul.f32 %v1571, %v1573
    %v1575 = vadd.f32 %v1571, %v1574
    %vm1576 = vweird.f32 %v1101
    %vm1577 = vweird.f32 %v1571
    %vm1578 = vmor %vm1576, %vm1577
    %v1579 = vsel %vm1578, %v1571, %v1575
    %v1580 = vand.u32 2147483647, %v1101
    %vm1581 = vcmp.eq.f32.partialorder %v1580, 8.507059e+37
    %v1582 = vand.u32 %v1101, 2147483648
    %v1583 = vor.u32 1.1754944e-38, %v1582
    %v1584 = vsel %vm1581, %v1583, %v1579
    %v1585 = vmul.f32 1.0, %v1584
    %v1586 = vrcp.pop %v1102
    %v1587 = vmul.f32 %v1102, %v1586
    %v1588 = vsub.f32 1.0, %v1587
    %v1589 = vmul.f32 %v1586, %v1588
    %v1590 = vadd.f32 %v1586, %v1589
    %vm1591 = vweird.f32 %v1102
    %vm1592 = vweird.f32 %v1586
    %vm1593 = vmor %vm1591, %vm1592
    %v1594 = vsel %vm1593, %v1586, %v1590
    %v1595 = vand.u32 2147483647, %v1102
    %vm1596 = vcmp.eq.f32.partialorder %v1595, 8.507059e+37
    %v1597 = vand.u32 %v1102, 2147483648
    %v1598 = vor.u32 1.1754944e-38, %v1597
    %v1599 = vsel %vm1596, %v1598, %v1594
    %v1600 = vmul.f32 1.0, %v1599
    %v1601 = vrcp.pop %v1103
    %v1602 = vmul.f32 %v1103, %v1601
    %v1603 = vsub.f32 1.0, %v1602
    %v1604 = vmul.f32 %v1601, %v1603
    %v1605 = vadd.f32 %v1601, %v1604
    %vm1606 = vweird.f32 %v1103
    %vm1607 = vweird.f32 %v1601
    %vm1608 = vmor %vm1606, %vm1607
    %v1609 = vsel %vm1608, %v1601, %v1605
    %v1610 = vand.u32 2147483647, %v1103
    %vm1611 = vcmp.eq.f32.partialorder %v1610, 8.507059e+37
    %v1612 = vand.u32 %v1103, 2147483648
    %v1613 = vor.u32 1.1754944e-38, %v1612
    %v1614 = vsel %vm1611, %v1613, %v1609
    %v1615 = vmul.f32 1.0, %v1614
    %v1616 = vrcp.pop %v1104
    %v1617 = vmul.f32 %v1104, %v1616
    %v1618 = vsub.f32 1.0, %v1617
    %v1619 = vmul.f32 %v1616, %v1618
    %v1620 = vadd.f32 %v1616, %v1619
    %vm1621 = vweird.f32 %v1104
    %vm1622 = vweird.f32 %v1616
    %vm1623 = vmor %vm1621, %vm1622
    %v1624 = vsel %vm1623, %v1616, %v1620
    %v1625 = vand.u32 2147483647, %v1104
    %vm1626 = vcmp.eq.f32.partialorder %v1625, 8.507059e+37
    %v1627 = vand.u32 %v1104, 2147483648
    %v1628 = vor.u32 1.1754944e-38, %v1627
    %v1629 = vsel %vm1626, %v1628, %v1624
    %v1630 = vmul.f32 1.0, %v1629
    %v1631 = vrcp.pop %v1105
    %v1632 = vmul.f32 %v1105, %v1631
    %v1633 = vsub.f32 1.0, %v1632
    %v1634 = vmul.f32 %v1631, %v1633
    %v1635 = vadd.f32 %v1631, %v1634
    %vm1636 = vweird.f32 %v1105
    %vm1637 = vweird.f32 %v1631
    %vm1638 = vmor %vm1636, %vm1637
    %v1639 = vsel %vm1638, %v1631, %v1635
    %v1640 = vand.u32 2147483647, %v1105
    %vm1641 = vcmp.eq.f32.partialorder %v1640, 8.507059e+37
    %v1642 = vand.u32 %v1105, 2147483648
    %v1643 = vor.u32 1.1754944e-38, %v1642
    %v1644 = vsel %vm1641, %v1643, %v1639
    %v1645 = vmul.f32 1.0, %v1644
    %v1646 = vrcp.pop %v1106
    %v1647 = vmul.f32 %v1106, %v1646
    %v1648 = vsub.f32 1.0, %v1647
    %v1649 = vmul.f32 %v1646, %v1648
    %v1650 = vadd.f32 %v1646, %v1649
    %vm1651 = vweird.f32 %v1106
    %vm1652 = vweird.f32 %v1646
    %vm1653 = vmor %vm1651, %vm1652
    %v1654 = vsel %vm1653, %v1646, %v1650
    %v1655 = vand.u32 2147483647, %v1106
    %vm1656 = vcmp.eq.f32.partialorder %v1655, 8.507059e+37
    %v1657 = vand.u32 %v1106, 2147483648
    %v1658 = vor.u32 1.1754944e-38, %v1657
    %v1659 = vsel %vm1656, %v1658, %v1654
    %v1660 = vmul.f32 1.0, %v1659
    %v1661 = vrcp.pop %v1107
    %v1662 = vmul.f32 %v1107, %v1661
    %v1663 = vsub.f32 1.0, %v1662
    %v1664 = vmul.f32 %v1661, %v1663
    %v1665 = vadd.f32 %v1661, %v1664
    %vm1666 = vweird.f32 %v1107
    %vm1667 = vweird.f32 %v1661
    %vm1668 = vmor %vm1666, %vm1667
    %v1669 = vsel %vm1668, %v1661, %v1665
    %v1670 = vand.u32 2147483647, %v1107
    %vm1671 = vcmp.eq.f32.partialorder %v1670, 8.507059e+37
    %v1672 = vand.u32 %v1107, 2147483648
    %v1673 = vor.u32 1.1754944e-38, %v1672
    %v1674 = vsel %vm1671, %v1673, %v1669
    %v1675 = vmul.f32 1.0, %v1674
    %v1676 = vrcp.pop %v1108
    %v1677 = vmul.f32 %v1108, %v1676
    %v1678 = vsub.f32 1.0, %v1677
    %v1679 = vmul.f32 %v1676, %v1678
    %v1680 = vadd.f32 %v1676, %v1679
    %vm1681 = vweird.f32 %v1108
    %vm1682 = vweird.f32 %v1676
    %vm1683 = vmor %vm1681, %vm1682
    %v1684 = vsel %vm1683, %v1676, %v1680
    %v1685 = vand.u32 2147483647, %v1108
    %vm1686 = vcmp.eq.f32.partialorder %v1685, 8.507059e+37
    %v1687 = vand.u32 %v1108, 2147483648
    %v1688 = vor.u32 1.1754944e-38, %v1687
    %v1689 = vsel %vm1686, %v1688, %v1684
    %v1690 = vmul.f32 1.0, %v1689
    %v1691 = vrcp.pop %v1109
    %v1692 = vmul.f32 %v1109, %v1691
    %v1693 = vsub.f32 1.0, %v1692
    %v1694 = vmul.f32 %v1691, %v1693
    %v1695 = vadd.f32 %v1691, %v1694
    %vm1696 = vweird.f32 %v1109
    %vm1697 = vweird.f32 %v1691
    %vm1698 = vmor %vm1696, %vm1697
    %v1699 = vsel %vm1698, %v1691, %v1695
    %v1700 = vand.u32 2147483647, %v1109
    %vm1701 = vcmp.eq.f32.partialorder %v1700, 8.507059e+37
    %v1702 = vand.u32 %v1109, 2147483648
    %v1703 = vor.u32 1.1754944e-38, %v1702
    %v1704 = vsel %vm1701, %v1703, %v1699
    %v1705 = vmul.f32 1.0, %v1704
    %v1706 = vrcp.pop %v1110
    %v1707 = vmul.f32 %v1110, %v1706
    %v1708 = vsub.f32 1.0, %v1707
    %v1709 = vmul.f32 %v1706, %v1708
    %v1710 = vadd.f32 %v1706, %v1709
    %vm1711 = vweird.f32 %v1110
    %vm1712 = vweird.f32 %v1706
    %vm1713 = vmor %vm1711, %vm1712
    %v1714 = vsel %vm1713, %v1706, %v1710
    %v1715 = vand.u32 2147483647, %v1110
    %vm1716 = vcmp.eq.f32.partialorder %v1715, 8.507059e+37
    %v1717 = vand.u32 %v1110, 2147483648
    %v1718 = vor.u32 1.1754944e-38, %v1717
    %v1719 = vsel %vm1716, %v1718, %v1714
    %v1720 = vmul.f32 1.0, %v1719
    %v1721 = vrcp.pop %v1111
    %v1722 = vmul.f32 %v1111, %v1721
    %v1723 = vsub.f32 1.0, %v1722
    %v1724 = vmul.f32 %v1721, %v1723
    %v1725 = vadd.f32 %v1721, %v1724
    %vm1726 = vweird.f32 %v1111
    %vm1727 = vweird.f32 %v1721
    %vm1728 = vmor %vm1726, %vm1727
    %v1729 = vsel %vm1728, %v1721, %v1725
    %v1730 = vand.u32 2147483647, %v1111
    %vm1731 = vcmp.eq.f32.partialorder %v1730, 8.507059e+37
    %v1732 = vand.u32 %v1111, 2147483648
    %v1733 = vor.u32 1.1754944e-38, %v1732
    %v1734 = vsel %vm1731, %v1733, %v1729
    %v1735 = vmul.f32 1.0, %v1734
    %v1736 = vrcp.pop %v1112
    %v1737 = vmul.f32 %v1112, %v1736
    %v1738 = vsub.f32 1.0, %v1737
    %v1739 = vmul.f32 %v1736, %v1738
    %v1740 = vadd.f32 %v1736, %v1739
    %vm1741 = vweird.f32 %v1112
    %vm1742 = vweird.f32 %v1736
    %vm1743 = vmor %vm1741, %vm1742
    %v1744 = vsel %vm1743, %v1736, %v1740
    %v1745 = vand.u32 2147483647, %v1112
    %vm1746 = vcmp.eq.f32.partialorder %v1745, 8.507059e+37
    %v1747 = vand.u32 %v1112, 2147483648
    %v1748 = vor.u32 1.1754944e-38, %v1747
    %v1749 = vsel %vm1746, %v1748, %v1744
    %v1750 = vmul.f32 1.0, %v1749
    %v1751 = vrcp.pop %v1113
    %v1752 = vmul.f32 %v1113, %v1751
    %v1753 = vsub.f32 1.0, %v1752
    %v1754 = vmul.f32 %v1751, %v1753
    %v1755 = vadd.f32 %v1751, %v1754
    %vm1756 = vweird.f32 %v1113
    %vm1757 = vweird.f32 %v1751
    %vm1758 = vmor %vm1756, %vm1757
    %v1759 = vsel %vm1758, %v1751, %v1755
    %v1760 = vand.u32 2147483647, %v1113
    %vm1761 = vcmp.eq.f32.partialorder %v1760, 8.507059e+37
    %v1762 = vand.u32 %v1113, 2147483648
    %v1763 = vor.u32 1.1754944e-38, %v1762
    %v1764 = vsel %vm1761, %v1763, %v1759
    %v1765 = vmul.f32 1.0, %v1764
    %v1766 = vrcp.pop %v1114
    %v1767 = vmul.f32 %v1114, %v1766
    %v1768 = vsub.f32 1.0, %v1767
    %v1769 = vmul.f32 %v1766, %v1768
    %v1770 = vadd.f32 %v1766, %v1769
    %vm1771 = vweird.f32 %v1114
    %vm1772 = vweird.f32 %v1766
    %vm1773 = vmor %vm1771, %vm1772
    %v1774 = vsel %vm1773, %v1766, %v1770
    %v1775 = vand.u32 2147483647, %v1114
    %vm1776 = vcmp.eq.f32.partialorder %v1775, 8.507059e+37
    %v1777 = vand.u32 %v1114, 2147483648
    %v1778 = vor.u32 1.1754944e-38, %v1777
    %v1779 = vsel %vm1776, %v1778, %v1774
    %v1780 = vmul.f32 1.0, %v1779
    %v1781 = vrcp.pop %v1115
    %v1782 = vmul.f32 %v1115, %v1781
    %v1783 = vsub.f32 1.0, %v1782
    %v1784 = vmul.f32 %v1781, %v1783
    %v1785 = vadd.f32 %v1781, %v1784
    %vm1786 = vweird.f32 %v1115
    %vm1787 = vweird.f32 %v1781
    %vm1788 = vmor %vm1786, %vm1787
    %v1789 = vsel %vm1788, %v1781, %v1785
    %v1790 = vand.u32 2147483647, %v1115
    %vm1791 = vcmp.eq.f32.partialorder %v1790, 8.507059e+37
    %v1792 = vand.u32 %v1115, 2147483648
    %v1793 = vor.u32 1.1754944e-38, %v1792
    %v1794 = vsel %vm1791, %v1793, %v1789
    %v1795 = vmul.f32 1.0, %v1794
    %v1796 = vrcp.pop %v1116
    %v1797 = vmul.f32 %v1116, %v1796
    %v1798 = vsub.f32 1.0, %v1797
    %v1799 = vmul.f32 %v1796, %v1798
    %v1800 = vadd.f32 %v1796, %v1799
    %vm1801 = vweird.f32 %v1116
    %vm1802 = vweird.f32 %v1796
    %vm1803 = vmor %vm1801, %vm1802
    %v1804 = vsel %vm1803, %v1796, %v1800
    %v1805 = vand.u32 2147483647, %v1116
    %vm1806 = vcmp.eq.f32.partialorder %v1805, 8.507059e+37
    %v1807 = vand.u32 %v1116, 2147483648
    %v1808 = vor.u32 1.1754944e-38, %v1807
    %v1809 = vsel %vm1806, %v1808, %v1804
    %v1810 = vmul.f32 1.0, %v1809
    %v1811 = vrcp.pop %v1117
    %v1812 = vmul.f32 %v1117, %v1811
    %v1813 = vsub.f32 1.0, %v1812
    %v1814 = vmul.f32 %v1811, %v1813
    %v1815 = vadd.f32 %v1811, %v1814
    %vm1816 = vweird.f32 %v1117
    %vm1817 = vweird.f32 %v1811
    %vm1818 = vmor %vm1816, %vm1817
    %v1819 = vsel %vm1818, %v1811, %v1815
    %v1820 = vand.u32 2147483647, %v1117
    %vm1821 = vcmp.eq.f32.partialorder %v1820, 8.507059e+37
    %v1822 = vand.u32 %v1117, 2147483648
    %v1823 = vor.u32 1.1754944e-38, %v1822
    %v1824 = vsel %vm1821, %v1823, %v1819
    %v1825 = vmul.f32 1.0, %v1824
    %v1826 = vrcp.pop %v1118
    %v1827 = vmul.f32 %v1118, %v1826
    %v1828 = vsub.f32 1.0, %v1827
    %v1829 = vmul.f32 %v1826, %v1828
    %v1830 = vadd.f32 %v1826, %v1829
    %vm1831 = vweird.f32 %v1118
    %vm1832 = vweird.f32 %v1826
    %vm1833 = vmor %vm1831, %vm1832
    %v1834 = vsel %vm1833, %v1826, %v1830
    %v1835 = vand.u32 2147483647, %v1118
    %vm1836 = vcmp.eq.f32.partialorder %v1835, 8.507059e+37
    %v1837 = vand.u32 %v1118, 2147483648
    %v1838 = vor.u32 1.1754944e-38, %v1837
    %v1839 = vsel %vm1836, %v1838, %v1834
    %v1840 = vmul.f32 1.0, %v1839
    %v1841 = vrcp.pop %v1119
    %v1842 = vmul.f32 %v1119, %v1841
    %v1843 = vsub.f32 1.0, %v1842
    %v1844 = vmul.f32 %v1841, %v1843
    %v1845 = vadd.f32 %v1841, %v1844
    %vm1846 = vweird.f32 %v1119
    %vm1847 = vweird.f32 %v1841
    %vm1848 = vmor %vm1846, %vm1847
    %v1849 = vsel %vm1848, %v1841, %v1845
    %v1850 = vand.u32 2147483647, %v1119
    %vm1851 = vcmp.eq.f32.partialorder %v1850, 8.507059e+37
    %v1852 = vand.u32 %v1119, 2147483648
    %v1853 = vor.u32 1.1754944e-38, %v1852
    %v1854 = vsel %vm1851, %v1853, %v1849
    %v1855 = vmul.f32 1.0, %v1854
    %v1856 = vrcp.pop %v1120
    %v1857 = vmul.f32 %v1120, %v1856
    %v1858 = vsub.f32 1.0, %v1857
    %v1859 = vmul.f32 %v1856, %v1858
    %v1860 = vadd.f32 %v1856, %v1859
    %vm1861 = vweird.f32 %v1120
    %vm1862 = vweird.f32 %v1856
    %vm1863 = vmor %vm1861, %vm1862
    %v1864 = vsel %vm1863, %v1856, %v1860
    %v1865 = vand.u32 2147483647, %v1120
    %vm1866 = vcmp.eq.f32.partialorder %v1865, 8.507059e+37
    %v1867 = vand.u32 %v1120, 2147483648
    %v1868 = vor.u32 1.1754944e-38, %v1867
    %v1869 = vsel %vm1866, %v1868, %v1864
    %v1870 = vmul.f32 1.0, %v1869
    %v1871 = vrcp.pop %v1121
    %v1872 = vmul.f32 %v1121, %v1871
    %v1873 = vsub.f32 1.0, %v1872
    %v1874 = vmul.f32 %v1871, %v1873
    %v1875 = vadd.f32 %v1871, %v1874
    %vm1876 = vweird.f32 %v1121
    %vm1877 = vweird.f32 %v1871
    %vm1878 = vmor %vm1876, %vm1877
    %v1879 = vsel %vm1878, %v1871, %v1875
    %v1880 = vand.u32 2147483647, %v1121
    %vm1881 = vcmp.eq.f32.partialorder %v1880, 8.507059e+37
    %v1882 = vand.u32 %v1121, 2147483648
    %v1883 = vor.u32 1.1754944e-38, %v1882
    %v1884 = vsel %vm1881, %v1883, %v1879
    %v1885 = vmul.f32 1.0, %v1884
    %v1886 = vrcp.pop %v1122
    %v1887 = vmul.f32 %v1122, %v1886
    %v1888 = vsub.f32 1.0, %v1887
    %v1889 = vmul.f32 %v1886, %v1888
    %v1890 = vadd.f32 %v1886, %v1889
    %vm1891 = vweird.f32 %v1122
    %vm1892 = vweird.f32 %v1886
    %vm1893 = vmor %vm1891, %vm1892
    %v1894 = vsel %vm1893, %v1886, %v1890
    %v1895 = vand.u32 2147483647, %v1122
    %vm1896 = vcmp.eq.f32.partialorder %v1895, 8.507059e+37
    %v1897 = vand.u32 %v1122, 2147483648
    %v1898 = vor.u32 1.1754944e-38, %v1897
    %v1899 = vsel %vm1896, %v1898, %v1894
    %v1900 = vmul.f32 1.0, %v1899
    %v1901 = vrcp.pop %v1123
    %v1902 = vmul.f32 %v1123, %v1901
    %v1903 = vsub.f32 1.0, %v1902
    %v1904 = vmul.f32 %v1901, %v1903
    %v1905 = vadd.f32 %v1901, %v1904
    %vm1906 = vweird.f32 %v1123
    %vm1907 = vweird.f32 %v1901
    %vm1908 = vmor %vm1906, %vm1907
    %v1909 = vsel %vm1908, %v1901, %v1905
    %v1910 = vand.u32 2147483647, %v1123
    %vm1911 = vcmp.eq.f32.partialorder %v1910, 8.507059e+37
    %v1912 = vand.u32 %v1123, 2147483648
    %v1913 = vor.u32 1.1754944e-38, %v1912
    %v1914 = vsel %vm1911, %v1913, %v1909
    %v1915 = vmul.f32 1.0, %v1914
    %v1916 = vrcp.pop %v1124
    %v1917 = vmul.f32 %v1124, %v1916
    %v1918 = vsub.f32 1.0, %v1917
    %v1919 = vmul.f32 %v1916, %v1918
    %v1920 = vadd.f32 %v1916, %v1919
    %vm1921 = vweird.f32 %v1124
    %vm1922 = vweird.f32 %v1916
    %vm1923 = vmor %vm1921, %vm1922
    %v1924 = vsel %vm1923, %v1916, %v1920
    %v1925 = vand.u32 2147483647, %v1124
    %vm1926 = vcmp.eq.f32.partialorder %v1925, 8.507059e+37
    %v1927 = vand.u32 %v1124, 2147483648
    %v1928 = vor.u32 1.1754944e-38, %v1927
    %v1929 = vsel %vm1926, %v1928, %v1924
    %v1930 = vmul.f32 1.0, %v1929
    %v1931 = vrcp.pop %v1125
    %v1932 = vmul.f32 %v1125, %v1931
    %v1933 = vsub.f32 1.0, %v1932
    %v1934 = vmul.f32 %v1931, %v1933
    %v1935 = vadd.f32 %v1931, %v1934
    %vm1936 = vweird.f32 %v1125
    %vm1937 = vweird.f32 %v1931
    %vm1938 = vmor %vm1936, %vm1937
    %v1939 = vsel %vm1938, %v1931, %v1935
    %v1940 = vand.u32 2147483647, %v1125
    %vm1941 = vcmp.eq.f32.partialorder %v1940, 8.507059e+37
    %v1942 = vand.u32 %v1125, 2147483648
    %v1943 = vor.u32 1.1754944e-38, %v1942
    %v1944 = vsel %vm1941, %v1943, %v1939
    %v1945 = vmul.f32 1.0, %v1944
    %v1946 = vrcp.pop %v1126
    %v1947 = vmul.f32 %v1126, %v1946
    %v1948 = vsub.f32 1.0, %v1947
    %v1949 = vmul.f32 %v1946, %v1948
    %v1950 = vadd.f32 %v1946, %v1949
    %vm1951 = vweird.f32 %v1126
    %vm1952 = vweird.f32 %v1946
    %vm1953 = vmor %vm1951, %vm1952
    %v1954 = vsel %vm1953, %v1946, %v1950
    %v1955 = vand.u32 2147483647, %v1126
    %vm1956 = vcmp.eq.f32.partialorder %v1955, 8.507059e+37
    %v1957 = vand.u32 %v1126, 2147483648
    %v1958 = vor.u32 1.1754944e-38, %v1957
    %v1959 = vsel %vm1956, %v1958, %v1954
    %v1960 = vmul.f32 1.0, %v1959
    %v1961 = vrcp.pop %v1127
    %v1962 = vmul.f32 %v1127, %v1961
    %v1963 = vsub.f32 1.0, %v1962
    %v1964 = vmul.f32 %v1961, %v1963
    %v1965 = vadd.f32 %v1961, %v1964
    %vm1966 = vweird.f32 %v1127
    %vm1967 = vweird.f32 %v1961
    %vm1968 = vmor %vm1966, %vm1967
    %v1969 = vsel %vm1968, %v1961, %v1965
    %v1970 = vand.u32 2147483647, %v1127
    %vm1971 = vcmp.eq.f32.partialorder %v1970, 8.507059e+37
    %v1972 = vand.u32 %v1127, 2147483648
    %v1973 = vor.u32 1.1754944e-38, %v1972
    %v1974 = vsel %vm1971, %v1973, %v1969
    %v1975 = vmul.f32 1.0, %v1974
    %v1976 = vrcp.pop %v1128
    %v1977 = vmul.f32 %v1128, %v1976
    %v1978 = vsub.f32 1.0, %v1977
    %v1979 = vmul.f32 %v1976, %v1978
    %v1980 = vadd.f32 %v1976, %v1979
    %vm1981 = vweird.f32 %v1128
    %vm1982 = vweird.f32 %v1976
    %vm1983 = vmor %vm1981, %vm1982
    %v1984 = vsel %vm1983, %v1976, %v1980
    %v1985 = vand.u32 2147483647, %v1128
    %vm1986 = vcmp.eq.f32.partialorder %v1985, 8.507059e+37
    %v1987 = vand.u32 %v1128, 2147483648
    %v1988 = vor.u32 1.1754944e-38, %v1987
    %v1989 = vsel %vm1986, %v1988, %v1984
    %v1990 = vmul.f32 1.0, %v1989
    %v1991 = vrcp.pop %v1129
    %v1992 = vmul.f32 %v1129, %v1991
    %v1993 = vsub.f32 1.0, %v1992
    %v1994 = vmul.f32 %v1991, %v1993
    %v1995 = vadd.f32 %v1991, %v1994
    %vm1996 = vweird.f32 %v1129
    %vm1997 = vweird.f32 %v1991
    %vm1998 = vmor %vm1996, %vm1997
    %v1999 = vsel %vm1998, %v1991, %v1995
    %v2000 = vand.u32 2147483647, %v1129
    %vm2001 = vcmp.eq.f32.partialorder %v2000, 8.507059e+37
    %v2002 = vand.u32 %v1129, 2147483648
    %v2003 = vor.u32 1.1754944e-38, %v2002
    %v2004 = vsel %vm2001, %v2003, %v1999
    %v2005 = vmul.f32 1.0, %v2004
    %v2006 = vrcp.pop %v1130
    %v2007 = vmul.f32 %v1130, %v2006
    %v2008 = vsub.f32 1.0, %v2007
    %v2009 = vmul.f32 %v2006, %v2008
    %v2010 = vadd.f32 %v2006, %v2009
    %vm2011 = vweird.f32 %v1130
    %vm2012 = vweird.f32 %v2006
    %vm2013 = vmor %vm2011, %vm2012
    %v2014 = vsel %vm2013, %v2006, %v2010
    %v2015 = vand.u32 2147483647, %v1130
    %vm2016 = vcmp.eq.f32.partialorder %v2015, 8.507059e+37
    %v2017 = vand.u32 %v1130, 2147483648
    %v2018 = vor.u32 1.1754944e-38, %v2017
    %v2019 = vsel %vm2016, %v2018, %v2014
    %v2020 = vmul.f32 1.0, %v2019
    %v2021 = vrcp.pop %v1131
    %v2022 = vmul.f32 %v1131, %v2021
    %v2023 = vsub.f32 1.0, %v2022
    %v2024 = vmul.f32 %v2021, %v2023
    %v2025 = vadd.f32 %v2021, %v2024
    %vm2026 = vweird.f32 %v1131
    %vm2027 = vweird.f32 %v2021
    %vm2028 = vmor %vm2026, %vm2027
    %v2029 = vsel %vm2028, %v2021, %v2025
    %v2030 = vand.u32 2147483647, %v1131
    %vm2031 = vcmp.eq.f32.partialorder %v2030, 8.507059e+37
    %v2032 = vand.u32 %v1131, 2147483648
    %v2033 = vor.u32 1.1754944e-38, %v2032
    %v2034 = vsel %vm2031, %v2033, %v2029
    %v2035 = vmul.f32 1.0, %v2034
    %v2036 = vrcp.pop %v1132
    %v2037 = vmul.f32 %v1132, %v2036
    %v2038 = vsub.f32 1.0, %v2037
    %v2039 = vmul.f32 %v2036, %v2038
    %v2040 = vadd.f32 %v2036, %v2039
    %vm2041 = vweird.f32 %v1132
    %vm2042 = vweird.f32 %v2036
    %vm2043 = vmor %vm2041, %vm2042
    %v2044 = vsel %vm2043, %v2036, %v2040
    %v2045 = vand.u32 2147483647, %v1132
    %vm2046 = vcmp.eq.f32.partialorder %v2045, 8.507059e+37
    %v2047 = vand.u32 %v1132, 2147483648
    %v2048 = vor.u32 1.1754944e-38, %v2047
    %v2049 = vsel %vm2046, %v2048, %v2044
    %v2050 = vmul.f32 1.0, %v2049
    %v2051 = vrcp.pop %v1133
    %v2052 = vmul.f32 %v1133, %v2051
    %v2053 = vsub.f32 1.0, %v2052
    %v2054 = vmul.f32 %v2051, %v2053
    %v2055 = vadd.f32 %v2051, %v2054
    %vm2056 = vweird.f32 %v1133
    %vm2057 = vweird.f32 %v2051
    %vm2058 = vmor %vm2056, %vm2057
    %v2059 = vsel %vm2058, %v2051, %v2055
    %v2060 = vand.u32 2147483647, %v1133
    %vm2061 = vcmp.eq.f32.partialorder %v2060, 8.507059e+37
    %v2062 = vand.u32 %v1133, 2147483648
    %v2063 = vor.u32 1.1754944e-38, %v2062
    %v2064 = vsel %vm2061, %v2063, %v2059
    %v2065 = vmul.f32 1.0, %v2064
    %v2066 = vrcp.pop %v1134
    %v2067 = vmul.f32 %v1134, %v2066
    %v2068 = vsub.f32 1.0, %v2067
    %v2069 = vmul.f32 %v2066, %v2068
    %v2070 = vadd.f32 %v2066, %v2069
    %vm2071 = vweird.f32 %v1134
    %vm2072 = vweird.f32 %v2066
    %vm2073 = vmor %vm2071, %vm2072
    %v2074 = vsel %vm2073, %v2066, %v2070
    %v2075 = vand.u32 2147483647, %v1134
    %vm2076 = vcmp.eq.f32.partialorder %v2075, 8.507059e+37
    %v2077 = vand.u32 %v1134, 2147483648
    %v2078 = vor.u32 1.1754944e-38, %v2077
    %v2079 = vsel %vm2076, %v2078, %v2074
    %v2080 = vmul.f32 1.0, %v2079
    %v2081 = vrcp.pop %v1135
    %v2082 = vmul.f32 %v1135, %v2081
    %v2083 = vsub.f32 1.0, %v2082
    %v2084 = vmul.f32 %v2081, %v2083
    %v2085 = vadd.f32 %v2081, %v2084
    %vm2086 = vweird.f32 %v1135
    %vm2087 = vweird.f32 %v2081
    %vm2088 = vmor %vm2086, %vm2087
    %v2089 = vsel %vm2088, %v2081, %v2085
    %v2090 = vand.u32 2147483647, %v1135
    %vm2091 = vcmp.eq.f32.partialorder %v2090, 8.507059e+37
    %v2092 = vand.u32 %v1135, 2147483648
    %v2093 = vor.u32 1.1754944e-38, %v2092
    %v2094 = vsel %vm2091, %v2093, %v2089
    %v2095 = vmul.f32 1.0, %v2094
    %v2096 = vmul.f32 %v1150, 0.17087276
    %v2097 = vmul.f32 %v1165, 0.17087276
    %v2098 = vmul.f32 %v1180, 0.17087276
    %v2099 = vmul.f32 %v1195, 0.17087276
    %v2100 = vmul.f32 %v1210, 0.17087276
    %v2101 = vmul.f32 %v1225, 0.17087276
    %v2102 = vmul.f32 %v1240, 0.17087276
    %v2103 = vmul.f32 %v1255, 0.17087276
    %v2104 = vmul.f32 %v1270, 0.17087276
    %v2105 = vmul.f32 %v1285, 0.17087276
    %v2106 = vmul.f32 %v1300, 0.17087276
    %v2107 = vmul.f32 %v1315, 0.17087276
    %v2108 = vmul.f32 %v1330, 0.17087276
    %v2109 = vmul.f32 %v1345, 0.17087276
    %v2110 = vmul.f32 %v1360, 0.17087276
    %v2111 = vmul.f32 %v1375, 0.17087276
    %v2112 = vmul.f32 %v1390, 0.17087276
    %v2113 = vmul.f32 %v1405, 0.17087276
    %v2114 = vmul.f32 %v1420, 0.17087276
    %v2115 = vmul.f32 %v1435, 0.17087276
    %v2116 = vmul.f32 %v1450, 0.17087276
    %v2117 = vmul.f32 %v1465, 0.17087276
    %v2118 = vmul.f32 %v1480, 0.17087276
    %v2119 = vmul.f32 %v1495, 0.17087276
    %v2120 = vmul.f32 %v1510, 0.17087276
    %v2121 = vmul.f32 %v1525, 0.17087276
    %v2122 = vmul.f32 %v1540, 0.17087276
    %v2123 = vmul.f32 %v1555, 0.17087276
    %v2124 = vmul.f32 %v1570, 0.17087276
    %v2125 = vmul.f32 %v1585, 0.17087276
    %v2126 = vmul.f32 %v1600, 0.17087276
    %v2127 = vmul.f32 %v1615, 0.17087276
    %v2128 = vmul.f32 %v1630, 0.17087276
    %v2129 = vmul.f32 %v1645, 0.17087276
    %v2130 = vmul.f32 %v1660, 0.17087276
    %v2131 = vmul.f32 %v1675, 0.17087276
    %v2132 = vmul.f32 %v1690, 0.17087276
    %v2133 = vmul.f32 %v1705, 0.17087276
    %v2134 = vmul.f32 %v1720, 0.17087276
    %v2135 = vmul.f32 %v1735, 0.17087276
    %v2136 = vmul.f32 %v1750, 0.17087276
    %v2137 = vmul.f32 %v1765, 0.17087276
    %v2138 = vmul.f32 %v1780, 0.17087276
    %v2139 = vmul.f32 %v1795, 0.17087276
    %v2140 = vmul.f32 %v1810, 0.17087276
    %v2141 = vmul.f32 %v1825, 0.17087276
    %v2142 = vmul.f32 %v1840, 0.17087276
    %v2143 = vmul.f32 %v1855, 0.17087276
    %v2144 = vmul.f32 %v1870, 0.17087276
    %v2145 = vmul.f32 %v1885, 0.17087276
    %v2146 = vmul.f32 %v1900, 0.17087276
    %v2147 = vmul.f32 %v1915, 0.17087276
    %v2148 = vmul.f32 %v1930, 0.17087276
    %v2149 = vmul.f32 %v1945, 0.17087276
    %v2150 = vmul.f32 %v1960, 0.17087276
    %v2151 = vmul.f32 %v1975, 0.17087276
    %v2152 = vmul.f32 %v1990, 0.17087276
    %v2153 = vmul.f32 %v2005, 0.17087276
    %v2154 = vmul.f32 %v2020, 0.17087276
    %v2155 = vmul.f32 %v2035, 0.17087276
    %v2156 = vmul.f32 %v2050, 0.17087276
    %v2157 = vmul.f32 %v2065, 0.17087276
    %v2158 = vmul.f32 %v2080, 0.17087276
    %v2159 = vmul.f32 %v2095, 0.17087276
    %v2160 = vadd.f32 %v2096, -0.82215226
    %v2161 = vadd.f32 %v2097, -0.82215226
    %v2162 = vadd.f32 %v2098, -0.82215226
    %v2163 = vadd.f32 %v2099, -0.82215226
    %v2164 = vadd.f32 %v2100, -0.82215226
    %v2165 = vadd.f32 %v2101, -0.82215226
    %v2166 = vadd.f32 %v2102, -0.82215226
    %v2167 = vadd.f32 %v2103, -0.82215226
    %v2168 = vadd.f32 %v2104, -0.82215226
    %v2169 = vadd.f32 %v2105, -0.82215226
    %v2170 = vadd.f32 %v2106, -0.82215226
    %v2171 = vadd.f32 %v2107, -0.82215226
    %v2172 = vadd.f32 %v2108, -0.82215226
    %v2173 = vadd.f32 %v2109, -0.82215226
    %v2174 = vadd.f32 %v2110, -0.82215226
    %v2175 = vadd.f32 %v2111, -0.82215226
    %v2176 = vadd.f32 %v2112, -0.82215226
    %v2177 = vadd.f32 %v2113, -0.82215226
    %v2178 = vadd.f32 %v2114, -0.82215226
    %v2179 = vadd.f32 %v2115, -0.82215226
    %v2180 = vadd.f32 %v2116, -0.82215226
    %v2181 = vadd.f32 %v2117, -0.82215226
    %v2182 = vadd.f32 %v2118, -0.82215226
    %v2183 = vadd.f32 %v2119, -0.82215226
    %v2184 = vadd.f32 %v2120, -0.82215226
    %v2185 = vadd.f32 %v2121, -0.82215226
    %v2186 = vadd.f32 %v2122, -0.82215226
    %v2187 = vadd.f32 %v2123, -0.82215226
    %v2188 = vadd.f32 %v2124, -0.82215226
    %v2189 = vadd.f32 %v2125, -0.82215226
    %v2190 = vadd.f32 %v2126, -0.82215226
    %v2191 = vadd.f32 %v2127, -0.82215226
    %v2192 = vadd.f32 %v2128, -0.82215226
    %v2193 = vadd.f32 %v2129, -0.82215226
    %v2194 = vadd.f32 %v2130, -0.82215226
    %v2195 = vadd.f32 %v2131, -0.82215226
    %v2196 = vadd.f32 %v2132, -0.82215226
    %v2197 = vadd.f32 %v2133, -0.82215226
    %v2198 = vadd.f32 %v2134, -0.82215226
    %v2199 = vadd.f32 %v2135, -0.82215226
    %v2200 = vadd.f32 %v2136, -0.82215226
    %v2201 = vadd.f32 %v2137, -0.82215226
    %v2202 = vadd.f32 %v2138, -0.82215226
    %v2203 = vadd.f32 %v2139, -0.82215226
    %v2204 = vadd.f32 %v2140, -0.82215226
    %v2205 = vadd.f32 %v2141, -0.82215226
    %v2206 = vadd.f32 %v2142, -0.82215226
    %v2207 = vadd.f32 %v2143, -0.82215226
    %v2208 = vadd.f32 %v2144, -0.82215226
    %v2209 = vadd.f32 %v2145, -0.82215226
    %v2210 = vadd.f32 %v2146, -0.82215226
    %v2211 = vadd.f32 %v2147, -0.82215226
    %v2212 = vadd.f32 %v2148, -0.82215226
    %v2213 = vadd.f32 %v2149, -0.82215226
    %v2214 = vadd.f32 %v2150, -0.82215226
    %v2215 = vadd.f32 %v2151, -0.82215226
    %v2216 = vadd.f32 %v2152, -0.82215226
    %v2217 = vadd.f32 %v2153, -0.82215226
    %v2218 = vadd.f32 %v2154, -0.82215226
    %v2219 = vadd.f32 %v2155, -0.82215226
    %v2220 = vadd.f32 %v2156, -0.82215226
    %v2221 = vadd.f32 %v2157, -0.82215226
    %v2222 = vadd.f32 %v2158, -0.82215226
    %v2223 = vadd.f32 %v2159, -0.82215226
    %v2224 = vmul.f32 %v1150, %v2160
    %v2225 = vmul.f32 %v1165, %v2161
    %v2226 = vmul.f32 %v1180, %v2162
    %v2227 = vmul.f32 %v1195, %v2163
    %v2228 = vmul.f32 %v1210, %v2164
    %v2229 = vmul.f32 %v1225, %v2165
    %v2230 = vmul.f32 %v1240, %v2166
    %v2231 = vmul.f32 %v1255, %v2167
    %v2232 = vmul.f32 %v1270, %v2168
    %v2233 = vmul.f32 %v1285, %v2169
    %v2234 = vmul.f32 %v1300, %v2170
    %v2235 = vmul.f32 %v1315, %v2171
    %v2236 = vmul.f32 %v1330, %v2172
    %v2237 = vmul.f32 %v1345, %v2173
    %v2238 = vmul.f32 %v1360, %v2174
    %v2239 = vmul.f32 %v1375, %v2175
    %v2240 = vmul.f32 %v1390, %v2176
    %v2241 = vmul.f32 %v1405, %v2177
    %v2242 = vmul.f32 %v1420, %v2178
    %v2243 = vmul.f32 %v1435, %v2179
    %v2244 = vmul.f32 %v1450, %v2180
    %v2245 = vmul.f32 %v1465, %v2181
    %v2246 = vmul.f32 %v1480, %v2182
    %v2247 = vmul.f32 %v1495, %v2183
    %v2248 = vmul.f32 %v1510, %v2184
    %v2249 = vmul.f32 %v1525, %v2185
    %v2250 = vmul.f32 %v1540, %v2186
    %v2251 = vmul.f32 %v1555, %v2187
    %v2252 = vmul.f32 %v1570, %v2188
    %v2253 = vmul.f32 %v1585, %v2189
    %v2254 = vmul.f32 %v1600, %v2190
    %v2255 = vmul.f32 %v1615, %v2191
    %v2256 = vmul.f32 %v1630, %v2192
    %v2257 = vmul.f32 %v1645, %v2193
    %v2258 = vmul.f32 %v1660, %v2194
    %v2259 = vmul.f32 %v1675, %v2195
    %v2260 = vmul.f32 %v1690, %v2196
    %v2261 = vmul.f32 %v1705, %v2197
    %v2262 = vmul.f32 %v1720, %v2198
    %v2263 = vmul.f32 %v1735, %v2199
    %v2264 = vmul.f32 %v1750, %v2200
    %v2265 = vmul.f32 %v1765, %v2201
    %v2266 = vmul.f32 %v1780, %v2202
    %v2267 = vmul.f32 %v1795, %v2203
    %v2268 = vmul.f32 %v1810, %v2204
    %v2269 = vmul.f32 %v1825, %v2205
    %v2270 = vmul.f32 %v1840, %v2206
    %v2271 = vmul.f32 %v1855, %v2207
    %v2272 = vmul.f32 %v1870, %v2208
    %v2273 = vmul.f32 %v1885, %v2209
    %v2274 = vmul.f32 %v1900, %v2210
    %v2275 = vmul.f32 %v1915, %v2211
    %v2276 = vmul.f32 %v1930, %v2212
    %v2277 = vmul.f32 %v1945, %v2213
    %v2278 = vmul.f32 %v1960, %v2214
    %v2279 = vmul.f32 %v1975, %v2215
    %v2280 = vmul.f32 %v1990, %v2216
    %v2281 = vmul.f32 %v2005, %v2217
    %v2282 = vmul.f32 %v2020, %v2218
    %v2283 = vmul.f32 %v2035, %v2219
    %v2284 = vmul.f32 %v2050, %v2220
    %v2285 = vmul.f32 %v2065, %v2221
    %v2286 = vmul.f32 %v2080, %v2222
    %v2287 = vmul.f32 %v2095, %v2223
    %v2288 = vadd.f32 %v2224, 1.4885159
    %v2289 = vadd.f32 %v2225, 1.4885159
    %v2290 = vadd.f32 %v2226, 1.4885159
    %v2291 = vadd.f32 %v2227, 1.4885159
    %v2292 = vadd.f32 %v2228, 1.4885159
    %v2293 = vadd.f32 %v2229, 1.4885159
    %v2294 = vadd.f32 %v2230, 1.4885159
    %v2295 = vadd.f32 %v2231, 1.4885159
    %v2296 = vadd.f32 %v2232, 1.4885159
    %v2297 = vadd.f32 %v2233, 1.4885159
    %v2298 = vadd.f32 %v2234, 1.4885159
    %v2299 = vadd.f32 %v2235, 1.4885159
    %v2300 = vadd.f32 %v2236, 1.4885159
    %v2301 = vadd.f32 %v2237, 1.4885159
    %v2302 = vadd.f32 %v2238, 1.4885159
    %v2303 = vadd.f32 %v2239, 1.4885159
    %v2304 = vadd.f32 %v2240, 1.4885159
    %v2305 = vadd.f32 %v2241, 1.4885159
    %v2306 = vadd.f32 %v2242, 1.4885159
    %v2307 = vadd.f32 %v2243, 1.4885159
    %v2308 = vadd.f32 %v2244, 1.4885159
    %v2309 = vadd.f32 %v2245, 1.4885159
    %v2310 = vadd.f32 %v2246, 1.4885159
    %v2311 = vadd.f32 %v2247, 1.4885159
    %v2312 = vadd.f32 %v2248, 1.4885159
    %v2313 = vadd.f32 %v2249, 1.4885159
    %v2314 = vadd.f32 %v2250, 1.4885159
    %v2315 = vadd.f32 %v2251, 1.4885159
    %v2316 = vadd.f32 %v2252, 1.4885159
    %v2317 = vadd.f32 %v2253, 1.4885159
    %v2318 = vadd.f32 %v2254, 1.4885159
    %v2319 = vadd.f32 %v2255, 1.4885159
    %v2320 = vadd.f32 %v2256, 1.4885159
    %v2321 = vadd.f32 %v2257, 1.4885159
    %v2322 = vadd.f32 %v2258, 1.4885159
    %v2323 = vadd.f32 %v2259, 1.4885159
    %v2324 = vadd.f32 %v2260, 1.4885159
    %v2325 = vadd.f32 %v2261, 1.4885159
    %v2326 = vadd.f32 %v2262, 1.4885159
    %v2327 = vadd.f32 %v2263, 1.4885159
    %v2328 = vadd.f32 %v2264, 1.4885159
    %v2329 = vadd.f32 %v2265, 1.4885159
    %v2330 = vadd.f32 %v2266, 1.4885159
    %v2331 = vadd.f32 %v2267, 1.4885159
    %v2332 = vadd.f32 %v2268, 1.4885159
    %v2333 = vadd.f32 %v2269, 1.4885159
    %v2334 = vadd.f32 %v2270, 1.4885159
    %v2335 = vadd.f32 %v2271, 1.4885159
    %v2336 = vadd.f32 %v2272, 1.4885159
    %v2337 = vadd.f32 %v2273, 1.4885159
    %v2338 = vadd.f32 %v2274, 1.4885159
    %v2339 = vadd.f32 %v2275, 1.4885159
    %v2340 = vadd.f32 %v2276, 1.4885159
    %v2341 = vadd.f32 %v2277, 1.4885159
    %v2342 = vadd.f32 %v2278, 1.4885159
    %v2343 = vadd.f32 %v2279, 1.4885159
    %v2344 = vadd.f32 %v2280, 1.4885159
    %v2345 = vadd.f32 %v2281, 1.4885159
    %v2346 = vadd.f32 %v2282, 1.4885159
    %v2347 = vadd.f32 %v2283, 1.4885159
    %v2348 = vadd.f32 %v2284, 1.4885159
    %v2349 = vadd.f32 %v2285, 1.4885159
    %v2350 = vadd.f32 %v2286, 1.4885159
    %v2351 = vadd.f32 %v2287, 1.4885159
    %v2352 = vmul.f32 %v1150, %v2288
    %v2353 = vmul.f32 %v1165, %v2289
    %v2354 = vmul.f32 %v1180, %v2290
    %v2355 = vmul.f32 %v1195, %v2291
    %v2356 = vmul.f32 %v1210, %v2292
    %v2357 = vmul.f32 %v1225, %v2293
    %v2358 = vmul.f32 %v1240, %v2294
    %v2359 = vmul.f32 %v1255, %v2295
    %v2360 = vmul.f32 %v1270, %v2296
    %v2361 = vmul.f32 %v1285, %v2297
    %v2362 = vmul.f32 %v1300, %v2298
    %v2363 = vmul.f32 %v1315, %v2299
    %v2364 = vmul.f32 %v1330, %v2300
    %v2365 = vmul.f32 %v1345, %v2301
    %v2366 = vmul.f32 %v1360, %v2302
    %v2367 = vmul.f32 %v1375, %v2303
    %v2368 = vmul.f32 %v1390, %v2304
    %v2369 = vmul.f32 %v1405, %v2305
    %v2370 = vmul.f32 %v1420, %v2306
    %v2371 = vmul.f32 %v1435, %v2307
    %v2372 = vmul.f32 %v1450, %v2308
    %v2373 = vmul.f32 %v1465, %v2309
    %v2374 = vmul.f32 %v1480, %v2310
    %v2375 = vmul.f32 %v1495, %v2311
    %v2376 = vmul.f32 %v1510, %v2312
    %v2377 = vmul.f32 %v1525, %v2313
    %v2378 = vmul.f32 %v1540, %v2314
    %v2379 = vmul.f32 %v1555, %v2315
    %v2380 = vmul.f32 %v1570, %v2316
    %v2381 = vmul.f32 %v1585, %v2317
    %v2382 = vmul.f32 %v1600, %v2318
    %v2383 = vmul.f32 %v1615, %v2319
    %v2384 = vmul.f32 %v1630, %v2320
    %v2385 = vmul.f32 %v1645, %v2321
    %v2386 = vmul.f32 %v1660, %v2322
    %v2387 = vmul.f32 %v1675, %v2323
    %v2388 = vmul.f32 %v1690, %v2324
    %v2389 = vmul.f32 %v1705, %v2325
    %v2390 = vmul.f32 %v1720, %v2326
    %v2391 = vmul.f32 %v1735, %v2327
    %v2392 = vmul.f32 %v1750, %v2328
    %v2393 = vmul.f32 %v1765, %v2329
    %v2394 = vmul.f32 %v1780, %v2330
    %v2395 = vmul.f32 %v1795, %v2331
    %v2396 = vmul.f32 %v1810, %v2332
    %v2397 = vmul.f32 %v1825, %v2333
    %v2398 = vmul.f32 %v1840, %v2334
    %v2399 = vmul.f32 %v1855, %v2335
    %v2400 = vmul.f32 %v1870, %v2336
    %v2401 = vmul.f32 %v1885, %v2337
    %v2402 = vmul.f32 %v1900, %v2338
    %v2403 = vmul.f32 %v1915, %v2339
    %v2404 = vmul.f32 %v1930, %v2340
    %v2405 = vmul.f32 %v1945, %v2341
    %v2406 = vmul.f32 %v1960, %v2342
    %v2407 = vmul.f32 %v1975, %v2343
    %v2408 = vmul.f32 %v1990, %v2344
    %v2409 = vmul.f32 %v2005, %v2345
    %v2410 = vmul.f32 %v2020, %v2346
    %v2411 = vmul.f32 %v2035, %v2347
    %v2412 = vmul.f32 %v2050, %v2348
    %v2413 = vmul.f32 %v2065, %v2349
    %v2414 = vmul.f32 %v2080, %v2350
    %v2415 = vmul.f32 %v2095, %v2351
    %v2416 = vadd.f32 %v2352, -1.135204
    %v2417 = vadd.f32 %v2353, -1.135204
    %v2418 = vadd.f32 %v2354, -1.135204
    %v2419 = vadd.f32 %v2355, -1.135204
    %v2420 = vadd.f32 %v2356, -1.135204
    %v2421 = vadd.f32 %v2357, -1.135204
    %v2422 = vadd.f32 %v2358, -1.135204
    %v2423 = vadd.f32 %v2359, -1.135204
    %v2424 = vadd.f32 %v2360, -1.135204
    %v2425 = vadd.f32 %v2361, -1.135204
    %v2426 = vadd.f32 %v2362, -1.135204
    %v2427 = vadd.f32 %v2363, -1.135204
    %v2428 = vadd.f32 %v2364, -1.135204
    %v2429 = vadd.f32 %v2365, -1.135204
    %v2430 = vadd.f32 %v2366, -1.135204
    %v2431 = vadd.f32 %v2367, -1.135204
    %v2432 = vadd.f32 %v2368, -1.135204
    %v2433 = vadd.f32 %v2369, -1.135204
    %v2434 = vadd.f32 %v2370, -1.135204
    %v2435 = vadd.f32 %v2371, -1.135204
    %v2436 = vadd.f32 %v2372, -1.135204
    %v2437 = vadd.f32 %v2373, -1.135204
    %v2438 = vadd.f32 %v2374, -1.135204
    %v2439 = vadd.f32 %v2375, -1.135204
    %v2440 = vadd.f32 %v2376, -1.135204
    %v2441 = vadd.f32 %v2377, -1.135204
    %v2442 = vadd.f32 %v2378, -1.135204
    %v2443 = vadd.f32 %v2379, -1.135204
    %v2444 = vadd.f32 %v2380, -1.135204
    %v2445 = vadd.f32 %v2381, -1.135204
    %v2446 = vadd.f32 %v2382, -1.135204
    %v2447 = vadd.f32 %v2383, -1.135204
    %v2448 = vadd.f32 %v2384, -1.135204
    %v2449 = vadd.f32 %v2385, -1.135204
    %v2450 = vadd.f32 %v2386, -1.135204
    %v2451 = vadd.f32 %v2387, -1.135204
    %v2452 = vadd.f32 %v2388, -1.135204
    %v2453 = vadd.f32 %v2389, -1.135204
    %v2454 = vadd.f32 %v2390, -1.135204
    %v2455 = vadd.f32 %v2391, -1.135204
    %v2456 = vadd.f32 %v2392, -1.135204
    %v2457 = vadd.f32 %v2393, -1.135204
    %v2458 = vadd.f32 %v2394, -1.135204
    %v2459 = vadd.f32 %v2395, -1.135204
    %v2460 = vadd.f32 %v2396, -1.135204
    %v2461 = vadd.f32 %v2397, -1.135204
    %v2462 = vadd.f32 %v2398, -1.135204
    %v2463 = vadd.f32 %v2399, -1.135204
    %v2464 = vadd.f32 %v2400, -1.135204
    %v2465 = vadd.f32 %v2401, -1.135204
    %v2466 = vadd.f32 %v2402, -1.135204
    %v2467 = vadd.f32 %v2403, -1.135204
    %v2468 = vadd.f32 %v2404, -1.135204
    %v2469 = vadd.f32 %v2405, -1.135204
    %v2470 = vadd.f32 %v2406, -1.135204
    %v2471 = vadd.f32 %v2407, -1.135204
    %v2472 = vadd.f32 %v2408, -1.135204
    %v2473 = vadd.f32 %v2409, -1.135204
    %v2474 = vadd.f32 %v2410, -1.135204
    %v2475 = vadd.f32 %v2411, -1.135204
    %v2476 = vadd.f32 %v2412, -1.135204
    %v2477 = vadd.f32 %v2413, -1.135204
    %v2478 = vadd.f32 %v2414, -1.135204
    %v2479 = vadd.f32 %v2415, -1.135204
    %v2480 = vmul.f32 %v1150, %v2416
    %v2481 = vmul.f32 %v1165, %v2417
    %v2482 = vmul.f32 %v1180, %v2418
    %v2483 = vmul.f32 %v1195, %v2419
    %v2484 = vmul.f32 %v1210, %v2420
    %v2485 = vmul.f32 %v1225, %v2421
    %v2486 = vmul.f32 %v1240, %v2422
    %v2487 = vmul.f32 %v1255, %v2423
    %v2488 = vmul.f32 %v1270, %v2424
    %v2489 = vmul.f32 %v1285, %v2425
    %v2490 = vmul.f32 %v1300, %v2426
    %v2491 = vmul.f32 %v1315, %v2427
    %v2492 = vmul.f32 %v1330, %v2428
    %v2493 = vmul.f32 %v1345, %v2429
    %v2494 = vmul.f32 %v1360, %v2430
    %v2495 = vmul.f32 %v1375, %v2431
    %v2496 = vmul.f32 %v1390, %v2432
    %v2497 = vmul.f32 %v1405, %v2433
    %v2498 = vmul.f32 %v1420, %v2434
    %v2499 = vmul.f32 %v1435, %v2435
    %v2500 = vmul.f32 %v1450, %v2436
    %v2501 = vmul.f32 %v1465, %v2437
    %v2502 = vmul.f32 %v1480, %v2438
    %v2503 = vmul.f32 %v1495, %v2439
    %v2504 = vmul.f32 %v1510, %v2440
    %v2505 = vmul.f32 %v1525, %v2441
    %v2506 = vmul.f32 %v1540, %v2442
    %v2507 = vmul.f32 %v1555, %v2443
    %v2508 = vmul.f32 %v1570, %v2444
    %v2509 = vmul.f32 %v1585, %v2445
    %v2510 = vmul.f32 %v1600, %v2446
    %v2511 = vmul.f32 %v1615, %v2447
    %v2512 = vmul.f32 %v1630, %v2448
    %v2513 = vmul.f32 %v1645, %v2449
    %v2514 = vmul.f32 %v1660, %v2450
    %v2515 = vmul.f32 %v1675, %v2451
    %v2516 = vmul.f32 %v1690, %v2452
    %v2517 = vmul.f32 %v1705, %v2453
    %v2518 = vmul.f32 %v1720, %v2454
    %v2519 = vmul.f32 %v1735, %v2455
    %v2520 = vmul.f32 %v1750, %v2456
    %v2521 = vmul.f32 %v1765, %v2457
    %v2522 = vmul.f32 %v1780, %v2458
    %v2523 = vmul.f32 %v1795, %v2459
    %v2524 = vmul.f32 %v1810, %v2460
    %v2525 = vmul.f32 %v1825, %v2461
    %v2526 = vmul.f32 %v1840, %v2462
    %v2527 = vmul.f32 %v1855, %v2463
    %v2528 = vmul.f32 %v1870, %v2464
    %v2529 = vmul.f32 %v1885, %v2465
    %v2530 = vmul.f32 %v1900, %v2466
    %v2531 = vmul.f32 %v1915, %v2467
    %v2532 = vmul.f32 %v1930, %v2468
    %v2533 = vmul.f32 %v1945, %v2469
    %v2534 = vmul.f32 %v1960, %v2470
    %v2535 = vmul.f32 %v1975, %v2471
    %v2536 = vmul.f32 %v1990, %v2472
    %v2537 = vmul.f32 %v2005, %v2473
    %v2538 = vmul.f32 %v2020, %v2474
    %v2539 = vmul.f32 %v2035, %v2475
    %v2540 = vmul.f32 %v2050, %v2476
    %v2541 = vmul.f32 %v2065, %v2477
    %v2542 = vmul.f32 %v2080, %v2478
    %v2543 = vmul.f32 %v2095, %v2479
    %v2544 = vadd.f32 %v2480, 0.27886808
    %v2545 = vadd.f32 %v2481, 0.27886808
    %v2546 = vadd.f32 %v2482, 0.27886808
    %v2547 = vadd.f32 %v2483, 0.27886808
    %v2548 = vadd.f32 %v2484, 0.27886808
    %v2549 = vadd.f32 %v2485, 0.27886808
    %v2550 = vadd.f32 %v2486, 0.27886808
    %v2551 = vadd.f32 %v2487, 0.27886808
    %v2552 = vadd.f32 %v2488, 0.27886808
    %v2553 = vadd.f32 %v2489, 0.27886808
    %v2554 = vadd.f32 %v2490, 0.27886808
    %v2555 = vadd.f32 %v2491, 0.27886808
    %v2556 = vadd.f32 %v2492, 0.27886808
    %v2557 = vadd.f32 %v2493, 0.27886808
    %v2558 = vadd.f32 %v2494, 0.27886808
    %v2559 = vadd.f32 %v2495, 0.27886808
    %v2560 = vadd.f32 %v2496, 0.27886808
    %v2561 = vadd.f32 %v2497, 0.27886808
    %v2562 = vadd.f32 %v2498, 0.27886808
    %v2563 = vadd.f32 %v2499, 0.27886808
    %v2564 = vadd.f32 %v2500, 0.27886808
    %v2565 = vadd.f32 %v2501, 0.27886808
    %v2566 = vadd.f32 %v2502, 0.27886808
    %v2567 = vadd.f32 %v2503, 0.27886808
    %v2568 = vadd.f32 %v2504, 0.27886808
    %v2569 = vadd.f32 %v2505, 0.27886808
    %v2570 = vadd.f32 %v2506, 0.27886808
    %v2571 = vadd.f32 %v2507, 0.27886808
    %v2572 = vadd.f32 %v2508, 0.27886808
    %v2573 = vadd.f32 %v2509, 0.27886808
    %v2574 = vadd.f32 %v2510, 0.27886808
    %v2575 = vadd.f32 %v2511, 0.27886808
    %v2576 = vadd.f32 %v2512, 0.27886808
    %v2577 = vadd.f32 %v2513, 0.27886808
    %v2578 = vadd.f32 %v2514, 0.27886808
    %v2579 = vadd.f32 %v2515, 0.27886808
    %v2580 = vadd.f32 %v2516, 0.27886808
    %v2581 = vadd.f32 %v2517, 0.27886808
    %v2582 = vadd.f32 %v2518, 0.27886808
    %v2583 = vadd.f32 %v2519, 0.27886808
    %v2584 = vadd.f32 %v2520, 0.27886808
    %v2585 = vadd.f32 %v2521, 0.27886808
    %v2586 = vadd.f32 %v2522, 0.27886808
    %v2587 = vadd.f32 %v2523, 0.27886808
    %v2588 = vadd.f32 %v2524, 0.27886808
    %v2589 = vadd.f32 %v2525, 0.27886808
    %v2590 = vadd.f32 %v2526, 0.27886808
    %v2591 = vadd.f32 %v2527, 0.27886808
    %v2592 = vadd.f32 %v2528, 0.27886808
    %v2593 = vadd.f32 %v2529, 0.27886808
    %v2594 = vadd.f32 %v2530, 0.27886808
    %v2595 = vadd.f32 %v2531, 0.27886808
    %v2596 = vadd.f32 %v2532, 0.27886808
    %v2597 = vadd.f32 %v2533, 0.27886808
    %v2598 = vadd.f32 %v2534, 0.27886808
    %v2599 = vadd.f32 %v2535, 0.27886808
    %v2600 = vadd.f32 %v2536, 0.27886808
    %v2601 = vadd.f32 %v2537, 0.27886808
    %v2602 = vadd.f32 %v2538, 0.27886808
    %v2603 = vadd.f32 %v2539, 0.27886808
    %v2604 = vadd.f32 %v2540, 0.27886808
    %v2605 = vadd.f32 %v2541, 0.27886808
    %v2606 = vadd.f32 %v2542, 0.27886808
    %v2607 = vadd.f32 %v2543, 0.27886808
    %v2608 = vmul.f32 %v1150, %v2544
    %v2609 = vmul.f32 %v1165, %v2545
    %v2610 = vmul.f32 %v1180, %v2546
    %v2611 = vmul.f32 %v1195, %v2547
    %v2612 = vmul.f32 %v1210, %v2548
    %v2613 = vmul.f32 %v1225, %v2549
    %v2614 = vmul.f32 %v1240, %v2550
    %v2615 = vmul.f32 %v1255, %v2551
    %v2616 = vmul.f32 %v1270, %v2552
    %v2617 = vmul.f32 %v1285, %v2553
    %v2618 = vmul.f32 %v1300, %v2554
    %v2619 = vmul.f32 %v1315, %v2555
    %v2620 = vmul.f32 %v1330, %v2556
    %v2621 = vmul.f32 %v1345, %v2557
    %v2622 = vmul.f32 %v1360, %v2558
    %v2623 = vmul.f32 %v1375, %v2559
    %v2624 = vmul.f32 %v1390, %v2560
    %v2625 = vmul.f32 %v1405, %v2561
    %v2626 = vmul.f32 %v1420, %v2562
    %v2627 = vmul.f32 %v1435, %v2563
    %v2628 = vmul.f32 %v1450, %v2564
    %v2629 = vmul.f32 %v1465, %v2565
    %v2630 = vmul.f32 %v1480, %v2566
    %v2631 = vmul.f32 %v1495, %v2567
    %v2632 = vmul.f32 %v1510, %v2568
    %v2633 = vmul.f32 %v1525, %v2569
    %v2634 = vmul.f32 %v1540, %v2570
    %v2635 = vmul.f32 %v1555, %v2571
    %v2636 = vmul.f32 %v1570, %v2572
    %v2637 = vmul.f32 %v1585, %v2573
    %v2638 = vmul.f32 %v1600, %v2574
    %v2639 = vmul.f32 %v1615, %v2575
    %v2640 = vmul.f32 %v1630, %v2576
    %v2641 = vmul.f32 %v1645, %v2577
    %v2642 = vmul.f32 %v1660, %v2578
    %v2643 = vmul.f32 %v1675, %v2579
    %v2644 = vmul.f32 %v1690, %v2580
    %v2645 = vmul.f32 %v1705, %v2581
    %v2646 = vmul.f32 %v1720, %v2582
    %v2647 = vmul.f32 %v1735, %v2583
    %v2648 = vmul.f32 %v1750, %v2584
    %v2649 = vmul.f32 %v1765, %v2585
    %v2650 = vmul.f32 %v1780, %v2586
    %v2651 = vmul.f32 %v1795, %v2587
    %v2652 = vmul.f32 %v1810, %v2588
    %v2653 = vmul.f32 %v1825, %v2589
    %v2654 = vmul.f32 %v1840, %v2590
    %v2655 = vmul.f32 %v1855, %v2591
    %v2656 = vmul.f32 %v1870, %v2592
    %v2657 = vmul.f32 %v1885, %v2593
    %v2658 = vmul.f32 %v1900, %v2594
    %v2659 = vmul.f32 %v1915, %v2595
    %v2660 = vmul.f32 %v1930, %v2596
    %v2661 = vmul.f32 %v1945, %v2597
    %v2662 = vmul.f32 %v1960, %v2598
    %v2663 = vmul.f32 %v1975, %v2599
    %v2664 = vmul.f32 %v1990, %v2600
    %v2665 = vmul.f32 %v2005, %v2601
    %v2666 = vmul.f32 %v2020, %v2602
    %v2667 = vmul.f32 %v2035, %v2603
    %v2668 = vmul.f32 %v2050, %v2604
    %v2669 = vmul.f32 %v2065, %v2605
    %v2670 = vmul.f32 %v2080, %v2606
    %v2671 = vmul.f32 %v2095, %v2607
    %v2672 = vadd.f32 %v2608, -0.18628806
    %v2673 = vadd.f32 %v2609, -0.18628806
    %v2674 = vadd.f32 %v2610, -0.18628806
    %v2675 = vadd.f32 %v2611, -0.18628806
    %v2676 = vadd.f32 %v2612, -0.18628806
    %v2677 = vadd.f32 %v2613, -0.18628806
    %v2678 = vadd.f32 %v2614, -0.18628806
    %v2679 = vadd.f32 %v2615, -0.18628806
    %v2680 = vadd.f32 %v2616, -0.18628806
    %v2681 = vadd.f32 %v2617, -0.18628806
    %v2682 = vadd.f32 %v2618, -0.18628806
    %v2683 = vadd.f32 %v2619, -0.18628806
    %v2684 = vadd.f32 %v2620, -0.18628806
    %v2685 = vadd.f32 %v2621, -0.18628806
    %v2686 = vadd.f32 %v2622, -0.18628806
    %v2687 = vadd.f32 %v2623, -0.18628806
    %v2688 = vadd.f32 %v2624, -0.18628806
    %v2689 = vadd.f32 %v2625, -0.18628806
    %v2690 = vadd.f32 %v2626, -0.18628806
    %v2691 = vadd.f32 %v2627, -0.18628806
    %v2692 = vadd.f32 %v2628, -0.18628806
    %v2693 = vadd.f32 %v2629, -0.18628806
    %v2694 = vadd.f32 %v2630, -0.18628806
    %v2695 = vadd.f32 %v2631, -0.18628806
    %v2696 = vadd.f32 %v2632, -0.18628806
    %v2697 = vadd.f32 %v2633, -0.18628806
    %v2698 = vadd.f32 %v2634, -0.18628806
    %v2699 = vadd.f32 %v2635, -0.18628806
    %v2700 = vadd.f32 %v2636, -0.18628806
    %v2701 = vadd.f32 %v2637, -0.18628806
    %v2702 = vadd.f32 %v2638, -0.18628806
    %v2703 = vadd.f32 %v2639, -0.18628806
    %v2704 = vadd.f32 %v2640, -0.18628806
    %v2705 = vadd.f32 %v2641, -0.18628806
    %v2706 = vadd.f32 %v2642, -0.18628806
    %v2707 = vadd.f32 %v2643, -0.18628806
    %v2708 = vadd.f32 %v2644, -0.18628806
    %v2709 = vadd.f32 %v2645, -0.18628806
    %v2710 = vadd.f32 %v2646, -0.18628806
    %v2711 = vadd.f32 %v2647, -0.18628806
    %v2712 = vadd.f32 %v2648, -0.18628806
    %v2713 = vadd.f32 %v2649, -0.18628806
    %v2714 = vadd.f32 %v2650, -0.18628806
    %v2715 = vadd.f32 %v2651, -0.18628806
    %v2716 = vadd.f32 %v2652, -0.18628806
    %v2717 = vadd.f32 %v2653, -0.18628806
    %v2718 = vadd.f32 %v2654, -0.18628806
    %v2719 = vadd.f32 %v2655, -0.18628806
    %v2720 = vadd.f32 %v2656, -0.18628806
    %v2721 = vadd.f32 %v2657, -0.18628806
    %v2722 = vadd.f32 %v2658, -0.18628806
    %v2723 = vadd.f32 %v2659, -0.18628806
    %v2724 = vadd.f32 %v2660, -0.18628806
    %v2725 = vadd.f32 %v2661, -0.18628806
    %v2726 = vadd.f32 %v2662, -0.18628806
    %v2727 = vadd.f32 %v2663, -0.18628806
    %v2728 = vadd.f32 %v2664, -0.18628806
    %v2729 = vadd.f32 %v2665, -0.18628806
    %v2730 = vadd.f32 %v2666, -0.18628806
    %v2731 = vadd.f32 %v2667, -0.18628806
    %v2732 = vadd.f32 %v2668, -0.18628806
    %v2733 = vadd.f32 %v2669, -0.18628806
    %v2734 = vadd.f32 %v2670, -0.18628806
    %v2735 = vadd.f32 %v2671, -0.18628806
    %v2736 = vmul.f32 %v1150, %v2672
    %v2737 = vmul.f32 %v1165, %v2673
    %v2738 = vmul.f32 %v1180, %v2674
    %v2739 = vmul.f32 %v1195, %v2675
    %v2740 = vmul.f32 %v1210, %v2676
    %v2741 = vmul.f32 %v1225, %v2677
    %v2742 = vmul.f32 %v1240, %v2678
    %v2743 = vmul.f32 %v1255, %v2679
    %v2744 = vmul.f32 %v1270, %v2680
    %v2745 = vmul.f32 %v1285, %v2681
    %v2746 = vmul.f32 %v1300, %v2682
    %v2747 = vmul.f32 %v1315, %v2683
    %v2748 = vmul.f32 %v1330, %v2684
    %v2749 = vmul.f32 %v1345, %v2685
    %v2750 = vmul.f32 %v1360, %v2686
    %v2751 = vmul.f32 %v1375, %v2687
    %v2752 = vmul.f32 %v1390, %v2688
    %v2753 = vmul.f32 %v1405, %v2689
    %v2754 = vmul.f32 %v1420, %v2690
    %v2755 = vmul.f32 %v1435, %v2691
    %v2756 = vmul.f32 %v1450, %v2692
    %v2757 = vmul.f32 %v1465, %v2693
    %v2758 = vmul.f32 %v1480, %v2694
    %v2759 = vmul.f32 %v1495, %v2695
    %v2760 = vmul.f32 %v1510, %v2696
    %v2761 = vmul.f32 %v1525, %v2697
    %v2762 = vmul.f32 %v1540, %v2698
    %v2763 = vmul.f32 %v1555, %v2699
    %v2764 = vmul.f32 %v1570, %v2700
    %v2765 = vmul.f32 %v1585, %v2701
    %v2766 = vmul.f32 %v1600, %v2702
    %v2767 = vmul.f32 %v1615, %v2703
    %v2768 = vmul.f32 %v1630, %v2704
    %v2769 = vmul.f32 %v1645, %v2705
    %v2770 = vmul.f32 %v1660, %v2706
    %v2771 = vmul.f32 %v1675, %v2707
    %v2772 = vmul.f32 %v1690, %v2708
    %v2773 = vmul.f32 %v1705, %v2709
    %v2774 = vmul.f32 %v1720, %v2710
    %v2775 = vmul.f32 %v1735, %v2711
    %v2776 = vmul.f32 %v1750, %v2712
    %v2777 = vmul.f32 %v1765, %v2713
    %v2778 = vmul.f32 %v1780, %v2714
    %v2779 = vmul.f32 %v1795, %v2715
    %v2780 = vmul.f32 %v1810, %v2716
    %v2781 = vmul.f32 %v1825, %v2717
    %v2782 = vmul.f32 %v1840, %v2718
    %v2783 = vmul.f32 %v1855, %v2719
    %v2784 = vmul.f32 %v1870, %v2720
    %v2785 = vmul.f32 %v1885, %v2721
    %v2786 = vmul.f32 %v1900, %v2722
    %v2787 = vmul.f32 %v1915, %v2723
    %v2788 = vmul.f32 %v1930, %v2724
    %v2789 = vmul.f32 %v1945, %v2725
    %v2790 = vmul.f32 %v1960, %v2726
    %v2791 = vmul.f32 %v1975, %v2727
    %v2792 = vmul.f32 %v1990, %v2728
    %v2793 = vmul.f32 %v2005, %v2729
    %v2794 = vmul.f32 %v2020, %v2730
    %v2795 = vmul.f32 %v2035, %v2731
    %v2796 = vmul.f32 %v2050, %v2732
    %v2797 = vmul.f32 %v2065, %v2733
    %v2798 = vmul.f32 %v2080, %v2734
    %v2799 = vmul.f32 %v2095, %v2735
    %v2800 = vadd.f32 %v2736, 0.09678418
    %v2801 = vadd.f32 %v2737, 0.09678418
    %v2802 = vadd.f32 %v2738, 0.09678418
    %v2803 = vadd.f32 %v2739, 0.09678418
    %v2804 = vadd.f32 %v2740, 0.09678418
    %v2805 = vadd.f32 %v2741, 0.09678418
    %v2806 = vadd.f32 %v2742, 0.09678418
    %v2807 = vadd.f32 %v2743, 0.09678418
    %v2808 = vadd.f32 %v2744, 0.09678418
    %v2809 = vadd.f32 %v2745, 0.09678418
    %v2810 = vadd.f32 %v2746, 0.09678418
    %v2811 = vadd.f32 %v2747, 0.09678418
    %v2812 = vadd.f32 %v2748, 0.09678418
    %v2813 = vadd.f32 %v2749, 0.09678418
    %v2814 = vadd.f32 %v2750, 0.09678418
    %v2815 = vadd.f32 %v2751, 0.09678418
    %v2816 = vadd.f32 %v2752, 0.09678418
    %v2817 = vadd.f32 %v2753, 0.09678418
    %v2818 = vadd.f32 %v2754, 0.09678418
    %v2819 = vadd.f32 %v2755, 0.09678418
    %v2820 = vadd.f32 %v2756, 0.09678418
    %v2821 = vadd.f32 %v2757, 0.09678418
    %v2822 = vadd.f32 %v2758, 0.09678418
    %v2823 = vadd.f32 %v2759, 0.09678418
    %v2824 = vadd.f32 %v2760, 0.09678418
    %v2825 = vadd.f32 %v2761, 0.09678418
    %v2826 = vadd.f32 %v2762, 0.09678418
    %v2827 = vadd.f32 %v2763, 0.09678418
    %v2828 = vadd.f32 %v2764, 0.09678418
    %v2829 = vadd.f32 %v2765, 0.09678418
    %v2830 = vadd.f32 %v2766, 0.09678418
    %v2831 = vadd.f32 %v2767, 0.09678418
    %v2832 = vadd.f32 %v2768, 0.09678418
    %v2833 = vadd.f32 %v2769, 0.09678418
    %v2834 = vadd.f32 %v2770, 0.09678418
    %v2835 = vadd.f32 %v2771, 0.09678418
    %v2836 = vadd.f32 %v2772, 0.09678418
    %v2837 = vadd.f32 %v2773, 0.09678418
    %v2838 = vadd.f32 %v2774, 0.09678418
    %v2839 = vadd.f32 %v2775, 0.09678418
    %v2840 = vadd.f32 %v2776, 0.09678418
    %v2841 = vadd.f32 %v2777, 0.09678418
    %v2842 = vadd.f32 %v2778, 0.09678418
    %v2843 = vadd.f32 %v2779, 0.09678418
    %v2844 = vadd.f32 %v2780, 0.09678418
    %v2845 = vadd.f32 %v2781, 0.09678418
    %v2846 = vadd.f32 %v2782, 0.09678418
    %v2847 = vadd.f32 %v2783, 0.09678418
    %v2848 = vadd.f32 %v2784, 0.09678418
    %v2849 = vadd.f32 %v2785, 0.09678418
    %v2850 = vadd.f32 %v2786, 0.09678418
    %v2851 = vadd.f32 %v2787, 0.09678418
    %v2852 = vadd.f32 %v2788, 0.09678418
    %v2853 = vadd.f32 %v2789, 0.09678418
    %v2854 = vadd.f32 %v2790, 0.09678418
    %v2855 = vadd.f32 %v2791, 0.09678418
    %v2856 = vadd.f32 %v2792, 0.09678418
    %v2857 = vadd.f32 %v2793, 0.09678418
    %v2858 = vadd.f32 %v2794, 0.09678418
    %v2859 = vadd.f32 %v2795, 0.09678418
    %v2860 = vadd.f32 %v2796, 0.09678418
    %v2861 = vadd.f32 %v2797, 0.09678418
    %v2862 = vadd.f32 %v2798, 0.09678418
    %v2863 = vadd.f32 %v2799, 0.09678418
    %v2864 = vmul.f32 %v1150, %v2800
    %v2865 = vmul.f32 %v1165, %v2801
    %v2866 = vmul.f32 %v1180, %v2802
    %v2867 = vmul.f32 %v1195, %v2803
    %v2868 = vmul.f32 %v1210, %v2804
    %v2869 = vmul.f32 %v1225, %v2805
    %v2870 = vmul.f32 %v1240, %v2806
    %v2871 = vmul.f32 %v1255, %v2807
    %v2872 = vmul.f32 %v1270, %v2808
    %v2873 = vmul.f32 %v1285, %v2809
    %v2874 = vmul.f32 %v1300, %v2810
    %v2875 = vmul.f32 %v1315, %v2811
    %v2876 = vmul.f32 %v1330, %v2812
    %v2877 = vmul.f32 %v1345, %v2813
    %v2878 = vmul.f32 %v1360, %v2814
    %v2879 = vmul.f32 %v1375, %v2815
    %v2880 = vmul.f32 %v1390, %v2816
    %v2881 = vmul.f32 %v1405, %v2817
    %v2882 = vmul.f32 %v1420, %v2818
    %v2883 = vmul.f32 %v1435, %v2819
    %v2884 = vmul.f32 %v1450, %v2820
    %v2885 = vmul.f32 %v1465, %v2821
    %v2886 = vmul.f32 %v1480, %v2822
    %v2887 = vmul.f32 %v1495, %v2823
    %v2888 = vmul.f32 %v1510, %v2824
    %v2889 = vmul.f32 %v1525, %v2825
    %v2890 = vmul.f32 %v1540, %v2826
    %v2891 = vmul.f32 %v1555, %v2827
    %v2892 = vmul.f32 %v1570, %v2828
    %v2893 = vmul.f32 %v1585, %v2829
    %v2894 = vmul.f32 %v1600, %v2830
    %v2895 = vmul.f32 %v1615, %v2831
    %v2896 = vmul.f32 %v1630, %v2832
    %v2897 = vmul.f32 %v1645, %v2833
    %v2898 = vmul.f32 %v1660, %v2834
    %v2899 = vmul.f32 %v1675, %v2835
    %v2900 = vmul.f32 %v1690, %v2836
    %v2901 = vmul.f32 %v1705, %v2837
    %v2902 = vmul.f32 %v1720, %v2838
    %v2903 = vmul.f32 %v1735, %v2839
    %v2904 = vmul.f32 %v1750, %v2840
    %v2905 = vmul.f32 %v1765, %v2841
    %v2906 = vmul.f32 %v1780, %v2842
    %v2907 = vmul.f32 %v1795, %v2843
    %v2908 = vmul.f32 %v1810, %v2844
    %v2909 = vmul.f32 %v1825, %v2845
    %v2910 = vmul.f32 %v1840, %v2846
    %v2911 = vmul.f32 %v1855, %v2847
    %v2912 = vmul.f32 %v1870, %v2848
    %v2913 = vmul.f32 %v1885, %v2849
    %v2914 = vmul.f32 %v1900, %v2850
    %v2915 = vmul.f32 %v1915, %v2851
    %v2916 = vmul.f32 %v1930, %v2852
    %v2917 = vmul.f32 %v1945, %v2853
    %v2918 = vmul.f32 %v1960, %v2854
    %v2919 = vmul.f32 %v1975, %v2855
    %v2920 = vmul.f32 %v1990, %v2856
    %v2921 = vmul.f32 %v2005, %v2857
    %v2922 = vmul.f32 %v2020, %v2858
    %v2923 = vmul.f32 %v2035, %v2859
    %v2924 = vmul.f32 %v2050, %v2860
    %v2925 = vmul.f32 %v2065, %v2861
    %v2926 = vmul.f32 %v2080, %v2862
    %v2927 = vmul.f32 %v2095, %v2863
    %v2928 = vadd.f32 %v2864, 0.37409195
    %v2929 = vadd.f32 %v2865, 0.37409195
    %v2930 = vadd.f32 %v2866, 0.37409195
    %v2931 = vadd.f32 %v2867, 0.37409195
    %v2932 = vadd.f32 %v2868, 0.37409195
    %v2933 = vadd.f32 %v2869, 0.37409195
    %v2934 = vadd.f32 %v2870, 0.37409195
    %v2935 = vadd.f32 %v2871, 0.37409195
    %v2936 = vadd.f32 %v2872, 0.37409195
    %v2937 = vadd.f32 %v2873, 0.37409195
    %v2938 = vadd.f32 %v2874, 0.37409195
    %v2939 = vadd.f32 %v2875, 0.37409195
    %v2940 = vadd.f32 %v2876, 0.37409195
    %v2941 = vadd.f32 %v2877, 0.37409195
    %v2942 = vadd.f32 %v2878, 0.37409195
    %v2943 = vadd.f32 %v2879, 0.37409195
    %v2944 = vadd.f32 %v2880, 0.37409195
    %v2945 = vadd.f32 %v2881, 0.37409195
    %v2946 = vadd.f32 %v2882, 0.37409195
    %v2947 = vadd.f32 %v2883, 0.37409195
    %v2948 = vadd.f32 %v2884, 0.37409195
    %v2949 = vadd.f32 %v2885, 0.37409195
    %v2950 = vadd.f32 %v2886, 0.37409195
    %v2951 = vadd.f32 %v2887, 0.37409195
    %v2952 = vadd.f32 %v2888, 0.37409195
    %v2953 = vadd.f32 %v2889, 0.37409195
    %v2954 = vadd.f32 %v2890, 0.37409195
    %v2955 = vadd.f32 %v2891, 0.37409195
    %v2956 = vadd.f32 %v2892, 0.37409195
    %v2957 = vadd.f32 %v2893, 0.37409195
    %v2958 = vadd.f32 %v2894, 0.37409195
    %v2959 = vadd.f32 %v2895, 0.37409195
    %v2960 = vadd.f32 %v2896, 0.37409195
    %v2961 = vadd.f32 %v2897, 0.37409195
    %v2962 = vadd.f32 %v2898, 0.37409195
    %v2963 = vadd.f32 %v2899, 0.37409195
    %v2964 = vadd.f32 %v2900, 0.37409195
    %v2965 = vadd.f32 %v2901, 0.37409195
    %v2966 = vadd.f32 %v2902, 0.37409195
    %v2967 = vadd.f32 %v2903, 0.37409195
    %v2968 = vadd.f32 %v2904, 0.37409195
    %v2969 = vadd.f32 %v2905, 0.37409195
    %v2970 = vadd.f32 %v2906, 0.37409195
    %v2971 = vadd.f32 %v2907, 0.37409195
    %v2972 = vadd.f32 %v2908, 0.37409195
    %v2973 = vadd.f32 %v2909, 0.37409195
    %v2974 = vadd.f32 %v2910, 0.37409195
    %v2975 = vadd.f32 %v2911, 0.37409195
    %v2976 = vadd.f32 %v2912, 0.37409195
    %v2977 = vadd.f32 %v2913, 0.37409195
    %v2978 = vadd.f32 %v2914, 0.37409195
    %v2979 = vadd.f32 %v2915, 0.37409195
    %v2980 = vadd.f32 %v2916, 0.37409195
    %v2981 = vadd.f32 %v2917, 0.37409195
    %v2982 = vadd.f32 %v2918, 0.37409195
    %v2983 = vadd.f32 %v2919, 0.37409195
    %v2984 = vadd.f32 %v2920, 0.37409195
    %v2985 = vadd.f32 %v2921, 0.37409195
    %v2986 = vadd.f32 %v2922, 0.37409195
    %v2987 = vadd.f32 %v2923, 0.37409195
    %v2988 = vadd.f32 %v2924, 0.37409195
    %v2989 = vadd.f32 %v2925, 0.37409195
    %v2990 = vadd.f32 %v2926, 0.37409195
    %v2991 = vadd.f32 %v2927, 0.37409195
    %v2992 = vmul.f32 %v1150, %v2928
    %v2993 = vmul.f32 %v1165, %v2929
    %v2994 = vmul.f32 %v1180, %v2930
    %v2995 = vmul.f32 %v1195, %v2931
    %v2996 = vmul.f32 %v1210, %v2932
    %v2997 = vmul.f32 %v1225, %v2933
    %v2998 = vmul.f32 %v1240, %v2934
    %v2999 = vmul.f32 %v1255, %v2935
    %v3000 = vmul.f32 %v1270, %v2936
    %v3001 = vmul.f32 %v1285, %v2937
    %v3002 = vmul.f32 %v1300, %v2938
    %v3003 = vmul.f32 %v1315, %v2939
    %v3004 = vmul.f32 %v1330, %v2940
    %v3005 = vmul.f32 %v1345, %v2941
    %v3006 = vmul.f32 %v1360, %v2942
    %v3007 = vmul.f32 %v1375, %v2943
    %v3008 = vmul.f32 %v1390, %v2944
    %v3009 = vmul.f32 %v1405, %v2945
    %v3010 = vmul.f32 %v1420, %v2946
    %v3011 = vmul.f32 %v1435, %v2947
    %v3012 = vmul.f32 %v1450, %v2948
    %v3013 = vmul.f32 %v1465, %v2949
    %v3014 = vmul.f32 %v1480, %v2950
    %v3015 = vmul.f32 %v1495, %v2951
    %v3016 = vmul.f32 %v1510, %v2952
    %v3017 = vmul.f32 %v1525, %v2953
    %v3018 = vmul.f32 %v1540, %v2954
    %v3019 = vmul.f32 %v1555, %v2955
    %v3020 = vmul.f32 %v1570, %v2956
    %v3021 = vmul.f32 %v1585, %v2957
    %v3022 = vmul.f32 %v1600, %v2958
    %v3023 = vmul.f32 %v1615, %v2959
    %v3024 = vmul.f32 %v1630, %v2960
    %v3025 = vmul.f32 %v1645, %v2961
    %v3026 = vmul.f32 %v1660, %v2962
    %v3027 = vmul.f32 %v1675, %v2963
    %v3028 = vmul.f32 %v1690, %v2964
    %v3029 = vmul.f32 %v1705, %v2965
    %v3030 = vmul.f32 %v1720, %v2966
    %v3031 = vmul.f32 %v1735, %v2967
    %v3032 = vmul.f32 %v1750, %v2968
    %v3033 = vmul.f32 %v1765, %v2969
    %v3034 = vmul.f32 %v1780, %v2970
    %v3035 = vmul.f32 %v1795, %v2971
    %v3036 = vmul.f32 %v1810, %v2972
    %v3037 = vmul.f32 %v1825, %v2973
    %v3038 = vmul.f32 %v1840, %v2974
    %v3039 = vmul.f32 %v1855, %v2975
    %v3040 = vmul.f32 %v1870, %v2976
    %v3041 = vmul.f32 %v1885, %v2977
    %v3042 = vmul.f32 %v1900, %v2978
    %v3043 = vmul.f32 %v1915, %v2979
    %v3044 = vmul.f32 %v1930, %v2980
    %v3045 = vmul.f32 %v1945, %v2981
    %v3046 = vmul.f32 %v1960, %v2982
    %v3047 = vmul.f32 %v1975, %v2983
    %v3048 = vmul.f32 %v1990, %v2984
    %v3049 = vmul.f32 %v2005, %v2985
    %v3050 = vmul.f32 %v2020, %v2986
    %v3051 = vmul.f32 %v2035, %v2987
    %v3052 = vmul.f32 %v2050, %v2988
    %v3053 = vmul.f32 %v2065, %v2989
    %v3054 = vmul.f32 %v2080, %v2990
    %v3055 = vmul.f32 %v2095, %v2991
    %v3056 = vadd.f32 %v2992, 1.0000237
    %v3057 = vadd.f32 %v2993, 1.0000237
    %v3058 = vadd.f32 %v2994, 1.0000237
    %v3059 = vadd.f32 %v2995, 1.0000237
    %v3060 = vadd.f32 %v2996, 1.0000237
    %v3061 = vadd.f32 %v2997, 1.0000237
    %v3062 = vadd.f32 %v2998, 1.0000237
    %v3063 = vadd.f32 %v2999, 1.0000237
    %v3064 = vadd.f32 %v3000, 1.0000237
    %v3065 = vadd.f32 %v3001, 1.0000237
    %v3066 = vadd.f32 %v3002, 1.0000237
    %v3067 = vadd.f32 %v3003, 1.0000237
    %v3068 = vadd.f32 %v3004, 1.0000237
    %v3069 = vadd.f32 %v3005, 1.0000237
    %v3070 = vadd.f32 %v3006, 1.0000237
    %v3071 = vadd.f32 %v3007, 1.0000237
    %v3072 = vadd.f32 %v3008, 1.0000237
    %v3073 = vadd.f32 %v3009, 1.0000237
    %v3074 = vadd.f32 %v3010, 1.0000237
    %v3075 = vadd.f32 %v3011, 1.0000237
    %v3076 = vadd.f32 %v3012, 1.0000237
    %v3077 = vadd.f32 %v3013, 1.0000237
    %v3078 = vadd.f32 %v3014, 1.0000237
    %v3079 = vadd.f32 %v3015, 1.0000237
    %v3080 = vadd.f32 %v3016, 1.0000237
    %v3081 = vadd.f32 %v3017, 1.0000237
    %v3082 = vadd.f32 %v3018, 1.0000237
    %v3083 = vadd.f32 %v3019, 1.0000237
    %v3084 = vadd.f32 %v3020, 1.0000237
    %v3085 = vadd.f32 %v3021, 1.0000237
    %v3086 = vadd.f32 %v3022, 1.0000237
    %v3087 = vadd.f32 %v3023, 1.0000237
    %v3088 = vadd.f32 %v3024, 1.0000237
    %v3089 = vadd.f32 %v3025, 1.0000237
    %v3090 = vadd.f32 %v3026, 1.0000237
    %v3091 = vadd.f32 %v3027, 1.0000237
    %v3092 = vadd.f32 %v3028, 1.0000237
    %v3093 = vadd.f32 %v3029, 1.0000237
    %v3094 = vadd.f32 %v3030, 1.0000237
    %v3095 = vadd.f32 %v3031, 1.0000237
    %v3096 = vadd.f32 %v3032, 1.0000237
    %v3097 = vadd.f32 %v3033, 1.0000237
    %v3098 = vadd.f32 %v3034, 1.0000237
    %v3099 = vadd.f32 %v3035, 1.0000237
    %v3100 = vadd.f32 %v3036, 1.0000237
    %v3101 = vadd.f32 %v3037, 1.0000237
    %v3102 = vadd.f32 %v3038, 1.0000237
    %v3103 = vadd.f32 %v3039, 1.0000237
    %v3104 = vadd.f32 %v3040, 1.0000237
    %v3105 = vadd.f32 %v3041, 1.0000237
    %v3106 = vadd.f32 %v3042, 1.0000237
    %v3107 = vadd.f32 %v3043, 1.0000237
    %v3108 = vadd.f32 %v3044, 1.0000237
    %v3109 = vadd.f32 %v3045, 1.0000237
    %v3110 = vadd.f32 %v3046, 1.0000237
    %v3111 = vadd.f32 %v3047, 1.0000237
    %v3112 = vadd.f32 %v3048, 1.0000237
    %v3113 = vadd.f32 %v3049, 1.0000237
    %v3114 = vadd.f32 %v3050, 1.0000237
    %v3115 = vadd.f32 %v3051, 1.0000237
    %v3116 = vadd.f32 %v3052, 1.0000237
    %v3117 = vadd.f32 %v3053, 1.0000237
    %v3118 = vadd.f32 %v3054, 1.0000237
    %v3119 = vadd.f32 %v3055, 1.0000237
    %v3120 = vmul.f32 %v1150, %v3056
    %v3121 = vmul.f32 %v1165, %v3057
    %v3122 = vmul.f32 %v1180, %v3058
    %v3123 = vmul.f32 %v1195, %v3059
    %v3124 = vmul.f32 %v1210, %v3060
    %v3125 = vmul.f32 %v1225, %v3061
    %v3126 = vmul.f32 %v1240, %v3062
    %v3127 = vmul.f32 %v1255, %v3063
    %v3128 = vmul.f32 %v1270, %v3064
    %v3129 = vmul.f32 %v1285, %v3065
    %v3130 = vmul.f32 %v1300, %v3066
    %v3131 = vmul.f32 %v1315, %v3067
    %v3132 = vmul.f32 %v1330, %v3068
    %v3133 = vmul.f32 %v1345, %v3069
    %v3134 = vmul.f32 %v1360, %v3070
    %v3135 = vmul.f32 %v1375, %v3071
    %v3136 = vmul.f32 %v1390, %v3072
    %v3137 = vmul.f32 %v1405, %v3073
    %v3138 = vmul.f32 %v1420, %v3074
    %v3139 = vmul.f32 %v1435, %v3075
    %v3140 = vmul.f32 %v1450, %v3076
    %v3141 = vmul.f32 %v1465, %v3077
    %v3142 = vmul.f32 %v1480, %v3078
    %v3143 = vmul.f32 %v1495, %v3079
    %v3144 = vmul.f32 %v1510, %v3080
    %v3145 = vmul.f32 %v1525, %v3081
    %v3146 = vmul.f32 %v1540, %v3082
    %v3147 = vmul.f32 %v1555, %v3083
    %v3148 = vmul.f32 %v1570, %v3084
    %v3149 = vmul.f32 %v1585, %v3085
    %v3150 = vmul.f32 %v1600, %v3086
    %v3151 = vmul.f32 %v1615, %v3087
    %v3152 = vmul.f32 %v1630, %v3088
    %v3153 = vmul.f32 %v1645, %v3089
    %v3154 = vmul.f32 %v1660, %v3090
    %v3155 = vmul.f32 %v1675, %v3091
    %v3156 = vmul.f32 %v1690, %v3092
    %v3157 = vmul.f32 %v1705, %v3093
    %v3158 = vmul.f32 %v1720, %v3094
    %v3159 = vmul.f32 %v1735, %v3095
    %v3160 = vmul.f32 %v1750, %v3096
    %v3161 = vmul.f32 %v1765, %v3097
    %v3162 = vmul.f32 %v1780, %v3098
    %v3163 = vmul.f32 %v1795, %v3099
    %v3164 = vmul.f32 %v1810, %v3100
    %v3165 = vmul.f32 %v1825, %v3101
    %v3166 = vmul.f32 %v1840, %v3102
    %v3167 = vmul.f32 %v1855, %v3103
    %v3168 = vmul.f32 %v1870, %v3104
    %v3169 = vmul.f32 %v1885, %v3105
    %v3170 = vmul.f32 %v1900, %v3106
    %v3171 = vmul.f32 %v1915, %v3107
    %v3172 = vmul.f32 %v1930, %v3108
    %v3173 = vmul.f32 %v1945, %v3109
    %v3174 = vmul.f32 %v1960, %v3110
    %v3175 = vmul.f32 %v1975, %v3111
    %v3176 = vmul.f32 %v1990, %v3112
    %v3177 = vmul.f32 %v2005, %v3113
    %v3178 = vmul.f32 %v2020, %v3114
    %v3179 = vmul.f32 %v2035, %v3115
    %v3180 = vmul.f32 %v2050, %v3116
    %v3181 = vmul.f32 %v2065, %v3117
    %v3182 = vmul.f32 %v2080, %v3118
    %v3183 = vmul.f32 %v2095, %v3119
    %v3184 = vsub.f32 0.0, %v944
    %v3185 = vsub.f32 0.0, %v945
    %v3186 = vsub.f32 0.0, %v946
    %v3187 = vsub.f32 0.0, %v947
    %v3188 = vsub.f32 0.0, %v948
    %v3189 = vsub.f32 0.0, %v949
    %v3190 = vsub.f32 0.0, %v950
    %v3191 = vsub.f32 0.0, %v951
    %v3192 = vsub.f32 0.0, %v952
    %v3193 = vsub.f32 0.0, %v953
    %v3194 = vsub.f32 0.0, %v954
    %v3195 = vsub.f32 0.0, %v955
    %v3196 = vsub.f32 0.0, %v956
    %v3197 = vsub.f32 0.0, %v957
    %v3198 = vsub.f32 0.0, %v958
    %v3199 = vsub.f32 0.0, %v959
    %v3200 = vsub.f32 0.0, %v960
    %v3201 = vsub.f32 0.0, %v961
    %v3202 = vsub.f32 0.0, %v962
    %v3203 = vsub.f32 0.0, %v963
    %v3204 = vsub.f32 0.0, %v964
    %v3205 = vsub.f32 0.0, %v965
    %v3206 = vsub.f32 0.0, %v966
    %v3207 = vsub.f32 0.0, %v967
    %v3208 = vsub.f32 0.0, %v968
    %v3209 = vsub.f32 0.0, %v969
    %v3210 = vsub.f32 0.0, %v970
    %v3211 = vsub.f32 0.0, %v971
    %v3212 = vsub.f32 0.0, %v972
    %v3213 = vsub.f32 0.0, %v973
    %v3214 = vsub.f32 0.0, %v974
    %v3215 = vsub.f32 0.0, %v975
    %v3216 = vsub.f32 0.0, %v976
    %v3217 = vsub.f32 0.0, %v977
    %v3218 = vsub.f32 0.0, %v978
    %v3219 = vsub.f32 0.0, %v979
    %v3220 = vsub.f32 0.0, %v980
    %v3221 = vsub.f32 0.0, %v981
    %v3222 = vsub.f32 0.0, %v982
    %v3223 = vsub.f32 0.0, %v983
    %v3224 = vsub.f32 0.0, %v984
    %v3225 = vsub.f32 0.0, %v985
    %v3226 = vsub.f32 0.0, %v986
    %v3227 = vsub.f32 0.0, %v987
    %v3228 = vsub.f32 0.0, %v988
    %v3229 = vsub.f32 0.0, %v989
    %v3230 = vsub.f32 0.0, %v990
    %v3231 = vsub.f32 0.0, %v991
    %v3232 = vsub.f32 0.0, %v992
    %v3233 = vsub.f32 0.0, %v993
    %v3234 = vsub.f32 0.0, %v994
    %v3235 = vsub.f32 0.0, %v995
    %v3236 = vsub.f32 0.0, %v996
    %v3237 = vsub.f32 0.0, %v997
    %v3238 = vsub.f32 0.0, %v998
    %v3239 = vsub.f32 0.0, %v999
    %v3240 = vsub.f32 0.0, %v1000
    %v3241 = vsub.f32 0.0, %v1001
    %v3242 = vsub.f32 0.0, %v1002
    %v3243 = vsub.f32 0.0, %v1003
    %v3244 = vsub.f32 0.0, %v1004
    %v3245 = vsub.f32 0.0, %v1005
    %v3246 = vsub.f32 0.0, %v1006
    %v3247 = vsub.f32 0.0, %v1007
    %v3248 = vmul.f32 %v3184, %v944
    %v3249 = vmul.f32 %v3185, %v945
    %v3250 = vmul.f32 %v3186, %v946
    %v3251 = vmul.f32 %v3187, %v947
    %v3252 = vmul.f32 %v3188, %v948
    %v3253 = vmul.f32 %v3189, %v949
    %v3254 = vmul.f32 %v3190, %v950
    %v3255 = vmul.f32 %v3191, %v951
    %v3256 = vmul.f32 %v3192, %v952
    %v3257 = vmul.f32 %v3193, %v953
    %v3258 = vmul.f32 %v3194, %v954
    %v3259 = vmul.f32 %v3195, %v955
    %v3260 = vmul.f32 %v3196, %v956
    %v3261 = vmul.f32 %v3197, %v957
    %v3262 = vmul.f32 %v3198, %v958
    %v3263 = vmul.f32 %v3199, %v959
    %v3264 = vmul.f32 %v3200, %v960
    %v3265 = vmul.f32 %v3201, %v961
    %v3266 = vmul.f32 %v3202, %v962
    %v3267 = vmul.f32 %v3203, %v963
    %v3268 = vmul.f32 %v3204, %v964
    %v3269 = vmul.f32 %v3205, %v965
    %v3270 = vmul.f32 %v3206, %v966
    %v3271 = vmul.f32 %v3207, %v967
    %v3272 = vmul.f32 %v3208, %v968
    %v3273 = vmul.f32 %v3209, %v969
    %v3274 = vmul.f32 %v3210, %v970
    %v3275 = vmul.f32 %v3211, %v971
    %v3276 = vmul.f32 %v3212, %v972
    %v3277 = vmul.f32 %v3213, %v973
    %v3278 = vmul.f32 %v3214, %v974
    %v3279 = vmul.f32 %v3215, %v975
    %v3280 = vmul.f32 %v3216, %v976
    %v3281 = vmul.f32 %v3217, %v977
    %v3282 = vmul.f32 %v3218, %v978
    %v3283 = vmul.f32 %v3219, %v979
    %v3284 = vmul.f32 %v3220, %v980
    %v3285 = vmul.f32 %v3221, %v981
    %v3286 = vmul.f32 %v3222, %v982
    %v3287 = vmul.f32 %v3223, %v983
    %v3288 = vmul.f32 %v3224, %v984
    %v3289 = vmul.f32 %v3225, %v985
    %v3290 = vmul.f32 %v3226, %v986
    %v3291 = vmul.f32 %v3227, %v987
    %v3292 = vmul.f32 %v3228, %v988
    %v3293 = vmul.f32 %v3229, %v989
    %v3294 = vmul.f32 %v3230, %v990
    %v3295 = vmul.f32 %v3231, %v991
    %v3296 = vmul.f32 %v3232, %v992
    %v3297 = vmul.f32 %v3233, %v993
    %v3298 = vmul.f32 %v3234, %v994
    %v3299 = vmul.f32 %v3235, %v995
    %v3300 = vmul.f32 %v3236, %v996
    %v3301 = vmul.f32 %v3237, %v997
    %v3302 = vmul.f32 %v3238, %v998
    %v3303 = vmul.f32 %v3239, %v999
    %v3304 = vmul.f32 %v3240, %v1000
    %v3305 = vmul.f32 %v3241, %v1001
    %v3306 = vmul.f32 %v3242, %v1002
    %v3307 = vmul.f32 %v3243, %v1003
    %v3308 = vmul.f32 %v3244, %v1004
    %v3309 = vmul.f32 %v3245, %v1005
    %v3310 = vmul.f32 %v3246, %v1006
    %v3311 = vmul.f32 %v3247, %v1007
    %v3312 = vsub.f32 %v3248, 1.2655122
    %v3313 = vsub.f32 %v3249, 1.2655122
    %v3314 = vsub.f32 %v3250, 1.2655122
    %v3315 = vsub.f32 %v3251, 1.2655122
    %v3316 = vsub.f32 %v3252, 1.2655122
    %v3317 = vsub.f32 %v3253, 1.2655122
    %v3318 = vsub.f32 %v3254, 1.2655122
    %v3319 = vsub.f32 %v3255, 1.2655122
    %v3320 = vsub.f32 %v3256, 1.2655122
    %v3321 = vsub.f32 %v3257, 1.2655122
    %v3322 = vsub.f32 %v3258, 1.2655122
    %v3323 = vsub.f32 %v3259, 1.2655122
    %v3324 = vsub.f32 %v3260, 1.2655122
    %v3325 = vsub.f32 %v3261, 1.2655122
    %v3326 = vsub.f32 %v3262, 1.2655122
    %v3327 = vsub.f32 %v3263, 1.2655122
    %v3328 = vsub.f32 %v3264, 1.2655122
    %v3329 = vsub.f32 %v3265, 1.2655122
    %v3330 = vsub.f32 %v3266, 1.2655122
    %v3331 = vsub.f32 %v3267, 1.2655122
    %v3332 = vsub.f32 %v3268, 1.2655122
    %v3333 = vsub.f32 %v3269, 1.2655122
    %v3334 = vsub.f32 %v3270, 1.2655122
    %v3335 = vsub.f32 %v3271, 1.2655122
    %v3336 = vsub.f32 %v3272, 1.2655122
    %v3337 = vsub.f32 %v3273, 1.2655122
    %v3338 = vsub.f32 %v3274, 1.2655122
    %v3339 = vsub.f32 %v3275, 1.2655122
    %v3340 = vsub.f32 %v3276, 1.2655122
    %v3341 = vsub.f32 %v3277, 1.2655122
    %v3342 = vsub.f32 %v3278, 1.2655122
    %v3343 = vsub.f32 %v3279, 1.2655122
    %v3344 = vsub.f32 %v3280, 1.2655122
    %v3345 = vsub.f32 %v3281, 1.2655122
    %v3346 = vsub.f32 %v3282, 1.2655122
    %v3347 = vsub.f32 %v3283, 1.2655122
    %v3348 = vsub.f32 %v3284, 1.2655122
    %v3349 = vsub.f32 %v3285, 1.2655122
    %v3350 = vsub.f32 %v3286, 1.2655122
    %v3351 = vsub.f32 %v3287, 1.2655122
    %v3352 = vsub.f32 %v3288, 1.2655122
    %v3353 = vsub.f32 %v3289, 1.2655122
    %v3354 = vsub.f32 %v3290, 1.2655122
    %v3355 = vsub.f32 %v3291, 1.2655122
    %v3356 = vsub.f32 %v3292, 1.2655122
    %v3357 = vsub.f32 %v3293, 1.2655122
    %v3358 = vsub.f32 %v3294, 1.2655122
    %v3359 = vsub.f32 %v3295, 1.2655122
    %v3360 = vsub.f32 %v3296, 1.2655122
    %v3361 = vsub.f32 %v3297, 1.2655122
    %v3362 = vsub.f32 %v3298, 1.2655122
    %v3363 = vsub.f32 %v3299, 1.2655122
    %v3364 = vsub.f32 %v3300, 1.2655122
    %v3365 = vsub.f32 %v3301, 1.2655122
    %v3366 = vsub.f32 %v3302, 1.2655122
    %v3367 = vsub.f32 %v3303, 1.2655122
    %v3368 = vsub.f32 %v3304, 1.2655122
    %v3369 = vsub.f32 %v3305, 1.2655122
    %v3370 = vsub.f32 %v3306, 1.2655122
    %v3371 = vsub.f32 %v3307, 1.2655122
    %v3372 = vsub.f32 %v3308, 1.2655122
    %v3373 = vsub.f32 %v3309, 1.2655122
    %v3374 = vsub.f32 %v3310, 1.2655122
    %v3375 = vsub.f32 %v3311, 1.2655122
    %v3376 = vadd.f32 %v3312, %v3120
    %v3377 = vadd.f32 %v3313, %v3121
    %v3378 = vadd.f32 %v3314, %v3122
    %v3379 = vadd.f32 %v3315, %v3123
    %v3380 = vadd.f32 %v3316, %v3124
    %v3381 = vadd.f32 %v3317, %v3125
    %v3382 = vadd.f32 %v3318, %v3126
    %v3383 = vadd.f32 %v3319, %v3127
    %v3384 = vadd.f32 %v3320, %v3128
    %v3385 = vadd.f32 %v3321, %v3129
    %v3386 = vadd.f32 %v3322, %v3130
    %v3387 = vadd.f32 %v3323, %v3131
    %v3388 = vadd.f32 %v3324, %v3132
    %v3389 = vadd.f32 %v3325, %v3133
    %v3390 = vadd.f32 %v3326, %v3134
    %v3391 = vadd.f32 %v3327, %v3135
    %v3392 = vadd.f32 %v3328, %v3136
    %v3393 = vadd.f32 %v3329, %v3137
    %v3394 = vadd.f32 %v3330, %v3138
    %v3395 = vadd.f32 %v3331, %v3139
    %v3396 = vadd.f32 %v3332, %v3140
    %v3397 = vadd.f32 %v3333, %v3141
    %v3398 = vadd.f32 %v3334, %v3142
    %v3399 = vadd.f32 %v3335, %v3143
    %v3400 = vadd.f32 %v3336, %v3144
    %v3401 = vadd.f32 %v3337, %v3145
    %v3402 = vadd.f32 %v3338, %v3146
    %v3403 = vadd.f32 %v3339, %v3147
    %v3404 = vadd.f32 %v3340, %v3148
    %v3405 = vadd.f32 %v3341, %v3149
    %v3406 = vadd.f32 %v3342, %v3150
    %v3407 = vadd.f32 %v3343, %v3151
    %v3408 = vadd.f32 %v3344, %v3152
    %v3409 = vadd.f32 %v3345, %v3153
    %v3410 = vadd.f32 %v3346, %v3154
    %v3411 = vadd.f32 %v3347, %v3155
    %v3412 = vadd.f32 %v3348, %v3156
    %v3413 = vadd.f32 %v3349, %v3157
    %v3414 = vadd.f32 %v3350, %v3158
    %v3415 = vadd.f32 %v3351, %v3159
    %v3416 = vadd.f32 %v3352, %v3160
    %v3417 = vadd.f32 %v3353, %v3161
    %v3418 = vadd.f32 %v3354, %v3162
    %v3419 = vadd.f32 %v3355, %v3163
    %v3420 = vadd.f32 %v3356, %v3164
    %v3421 = vadd.f32 %v3357, %v3165
    %v3422 = vadd.f32 %v3358, %v3166
    %v3423 = vadd.f32 %v3359, %v3167
    %v3424 = vadd.f32 %v3360, %v3168
    %v3425 = vadd.f32 %v3361, %v3169
    %v3426 = vadd.f32 %v3362, %v3170
    %v3427 = vadd.f32 %v3363, %v3171
    %v3428 = vadd.f32 %v3364, %v3172
    %v3429 = vadd.f32 %v3365, %v3173
    %v3430 = vadd.f32 %v3366, %v3174
    %v3431 = vadd.f32 %v3367, %v3175
    %v3432 = vadd.f32 %v3368, %v3176
    %v3433 = vadd.f32 %v3369, %v3177
    %v3434 = vadd.f32 %v3370, %v3178
    %v3435 = vadd.f32 %v3371, %v3179
    %v3436 = vadd.f32 %v3372, %v3180
    %v3437 = vadd.f32 %v3373, %v3181
    %v3438 = vadd.f32 %v3374, %v3182
    %v3439 = vadd.f32 %v3375, %v3183
    %v3440 = vmul.f32 %v3376, 1.442695
    %v3441 = vpow.pop %v3440
    %v3442 = vmul.f32 %v3377, 1.442695
    %v3443 = vpow.pop %v3442
    %v3444 = vmul.f32 %v3378, 1.442695
    %v3445 = vpow.pop %v3444
    %v3446 = vmul.f32 %v3379, 1.442695
    %v3447 = vpow.pop %v3446
    %v3448 = vmul.f32 %v3380, 1.442695
    %v3449 = vpow.pop %v3448
    %v3450 = vmul.f32 %v3381, 1.442695
    %v3451 = vpow.pop %v3450
    %v3452 = vmul.f32 %v3382, 1.442695
    %v3453 = vpow.pop %v3452
    %v3454 = vmul.f32 %v3383, 1.442695
    %v3455 = vpow.pop %v3454
    %v3456 = vmul.f32 %v3384, 1.442695
    %v3457 = vpow.pop %v3456
    %v3458 = vmul.f32 %v3385, 1.442695
    %v3459 = vpow.pop %v3458
    %v3460 = vmul.f32 %v3386, 1.442695
    %v3461 = vpow.pop %v3460
    %v3462 = vmul.f32 %v3387, 1.442695
    %v3463 = vpow.pop %v3462
    %v3464 = vmul.f32 %v3388, 1.442695
    %v3465 = vpow.pop %v3464
    %v3466 = vmul.f32 %v3389, 1.442695
    %v3467 = vpow.pop %v3466
    %v3468 = vmul.f32 %v3390, 1.442695
    %v3469 = vpow.pop %v3468
    %v3470 = vmul.f32 %v3391, 1.442695
    %v3471 = vpow.pop %v3470
    %v3472 = vmul.f32 %v3392, 1.442695
    %v3473 = vpow.pop %v3472
    %v3474 = vmul.f32 %v3393, 1.442695
    %v3475 = vpow.pop %v3474
    %v3476 = vmul.f32 %v3394, 1.442695
    %v3477 = vpow.pop %v3476
    %v3478 = vmul.f32 %v3395, 1.442695
    %v3479 = vpow.pop %v3478
    %v3480 = vmul.f32 %v3396, 1.442695
    %v3481 = vpow.pop %v3480
    %v3482 = vmul.f32 %v3397, 1.442695
    %v3483 = vpow.pop %v3482
    %v3484 = vmul.f32 %v3398, 1.442695
    %v3485 = vpow.pop %v3484
    %v3486 = vmul.f32 %v3399, 1.442695
    %v3487 = vpow.pop %v3486
    %v3488 = vmul.f32 %v3400, 1.442695
    %v3489 = vpow.pop %v3488
    %v3490 = vmul.f32 %v3401, 1.442695
    %v3491 = vpow.pop %v3490
    %v3492 = vmul.f32 %v3402, 1.442695
    %v3493 = vpow.pop %v3492
    %v3494 = vmul.f32 %v3403, 1.442695
    %v3495 = vpow.pop %v3494
    %v3496 = vmul.f32 %v3404, 1.442695
    %v3497 = vpow.pop %v3496
    %v3498 = vmul.f32 %v3405, 1.442695
    %v3499 = vpow.pop %v3498
    %v3500 = vmul.f32 %v3406, 1.442695
    %v3501 = vpow.pop %v3500
    %v3502 = vmul.f32 %v3407, 1.442695
    %v3503 = vpow.pop %v3502
    %v3504 = vmul.f32 %v3408, 1.442695
    %v3505 = vpow.pop %v3504
    %v3506 = vmul.f32 %v3409, 1.442695
    %v3507 = vpow.pop %v3506
    %v3508 = vmul.f32 %v3410, 1.442695
    %v3509 = vpow.pop %v3508
    %v3510 = vmul.f32 %v3411, 1.442695
    %v3511 = vpow.pop %v3510
    %v3512 = vmul.f32 %v3412, 1.442695
    %v3513 = vpow.pop %v3512
    %v3514 = vmul.f32 %v3413, 1.442695
    %v3515 = vpow.pop %v3514
    %v3516 = vmul.f32 %v3414, 1.442695
    %v3517 = vpow.pop %v3516
    %v3518 = vmul.f32 %v3415, 1.442695
    %v3519 = vpow.pop %v3518
    %v3520 = vmul.f32 %v3416, 1.442695
    %v3521 = vpow.pop %v3520
    %v3522 = vmul.f32 %v3417, 1.442695
    %v3523 = vpow.pop %v3522
    %v3524 = vmul.f32 %v3418, 1.442695
    %v3525 = vpow.pop %v3524
    %v3526 = vmul.f32 %v3419, 1.442695
    %v3527 = vpow.pop %v3526
    %v3528 = vmul.f32 %v3420, 1.442695
    %v3529 = vpow.pop %v3528
    %v3530 = vmul.f32 %v3421, 1.442695
    %v3531 = vpow.pop %v3530
    %v3532 = vmul.f32 %v3422, 1.442695
    %v3533 = vpow.pop %v3532
    %v3534 = vmul.f32 %v3423, 1.442695
    %v3535 = vpow.pop %v3534
    %v3536 = vmul.f32 %v3424, 1.442695
    %v3537 = vpow.pop %v3536
    %v3538 = vmul.f32 %v3425, 1.442695
    %v3539 = vpow.pop %v3538
    %v3540 = vmul.f32 %v3426, 1.442695
    %v3541 = vpow.pop %v3540
    %v3542 = vmul.f32 %v3427, 1.442695
    %v3543 = vpow.pop %v3542
    %v3544 = vmul.f32 %v3428, 1.442695
    %v3545 = vpow.pop %v3544
    %v3546 = vmul.f32 %v3429, 1.442695
    %v3547 = vpow.pop %v3546
    %v3548 = vmul.f32 %v3430, 1.442695
    %v3549 = vpow.pop %v3548
    %v3550 = vmul.f32 %v3431, 1.442695
    %v3551 = vpow.pop %v3550
    %v3552 = vmul.f32 %v3432, 1.442695
    %v3553 = vpow.pop %v3552
    %v3554 = vmul.f32 %v3433, 1.442695
    %v3555 = vpow.pop %v3554
    %v3556 = vmul.f32 %v3434, 1.442695
    %v3557 = vpow.pop %v3556
    %v3558 = vmul.f32 %v3435, 1.442695
    %v3559 = vpow.pop %v3558
    %v3560 = vmul.f32 %v3436, 1.442695
    %v3561 = vpow.pop %v3560
    %v3562 = vmul.f32 %v3437, 1.442695
    %v3563 = vpow.pop %v3562
    %v3564 = vmul.f32 %v3438, 1.442695
    %v3565 = vpow.pop %v3564
    %v3566 = vmul.f32 %v3439, 1.442695
    %v3567 = vpow.pop %v3566
    %v3568 = vmul.f32 %v1150, %v3441
    %v3569 = vmul.f32 %v1165, %v3443
    %v3570 = vmul.f32 %v1180, %v3445
    %v3571 = vmul.f32 %v1195, %v3447
    %v3572 = vmul.f32 %v1210, %v3449
    %v3573 = vmul.f32 %v1225, %v3451
    %v3574 = vmul.f32 %v1240, %v3453
    %v3575 = vmul.f32 %v1255, %v3455
    %v3576 = vmul.f32 %v1270, %v3457
    %v3577 = vmul.f32 %v1285, %v3459
    %v3578 = vmul.f32 %v1300, %v3461
    %v3579 = vmul.f32 %v1315, %v3463
    %v3580 = vmul.f32 %v1330, %v3465
    %v3581 = vmul.f32 %v1345, %v3467
    %v3582 = vmul.f32 %v1360, %v3469
    %v3583 = vmul.f32 %v1375, %v3471
    %v3584 = vmul.f32 %v1390, %v3473
    %v3585 = vmul.f32 %v1405, %v3475
    %v3586 = vmul.f32 %v1420, %v3477
    %v3587 = vmul.f32 %v1435, %v3479
    %v3588 = vmul.f32 %v1450, %v3481
    %v3589 = vmul.f32 %v1465, %v3483
    %v3590 = vmul.f32 %v1480, %v3485
    %v3591 = vmul.f32 %v1495, %v3487
    %v3592 = vmul.f32 %v1510, %v3489
    %v3593 = vmul.f32 %v1525, %v3491
    %v3594 = vmul.f32 %v1540, %v3493
    %v3595 = vmul.f32 %v1555, %v3495
    %v3596 = vmul.f32 %v1570, %v3497
    %v3597 = vmul.f32 %v1585, %v3499
    %v3598 = vmul.f32 %v1600, %v3501
    %v3599 = vmul.f32 %v1615, %v3503
    %v3600 = vmul.f32 %v1630, %v3505
    %v3601 = vmul.f32 %v1645, %v3507
    %v3602 = vmul.f32 %v1660, %v3509
    %v3603 = vmul.f32 %v1675, %v3511
    %v3604 = vmul.f32 %v1690, %v3513
    %v3605 = vmul.f32 %v1705, %v3515
    %v3606 = vmul.f32 %v1720, %v3517
    %v3607 = vmul.f32 %v1735, %v3519
    %v3608 = vmul.f32 %v1750, %v3521
    %v3609 = vmul.f32 %v1765, %v3523
    %v3610 = vmul.f32 %v1780, %v3525
    %v3611 = vmul.f32 %v1795, %v3527
    %v3612 = vmul.f32 %v1810, %v3529
    %v3613 = vmul.f32 %v1825, %v3531
    %v3614 = vmul.f32 %v1840, %v3533
    %v3615 = vmul.f32 %v1855, %v3535
    %v3616 = vmul.f32 %v1870, %v3537
    %v3617 = vmul.f32 %v1885, %v3539
    %v3618 = vmul.f32 %v1900, %v3541
    %v3619 = vmul.f32 %v1915, %v3543
    %v3620 = vmul.f32 %v1930, %v3545
    %v3621 = vmul.f32 %v1945, %v3547
    %v3622 = vmul.f32 %v1960, %v3549
    %v3623 = vmul.f32 %v1975, %v3551
    %v3624 = vmul.f32 %v1990, %v3553
    %v3625 = vmul.f32 %v2005, %v3555
    %v3626 = vmul.f32 %v2020, %v3557
    %v3627 = vmul.f32 %v2035, %v3559
    %v3628 = vmul.f32 %v2050, %v3561
    %v3629 = vmul.f32 %v2065, %v3563
    %v3630 = vmul.f32 %v2080, %v3565
    %v3631 = vmul.f32 %v2095, %v3567
    %vm3632 = vcmp.ge.f32.partialorder %v880, 0.0
    %vm3633 = vcmp.ge.f32.partialorder %v881, 0.0
    %vm3634 = vcmp.ge.f32.partialorder %v882, 0.0
    %vm3635 = vcmp.ge.f32.partialorder %v883, 0.0
    %vm3636 = vcmp.ge.f32.partialorder %v884, 0.0
    %vm3637 = vcmp.ge.f32.partialorder %v885, 0.0
    %vm3638 = vcmp.ge.f32.partialorder %v886, 0.0
    %vm3639 = vcmp.ge.f32.partialorder %v887, 0.0
    %vm3640 = vcmp.ge.f32.partialorder %v888, 0.0
    %vm3641 = vcmp.ge.f32.partialorder %v889, 0.0
    %vm3642 = vcmp.ge.f32.partialorder %v890, 0.0
    %vm3643 = vcmp.ge.f32.partialorder %v891, 0.0
    %vm3644 = vcmp.ge.f32.partialorder %v892, 0.0
    %vm3645 = vcmp.ge.f32.partialorder %v893, 0.0
    %vm3646 = vcmp.ge.f32.partialorder %v894, 0.0
    %vm3647 = vcmp.ge.f32.partialorder %v895, 0.0
    %vm3648 = vcmp.ge.f32.partialorder %v896, 0.0
    %vm3649 = vcmp.ge.f32.partialorder %v897, 0.0
    %vm3650 = vcmp.ge.f32.partialorder %v898, 0.0
    %vm3651 = vcmp.ge.f32.partialorder %v899, 0.0
    %vm3652 = vcmp.ge.f32.partialorder %v900, 0.0
    %vm3653 = vcmp.ge.f32.partialorder %v901, 0.0
    %vm3654 = vcmp.ge.f32.partialorder %v902, 0.0
    %vm3655 = vcmp.ge.f32.partialorder %v903, 0.0
    %vm3656 = vcmp.ge.f32.partialorder %v904, 0.0
    %vm3657 = vcmp.ge.f32.partialorder %v905, 0.0
    %vm3658 = vcmp.ge.f32.partialorder %v906, 0.0
    %vm3659 = vcmp.ge.f32.partialorder %v907, 0.0
    %vm3660 = vcmp.ge.f32.partialorder %v908, 0.0
    %vm3661 = vcmp.ge.f32.partialorder %v909, 0.0
    %vm3662 = vcmp.ge.f32.partialorder %v910, 0.0
    %vm3663 = vcmp.ge.f32.partialorder %v911, 0.0
    %vm3664 = vcmp.ge.f32.partialorder %v912, 0.0
    %vm3665 = vcmp.ge.f32.partialorder %v913, 0.0
    %vm3666 = vcmp.ge.f32.partialorder %v914, 0.0
    %vm3667 = vcmp.ge.f32.partialorder %v915, 0.0
    %vm3668 = vcmp.ge.f32.partialorder %v916, 0.0
    %vm3669 = vcmp.ge.f32.partialorder %v917, 0.0
    %vm3670 = vcmp.ge.f32.partialorder %v918, 0.0
    %vm3671 = vcmp.ge.f32.partialorder %v919, 0.0
    %vm3672 = vcmp.ge.f32.partialorder %v920, 0.0
    %vm3673 = vcmp.ge.f32.partialorder %v921, 0.0
    %vm3674 = vcmp.ge.f32.partialorder %v922, 0.0
    %vm3675 = vcmp.ge.f32.partialorder %v923, 0.0
    %vm3676 = vcmp.ge.f32.partialorder %v924, 0.0
    %vm3677 = vcmp.ge.f32.partialorder %v925, 0.0
    %vm3678 = vcmp.ge.f32.partialorder %v926, 0.0
    %vm3679 = vcmp.ge.f32.partialorder %v927, 0.0
    %vm3680 = vcmp.ge.f32.partialorder %v928, 0.0
    %vm3681 = vcmp.ge.f32.partialorder %v929, 0.0
    %vm3682 = vcmp.ge.f32.partialorder %v930, 0.0
    %vm3683 = vcmp.ge.f32.partialorder %v931, 0.0
    %vm3684 = vcmp.ge.f32.partialorder %v932, 0.0
    %vm3685 = vcmp.ge.f32.partialorder %v933, 0.0
    %vm3686 = vcmp.ge.f32.partialorder %v934, 0.0
    %vm3687 = vcmp.ge.f32.partialorder %v935, 0.0
    %vm3688 = vcmp.ge.f32.partialorder %v936, 0.0
    %vm3689 = vcmp.ge.f32.partialorder %v937, 0.0
    %vm3690 = vcmp.ge.f32.partialorder %v938, 0.0
    %vm3691 = vcmp.ge.f32.partialorder %v939, 0.0
    %vm3692 = vcmp.ge.f32.partialorder %v940, 0.0
    %vm3693 = vcmp.ge.f32.partialorder %v941, 0.0
    %vm3694 = vcmp.ge.f32.partialorder %v942, 0.0
    %vm3695 = vcmp.ge.f32.partialorder %v943, 0.0
    %v3696 = vsub.f32 1.0, %v3568
    %v3697 = vsub.f32 1.0, %v3569
    %v3698 = vsub.f32 1.0, %v3570
    %v3699 = vsub.f32 1.0, %v3571
    %v3700 = vsub.f32 1.0, %v3572
    %v3701 = vsub.f32 1.0, %v3573
    %v3702 = vsub.f32 1.0, %v3574
    %v3703 = vsub.f32 1.0, %v3575
    %v3704 = vsub.f32 1.0, %v3576
    %v3705 = vsub.f32 1.0, %v3577
    %v3706 = vsub.f32 1.0, %v3578
    %v3707 = vsub.f32 1.0, %v3579
    %v3708 = vsub.f32 1.0, %v3580
    %v3709 = vsub.f32 1.0, %v3581
    %v3710 = vsub.f32 1.0, %v3582
    %v3711 = vsub.f32 1.0, %v3583
    %v3712 = vsub.f32 1.0, %v3584
    %v3713 = vsub.f32 1.0, %v3585
    %v3714 = vsub.f32 1.0, %v3586
    %v3715 = vsub.f32 1.0, %v3587
    %v3716 = vsub.f32 1.0, %v3588
    %v3717 = vsub.f32 1.0, %v3589
    %v3718 = vsub.f32 1.0, %v3590
    %v3719 = vsub.f32 1.0, %v3591
    %v3720 = vsub.f32 1.0, %v3592
    %v3721 = vsub.f32 1.0, %v3593
    %v3722 = vsub.f32 1.0, %v3594
    %v3723 = vsub.f32 1.0, %v3595
    %v3724 = vsub.f32 1.0, %v3596
    %v3725 = vsub.f32 1.0, %v3597
    %v3726 = vsub.f32 1.0, %v3598
    %v3727 = vsub.f32 1.0, %v3599
    %v3728 = vsub.f32 1.0, %v3600
    %v3729 = vsub.f32 1.0, %v3601
    %v3730 = vsub.f32 1.0, %v3602
    %v3731 = vsub.f32 1.0, %v3603
    %v3732 = vsub.f32 1.0, %v3604
    %v3733 = vsub.f32 1.0, %v3605
    %v3734 = vsub.f32 1.0, %v3606
    %v3735 = vsub.f32 1.0, %v3607
    %v3736 = vsub.f32 1.0, %v3608
    %v3737 = vsub.f32 1.0, %v3609
    %v3738 = vsub.f32 1.0, %v3610
    %v3739 = vsub.f32 1.0, %v3611
    %v3740 = vsub.f32 1.0, %v3612
    %v3741 = vsub.f32 1.0, %v3613
    %v3742 = vsub.f32 1.0, %v3614
    %v3743 = vsub.f32 1.0, %v3615
    %v3744 = vsub.f32 1.0, %v3616
    %v3745 = vsub.f32 1.0, %v3617
    %v3746 = vsub.f32 1.0, %v3618
    %v3747 = vsub.f32 1.0, %v3619
    %v3748 = vsub.f32 1.0, %v3620
    %v3749 = vsub.f32 1.0, %v3621
    %v3750 = vsub.f32 1.0, %v3622
    %v3751 = vsub.f32 1.0, %v3623
    %v3752 = vsub.f32 1.0, %v3624
    %v3753 = vsub.f32 1.0, %v3625
    %v3754 = vsub.f32 1.0, %v3626
    %v3755 = vsub.f32 1.0, %v3627
    %v3756 = vsub.f32 1.0, %v3628
    %v3757 = vsub.f32 1.0, %v3629
    %v3758 = vsub.f32 1.0, %v3630
    %v3759 = vsub.f32 1.0, %v3631
    %v3760 = vsub.f32 %v3568, 1.0
    %v3761 = vsub.f32 %v3569, 1.0
    %v3762 = vsub.f32 %v3570, 1.0
    %v3763 = vsub.f32 %v3571, 1.0
    %v3764 = vsub.f32 %v3572, 1.0
    %v3765 = vsub.f32 %v3573, 1.0
    %v3766 = vsub.f32 %v3574, 1.0
    %v3767 = vsub.f32 %v3575, 1.0
    %v3768 = vsub.f32 %v3576, 1.0
    %v3769 = vsub.f32 %v3577, 1.0
    %v3770 = vsub.f32 %v3578, 1.0
    %v3771 = vsub.f32 %v3579, 1.0
    %v3772 = vsub.f32 %v3580, 1.0
    %v3773 = vsub.f32 %v3581, 1.0
    %v3774 = vsub.f32 %v3582, 1.0
    %v3775 = vsub.f32 %v3583, 1.0
    %v3776 = vsub.f32 %v3584, 1.0
    %v3777 = vsub.f32 %v3585, 1.0
    %v3778 = vsub.f32 %v3586, 1.0
    %v3779 = vsub.f32 %v3587, 1.0
    %v3780 = vsub.f32 %v3588, 1.0
    %v3781 = vsub.f32 %v3589, 1.0
    %v3782 = vsub.f32 %v3590, 1.0
    %v3783 = vsub.f32 %v3591, 1.0
    %v3784 = vsub.f32 %v3592, 1.0
    %v3785 = vsub.f32 %v3593, 1.0
    %v3786 = vsub.f32 %v3594, 1.0
    %v3787 = vsub.f32 %v3595, 1.0
    %v3788 = vsub.f32 %v3596, 1.0
    %v3789 = vsub.f32 %v3597, 1.0
    %v3790 = vsub.f32 %v3598, 1.0
    %v3791 = vsub.f32 %v3599, 1.0
    %v3792 = vsub.f32 %v3600, 1.0
    %v3793 = vsub.f32 %v3601, 1.0
    %v3794 = vsub.f32 %v3602, 1.0
    %v3795 = vsub.f32 %v3603, 1.0
    %v3796 = vsub.f32 %v3604, 1.0
    %v3797 = vsub.f32 %v3605, 1.0
    %v3798 = vsub.f32 %v3606, 1.0
    %v3799 = vsub.f32 %v3607, 1.0
    %v3800 = vsub.f32 %v3608, 1.0
    %v3801 = vsub.f32 %v3609, 1.0
    %v3802 = vsub.f32 %v3610, 1.0
    %v3803 = vsub.f32 %v3611, 1.0
    %v3804 = vsub.f32 %v3612, 1.0
    %v3805 = vsub.f32 %v3613, 1.0
    %v3806 = vsub.f32 %v3614, 1.0
    %v3807 = vsub.f32 %v3615, 1.0
    %v3808 = vsub.f32 %v3616, 1.0
    %v3809 = vsub.f32 %v3617, 1.0
    %v3810 = vsub.f32 %v3618, 1.0
    %v3811 = vsub.f32 %v3619, 1.0
    %v3812 = vsub.f32 %v3620, 1.0
    %v3813 = vsub.f32 %v3621, 1.0
    %v3814 = vsub.f32 %v3622, 1.0
    %v3815 = vsub.f32 %v3623, 1.0
    %v3816 = vsub.f32 %v3624, 1.0
    %v3817 = vsub.f32 %v3625, 1.0
    %v3818 = vsub.f32 %v3626, 1.0
    %v3819 = vsub.f32 %v3627, 1.0
    %v3820 = vsub.f32 %v3628, 1.0
    %v3821 = vsub.f32 %v3629, 1.0
    %v3822 = vsub.f32 %v3630, 1.0
    %v3823 = vsub.f32 %v3631, 1.0
    %v3824 = vsel %vm3632, %v3696, %v3760
    %v3825 = vsel %vm3633, %v3697, %v3761
    %v3826 = vsel %vm3634, %v3698, %v3762
    %v3827 = vsel %vm3635, %v3699, %v3763
    %v3828 = vsel %vm3636, %v3700, %v3764
    %v3829 = vsel %vm3637, %v3701, %v3765
    %v3830 = vsel %vm3638, %v3702, %v3766
    %v3831 = vsel %vm3639, %v3703, %v3767
    %v3832 = vsel %vm3640, %v3704, %v3768
    %v3833 = vsel %vm3641, %v3705, %v3769
    %v3834 = vsel %vm3642, %v3706, %v3770
    %v3835 = vsel %vm3643, %v3707, %v3771
    %v3836 = vsel %vm3644, %v3708, %v3772
    %v3837 = vsel %vm3645, %v3709, %v3773
    %v3838 = vsel %vm3646, %v3710, %v3774
    %v3839 = vsel %vm3647, %v3711, %v3775
    %v3840 = vsel %vm3648, %v3712, %v3776
    %v3841 = vsel %vm3649, %v3713, %v3777
    %v3842 = vsel %vm3650, %v3714, %v3778
    %v3843 = vsel %vm3651, %v3715, %v3779
    %v3844 = vsel %vm3652, %v3716, %v3780
    %v3845 = vsel %vm3653, %v3717, %v3781
    %v3846 = vsel %vm3654, %v3718, %v3782
    %v3847 = vsel %vm3655, %v3719, %v3783
    %v3848 = vsel %vm3656, %v3720, %v3784
    %v3849 = vsel %vm3657, %v3721, %v3785
    %v3850 = vsel %vm3658, %v3722, %v3786
    %v3851 = vsel %vm3659, %v3723, %v3787
    %v3852 = vsel %vm3660, %v3724, %v3788
    %v3853 = vsel %vm3661, %v3725, %v3789
    %v3854 = vsel %vm3662, %v3726, %v3790
    %v3855 = vsel %vm3663, %v3727, %v3791
    %v3856 = vsel %vm3664, %v3728, %v3792
    %v3857 = vsel %vm3665, %v3729, %v3793
    %v3858 = vsel %vm3666, %v3730, %v3794
    %v3859 = vsel %vm3667, %v3731, %v3795
    %v3860 = vsel %vm3668, %v3732, %v3796
    %v3861 = vsel %vm3669, %v3733, %v3797
    %v3862 = vsel %vm3670, %v3734, %v3798
    %v3863 = vsel %vm3671, %v3735, %v3799
    %v3864 = vsel %vm3672, %v3736, %v3800
    %v3865 = vsel %vm3673, %v3737, %v3801
    %v3866 = vsel %vm3674, %v3738, %v3802
    %v3867 = vsel %vm3675, %v3739, %v3803
    %v3868 = vsel %vm3676, %v3740, %v3804
    %v3869 = vsel %vm3677, %v3741, %v3805
    %v3870 = vsel %vm3678, %v3742, %v3806
    %v3871 = vsel %vm3679, %v3743, %v3807
    %v3872 = vsel %vm3680, %v3744, %v3808
    %v3873 = vsel %vm3681, %v3745, %v3809
    %v3874 = vsel %vm3682, %v3746, %v3810
    %v3875 = vsel %vm3683, %v3747, %v3811
    %v3876 = vsel %vm3684, %v3748, %v3812
    %v3877 = vsel %vm3685, %v3749, %v3813
    %v3878 = vsel %vm3686, %v3750, %v3814
    %v3879 = vsel %vm3687, %v3751, %v3815
    %v3880 = vsel %vm3688, %v3752, %v3816
    %v3881 = vsel %vm3689, %v3753, %v3817
    %v3882 = vsel %vm3690, %v3754, %v3818
    %v3883 = vsel %vm3691, %v3755, %v3819
    %v3884 = vsel %vm3692, %v3756, %v3820
    %v3885 = vsel %vm3693, %v3757, %v3821
    %v3886 = vsel %vm3694, %v3758, %v3822
    %v3887 = vsel %vm3695, %v3759, %v3823
    %v3888 = vadd.f32 %v3824, 1.0
    %v3889 = vadd.f32 %v3825, 1.0
    %v3890 = vadd.f32 %v3826, 1.0
    %v3891 = vadd.f32 %v3827, 1.0
    %v3892 = vadd.f32 %v3828, 1.0
    %v3893 = vadd.f32 %v3829, 1.0
    %v3894 = vadd.f32 %v3830, 1.0
    %v3895 = vadd.f32 %v3831, 1.0
    %v3896 = vadd.f32 %v3832, 1.0
    %v3897 = vadd.f32 %v3833, 1.0
    %v3898 = vadd.f32 %v3834, 1.0
    %v3899 = vadd.f32 %v3835, 1.0
    %v3900 = vadd.f32 %v3836, 1.0
    %v3901 = vadd.f32 %v3837, 1.0
    %v3902 = vadd.f32 %v3838, 1.0
    %v3903 = vadd.f32 %v3839, 1.0
    %v3904 = vadd.f32 %v3840, 1.0
    %v3905 = vadd.f32 %v3841, 1.0
    %v3906 = vadd.f32 %v3842, 1.0
    %v3907 = vadd.f32 %v3843, 1.0
    %v3908 = vadd.f32 %v3844, 1.0
    %v3909 = vadd.f32 %v3845, 1.0
    %v3910 = vadd.f32 %v3846, 1.0
    %v3911 = vadd.f32 %v3847, 1.0
    %v3912 = vadd.f32 %v3848, 1.0
    %v3913 = vadd.f32 %v3849, 1.0
    %v3914 = vadd.f32 %v3850, 1.0
    %v3915 = vadd.f32 %v3851, 1.0
    %v3916 = vadd.f32 %v3852, 1.0
    %v3917 = vadd.f32 %v3853, 1.0
    %v3918 = vadd.f32 %v3854, 1.0
    %v3919 = vadd.f32 %v3855, 1.0
    %v3920 = vadd.f32 %v3856, 1.0
    %v3921 = vadd.f32 %v3857, 1.0
    %v3922 = vadd.f32 %v3858, 1.0
    %v3923 = vadd.f32 %v3859, 1.0
    %v3924 = vadd.f32 %v3860, 1.0
    %v3925 = vadd.f32 %v3861, 1.0
    %v3926 = vadd.f32 %v3862, 1.0
    %v3927 = vadd.f32 %v3863, 1.0
    %v3928 = vadd.f32 %v3864, 1.0
    %v3929 = vadd.f32 %v3865, 1.0
    %v3930 = vadd.f32 %v3866, 1.0
    %v3931 = vadd.f32 %v3867, 1.0
    %v3932 = vadd.f32 %v3868, 1.0
    %v3933 = vadd.f32 %v3869, 1.0
    %v3934 = vadd.f32 %v3870, 1.0
    %v3935 = vadd.f32 %v3871, 1.0
    %v3936 = vadd.f32 %v3872, 1.0
    %v3937 = vadd.f32 %v3873, 1.0
    %v3938 = vadd.f32 %v3874, 1.0
    %v3939 = vadd.f32 %v3875, 1.0
    %v3940 = vadd.f32 %v3876, 1.0
    %v3941 = vadd.f32 %v3877, 1.0
    %v3942 = vadd.f32 %v3878, 1.0
    %v3943 = vadd.f32 %v3879, 1.0
    %v3944 = vadd.f32 %v3880, 1.0
    %v3945 = vadd.f32 %v3881, 1.0
    %v3946 = vadd.f32 %v3882, 1.0
    %v3947 = vadd.f32 %v3883, 1.0
    %v3948 = vadd.f32 %v3884, 1.0
    %v3949 = vadd.f32 %v3885, 1.0
    %v3950 = vadd.f32 %v3886, 1.0
    %v3951 = vadd.f32 %v3887, 1.0
    %v3952 = vmul.f32 %v816, %v3888
    %v3953 = vmul.f32 %v817, %v3889
    %v3954 = vmul.f32 %v818, %v3890
    %v3955 = vmul.f32 %v819, %v3891
    %v3956 = vmul.f32 %v820, %v3892
    %v3957 = vmul.f32 %v821, %v3893
    %v3958 = vmul.f32 %v822, %v3894
    %v3959 = vmul.f32 %v823, %v3895
    %v3960 = vmul.f32 %v824, %v3896
    %v3961 = vmul.f32 %v825, %v3897
    %v3962 = vmul.f32 %v826, %v3898
    %v3963 = vmul.f32 %v827, %v3899
    %v3964 = vmul.f32 %v828, %v3900
    %v3965 = vmul.f32 %v829, %v3901
    %v3966 = vmul.f32 %v830, %v3902
    %v3967 = vmul.f32 %v831, %v3903
    %v3968 = vmul.f32 %v832, %v3904
    %v3969 = vmul.f32 %v833, %v3905
    %v3970 = vmul.f32 %v834, %v3906
    %v3971 = vmul.f32 %v835, %v3907
    %v3972 = vmul.f32 %v836, %v3908
    %v3973 = vmul.f32 %v837, %v3909
    %v3974 = vmul.f32 %v838, %v3910
    %v3975 = vmul.f32 %v839, %v3911
    %v3976 = vmul.f32 %v840, %v3912
    %v3977 = vmul.f32 %v841, %v3913
    %v3978 = vmul.f32 %v842, %v3914
    %v3979 = vmul.f32 %v843, %v3915
    %v3980 = vmul.f32 %v844, %v3916
    %v3981 = vmul.f32 %v845, %v3917
    %v3982 = vmul.f32 %v846, %v3918
    %v3983 = vmul.f32 %v847, %v3919
    %v3984 = vmul.f32 %v848, %v3920
    %v3985 = vmul.f32 %v849, %v3921
    %v3986 = vmul.f32 %v850, %v3922
    %v3987 = vmul.f32 %v851, %v3923
    %v3988 = vmul.f32 %v852, %v3924
    %v3989 = vmul.f32 %v853, %v3925
    %v3990 = vmul.f32 %v854, %v3926
    %v3991 = vmul.f32 %v855, %v3927
    %v3992 = vmul.f32 %v856, %v3928
    %v3993 = vmul.f32 %v857, %v3929
    %v3994 = vmul.f32 %v858, %v3930
    %v3995 = vmul.f32 %v859, %v3931
    %v3996 = vmul.f32 %v860, %v3932
    %v3997 = vmul.f32 %v861, %v3933
    %v3998 = vmul.f32 %v862, %v3934
    %v3999 = vmul.f32 %v863, %v3935
    %v4000 = vmul.f32 %v864, %v3936
    %v4001 = vmul.f32 %v865, %v3937
    %v4002 = vmul.f32 %v866, %v3938
    %v4003 = vmul.f32 %v867, %v3939
    %v4004 = vmul.f32 %v868, %v3940
    %v4005 = vmul.f32 %v869, %v3941
    %v4006 = vmul.f32 %v870, %v3942
    %v4007 = vmul.f32 %v871, %v3943
    %v4008 = vmul.f32 %v872, %v3944
    %v4009 = vmul.f32 %v873, %v3945
    %v4010 = vmul.f32 %v874, %v3946
    %v4011 = vmul.f32 %v875, %v3947
    %v4012 = vmul.f32 %v876, %v3948
    %v4013 = vmul.f32 %v877, %v3949
    %v4014 = vmul.f32 %v878, %v3950
    %v4015 = vmul.f32 %v879, %v3951
    %v4016 = vpack.c.bf16 %v3956, %v3952
    %v4017 = vpack.c.bf16 %v3957, %v3953
    %v4018 = vpack.c.bf16 %v3958, %v3954
    %v4019 = vpack.c.bf16 %v3959, %v3955
    %v4020 = vpack.c.bf16 %v3964, %v3960
    %v4021 = vpack.c.bf16 %v3965, %v3961
    %v4022 = vpack.c.bf16 %v3966, %v3962
    %v4023 = vpack.c.bf16 %v3967, %v3963
    %v4024 = vpack.c.bf16 %v3972, %v3968
    %v4025 = vpack.c.bf16 %v3973, %v3969
    %v4026 = vpack.c.bf16 %v3974, %v3970
    %v4027 = vpack.c.bf16 %v3975, %v3971
    %v4028 = vpack.c.bf16 %v3980, %v3976
    %v4029 = vpack.c.bf16 %v3981, %v3977
    %v4030 = vpack.c.bf16 %v3982, %v3978
    %v4031 = vpack.c.bf16 %v3983, %v3979
    %v4032 = vpack.c.bf16 %v3988, %v3984
    %v4033 = vpack.c.bf16 %v3989, %v3985
    %v4034 = vpack.c.bf16 %v3990, %v3986
    %v4035 = vpack.c.bf16 %v3991, %v3987
    %v4036 = vpack.c.bf16 %v3996, %v3992
    %v4037 = vpack.c.bf16 %v3997, %v3993
    %v4038 = vpack.c.bf16 %v3998, %v3994
    %v4039 = vpack.c.bf16 %v3999, %v3995
    %v4040 = vpack.c.bf16 %v4004, %v4000
    %v4041 = vpack.c.bf16 %v4005, %v4001
    %v4042 = vpack.c.bf16 %v4006, %v4002
    %v4043 = vpack.c.bf16 %v4007, %v4003
    %v4044 = vpack.c.bf16 %v4012, %v4008
    %v4045 = vpack.c.bf16 %v4013, %v4009
    %v4046 = vpack.c.bf16 %v4014, %v4010
    %v4047 = vpack.c.bf16 %v4015, %v4011
    %v4048 = vld [vmem:[%s5] sm:$0xf]
    %v4049 = vld [vmem:[%s5 + $0x4] sm:$0xf]
    %v4050 = vld [vmem:[%s5 + $0x8] sm:$0xf]
    %v4051 = vld [vmem:[%s5 + $0xc] sm:$0xf]
    %v4052 = vld [vmem:[%s5 + $0x10] sm:$0xf]
    %v4053 = vld [vmem:[%s5 + $0x14] sm:$0xf]
    %v4054 = vld [vmem:[%s5 + $0x18] sm:$0xf]
    %v4055 = vld [vmem:[%s5 + $0x1c] sm:$0xf]
    %v4056 = vld [vmem:[%s5 + $0x20] sm:$0xf]
    %v4057 = vld [vmem:[%s5 + $0x24] sm:$0xf]
    %v4058 = vld [vmem:[%s5 + $0x28] sm:$0xf]
    %v4059 = vld [vmem:[%s5 + $0x2c] sm:$0xf]
    %v4060 = vld [vmem:[%s5 + $0x30] sm:$0xf]
    %v4061 = vld [vmem:[%s5 + $0x34] sm:$0xf]
    %v4062 = vld [vmem:[%s5 + $0x38] sm:$0xf]
    %v4063 = vld [vmem:[%s5 + $0x3c] sm:$0xf]
    %v4064 = vld [vmem:[%s5 + $0x40] sm:$0xf]
    %v4065 = vld [vmem:[%s5 + $0x44] sm:$0xf]
    %v4066 = vld [vmem:[%s5 + $0x48] sm:$0xf]
    %v4067 = vld [vmem:[%s5 + $0x4c] sm:$0xf]
    %v4068 = vld [vmem:[%s5 + $0x50] sm:$0xf]
    %v4069 = vld [vmem:[%s5 + $0x54] sm:$0xf]
    %v4070 = vld [vmem:[%s5 + $0x58] sm:$0xf]
    %v4071 = vld [vmem:[%s5 + $0x5c] sm:$0xf]
    %v4072 = vld [vmem:[%s5 + $0x60] sm:$0xf]
    %v4073 = vld [vmem:[%s5 + $0x64] sm:$0xf]
    %v4074 = vld [vmem:[%s5 + $0x68] sm:$0xf]
    %v4075 = vld [vmem:[%s5 + $0x6c] sm:$0xf]
    %v4076 = vld [vmem:[%s5 + $0x70] sm:$0xf]
    %v4077 = vld [vmem:[%s5 + $0x74] sm:$0xf]
    %v4078 = vld [vmem:[%s5 + $0x78] sm:$0xf]
    %v4079 = vld [vmem:[%s5 + $0x7c] sm:$0xf]
    %v4080 = vld [vmem:[%s5 + $0x80] sm:$0xf]
    %v4081 = vld [vmem:[%s5 + $0x84] sm:$0xf]
    %v4082 = vld [vmem:[%s5 + $0x88] sm:$0xf]
    %v4083 = vld [vmem:[%s5 + $0x8c] sm:$0xf]
    %v4084 = vld [vmem:[%s5 + $0x90] sm:$0xf]
    %v4085 = vld [vmem:[%s5 + $0x94] sm:$0xf]
    %v4086 = vld [vmem:[%s5 + $0x98] sm:$0xf]
    %v4087 = vld [vmem:[%s5 + $0x9c] sm:$0xf]
    %v4088 = vld [vmem:[%s5 + $0xa0] sm:$0xf]
    %v4089 = vld [vmem:[%s5 + $0xa4] sm:$0xf]
    %v4090 = vld [vmem:[%s5 + $0xa8] sm:$0xf]
    %v4091 = vld [vmem:[%s5 + $0xac] sm:$0xf]
    %v4092 = vld [vmem:[%s5 + $0xb0] sm:$0xf]
    %v4093 = vld [vmem:[%s5 + $0xb4] sm:$0xf]
    %v4094 = vld [vmem:[%s5 + $0xb8] sm:$0xf]
    %v4095 = vld [vmem:[%s5 + $0xbc] sm:$0xf]
    %v4096 = vld [vmem:[%s5 + $0xc0] sm:$0xf]
    %v4097 = vld [vmem:[%s5 + $0xc4] sm:$0xf]
    %v4098 = vld [vmem:[%s5 + $0xc8] sm:$0xf]
    %v4099 = vld [vmem:[%s5 + $0xcc] sm:$0xf]
    %v4100 = vld [vmem:[%s5 + $0xd0] sm:$0xf]
    %v4101 = vld [vmem:[%s5 + $0xd4] sm:$0xf]
    %v4102 = vld [vmem:[%s5 + $0xd8] sm:$0xf]
    %v4103 = vld [vmem:[%s5 + $0xdc] sm:$0xf]
    %v4104 = vld [vmem:[%s5 + $0xe0] sm:$0xf]
    %v4105 = vld [vmem:[%s5 + $0xe4] sm:$0xf]
    %v4106 = vld [vmem:[%s5 + $0xe8] sm:$0xf]
    %v4107 = vld [vmem:[%s5 + $0xec] sm:$0xf]
    %v4108 = vld [vmem:[%s5 + $0xf0] sm:$0xf]
    %v4109 = vld [vmem:[%s5 + $0xf4] sm:$0xf]
    %v4110 = vld [vmem:[%s5 + $0xf8] sm:$0xf]
    %v4111 = vld [vmem:[%s5 + $0xfc] sm:$0xf]
    %v4112 = vld [vmem:[%s6] sm:$0x1]
    %v4114 = vperm.slane %v4112, 0
    %v4180 = vunpack.c.l.b16 %v4048
    %v4181 = vunpack.c.l.b16 %v4049
    %v4182 = vunpack.c.l.b16 %v4050
    %v4183 = vunpack.c.l.b16 %v4051
    %v4184 = vunpack.c.l.b16 %v4052
    %v4185 = vunpack.c.l.b16 %v4053
    %v4186 = vunpack.c.l.b16 %v4054
    %v4187 = vunpack.c.l.b16 %v4055
    %v4188 = vunpack.c.l.b16 %v4056
    %v4189 = vunpack.c.l.b16 %v4057
    %v4190 = vunpack.c.l.b16 %v4058
    %v4191 = vunpack.c.l.b16 %v4059
    %v4192 = vunpack.c.l.b16 %v4060
    %v4193 = vunpack.c.l.b16 %v4061
    %v4194 = vunpack.c.l.b16 %v4062
    %v4195 = vunpack.c.l.b16 %v4063
    %v4196 = vunpack.c.l.b16 %v4064
    %v4197 = vunpack.c.l.b16 %v4065
    %v4198 = vunpack.c.l.b16 %v4066
    %v4199 = vunpack.c.l.b16 %v4067
    %v4200 = vunpack.c.l.b16 %v4068
    %v4201 = vunpack.c.l.b16 %v4069
    %v4202 = vunpack.c.l.b16 %v4070
    %v4203 = vunpack.c.l.b16 %v4071
    %v4204 = vunpack.c.l.b16 %v4072
    %v4205 = vunpack.c.l.b16 %v4073
    %v4206 = vunpack.c.l.b16 %v4074
    %v4207 = vunpack.c.l.b16 %v4075
    %v4208 = vunpack.c.l.b16 %v4076
    %v4209 = vunpack.c.l.b16 %v4077
    %v4210 = vunpack.c.l.b16 %v4078
    %v4211 = vunpack.c.l.b16 %v4079
    %v4212 = vunpack.c.l.b16 %v4080
    %v4213 = vunpack.c.l.b16 %v4081
    %v4214 = vunpack.c.l.b16 %v4082
    %v4215 = vunpack.c.l.b16 %v4083
    %v4216 = vunpack.c.l.b16 %v4084
    %v4217 = vunpack.c.l.b16 %v4085
    %v4218 = vunpack.c.l.b16 %v4086
    %v4219 = vunpack.c.l.b16 %v4087
    %v4220 = vunpack.c.l.b16 %v4088
    %v4221 = vunpack.c.l.b16 %v4089
    %v4222 = vunpack.c.l.b16 %v4090
    %v4223 = vunpack.c.l.b16 %v4091
    %v4224 = vunpack.c.l.b16 %v4092
    %v4225 = vunpack.c.l.b16 %v4093
    %v4226 = vunpack.c.l.b16 %v4094
    %v4227 = vunpack.c.l.b16 %v4095
    %v4228 = vunpack.c.l.b16 %v4096
    %v4229 = vunpack.c.l.b16 %v4097
    %v4230 = vunpack.c.l.b16 %v4098
    %v4231 = vunpack.c.l.b16 %v4099
    %v4232 = vunpack.c.l.b16 %v4100
    %v4233 = vunpack.c.l.b16 %v4101
    %v4234 = vunpack.c.l.b16 %v4102
    %v4235 = vunpack.c.l.b16 %v4103
    %v4236 = vunpack.c.l.b16 %v4104
    %v4237 = vunpack.c.l.b16 %v4105
    %v4238 = vunpack.c.l.b16 %v4106
    %v4239 = vunpack.c.l.b16 %v4107
    %v4240 = vunpack.c.l.b16 %v4108
    %v4241 = vunpack.c.l.b16 %v4109
    %v4242 = vunpack.c.l.b16 %v4110
    %v4243 = vunpack.c.l.b16 %v4111
    %v4244 = vpack.c.b16 %v4181, %v4180
    %v4245 = vpack.c.b16 %v4183, %v4182
    %v4246 = vpack.c.b16 %v4185, %v4184
    %v4247 = vpack.c.b16 %v4187, %v4186
    %v4248 = vpack.c.b16 %v4189, %v4188
    %v4249 = vpack.c.b16 %v4191, %v4190
    %v4250 = vpack.c.b16 %v4193, %v4192
    %v4251 = vpack.c.b16 %v4195, %v4194
    %v4252 = vpack.c.b16 %v4197, %v4196
    %v4253 = vpack.c.b16 %v4199, %v4198
    %v4254 = vpack.c.b16 %v4201, %v4200
    %v4255 = vpack.c.b16 %v4203, %v4202
    %v4256 = vpack.c.b16 %v4205, %v4204
    %v4257 = vpack.c.b16 %v4207, %v4206
    %v4258 = vpack.c.b16 %v4209, %v4208
    %v4259 = vpack.c.b16 %v4211, %v4210
    %v4260 = vpack.c.b16 %v4213, %v4212
    %v4261 = vpack.c.b16 %v4215, %v4214
    %v4262 = vpack.c.b16 %v4217, %v4216
    %v4263 = vpack.c.b16 %v4219, %v4218
    %v4264 = vpack.c.b16 %v4221, %v4220
    %v4265 = vpack.c.b16 %v4223, %v4222
    %v4266 = vpack.c.b16 %v4225, %v4224
    %v4267 = vpack.c.b16 %v4227, %v4226
    %v4268 = vpack.c.b16 %v4229, %v4228
    %v4269 = vpack.c.b16 %v4231, %v4230
    %v4270 = vpack.c.b16 %v4233, %v4232
    %v4271 = vpack.c.b16 %v4235, %v4234
    %v4272 = vpack.c.b16 %v4237, %v4236
    %v4273 = vpack.c.b16 %v4239, %v4238
    %v4274 = vpack.c.b16 %v4241, %v4240
    %v4275 = vpack.c.b16 %v4243, %v4242
    %4308 = vmatpush.bf16.msra.mxu0 %v4251
    %4309 = vmatpush.bf16.msra.mxu0 %v4250
    %4310 = vmatpush.bf16.msra.mxu0 %v4249
    %4311 = vmatpush.bf16.msra.mxu0 %v4248
    %4312 = vmatpush.bf16.msra.mxu0 %v4247
    %4313 = vmatpush.bf16.msra.mxu0 %v4246
    %4314 = vmatpush.bf16.msra.mxu0 %v4245
    %4315 = vmatpush.bf16.msra.mxu0 %v4244
    %4316 = vmatmul.bf16.gmra.mxu0 %v4016
    %v4317 = vpop.f32.mrf.mxu0
    %v4318 = vadd.f32 %v4114, %v4317
    %v4319 = vpop.f32.mrf.mxu0
    %v4320 = vadd.f32 %v4114, %v4319
    %4321 = vmatmul.bf16.gmra.mxu0 %v4020
    %v4322 = vpop.f32.mrf.mxu0
    %v4323 = vadd.f32 %v4114, %v4322
    %v4324 = vpop.f32.mrf.mxu0
    %v4325 = vadd.f32 %v4114, %v4324
    %4326 = vmatmul.bf16.gmra.mxu0 %v4024
    %v4327 = vpop.f32.mrf.mxu0
    %v4328 = vadd.f32 %v4114, %v4327
    %v4329 = vpop.f32.mrf.mxu0
    %v4330 = vadd.f32 %v4114, %v4329
    %4331 = vmatmul.bf16.gmra.mxu0 %v4028
    %v4332 = vpop.f32.mrf.mxu0
    %v4333 = vadd.f32 %v4114, %v4332
    %v4334 = vpop.f32.mrf.mxu0
    %v4335 = vadd.f32 %v4114, %v4334
    %4336 = vmatmul.bf16.gmra.mxu0 %v4032
    %v4337 = vpop.f32.mrf.mxu0
    %v4338 = vadd.f32 %v4114, %v4337
    %v4339 = vpop.f32.mrf.mxu0
    %v4340 = vadd.f32 %v4114, %v4339
    %4341 = vmatmul.bf16.gmra.mxu0 %v4036
    %v4342 = vpop.f32.mrf.mxu0
    %v4343 = vadd.f32 %v4114, %v4342
    %v4344 = vpop.f32.mrf.mxu0
    %v4345 = vadd.f32 %v4114, %v4344
    %4346 = vmatmul.bf16.gmra.mxu0 %v4040
    %v4347 = vpop.f32.mrf.mxu0
    %v4348 = vadd.f32 %v4114, %v4347
    %v4349 = vpop.f32.mrf.mxu0
    %v4350 = vadd.f32 %v4114, %v4349
    %4351 = vmatmul.bf16.gmra.mxu0 %v4044
    %v4352 = vpop.f32.mrf.mxu0
    %v4353 = vadd.f32 %v4114, %v4352
    %v4354 = vpop.f32.mrf.mxu0
    %v4355 = vadd.f32 %v4114, %v4354
    %4356 = vdwg.mxu0
    %4357 = vmatpush.bf16.msra.mxu0 %v4259
    %4358 = vmatpush.bf16.msra.mxu0 %v4258
    %4359 = vmatpush.bf16.msra.mxu0 %v4257
    %4360 = vmatpush.bf16.msra.mxu0 %v4256
    %4361 = vmatpush.bf16.msra.mxu0 %v4255
    %4362 = vmatpush.bf16.msra.mxu0 %v4254
    %4363 = vmatpush.bf16.msra.mxu0 %v4253
    %4364 = vmatpush.bf16.msra.mxu0 %v4252
    %4365 = vmatmul.bf16.gmra.mxu0 %v4017
    %v4366 = vpop.f32.mrf.mxu0
    %v4367 = vadd.f32 %v4318, %v4366
    %v4368 = vpop.f32.mrf.mxu0
    %v4369 = vadd.f32 %v4320, %v4368
    %4370 = vmatmul.bf16.gmra.mxu0 %v4021
    %v4371 = vpop.f32.mrf.mxu0
    %v4372 = vadd.f32 %v4323, %v4371
    %v4373 = vpop.f32.mrf.mxu0
    %v4374 = vadd.f32 %v4325, %v4373
    %4375 = vmatmul.bf16.gmra.mxu0 %v4025
    %v4376 = vpop.f32.mrf.mxu0
    %v4377 = vadd.f32 %v4328, %v4376
    %v4378 = vpop.f32.mrf.mxu0
    %v4379 = vadd.f32 %v4330, %v4378
    %4380 = vmatmul.bf16.gmra.mxu0 %v4029
    %v4381 = vpop.f32.mrf.mxu0
    %v4382 = vadd.f32 %v4333, %v4381
    %v4383 = vpop.f32.mrf.mxu0
    %v4384 = vadd.f32 %v4335, %v4383
    %4385 = vmatmul.bf16.gmra.mxu0 %v4033
    %v4386 = vpop.f32.mrf.mxu0
    %v4387 = vadd.f32 %v4338, %v4386
    %v4388 = vpop.f32.mrf.mxu0
    %v4389 = vadd.f32 %v4340, %v4388
    %4390 = vmatmul.bf16.gmra.mxu0 %v4037
    %v4391 = vpop.f32.mrf.mxu0
    %v4392 = vadd.f32 %v4343, %v4391
    %v4393 = vpop.f32.mrf.mxu0
    %v4394 = vadd.f32 %v4345, %v4393
    %4395 = vmatmul.bf16.gmra.mxu0 %v4041
    %v4396 = vpop.f32.mrf.mxu0
    %v4397 = vadd.f32 %v4348, %v4396
    %v4398 = vpop.f32.mrf.mxu0
    %v4399 = vadd.f32 %v4350, %v4398
    %4400 = vmatmul.bf16.gmra.mxu0 %v4045
    %v4401 = vpop.f32.mrf.mxu0
    %v4402 = vadd.f32 %v4353, %v4401
    %v4403 = vpop.f32.mrf.mxu0
    %v4404 = vadd.f32 %v4355, %v4403
    %4405 = vdwg.mxu0
    %4406 = vmatpush.bf16.msra.mxu0 %v4267
    %4407 = vmatpush.bf16.msra.mxu0 %v4266
    %4408 = vmatpush.bf16.msra.mxu0 %v4265
    %4409 = vmatpush.bf16.msra.mxu0 %v4264
    %4410 = vmatpush.bf16.msra.mxu0 %v4263
    %4411 = vmatpush.bf16.msra.mxu0 %v4262
    %4412 = vmatpush.bf16.msra.mxu0 %v4261
    %4413 = vmatpush.bf16.msra.mxu0 %v4260
    %4414 = vmatmul.bf16.gmra.mxu0 %v4018
    %v4415 = vpop.f32.mrf.mxu0
    %v4416 = vadd.f32 %v4367, %v4415
    %v4417 = vpop.f32.mrf.mxu0
    %v4418 = vadd.f32 %v4369, %v4417
    %4419 = vmatmul.bf16.gmra.mxu0 %v4022
    %v4420 = vpop.f32.mrf.mxu0
    %v4421 = vadd.f32 %v4372, %v4420
    %v4422 = vpop.f32.mrf.mxu0
    %v4423 = vadd.f32 %v4374, %v4422
    %4424 = vmatmul.bf16.gmra.mxu0 %v4026
    %v4425 = vpop.f32.mrf.mxu0
    %v4426 = vadd.f32 %v4377, %v4425
    %v4427 = vpop.f32.mrf.mxu0
    %v4428 = vadd.f32 %v4379, %v4427
    %4429 = vmatmul.bf16.gmra.mxu0 %v4030
    %v4430 = vpop.f32.mrf.mxu0
    %v4431 = vadd.f32 %v4382, %v4430
    %v4432 = vpop.f32.mrf.mxu0
    %v4433 = vadd.f32 %v4384, %v4432
    %4434 = vmatmul.bf16.gmra.mxu0 %v4034
    %v4435 = vpop.f32.mrf.mxu0
    %v4436 = vadd.f32 %v4387, %v4435
    %v4437 = vpop.f32.mrf.mxu0
    %v4438 = vadd.f32 %v4389, %v4437
    %4439 = vmatmul.bf16.gmra.mxu0 %v4038
    %v4440 = vpop.f32.mrf.mxu0
    %v4441 = vadd.f32 %v4392, %v4440
    %v4442 = vpop.f32.mrf.mxu0
    %v4443 = vadd.f32 %v4394, %v4442
    %4444 = vmatmul.bf16.gmra.mxu0 %v4042
    %v4445 = vpop.f32.mrf.mxu0
    %v4446 = vadd.f32 %v4397, %v4445
    %v4447 = vpop.f32.mrf.mxu0
    %v4448 = vadd.f32 %v4399, %v4447
    %4449 = vmatmul.bf16.gmra.mxu0 %v4046
    %v4450 = vpop.f32.mrf.mxu0
    %v4451 = vadd.f32 %v4402, %v4450
    %v4452 = vpop.f32.mrf.mxu0
    %v4453 = vadd.f32 %v4404, %v4452
    %4454 = vdwg.mxu0
    %4455 = vmatpush.bf16.msra.mxu0 %v4275
    %4456 = vmatpush.bf16.msra.mxu0 %v4274
    %4457 = vmatpush.bf16.msra.mxu0 %v4273
    %4458 = vmatpush.bf16.msra.mxu0 %v4272
    %4459 = vmatpush.bf16.msra.mxu0 %v4271
    %4460 = vmatpush.bf16.msra.mxu0 %v4270
    %4461 = vmatpush.bf16.msra.mxu0 %v4269
    %4462 = vmatpush.bf16.msra.mxu0 %v4268
    %4463 = vmatmul.bf16.gmra.mxu0 %v4019
    %v4464 = vpop.f32.mrf.mxu0
    %v4465 = vadd.f32 %v4416, %v4464
    %v4466 = vpop.f32.mrf.mxu0
    %v4467 = vadd.f32 %v4418, %v4466
    %4468 = vmatmul.bf16.gmra.mxu0 %v4023
    %v4469 = vpop.f32.mrf.mxu0
    %v4470 = vadd.f32 %v4421, %v4469
    %v4471 = vpop.f32.mrf.mxu0
    %v4472 = vadd.f32 %v4423, %v4471
    %4473 = vmatmul.bf16.gmra.mxu0 %v4027
    %v4474 = vpop.f32.mrf.mxu0
    %v4475 = vadd.f32 %v4426, %v4474
    %v4476 = vpop.f32.mrf.mxu0
    %v4477 = vadd.f32 %v4428, %v4476
    %4478 = vmatmul.bf16.gmra.mxu0 %v4031
    %v4479 = vpop.f32.mrf.mxu0
    %v4480 = vadd.f32 %v4431, %v4479
    %v4481 = vpop.f32.mrf.mxu0
    %v4482 = vadd.f32 %v4433, %v4481
    %4483 = vmatmul.bf16.gmra.mxu0 %v4035
    %v4484 = vpop.f32.mrf.mxu0
    %v4485 = vadd.f32 %v4436, %v4484
    %v4486 = vpop.f32.mrf.mxu0
    %v4487 = vadd.f32 %v4438, %v4486
    %4488 = vmatmul.bf16.gmra.mxu0 %v4039
    %v4489 = vpop.f32.mrf.mxu0
    %v4490 = vadd.f32 %v4441, %v4489
    %v4491 = vpop.f32.mrf.mxu0
    %v4492 = vadd.f32 %v4443, %v4491
    %4493 = vmatmul.bf16.gmra.mxu0 %v4043
    %v4494 = vpop.f32.mrf.mxu0
    %v4495 = vadd.f32 %v4446, %v4494
    %v4496 = vpop.f32.mrf.mxu0
    %v4497 = vadd.f32 %v4448, %v4496
    %4498 = vmatmul.bf16.gmra.mxu0 %v4047
    %v4499 = vpop.f32.mrf.mxu0
    %v4500 = vadd.f32 %v4451, %v4499
    %v4501 = vpop.f32.mrf.mxu0
    %v4502 = vadd.f32 %v4453, %v4501
    %4503 = vdwg.mxu0
    %v4504 = vadd.f32 %v27, %v4465
    %v4505 = vadd.f32 %v28, %v4467
    %v4506 = vadd.f32 %v29, %v4470
    %v4507 = vadd.f32 %v30, %v4472
    %v4508 = vadd.f32 %v31, %v4475
    %v4509 = vadd.f32 %v32, %v4477
    %v4510 = vadd.f32 %v33, %v4480
    %v4511 = vadd.f32 %v34, %v4482
    %v4512 = vadd.f32 %v35, %v4485
    %v4513 = vadd.f32 %v36, %v4487
    %v4514 = vadd.f32 %v37, %v4490
    %v4515 = vadd.f32 %v38, %v4492
    %v4516 = vadd.f32 %v39, %v4495
    %v4517 = vadd.f32 %v40, %v4497
    %v4518 = vadd.f32 %v41, %v4500
    %v4519 = vadd.f32 %v42, %v4502
    %4520 = vst [vmem:[#allocation2] sm:$0xff] %v4504
    %4521 = vst [vmem:[#allocation2 + $0x8] sm:$0xff] %v4505
    %4522 = vst [vmem:[#allocation2 + $0x10] sm:$0xff] %v4506
    %4523 = vst [vmem:[#allocation2 + $0x18] sm:$0xff] %v4507
    %4524 = vst [vmem:[#allocation2 + $0x20] sm:$0xff] %v4508
    %4525 = vst [vmem:[#allocation2 + $0x28] sm:$0xff] %v4509
    %4526 = vst [vmem:[#allocation2 + $0x30] sm:$0xff] %v4510
    %4527 = vst [vmem:[#allocation2 + $0x38] sm:$0xff] %v4511
    %4528 = vst [vmem:[#allocation2 + $0x40] sm:$0xff] %v4512
    %4529 = vst [vmem:[#allocation2 + $0x48] sm:$0xff] %v4513
    %4530 = vst [vmem:[#allocation2 + $0x50] sm:$0xff] %v4514
    %4531 = vst [vmem:[#allocation2 + $0x58] sm:$0xff] %v4515
    %4532 = vst [vmem:[#allocation2 + $0x60] sm:$0xff] %v4516
    %4533 = vst [vmem:[#allocation2 + $0x68] sm:$0xff] %v4517
    %4534 = vst [vmem:[#allocation2 + $0x70] sm:$0xff] %v4518
    %4535 = vst [vmem:[#allocation2 + $0x78] sm:$0xff] %v4519
    // Predicated region
    $region30: #{spatio_temporal_block.5} parent=1 // pred_check
      _
    $region31: #{spatio_temporal_block.5} parent=1 // pred_check_branch
      %4537 = sbr.rel (0) target = $region33
    $region32: #{spatio_temporal_block.5} parent=1 // pred_region
      %4539 = vsyncadd [#allocation3], 0
      %s4540 = sshll.u32 [#allocation2], 4
      %s4541 = int_to_ptr.vmem [resolvable:$true] %s4540
      %s4542 = sshll.u32 %s7, 4
      %s4543 = int_to_ptr.hbm [resolvable:$true] %s4542
      %4548 = dma.vmem_to_hbm [thread:$0]  %s4541, 2048, %s4543, [#allocation3], 128, 128, 8
    $region33: #{spatio_temporal_block.5} parent=1 // pred_fallthru
      _
    // Predicated region
    $region34: #{spatio_temporal_block.5} parent=1 // pred_check
      _
    $region35: #{spatio_temporal_block.5} parent=1 // pred_check_branch
      %4550 = sbr.rel (0) target = $region37
    $region36: #{spatio_temporal_block.5} parent=1 // pred_region
      %4552 = dma.done [#allocation3], 2048
    $region37: #{spatio_temporal_block.5} parent=1 // pred_fallthru
      _
    %4553 = vsyncpa [#allocation3], 1

</llo_original>
